<compile_context>
chip_gen: v5e
topology: v5e:2x2
jax: 0.10.0
libtpu: 0.0.40
codegen_flags: <defaults>
</compile_context>

<pallas_src>
import math
import jax
import jax.numpy as jnp
from jax.experimental import pallas as pl
from jax.experimental.pallas import tpu as pltpu

N_ACTIONS = 6     # free symbol in the reference module; fixed here
FC_HIDDEN = 256   # heavy_model=False
C1_OUT, C2_OUT = 16, 32
PATCH_K = 256                   # conv1: 4*8*8  == conv2: 16*4*4
COLS = 16 * 128                 # 16 conv2 kernel offsets x (81 -> 128 padded) positions


# ---------------------------------------------------------------------------
# The fused kernel (one grid step == one image)
# ---------------------------------------------------------------------------
def _net_kernel(p1_ref, w1_ref, b1_ref, w2_ref, b2_ref,
                wh_ref, bh_ref, wav_ref, bav_ref,
                q_ref, p2_scr, xf_scr):
    # conv1, evaluated directly at the 16*128 columns conv2 will need:
    # (16,256) x (256,2048) bf16 -> f32
    a1 = jnp.dot(w1_ref[...], p1_ref[0], preferred_element_type=jnp.float32)
    a1 = jnp.maximum(a1 + b1_ref[...], 0.0)                       # (16, 2048)

    # conv2 im2col: column block `off` of a1 holds conv1 outputs at kernel
    # offset (kh2, kw2) = (off//4, off%4) over the padded 9x9 conv2 grid.
    # 16 lane-tile-aligned copies into a (256,128) scratch, rows = (off, cin).
    for off in range(16):
        p2_scr[off * 16:(off + 1) * 16, :] = a1[:, off * 128:(off + 1) * 128]

    # conv2: (32,256) x (256,128) -> (32,128)
    a2 = jnp.dot(w2_ref[...], p2_scr[...], preferred_element_type=jnp.float32)
    a2 = jnp.maximum(a2 + b2_ref[...], 0.0)

    # flatten to PyTorch (c, oh, ow) order, 81 -> 128 padded per channel
    # (the padded lanes meet zero rows of the head weight).
    for c in range(C2_OUT):
        xf_scr[:, c * 128:(c + 1) * 128] = a2[c:c + 1, :]
    xf = xf_scr[...].astype(jnp.bfloat16)                         # (1, 4096)

    # dueling head: fused [h_adv | h_v], then fused [adv | v]
    h = jnp.dot(xf, wh_ref[...], preferred_element_type=jnp.float32) + bh_ref[...]
    h = jnp.maximum(h, 0.0)                                       # (1, 512)
    av = jnp.dot(h, wav_ref[...], preferred_element_type=jnp.float32) + bav_ref[...]
    adv = av[:, :N_ACTIONS]
    v = av[:, N_ACTIONS:N_ACTIONS + 1]
    q_ref[0] = v + (adv - jnp.mean(adv, axis=1, keepdims=True))


def _fused_forward(p1, p):
    B = p1.shape[0]
    p1_bytes = PATCH_K * COLS * 2           # bf16 per-image patch block
    wh_bytes = C2_OUT * 128 * 2 * FC_HIDDEN * 2
    vmem_limit = 4 * p1_bytes + 4 * wh_bytes + (8 << 20)   # ~29 MiB << 64 MiB (v7x)
    return pl.pallas_call(
        _net_kernel,
        out_shape=jax.ShapeDtypeStruct((B, 1, N_ACTIONS), jnp.float32),
        grid=(B,),
        in_specs=[
            pl.BlockSpec((1, PATCH_K, COLS), lambda b: (b, 0, 0)),     # per-image patches
            pl.BlockSpec((C1_OUT, PATCH_K), lambda b: (0, 0)),         # conv1 W (bf16)
            pl.BlockSpec((C1_OUT, 1), lambda b: (0, 0)),               # conv1 b
            pl.BlockSpec((C2_OUT, PATCH_K), lambda b: (0, 0)),         # conv2 W
            pl.BlockSpec((C2_OUT, 1), lambda b: (0, 0)),               # conv2 b
            pl.BlockSpec((C2_OUT * 128, 2 * FC_HIDDEN), lambda b: (0, 0)),   # head W (bf16)
            pl.BlockSpec((1, 2 * FC_HIDDEN), lambda b: (0, 0)),        # head b
            pl.BlockSpec((2 * FC_HIDDEN, N_ACTIONS + 1), lambda b: (0, 0)),  # [adv|v] W
            pl.BlockSpec((1, N_ACTIONS + 1), lambda b: (0, 0)),        # [adv|v] b
        ],
        out_specs=pl.BlockSpec((1, 1, N_ACTIONS), lambda b: (b, 0, 0)),
        scratch_shapes=[
            pltpu.VMEM((PATCH_K, 128), jnp.float32),   # conv2 im2col buffer
            pltpu.VMEM((1, C2_OUT * 128), jnp.float32),  # flattened features
        ],
        compiler_params=pltpu.CompilerParams(
            dimension_semantics=("parallel",),
            vmem_limit_bytes=int(vmem_limit),
        ),
    )(p1, p["w1"], p["b1"], p["w2"], p["b2"],
      p["wh"], p["bh"], p["wav"], p["bav"])


# ---------------------------------------------------------------------------
# XLA glue: patch extraction via two space-to-depth decompositions (~20 HLOs)
# ---------------------------------------------------------------------------
def build_conv_patches(x):
    """(B, 4, 84, 84) f32 -> (B, 256, 2048) bf16 conv1-patch matrix.

    Rows  r = cin*64 + kh1*8 + kw1            (PyTorch Conv2d weight order).
    Cols  m = off*128 + j, off = kh2*4 + kw2  (conv2 kernel offset),
          j = oh2*9 + ow2 for j < 81          (conv2 output position), 0-padded.
    Column m holds the conv1 input patch whose conv1 output feeds conv2 at
    (kh2, kw2, oh2, ow2), so the kernel evaluates conv1 exactly at the columns
    conv2 consumes and every in-kernel slice stays 128-lane aligned.
    """
    B, C, H, W = x.shape
    assert (C, H, W) == (4, 84, 84), "Net's 9*9*32 flatten implies 84x84 inputs"
    # conv1 im2col via space-to-depth(4)  (k=8, s=4):
    y = x.reshape(B, C, 21, 4, 21, 4).transpose(0, 1, 3, 5, 2, 4)   # (B,c,rh,rw,21,21)
    rows = [[y[..., dh:dh + 20, dw:dw + 20] for dw in (0, 1)] for dh in (0, 1)]
    p = jnp.stack([jnp.stack(r, axis=0) for r in rows], axis=0)     # (dh,dw,B,c,rh,rw,20,20)
    p = p.transpose(2, 3, 0, 4, 1, 5, 6, 7)                         # (B,c,dh,rh,dw,rw,20,20)
    p1_grid = p.reshape(B, PATCH_K, 20, 20)        # rows=(c,kh1,kw1); 20x20 conv1 grid
    # enumerate the conv1-output positions conv2 needs: s2d(2)  (k=4, s=2):
    g = p1_grid.reshape(B, PATCH_K, 10, 2, 10, 2).transpose(0, 1, 3, 5, 2, 4)
    cols = [[g[..., eh:eh + 9, ew:ew + 9] for ew in (0, 1)] for eh in (0, 1)]
    q = jnp.stack([jnp.stack(c_, axis=0) for c_ in cols], axis=0)   # (eh,ew,B,256,sh,sw,9,9)
    q = q.transpose(2, 3, 0, 4, 1, 5, 6, 7)                         # (B,256,eh,sh,ew,sw,9,9)
    q = q.reshape(B, PATCH_K, 16, 81)              # cols = (kh2*4+kw2, oh2*9+ow2)
    q = jnp.pad(q, ((0, 0), (0, 0), (0, 0), (0, 128 - 81)))
    return q.reshape(B, PATCH_K, COLS).astype(jnp.bfloat16)


# ---------------------------------------------------------------------------
# Parameter init (mirrors _init_weights) + one-time kernel-layout packing
# ---------------------------------------------------------------------------
def _scaled_normal(key, shape, fan_in):
    return math.sqrt(2.0 / fan_in) * jax.random.normal(key, shape, dtype=jnp.float32)


def _default_bias(key, n, fan_in):
    bound = 1.0 / math.sqrt(fan_in)
    return jax.random.uniform(key, (n,), jnp.float32, -bound, bound)


def init_raw_params(key):
    flat = 9 * 9 * C2_OUT                    # 2592
    ks = jax.random.split(key, 12)
    return {
        "w_c1": _scaled_normal(ks[0], (C1_OUT, 4, 8, 8), 4 * 8 * 8),
        "b_c1": _default_bias(ks[1], C1_OUT, 4 * 8 * 8),
        "w_c2": _scaled_normal(ks[2], (C2_OUT, C1_OUT, 4, 4), C1_OUT * 4 * 4),
        "b_c2": _default_bias(ks[3], C2_OUT, C1_OUT * 4 * 4),
        "w_hadv": _scaled_normal(ks[4], (FC_HIDDEN, flat), flat),
        "b_hadv": _default_bias(ks[5], FC_HIDDEN, flat),
        "w_hv": _scaled_normal(ks[6], (FC_HIDDEN, flat), flat),
        "b_hv": _default_bias(ks[7], FC_HIDDEN, flat),
        "w_adv": _scaled_normal(ks[8], (N_ACTIONS, FC_HIDDEN), FC_HIDDEN),
        "b_adv": _default_bias(ks[9], N_ACTIONS, FC_HIDDEN),
        "w_v": _scaled_normal(ks[10], (1, FC_HIDDEN), FC_HIDDEN),
        "b_v": _default_bias(ks[11], 1, FC_HIDDEN),
    }


def pack_params(raw):
    # conv2 weight columns reordered to (kh2, kw2, cin) to match p2 scratch rows
    w2 = jnp.transpose(raw["w_c2"], (0, 2, 3, 1)).reshape(C2_OUT, PATCH_K)
    # head weight: [h_adv.T | h_v.T], rows padded 81 -> 128 per channel (zeros)
    wh = jnp.concatenate([raw["w_hadv"].T, raw["w_hv"].T], axis=1)       # (2592, 512)
    wh = jnp.pad(wh.reshape(C2_OUT, 81, 2 * FC_HIDDEN), ((0, 0), (0, 128 - 81), (0, 0)))
    wh = wh.reshape(C2_OUT * 128, 2 * FC_HIDDEN)
    # fused [adv | v] block-diagonal weight
    wav = jnp.zeros((2 * FC_HIDDEN, N_ACTIONS + 1), jnp.float32)
    wav = wav.at[:FC_HIDDEN, :N_ACTIONS].set(raw["w_adv"].T)
    wav = wav.at[FC_HIDDEN:, N_ACTIONS:].set(raw["w_v"].T)
    return {
        "w1": raw["w_c1"].reshape(C1_OUT, PATCH_K).astype(jnp.bfloat16),
        "b1": raw["b_c1"].reshape(C1_OUT, 1),
        "w2": w2,
        "b2": raw["b_c2"].reshape(C2_OUT, 1),
        "wh": wh.astype(jnp.bfloat16),
        "bh": jnp.concatenate([raw["b_hadv"], raw["b_hv"]]).reshape(1, -1),
        "wav": wav,
        "bav": jnp.concatenate([raw["b_adv"], raw["b_v"]]).reshape(1, -1),
    }


# ---------------------------------------------------------------------------
# Forward pass + pure-JAX reference (for a loose self-check)
# ---------------------------------------------------------------------------
@jax.jit
def net_forward(params, x):
    """x: (B, 4, 84, 84) f32 NCHW -> q: (B, N_ACTIONS) f32."""
    B = x.shape[0]
    p1 = build_conv_patches(x)
    return _fused_forward(p1, params).reshape(B, N_ACTIONS)


def reference_forward(raw, x):
    dn = ("NCHW", "OIHW", "NCHW")
    a = jax.lax.conv_general_dilated(x, raw["w_c1"], (4, 4), "VALID", dimension_numbers=dn)
    a = jax.nn.relu(a + raw["b_c1"][None, :, None, None])
    a = jax.lax.conv_general_dilated(a, raw["w_c2"], (2, 2), "VALID", dimension_numbers=dn)
    a = jax.nn.relu(a + raw["b_c2"][None, :, None, None])
    xf = a.reshape(a.shape[0], -1)
    h_adv = jax.nn.relu(xf @ raw["w_hadv"].T + raw["b_hadv"])
    h_v = jax.nn.relu(xf @ raw["w_hv"].T + raw["b_hv"])
    adv = h_adv @ raw["w_adv"].T + raw["b_adv"]
    v = h_v @ raw["w_v"].T + raw["b_v"]
    return v + (adv - jnp.mean(adv, axis=1, keepdims=True))


if __name__ == "__main__":
    key = jax.random.PRNGKey(0)
    pkey, xkey = jax.random.split(key)
    raw = init_raw_params(pkey)
    params = pack_params(raw)
    # Spatial size is fixed at 84x84 by the 9*9*32 flatten assumed in the module.
    x = jax.random.uniform(xkey, (2, 4, 84, 84), dtype=jnp.float32)
    q = net_forward(params, x)
    jax.block_until_ready(q)
    assert q.shape == (2, N_ACTIONS) and q.dtype == jnp.float32
    # loose tolerance: head / conv1 weights are bf16 in the kernel
    err = float(jnp.max(jnp.abs(q - reference_forward(raw, x))))
    assert err < 1e-1, f"max abs error vs f32 reference: {err}"
    print("KERNEL_OK")
</pallas_src>

<mosaic_0001>
module attributes {stable_mosaic.version = 11 : i64} {
  func.func @_net_kernel(%arg0: i32, %arg1: memref<1x256x2048xbf16, #tpu.memory_space<vmem>>, %arg2: memref<16x256xbf16, #tpu.memory_space<vmem>>, %arg3: memref<16x1xf32, #tpu.memory_space<vmem>>, %arg4: memref<32x256xf32, #tpu.memory_space<vmem>>, %arg5: memref<32x1xf32, #tpu.memory_space<vmem>>, %arg6: memref<4096x512xbf16, #tpu.memory_space<vmem>>, %arg7: memref<1x512xf32, #tpu.memory_space<vmem>>, %arg8: memref<512x7xf32, #tpu.memory_space<vmem>>, %arg9: memref<1x7xf32, #tpu.memory_space<vmem>>, %arg10: memref<1x1x6xf32, #tpu.memory_space<vmem>>, %arg11: memref<256x128xf32, #tpu.memory_space<vmem>>, %arg12: memref<1x4096xf32, #tpu.memory_space<vmem>>) attributes {dimension_semantics = [#tpu.dimension_semantics<parallel>], iteration_bounds = array<i64: 2>, scalar_prefetch = 0 : i64, scratch_operands = 2 : i64, tpu.core_type = #tpu.core_type<tc>, window_params = [{transform_indices = @transform_0, window_bounds = array<i64: 1, 256, 2048>}, {pipeline_mode = #tpu.pipeline_mode<synchronous>, transform_indices = @transform_1, window_bounds = array<i64: 16, 256>}, {pipeline_mode = #tpu.pipeline_mode<synchronous>, transform_indices = @transform_2, window_bounds = array<i64: 16, 1>}, {pipeline_mode = #tpu.pipeline_mode<synchronous>, transform_indices = @transform_3, window_bounds = array<i64: 32, 256>}, {pipeline_mode = #tpu.pipeline_mode<synchronous>, transform_indices = @transform_4, window_bounds = array<i64: 32, 1>}, {pipeline_mode = #tpu.pipeline_mode<synchronous>, transform_indices = @transform_5, window_bounds = array<i64: 4096, 512>}, {pipeline_mode = #tpu.pipeline_mode<synchronous>, transform_indices = @transform_6, window_bounds = array<i64: 1, 512>}, {pipeline_mode = #tpu.pipeline_mode<synchronous>, transform_indices = @transform_7, window_bounds = array<i64: 512, 7>}, {pipeline_mode = #tpu.pipeline_mode<synchronous>, transform_indices = @transform_8, window_bounds = array<i64: 1, 7>}, {transform_indices = @transform_9, window_bounds = array<i64: 1, 1, 6>}]} {
    %c0 = arith.constant 0 : index
    %c0_0 = arith.constant 0 : index
    %0 = vector.load %arg2[%c0, %c0_0] : memref<16x256xbf16, #tpu.memory_space<vmem>>, vector<16x256xbf16>
    %c0_1 = arith.constant 0 : index
    %c0_2 = arith.constant 0 : index
    %c0_3 = arith.constant 0 : index
    %1 = vector.load %arg1[%c0_1, %c0_2, %c0_3] : memref<1x256x2048xbf16, #tpu.memory_space<vmem>>, vector<1x256x2048xbf16>
    %2 = vector.shape_cast %1 : vector<1x256x2048xbf16> to vector<256x2048xbf16>
    %cst = arith.constant dense<0.000000e+00> : vector<16x2048xf32>
    %3 = tpu.matmul %0, %2, %cst {dimension_numbers = #tpu.dot_dimension_numbers<[1], [0], [0], [1], [0, 0, 1, 1], [], []>} : vector<16x256xbf16>, vector<256x2048xbf16>, vector<16x2048xf32> -> vector<16x2048xf32>
    %c0_4 = arith.constant 0 : index
    %c0_5 = arith.constant 0 : index
    %4 = vector.load %arg3[%c0_4, %c0_5] : memref<16x1xf32, #tpu.memory_space<vmem>>, vector<16x1xf32>
    %5 = vector.broadcast %4 : vector<16x1xf32> to vector<16x2048xf32>
    %6 = arith.addf %3, %5 : vector<16x2048xf32>
    %cst_6 = arith.constant 0.000000e+00 : f32
    %7 = vector.broadcast %cst_6 : f32 to vector<16x2048xf32>
    %8 = arith.maximumf %6, %7 : vector<16x2048xf32>
    %9 = vector.extract_strided_slice %8 {offsets = [0, 0], sizes = [16, 128], strides = [1, 1]} : vector<16x2048xf32> to vector<16x128xf32>
    %c0_7 = arith.constant 0 : index
    %c0_8 = arith.constant 0 : index
    %10 = vector.load %arg11[%c0_7, %c0_8] : memref<256x128xf32, #tpu.memory_space<vmem>>, vector<16x128xf32>
    tpu.vector_store %arg11[%c0_7, %c0_8], %9 {strides = array<i32>} : memref<256x128xf32, #tpu.memory_space<vmem>>, vector<16x128xf32>,
    %11 = vector.extract_strided_slice %8 {offsets = [0, 128], sizes = [16, 128], strides = [1, 1]} : vector<16x2048xf32> to vector<16x128xf32>
    %c16 = arith.constant 16 : index
    %c0_9 = arith.constant 0 : index
    %12 = vector.load %arg11[%c16, %c0_9] : memref<256x128xf32, #tpu.memory_space<vmem>>, vector<16x128xf32>
    tpu.vector_store %arg11[%c16, %c0_9], %11 {strides = array<i32>} : memref<256x128xf32, #tpu.memory_space<vmem>>, vector<16x128xf32>,
    %13 = vector.extract_strided_slice %8 {offsets = [0, 256], sizes = [16, 128], strides = [1, 1]} : vector<16x2048xf32> to vector<16x128xf32>
    %c32 = arith.constant 32 : index
    %c0_10 = arith.constant 0 : index
    %14 = vector.load %arg11[%c32, %c0_10] : memref<256x128xf32, #tpu.memory_space<vmem>>, vector<16x128xf32>
    tpu.vector_store %arg11[%c32, %c0_10], %13 {strides = array<i32>} : memref<256x128xf32, #tpu.memory_space<vmem>>, vector<16x128xf32>,
    %15 = vector.extract_strided_slice %8 {offsets = [0, 384], sizes = [16, 128], strides = [1, 1]} : vector<16x2048xf32> to vector<16x128xf32>
    %c48 = arith.constant 48 : index
    %c0_11 = arith.constant 0 : index
    %16 = vector.load %arg11[%c48, %c0_11] : memref<256x128xf32, #tpu.memory_space<vmem>>, vector<16x128xf32>
    tpu.vector_store %arg11[%c48, %c0_11], %15 {strides = array<i32>} : memref<256x128xf32, #tpu.memory_space<vmem>>, vector<16x128xf32>,
    %17 = vector.extract_strided_slice %8 {offsets = [0, 512], sizes = [16, 128], strides = [1, 1]} : vector<16x2048xf32> to vector<16x128xf32>
    %c64 = arith.constant 64 : index
    %c0_12 = arith.constant 0 : index
    %18 = vector.load %arg11[%c64, %c0_12] : memref<256x128xf32, #tpu.memory_space<vmem>>, vector<16x128xf32>
    tpu.vector_store %arg11[%c64, %c0_12], %17 {strides = array<i32>} : memref<256x128xf32, #tpu.memory_space<vmem>>, vector<16x128xf32>,
    %19 = vector.extract_strided_slice %8 {offsets = [0, 640], sizes = [16, 128], strides = [1, 1]} : vector<16x2048xf32> to vector<16x128xf32>
    %c80 = arith.constant 80 : index
    %c0_13 = arith.constant 0 : index
    %20 = vector.load %arg11[%c80, %c0_13] : memref<256x128xf32, #tpu.memory_space<vmem>>, vector<16x128xf32>
    tpu.vector_store %arg11[%c80, %c0_13], %19 {strides = array<i32>} : memref<256x128xf32, #tpu.memory_space<vmem>>, vector<16x128xf32>,
    %21 = vector.extract_strided_slice %8 {offsets = [0, 768], sizes = [16, 128], strides = [1, 1]} : vector<16x2048xf32> to vector<16x128xf32>
    %c96 = arith.constant 96 : index
    %c0_14 = arith.constant 0 : index
    %22 = vector.load %arg11[%c96, %c0_14] : memref<256x128xf32, #tpu.memory_space<vmem>>, vector<16x128xf32>
    tpu.vector_store %arg11[%c96, %c0_14], %21 {strides = array<i32>} : memref<256x128xf32, #tpu.memory_space<vmem>>, vector<16x128xf32>,
    %23 = vector.extract_strided_slice %8 {offsets = [0, 896], sizes = [16, 128], strides = [1, 1]} : vector<16x2048xf32> to vector<16x128xf32>
    %c112 = arith.constant 112 : index
    %c0_15 = arith.constant 0 : index
    %24 = vector.load %arg11[%c112, %c0_15] : memref<256x128xf32, #tpu.memory_space<vmem>>, vector<16x128xf32>
    tpu.vector_store %arg11[%c112, %c0_15], %23 {strides = array<i32>} : memref<256x128xf32, #tpu.memory_space<vmem>>, vector<16x128xf32>,
    %25 = vector.extract_strided_slice %8 {offsets = [0, 1024], sizes = [16, 128], strides = [1, 1]} : vector<16x2048xf32> to vector<16x128xf32>
    %c128 = arith.constant 128 : index
    %c0_16 = arith.constant 0 : index
    %26 = vector.load %arg11[%c128, %c0_16] : memref<256x128xf32, #tpu.memory_space<vmem>>, vector<16x128xf32>
    tpu.vector_store %arg11[%c128, %c0_16], %25 {strides = array<i32>} : memref<256x128xf32, #tpu.memory_space<vmem>>, vector<16x128xf32>,
    %27 = vector.extract_strided_slice %8 {offsets = [0, 1152], sizes = [16, 128], strides = [1, 1]} : vector<16x2048xf32> to vector<16x128xf32>
    %c144 = arith.constant 144 : index
    %c0_17 = arith.constant 0 : index
    %28 = vector.load %arg11[%c144, %c0_17] : memref<256x128xf32, #tpu.memory_space<vmem>>, vector<16x128xf32>
    tpu.vector_store %arg11[%c144, %c0_17], %27 {strides = array<i32>} : memref<256x128xf32, #tpu.memory_space<vmem>>, vector<16x128xf32>,
    %29 = vector.extract_strided_slice %8 {offsets = [0, 1280], sizes = [16, 128], strides = [1, 1]} : vector<16x2048xf32> to vector<16x128xf32>
    %c160 = arith.constant 160 : index
    %c0_18 = arith.constant 0 : index
    %30 = vector.load %arg11[%c160, %c0_18] : memref<256x128xf32, #tpu.memory_space<vmem>>, vector<16x128xf32>
    tpu.vector_store %arg11[%c160, %c0_18], %29 {strides = array<i32>} : memref<256x128xf32, #tpu.memory_space<vmem>>, vector<16x128xf32>,
    %31 = vector.extract_strided_slice %8 {offsets = [0, 1408], sizes = [16, 128], strides = [1, 1]} : vector<16x2048xf32> to vector<16x128xf32>
    %c176 = arith.constant 176 : index
    %c0_19 = arith.constant 0 : index
    %32 = vector.load %arg11[%c176, %c0_19] : memref<256x128xf32, #tpu.memory_space<vmem>>, vector<16x128xf32>
    tpu.vector_store %arg11[%c176, %c0_19], %31 {strides = array<i32>} : memref<256x128xf32, #tpu.memory_space<vmem>>, vector<16x128xf32>,
    %33 = vector.extract_strided_slice %8 {offsets = [0, 1536], sizes = [16, 128], strides = [1, 1]} : vector<16x2048xf32> to vector<16x128xf32>
    %c192 = arith.constant 192 : index
    %c0_20 = arith.constant 0 : index
    %34 = vector.load %arg11[%c192, %c0_20] : memref<256x128xf32, #tpu.memory_space<vmem>>, vector<16x128xf32>
    tpu.vector_store %arg11[%c192, %c0_20], %33 {strides = array<i32>} : memref<256x128xf32, #tpu.memory_space<vmem>>, vector<16x128xf32>,
    %35 = vector.extract_strided_slice %8 {offsets = [0, 1664], sizes = [16, 128], strides = [1, 1]} : vector<16x2048xf32> to vector<16x128xf32>
    %c208 = arith.constant 208 : index
    %c0_21 = arith.constant 0 : index
    %36 = vector.load %arg11[%c208, %c0_21] : memref<256x128xf32, #tpu.memory_space<vmem>>, vector<16x128xf32>
    tpu.vector_store %arg11[%c208, %c0_21], %35 {strides = array<i32>} : memref<256x128xf32, #tpu.memory_space<vmem>>, vector<16x128xf32>,
    %37 = vector.extract_strided_slice %8 {offsets = [0, 1792], sizes = [16, 128], strides = [1, 1]} : vector<16x2048xf32> to vector<16x128xf32>
    %c224 = arith.constant 224 : index
    %c0_22 = arith.constant 0 : index
    %38 = vector.load %arg11[%c224, %c0_22] : memref<256x128xf32, #tpu.memory_space<vmem>>, vector<16x128xf32>
    tpu.vector_store %arg11[%c224, %c0_22], %37 {strides = array<i32>} : memref<256x128xf32, #tpu.memory_space<vmem>>, vector<16x128xf32>,
    %39 = vector.extract_strided_slice %8 {offsets = [0, 1920], sizes = [16, 128], strides = [1, 1]} : vector<16x2048xf32> to vector<16x128xf32>
    %c240 = arith.constant 240 : index
    %c0_23 = arith.constant 0 : index
    %40 = vector.load %arg11[%c240, %c0_23] : memref<256x128xf32, #tpu.memory_space<vmem>>, vector<16x128xf32>
    tpu.vector_store %arg11[%c240, %c0_23], %39 {strides = array<i32>} : memref<256x128xf32, #tpu.memory_space<vmem>>, vector<16x128xf32>,
    %c0_24 = arith.constant 0 : index
    %c0_25 = arith.constant 0 : index
    %41 = vector.load %arg4[%c0_24, %c0_25] : memref<32x256xf32, #tpu.memory_space<vmem>>, vector<32x256xf32>
    %c0_26 = arith.constant 0 : index
    %c0_27 = arith.constant 0 : index
    %42 = vector.load %arg11[%c0_26, %c0_27] : memref<256x128xf32, #tpu.memory_space<vmem>>, vector<256x128xf32>
    %cst_28 = arith.constant dense<0.000000e+00> : vector<32x128xf32>
    %43 = tpu.matmul %41, %42, %cst_28 {dimension_numbers = #tpu.dot_dimension_numbers<[1], [0], [0], [1], [0, 0, 1, 1], [], []>} : vector<32x256xf32>, vector<256x128xf32>, vector<32x128xf32> -> vector<32x128xf32>
    %c0_29 = arith.constant 0 : index
    %c0_30 = arith.constant 0 : index
    %44 = vector.load %arg5[%c0_29, %c0_30] : memref<32x1xf32, #tpu.memory_space<vmem>>, vector<32x1xf32>
    %45 = vector.broadcast %44 : vector<32x1xf32> to vector<32x128xf32>
    %46 = arith.addf %43, %45 : vector<32x128xf32>
    %cst_31 = arith.constant 0.000000e+00 : f32
    %47 = vector.broadcast %cst_31 : f32 to vector<32x128xf32>
    %48 = arith.maximumf %46, %47 : vector<32x128xf32>
    %49 = vector.extract_strided_slice %48 {offsets = [0, 0], sizes = [1, 128], strides = [1, 1]} : vector<32x128xf32> to vector<1x128xf32>
    %c0_32 = arith.constant 0 : index
    %c0_33 = arith.constant 0 : index
    %50 = vector.load %arg12[%c0_32, %c0_33] : memref<1x4096xf32, #tpu.memory_space<vmem>>, vector<1x128xf32>
    tpu.vector_store %arg12[%c0_32, %c0_33], %49 {strides = array<i32>} : memref<1x4096xf32, #tpu.memory_space<vmem>>, vector<1x128xf32>,
    %51 = vector.extract_strided_slice %48 {offsets = [1, 0], sizes = [1, 128], strides = [1, 1]} : vector<32x128xf32> to vector<1x128xf32>
    %c0_34 = arith.constant 0 : index
    %c128_35 = arith.constant 128 : index
    %52 = vector.load %arg12[%c0_34, %c128_35] : memref<1x4096xf32, #tpu.memory_space<vmem>>, vector<1x128xf32>
    tpu.vector_store %arg12[%c0_34, %c128_35], %51 {strides = array<i32>} : memref<1x4096xf32, #tpu.memory_space<vmem>>, vector<1x128xf32>,
    %53 = vector.extract_strided_slice %48 {offsets = [2, 0], sizes = [1, 128], strides = [1, 1]} : vector<32x128xf32> to vector<1x128xf32>
    %c0_36 = arith.constant 0 : index
    %c256 = arith.constant 256 : index
    %54 = vector.load %arg12[%c0_36, %c256] : memref<1x4096xf32, #tpu.memory_space<vmem>>, vector<1x128xf32>
    tpu.vector_store %arg12[%c0_36, %c256], %53 {strides = array<i32>} : memref<1x4096xf32, #tpu.memory_space<vmem>>, vector<1x128xf32>,
    %55 = vector.extract_strided_slice %48 {offsets = [3, 0], sizes = [1, 128], strides = [1, 1]} : vector<32x128xf32> to vector<1x128xf32>
    %c0_37 = arith.constant 0 : index
    %c384 = arith.constant 384 : index
    %56 = vector.load %arg12[%c0_37, %c384] : memref<1x4096xf32, #tpu.memory_space<vmem>>, vector<1x128xf32>
    tpu.vector_store %arg12[%c0_37, %c384], %55 {strides = array<i32>} : memref<1x4096xf32, #tpu.memory_space<vmem>>, vector<1x128xf32>,
    %57 = vector.extract_strided_slice %48 {offsets = [4, 0], sizes = [1, 128], strides = [1, 1]} : vector<32x128xf32> to vector<1x128xf32>
    %c0_38 = arith.constant 0 : index
    %c512 = arith.constant 512 : index
    %58 = vector.load %arg12[%c0_38, %c512] : memref<1x4096xf32, #tpu.memory_space<vmem>>, vector<1x128xf32>
    tpu.vector_store %arg12[%c0_38, %c512], %57 {strides = array<i32>} : memref<1x4096xf32, #tpu.memory_space<vmem>>, vector<1x128xf32>,
    %59 = vector.extract_strided_slice %48 {offsets = [5, 0], sizes = [1, 128], strides = [1, 1]} : vector<32x128xf32> to vector<1x128xf32>
    %c0_39 = arith.constant 0 : index
    %c640 = arith.constant 640 : index
    %60 = vector.load %arg12[%c0_39, %c640] : memref<1x4096xf32, #tpu.memory_space<vmem>>, vector<1x128xf32>
    tpu.vector_store %arg12[%c0_39, %c640], %59 {strides = array<i32>} : memref<1x4096xf32, #tpu.memory_space<vmem>>, vector<1x128xf32>,
    %61 = vector.extract_strided_slice %48 {offsets = [6, 0], sizes = [1, 128], strides = [1, 1]} : vector<32x128xf32> to vector<1x128xf32>
    %c0_40 = arith.constant 0 : index
    %c768 = arith.constant 768 : index
    %62 = vector.load %arg12[%c0_40, %c768] : memref<1x4096xf32, #tpu.memory_space<vmem>>, vector<1x128xf32>
    tpu.vector_store %arg12[%c0_40, %c768], %61 {strides = array<i32>} : memref<1x4096xf32, #tpu.memory_space<vmem>>, vector<1x128xf32>,
    %63 = vector.extract_strided_slice %48 {offsets = [7, 0], sizes = [1, 128], strides = [1, 1]} : vector<32x128xf32> to vector<1x128xf32>
    %c0_41 = arith.constant 0 : index
    %c896 = arith.constant 896 : index
    %64 = vector.load %arg12[%c0_41, %c896] : memref<1x4096xf32, #tpu.memory_space<vmem>>, vector<1x128xf32>
    tpu.vector_store %arg12[%c0_41, %c896], %63 {strides = array<i32>} : memref<1x4096xf32, #tpu.memory_space<vmem>>, vector<1x128xf32>,
    %65 = vector.extract_strided_slice %48 {offsets = [8, 0], sizes = [1, 128], strides = [1, 1]} : vector<32x128xf32> to vector<1x128xf32>
    %c0_42 = arith.constant 0 : index
    %c1024 = arith.constant 1024 : index
    %66 = vector.load %arg12[%c0_42, %c1024] : memref<1x4096xf32, #tpu.memory_space<vmem>>, vector<1x128xf32>
    tpu.vector_store %arg12[%c0_42, %c1024], %65 {strides = array<i32>} : memref<1x4096xf32, #tpu.memory_space<vmem>>, vector<1x128xf32>,
    %67 = vector.extract_strided_slice %48 {offsets = [9, 0], sizes = [1, 128], strides = [1, 1]} : vector<32x128xf32> to vector<1x128xf32>
    %c0_43 = arith.constant 0 : index
    %c1152 = arith.constant 1152 : index
    %68 = vector.load %arg12[%c0_43, %c1152] : memref<1x4096xf32, #tpu.memory_space<vmem>>, vector<1x128xf32>
    tpu.vector_store %arg12[%c0_43, %c1152], %67 {strides = array<i32>} : memref<1x4096xf32, #tpu.memory_space<vmem>>, vector<1x128xf32>,
    %69 = vector.extract_strided_slice %48 {offsets = [10, 0], sizes = [1, 128], strides = [1, 1]} : vector<32x128xf32> to vector<1x128xf32>
    %c0_44 = arith.constant 0 : index
    %c1280 = arith.constant 1280 : index
    %70 = vector.load %arg12[%c0_44, %c1280] : memref<1x4096xf32, #tpu.memory_space<vmem>>, vector<1x128xf32>
    tpu.vector_store %arg12[%c0_44, %c1280], %69 {strides = array<i32>} : memref<1x4096xf32, #tpu.memory_space<vmem>>, vector<1x128xf32>,
    %71 = vector.extract_strided_slice %48 {offsets = [11, 0], sizes = [1, 128], strides = [1, 1]} : vector<32x128xf32> to vector<1x128xf32>
    %c0_45 = arith.constant 0 : index
    %c1408 = arith.constant 1408 : index
    %72 = vector.load %arg12[%c0_45, %c1408] : memref<1x4096xf32, #tpu.memory_space<vmem>>, vector<1x128xf32>
    tpu.vector_store %arg12[%c0_45, %c1408], %71 {strides = array<i32>} : memref<1x4096xf32, #tpu.memory_space<vmem>>, vector<1x128xf32>,
    %73 = vector.extract_strided_slice %48 {offsets = [12, 0], sizes = [1, 128], strides = [1, 1]} : vector<32x128xf32> to vector<1x128xf32>
    %c0_46 = arith.constant 0 : index
    %c1536 = arith.constant 1536 : index
    %74 = vector.load %arg12[%c0_46, %c1536] : memref<1x4096xf32, #tpu.memory_space<vmem>>, vector<1x128xf32>
    tpu.vector_store %arg12[%c0_46, %c1536], %73 {strides = array<i32>} : memref<1x4096xf32, #tpu.memory_space<vmem>>, vector<1x128xf32>,
    %75 = vector.extract_strided_slice %48 {offsets = [13, 0], sizes = [1, 128], strides = [1, 1]} : vector<32x128xf32> to vector<1x128xf32>
    %c0_47 = arith.constant 0 : index
    %c1664 = arith.constant 1664 : index
    %76 = vector.load %arg12[%c0_47, %c1664] : memref<1x4096xf32, #tpu.memory_space<vmem>>, vector<1x128xf32>
    tpu.vector_store %arg12[%c0_47, %c1664], %75 {strides = array<i32>} : memref<1x4096xf32, #tpu.memory_space<vmem>>, vector<1x128xf32>,
    %77 = vector.extract_strided_slice %48 {offsets = [14, 0], sizes = [1, 128], strides = [1, 1]} : vector<32x128xf32> to vector<1x128xf32>
    %c0_48 = arith.constant 0 : index
    %c1792 = arith.constant 1792 : index
    %78 = vector.load %arg12[%c0_48, %c1792] : memref<1x4096xf32, #tpu.memory_space<vmem>>, vector<1x128xf32>
    tpu.vector_store %arg12[%c0_48, %c1792], %77 {strides = array<i32>} : memref<1x4096xf32, #tpu.memory_space<vmem>>, vector<1x128xf32>,
    %79 = vector.extract_strided_slice %48 {offsets = [15, 0], sizes = [1, 128], strides = [1, 1]} : vector<32x128xf32> to vector<1x128xf32>
    %c0_49 = arith.constant 0 : index
    %c1920 = arith.constant 1920 : index
    %80 = vector.load %arg12[%c0_49, %c1920] : memref<1x4096xf32, #tpu.memory_space<vmem>>, vector<1x128xf32>
    tpu.vector_store %arg12[%c0_49, %c1920], %79 {strides = array<i32>} : memref<1x4096xf32, #tpu.memory_space<vmem>>, vector<1x128xf32>,
    %81 = vector.extract_strided_slice %48 {offsets = [16, 0], sizes = [1, 128], strides = [1, 1]} : vector<32x128xf32> to vector<1x128xf32>
    %c0_50 = arith.constant 0 : index
    %c2048 = arith.constant 2048 : index
    %82 = vector.load %arg12[%c0_50, %c2048] : memref<1x4096xf32, #tpu.memory_space<vmem>>, vector<1x128xf32>
    tpu.vector_store %arg12[%c0_50, %c2048], %81 {strides = array<i32>} : memref<1x4096xf32, #tpu.memory_space<vmem>>, vector<1x128xf32>,
    %83 = vector.extract_strided_slice %48 {offsets = [17, 0], sizes = [1, 128], strides = [1, 1]} : vector<32x128xf32> to vector<1x128xf32>
    %c0_51 = arith.constant 0 : index
    %c2176 = arith.constant 2176 : index
    %84 = vector.load %arg12[%c0_51, %c2176] : memref<1x4096xf32, #tpu.memory_space<vmem>>, vector<1x128xf32>
    tpu.vector_store %arg12[%c0_51, %c2176], %83 {strides = array<i32>} : memref<1x4096xf32, #tpu.memory_space<vmem>>, vector<1x128xf32>,
    %85 = vector.extract_strided_slice %48 {offsets = [18, 0], sizes = [1, 128], strides = [1, 1]} : vector<32x128xf32> to vector<1x128xf32>
    %c0_52 = arith.constant 0 : index
    %c2304 = arith.constant 2304 : index
    %86 = vector.load %arg12[%c0_52, %c2304] : memref<1x4096xf32, #tpu.memory_space<vmem>>, vector<1x128xf32>
    tpu.vector_store %arg12[%c0_52, %c2304], %85 {strides = array<i32>} : memref<1x4096xf32, #tpu.memory_space<vmem>>, vector<1x128xf32>,
    %87 = vector.extract_strided_slice %48 {offsets = [19, 0], sizes = [1, 128], strides = [1, 1]} : vector<32x128xf32> to vector<1x128xf32>
    %c0_53 = arith.constant 0 : index
    %c2432 = arith.constant 2432 : index
    %88 = vector.load %arg12[%c0_53, %c2432] : memref<1x4096xf32, #tpu.memory_space<vmem>>, vector<1x128xf32>
    tpu.vector_store %arg12[%c0_53, %c2432], %87 {strides = array<i32>} : memref<1x4096xf32, #tpu.memory_space<vmem>>, vector<1x128xf32>,
    %89 = vector.extract_strided_slice %48 {offsets = [20, 0], sizes = [1, 128], strides = [1, 1]} : vector<32x128xf32> to vector<1x128xf32>
    %c0_54 = arith.constant 0 : index
    %c2560 = arith.constant 2560 : index
    %90 = vector.load %arg12[%c0_54, %c2560] : memref<1x4096xf32, #tpu.memory_space<vmem>>, vector<1x128xf32>
    tpu.vector_store %arg12[%c0_54, %c2560], %89 {strides = array<i32>} : memref<1x4096xf32, #tpu.memory_space<vmem>>, vector<1x128xf32>,
    %91 = vector.extract_strided_slice %48 {offsets = [21, 0], sizes = [1, 128], strides = [1, 1]} : vector<32x128xf32> to vector<1x128xf32>
    %c0_55 = arith.constant 0 : index
    %c2688 = arith.constant 2688 : index
    %92 = vector.load %arg12[%c0_55, %c2688] : memref<1x4096xf32, #tpu.memory_space<vmem>>, vector<1x128xf32>
    tpu.vector_store %arg12[%c0_55, %c2688], %91 {strides = array<i32>} : memref<1x4096xf32, #tpu.memory_space<vmem>>, vector<1x128xf32>,
    %93 = vector.extract_strided_slice %48 {offsets = [22, 0], sizes = [1, 128], strides = [1, 1]} : vector<32x128xf32> to vector<1x128xf32>
    %c0_56 = arith.constant 0 : index
    %c2816 = arith.constant 2816 : index
    %94 = vector.load %arg12[%c0_56, %c2816] : memref<1x4096xf32, #tpu.memory_space<vmem>>, vector<1x128xf32>
    tpu.vector_store %arg12[%c0_56, %c2816], %93 {strides = array<i32>} : memref<1x4096xf32, #tpu.memory_space<vmem>>, vector<1x128xf32>,
    %95 = vector.extract_strided_slice %48 {offsets = [23, 0], sizes = [1, 128], strides = [1, 1]} : vector<32x128xf32> to vector<1x128xf32>
    %c0_57 = arith.constant 0 : index
    %c2944 = arith.constant 2944 : index
    %96 = vector.load %arg12[%c0_57, %c2944] : memref<1x4096xf32, #tpu.memory_space<vmem>>, vector<1x128xf32>
    tpu.vector_store %arg12[%c0_57, %c2944], %95 {strides = array<i32>} : memref<1x4096xf32, #tpu.memory_space<vmem>>, vector<1x128xf32>,
    %97 = vector.extract_strided_slice %48 {offsets = [24, 0], sizes = [1, 128], strides = [1, 1]} : vector<32x128xf32> to vector<1x128xf32>
    %c0_58 = arith.constant 0 : index
    %c3072 = arith.constant 3072 : index
    %98 = vector.load %arg12[%c0_58, %c3072] : memref<1x4096xf32, #tpu.memory_space<vmem>>, vector<1x128xf32>
    tpu.vector_store %arg12[%c0_58, %c3072], %97 {strides = array<i32>} : memref<1x4096xf32, #tpu.memory_space<vmem>>, vector<1x128xf32>,
    %99 = vector.extract_strided_slice %48 {offsets = [25, 0], sizes = [1, 128], strides = [1, 1]} : vector<32x128xf32> to vector<1x128xf32>
    %c0_59 = arith.constant 0 : index
    %c3200 = arith.constant 3200 : index
    %100 = vector.load %arg12[%c0_59, %c3200] : memref<1x4096xf32, #tpu.memory_space<vmem>>, vector<1x128xf32>
    tpu.vector_store %arg12[%c0_59, %c3200], %99 {strides = array<i32>} : memref<1x4096xf32, #tpu.memory_space<vmem>>, vector<1x128xf32>,
    %101 = vector.extract_strided_slice %48 {offsets = [26, 0], sizes = [1, 128], strides = [1, 1]} : vector<32x128xf32> to vector<1x128xf32>
    %c0_60 = arith.constant 0 : index
    %c3328 = arith.constant 3328 : index
    %102 = vector.load %arg12[%c0_60, %c3328] : memref<1x4096xf32, #tpu.memory_space<vmem>>, vector<1x128xf32>
    tpu.vector_store %arg12[%c0_60, %c3328], %101 {strides = array<i32>} : memref<1x4096xf32, #tpu.memory_space<vmem>>, vector<1x128xf32>,
    %103 = vector.extract_strided_slice %48 {offsets = [27, 0], sizes = [1, 128], strides = [1, 1]} : vector<32x128xf32> to vector<1x128xf32>
    %c0_61 = arith.constant 0 : index
    %c3456 = arith.constant 3456 : index
    %104 = vector.load %arg12[%c0_61, %c3456] : memref<1x4096xf32, #tpu.memory_space<vmem>>, vector<1x128xf32>
    tpu.vector_store %arg12[%c0_61, %c3456], %103 {strides = array<i32>} : memref<1x4096xf32, #tpu.memory_space<vmem>>, vector<1x128xf32>,
    %105 = vector.extract_strided_slice %48 {offsets = [28, 0], sizes = [1, 128], strides = [1, 1]} : vector<32x128xf32> to vector<1x128xf32>
    %c0_62 = arith.constant 0 : index
    %c3584 = arith.constant 3584 : index
    %106 = vector.load %arg12[%c0_62, %c3584] : memref<1x4096xf32, #tpu.memory_space<vmem>>, vector<1x128xf32>
    tpu.vector_store %arg12[%c0_62, %c3584], %105 {strides = array<i32>} : memref<1x4096xf32, #tpu.memory_space<vmem>>, vector<1x128xf32>,
    %107 = vector.extract_strided_slice %48 {offsets = [29, 0], sizes = [1, 128], strides = [1, 1]} : vector<32x128xf32> to vector<1x128xf32>
    %c0_63 = arith.constant 0 : index
    %c3712 = arith.constant 3712 : index
    %108 = vector.load %arg12[%c0_63, %c3712] : memref<1x4096xf32, #tpu.memory_space<vmem>>, vector<1x128xf32>
    tpu.vector_store %arg12[%c0_63, %c3712], %107 {strides = array<i32>} : memref<1x4096xf32, #tpu.memory_space<vmem>>, vector<1x128xf32>,
    %109 = vector.extract_strided_slice %48 {offsets = [30, 0], sizes = [1, 128], strides = [1, 1]} : vector<32x128xf32> to vector<1x128xf32>
    %c0_64 = arith.constant 0 : index
    %c3840 = arith.constant 3840 : index
    %110 = vector.load %arg12[%c0_64, %c3840] : memref<1x4096xf32, #tpu.memory_space<vmem>>, vector<1x128xf32>
    tpu.vector_store %arg12[%c0_64, %c3840], %109 {strides = array<i32>} : memref<1x4096xf32, #tpu.memory_space<vmem>>, vector<1x128xf32>,
    %111 = vector.extract_strided_slice %48 {offsets = [31, 0], sizes = [1, 128], strides = [1, 1]} : vector<32x128xf32> to vector<1x128xf32>
    %c0_65 = arith.constant 0 : index
    %c3968 = arith.constant 3968 : index
    %112 = vector.load %arg12[%c0_65, %c3968] : memref<1x4096xf32, #tpu.memory_space<vmem>>, vector<1x128xf32>
    tpu.vector_store %arg12[%c0_65, %c3968], %111 {strides = array<i32>} : memref<1x4096xf32, #tpu.memory_space<vmem>>, vector<1x128xf32>,
    %c0_66 = arith.constant 0 : index
    %c0_67 = arith.constant 0 : index
    %113 = vector.load %arg12[%c0_66, %c0_67] : memref<1x4096xf32, #tpu.memory_space<vmem>>, vector<1x4096xf32>
    %114 = arith.truncf %113 : vector<1x4096xf32> to vector<1x4096xbf16>
    %c0_68 = arith.constant 0 : index
    %c0_69 = arith.constant 0 : index
    %115 = vector.load %arg6[%c0_68, %c0_69] : memref<4096x512xbf16, #tpu.memory_space<vmem>>, vector<4096x512xbf16>
    %cst_70 = arith.constant dense<0.000000e+00> : vector<1x512xf32>
    %116 = tpu.matmul %114, %115, %cst_70 {dimension_numbers = #tpu.dot_dimension_numbers<[1], [0], [0], [1], [0, 0, 1, 1], [], []>} : vector<1x4096xbf16>, vector<4096x512xbf16>, vector<1x512xf32> -> vector<1x512xf32>
    %c0_71 = arith.constant 0 : index
    %c0_72 = arith.constant 0 : index
    %117 = vector.load %arg7[%c0_71, %c0_72] : memref<1x512xf32, #tpu.memory_space<vmem>>, vector<1x512xf32>
    %118 = arith.addf %116, %117 : vector<1x512xf32>
    %cst_73 = arith.constant 0.000000e+00 : f32
    %119 = vector.broadcast %cst_73 : f32 to vector<1x512xf32>
    %120 = arith.maximumf %118, %119 : vector<1x512xf32>
    %c0_74 = arith.constant 0 : index
    %c0_75 = arith.constant 0 : index
    %121 = vector.load %arg8[%c0_74, %c0_75] : memref<512x7xf32, #tpu.memory_space<vmem>>, vector<512x7xf32>
    %cst_76 = arith.constant dense<0.000000e+00> : vector<1x7xf32>
    %122 = tpu.matmul %120, %121, %cst_76 {dimension_numbers = #tpu.dot_dimension_numbers<[1], [0], [0], [1], [0, 0, 1, 1], [], []>} : vector<1x512xf32>, vector<512x7xf32>, vector<1x7xf32> -> vector<1x7xf32>
    %c0_77 = arith.constant 0 : index
    %c0_78 = arith.constant 0 : index
    %123 = vector.load %arg9[%c0_77, %c0_78] : memref<1x7xf32, #tpu.memory_space<vmem>>, vector<1x7xf32>
    %124 = arith.addf %122, %123 : vector<1x7xf32>
    %125 = vector.extract_strided_slice %124 {offsets = [0, 0], sizes = [1, 6], strides = [1, 1]} : vector<1x7xf32> to vector<1x6xf32>
    %126 = vector.extract_strided_slice %124 {offsets = [0, 6], sizes = [1, 1], strides = [1, 1]} : vector<1x7xf32> to vector<1x1xf32>
    %cst_79 = arith.constant dense<0.000000e+00> : vector<1xf32>
    %127 = vector.multi_reduction <add>, %125, %cst_79 [1] : vector<1x6xf32> to vector<1xf32>
    %128 = vector.shape_cast %127 : vector<1xf32> to vector<1x1xf32>
    %cst_80 = arith.constant 6.000000e+00 : f32
    %129 = vector.broadcast %cst_80 : f32 to vector<1x1xf32>
    %130 = arith.divf %128, %129 : vector<1x1xf32>
    %131 = vector.broadcast %130 : vector<1x1xf32> to vector<1x6xf32>
    %132 = arith.subf %125, %131 : vector<1x6xf32>
    %133 = vector.broadcast %126 : vector<1x1xf32> to vector<1x6xf32>
    %134 = arith.addf %133, %132 : vector<1x6xf32>
    %c0_81 = arith.constant 0 : index
    %c0_82 = arith.constant 0 : index
    %c0_83 = arith.constant 0 : index
    %135 = vector.load %arg10[%c0_81, %c0_82, %c0_83] : memref<1x1x6xf32, #tpu.memory_space<vmem>>, vector<1x1x6xf32>
    %136 = vector.shape_cast %135 : vector<1x1x6xf32> to vector<1x6xf32>
    %137 = vector.shape_cast %134 : vector<1x6xf32> to vector<1x1x6xf32>
    tpu.vector_store %arg10[%c0_81, %c0_82, %c0_83], %137 {strides = array<i32>} : memref<1x1x6xf32, #tpu.memory_space<vmem>>, vector<1x1x6xf32>,
    return
  }
  func.func @transform_0(%arg0: i32) -> (i32, i32, i32) {
    %c0_i32 = arith.constant 0 : i32
    %c0_i32_0 = arith.constant 0 : i32
    %c0_i32_1 = arith.constant 0 : i32
    return %arg0, %c0_i32, %c0_i32_0 : i32, i32, i32
  }
  func.func @transform_1(%arg0: i32) -> (i32, i32) {
    %c0_i32 = arith.constant 0 : i32
    %c0_i32_0 = arith.constant 0 : i32
    %c0_i32_1 = arith.constant 0 : i32
    return %c0_i32, %c0_i32_0 : i32, i32
  }
  func.func @transform_2(%arg0: i32) -> (i32, i32) {
    %c0_i32 = arith.constant 0 : i32
    %c0_i32_0 = arith.constant 0 : i32
    %c0_i32_1 = arith.constant 0 : i32
    return %c0_i32, %c0_i32_0 : i32, i32
  }
  func.func @transform_3(%arg0: i32) -> (i32, i32) {
    %c0_i32 = arith.constant 0 : i32
    %c0_i32_0 = arith.constant 0 : i32
    %c0_i32_1 = arith.constant 0 : i32
    return %c0_i32, %c0_i32_0 : i32, i32
  }
  func.func @transform_4(%arg0: i32) -> (i32, i32) {
    %c0_i32 = arith.constant 0 : i32
    %c0_i32_0 = arith.constant 0 : i32
    %c0_i32_1 = arith.constant 0 : i32
    return %c0_i32, %c0_i32_0 : i32, i32
  }
  func.func @transform_5(%arg0: i32) -> (i32, i32) {
    %c0_i32 = arith.constant 0 : i32
    %c0_i32_0 = arith.constant 0 : i32
    %c0_i32_1 = arith.constant 0 : i32
    return %c0_i32, %c0_i32_0 : i32, i32
  }
  func.func @transform_6(%arg0: i32) -> (i32, i32) {
    %c0_i32 = arith.constant 0 : i32
    %c0_i32_0 = arith.constant 0 : i32
    %c0_i32_1 = arith.constant 0 : i32
    return %c0_i32, %c0_i32_0 : i32, i32
  }
  func.func @transform_7(%arg0: i32) -> (i32, i32) {
    %c0_i32 = arith.constant 0 : i32
    %c0_i32_0 = arith.constant 0 : i32
    %c0_i32_1 = arith.constant 0 : i32
    return %c0_i32, %c0_i32_0 : i32, i32
  }
  func.func @transform_8(%arg0: i32) -> (i32, i32) {
    %c0_i32 = arith.constant 0 : i32
    %c0_i32_0 = arith.constant 0 : i32
    %c0_i32_1 = arith.constant 0 : i32
    return %c0_i32, %c0_i32_0 : i32, i32
  }
  func.func @transform_9(%arg0: i32) -> (i32, i32, i32) {
    %c0_i32 = arith.constant 0 : i32
    %c0_i32_0 = arith.constant 0 : i32
    %c0_i32_1 = arith.constant 0 : i32
    return %arg0, %c0_i32, %c0_i32_0 : i32, i32, i32
  }
}

</mosaic_0001>

<llo_original>
// kernel: net_forward.1
$region0: #{net_forward.1}
  #allocation0 [shape = 'u32[]', space=smem, size = 0x4, offset = 0x4, fixed_abs, tag = 'smem constant byte address 0x4 - core index']
  #allocation1 [shape = 'u32[72,128]{1,0:T(1,128)}', space=vmem, size = 0x9000, scoped, tag = 'internal scratch']
  #allocation2 [shape = 'f32[256,128]{1,0:T(8,128)}', space=vmem, size = 0x20000, scoped, tag = 'scratch operand']
  #allocation3 [shape = 'f32[1,4096]{1,0:T(1,128)}', space=vmem, size = 0x4000, scoped, tag = 'scratch operand']
  %s0 = inlined_call_operand.vmem [shape: bf16[2,256,2048], index: 0, kind: input, shape index: {}]
  %s1 = inlined_call_operand.vmem [shape: bf16[16,256], index: 1, kind: input, shape index: {}]
  %s2 = inlined_call_operand.vmem [shape: f32[16,1], index: 2, kind: input, shape index: {}]
  %s3 = inlined_call_operand.vmem [shape: f32[32,256], index: 3, kind: input, shape index: {}]
  %s4 = inlined_call_operand.vmem [shape: f32[32,1], index: 4, kind: input, shape index: {}]
  %s5 = inlined_call_operand.vmem [shape: bf16[4096,512], index: 5, kind: input, shape index: {}]
  %s6 = inlined_call_operand.vmem [shape: f32[1,512], index: 6, kind: input, shape index: {}]
  %s7 = inlined_call_operand.vmem [shape: f32[512,7], index: 7, kind: input, shape index: {}]
  %s8 = inlined_call_operand.vmem [shape: f32[1,7], index: 8, kind: input, shape index: {}]
  %s9 = inlined_call_operand.hbm [shape: f32[2,1,6], index: 9, kind: output, shape index: {}]
  %s10 = sld [smem:[#allocation0]]
  $region69: #{net_forward.1} parent=0
    _
  %s12 = ssub.s32 1, %s10
  %s13 = scalar_select 0, %s12, %s10
  $region1: #{net_forward.1} parent=0
    #allocation4 [shape = 'u8[1024]{0}', space=vmem, size = 0x400, scoped, tag = 'output window, operand 0']
    #allocation5 [shape = 's32[2]{0}', space=sflag, size = 0x8, scoped, tag = 'scoped memory for net_forward.1']
    %14 = vsyncpa [#allocation5], 0
    %s15 = scalar_lea.sflag [#allocation5], 1
    %16 = vsyncpa %s15, 0
    loop: start=0, step=1, limit=4
    $region2: #{net_forward.1} parent=1 // loop_pre_header
      _
    $region3: #{net_forward.1} parent=1 // loop_header
      %s18 = sphi 0, %s22
      %p19 = scmp.ge.s32.totalorder %s18, 4
      %s28 = sphi 0, %s30
      %s31 = sphi 0, %s28
      %s32 = sphi 0, %s31
      %s48 = sphi 0, %s32
      %s52 = sphi 0, %s52
      %s54 = sphi 0, %s52
      %s55 = sphi 0, %s54
      %s69 = sphi 0, %s55
      %s73 = sphi 0, %s73
      %s75 = sphi 0, %s73
      %s76 = sphi 0, %s75
      %s90 = sphi 0, %s76
      %s94 = sphi 0, %s94
      %s96 = sphi 0, %s94
      %s97 = sphi 0, %s96
      %s111 = sphi 0, %s97
      %s115 = sphi 0, %s115
      %s117 = sphi 0, %s115
      %s118 = sphi 0, %s117
      %s132 = sphi 0, %s118
      %s136 = sphi 0, %s136
      %s138 = sphi 0, %s136
      %s139 = sphi 0, %s138
      %s153 = sphi 0, %s139
      %s157 = sphi 0, %s157
      %s159 = sphi 0, %s157
      %s160 = sphi 0, %s159
      %s174 = sphi 0, %s160
      %s178 = sphi 0, %s178
      %s180 = sphi 0, %s178
      %s181 = sphi 0, %s180
      %s195 = sphi 0, %s181
      %s199 = sphi 0, %s199
      %s201 = sphi 0, %s199
      %s202 = sphi 0, %s201
      %s216 = sphi 0, %s202
      %s222 = sphi 0, %s224
      %s225 = sphi 0, %s222
      %s226 = sphi 0, %s225
      %s242 = sphi 0, %s226
    $region4: #{net_forward.1} parent=1 // loop_header_branch
      %21 = sbr.rel (%p19) target = $region8
    $region5: #{net_forward.1} parent=1 // loop_body
      %s23 = ssub.s32 %s18, 1
      %s24 = ssub.s32 %s18, 2
      %s25 = sadd.s32 %s18, 1
      %s26 = ssub.s32 %s18, %s25
      %p27 = scmp.eq.s32.totalorder %s26, 0
      %s29 = sadd.s32 %s28, 1
      %s30 = scalar_select %p27, %s28, %s29
      %p33 = pneg %p27
      %p34 = scmp.eq.s32.totalorder %s18, 1
      %p35 = por %p33, %p34
      %p36 = scmp.ne.s32.totalorder %s28, %s31
      %p37 = scmp.eq.s32.totalorder %s18, 0
      %p38 = por %p36, %p37
      %p39 = scmp.ne.s32.totalorder %s28, %s31
      %p40 = scmp.eq.s32.totalorder %s23, 1
      %p41 = por %p39, %p40
      %p42 = scmp.ne.s32.totalorder %s31, %s32
      %p43 = scmp.eq.s32.totalorder %s23, 0
      %p44 = por %p42, %p43
      %p45 = scmp.ne.s32.totalorder %s31, %s32
      %p46 = scmp.eq.s32.totalorder %s24, 1
      %p47 = por %p45, %p46
      %p49 = scmp.ne.s32.totalorder %s32, %s48
      %p50 = scmp.eq.s32.totalorder %s24, 0
      %p51 = por %p49, %p50
      %s53 = sadd.s32 %s52, 1
      %p56 = scmp.eq.s32.totalorder %s18, 1
      %p57 = scmp.ne.s32.totalorder %s52, %s54
      %p58 = scmp.eq.s32.totalorder %s18, 0
      %p59 = por %p57, %p58
      %p60 = scmp.ne.s32.totalorder %s52, %s54
      %p61 = scmp.eq.s32.totalorder %s23, 1
      %p62 = por %p60, %p61
      %p63 = scmp.ne.s32.totalorder %s54, %s55
      %p64 = scmp.eq.s32.totalorder %s23, 0
      %p65 = por %p63, %p64
      %p66 = scmp.ne.s32.totalorder %s54, %s55
      %p67 = scmp.eq.s32.totalorder %s24, 1
      %p68 = por %p66, %p67
      %p70 = scmp.ne.s32.totalorder %s55, %s69
      %p71 = scmp.eq.s32.totalorder %s24, 0
      %p72 = por %p70, %p71
      %s74 = sadd.s32 %s73, 1
      %p77 = scmp.eq.s32.totalorder %s18, 1
      %p78 = scmp.ne.s32.totalorder %s73, %s75
      %p79 = scmp.eq.s32.totalorder %s18, 0
      %p80 = por %p78, %p79
      %p81 = scmp.ne.s32.totalorder %s73, %s75
      %p82 = scmp.eq.s32.totalorder %s23, 1
      %p83 = por %p81, %p82
      %p84 = scmp.ne.s32.totalorder %s75, %s76
      %p85 = scmp.eq.s32.totalorder %s23, 0
      %p86 = por %p84, %p85
      %p87 = scmp.ne.s32.totalorder %s75, %s76
      %p88 = scmp.eq.s32.totalorder %s24, 1
      %p89 = por %p87, %p88
      %p91 = scmp.ne.s32.totalorder %s76, %s90
      %p92 = scmp.eq.s32.totalorder %s24, 0
      %p93 = por %p91, %p92
      %s95 = sadd.s32 %s94, 1
      %p98 = scmp.eq.s32.totalorder %s18, 1
      %p99 = scmp.ne.s32.totalorder %s94, %s96
      %p100 = scmp.eq.s32.totalorder %s18, 0
      %p101 = por %p99, %p100
      %p102 = scmp.ne.s32.totalorder %s94, %s96
      %p103 = scmp.eq.s32.totalorder %s23, 1
      %p104 = por %p102, %p103
      %p105 = scmp.ne.s32.totalorder %s96, %s97
      %p106 = scmp.eq.s32.totalorder %s23, 0
      %p107 = por %p105, %p106
      %p108 = scmp.ne.s32.totalorder %s96, %s97
      %p109 = scmp.eq.s32.totalorder %s24, 1
      %p110 = por %p108, %p109
      %p112 = scmp.ne.s32.totalorder %s97, %s111
      %p113 = scmp.eq.s32.totalorder %s24, 0
      %p114 = por %p112, %p113
      %s116 = sadd.s32 %s115, 1
      %p119 = scmp.eq.s32.totalorder %s18, 1
      %p120 = scmp.ne.s32.totalorder %s115, %s117
      %p121 = scmp.eq.s32.totalorder %s18, 0
      %p122 = por %p120, %p121
      %p123 = scmp.ne.s32.totalorder %s115, %s117
      %p124 = scmp.eq.s32.totalorder %s23, 1
      %p125 = por %p123, %p124
      %p126 = scmp.ne.s32.totalorder %s117, %s118
      %p127 = scmp.eq.s32.totalorder %s23, 0
      %p128 = por %p126, %p127
      %p129 = scmp.ne.s32.totalorder %s117, %s118
      %p130 = scmp.eq.s32.totalorder %s24, 1
      %p131 = por %p129, %p130
      %p133 = scmp.ne.s32.totalorder %s118, %s132
      %p134 = scmp.eq.s32.totalorder %s24, 0
      %p135 = por %p133, %p134
      %s137 = sadd.s32 %s136, 1
      %p140 = scmp.eq.s32.totalorder %s18, 1
      %p141 = scmp.ne.s32.totalorder %s136, %s138
      %p142 = scmp.eq.s32.totalorder %s18, 0
      %p143 = por %p141, %p142
      %p144 = scmp.ne.s32.totalorder %s136, %s138
      %p145 = scmp.eq.s32.totalorder %s23, 1
      %p146 = por %p144, %p145
      %p147 = scmp.ne.s32.totalorder %s138, %s139
      %p148 = scmp.eq.s32.totalorder %s23, 0
      %p149 = por %p147, %p148
      %p150 = scmp.ne.s32.totalorder %s138, %s139
      %p151 = scmp.eq.s32.totalorder %s24, 1
      %p152 = por %p150, %p151
      %p154 = scmp.ne.s32.totalorder %s139, %s153
      %p155 = scmp.eq.s32.totalorder %s24, 0
      %p156 = por %p154, %p155
      %s158 = sadd.s32 %s157, 1
      %p161 = scmp.eq.s32.totalorder %s18, 1
      %p162 = scmp.ne.s32.totalorder %s157, %s159
      %p163 = scmp.eq.s32.totalorder %s18, 0
      %p164 = por %p162, %p163
      %p165 = scmp.ne.s32.totalorder %s157, %s159
      %p166 = scmp.eq.s32.totalorder %s23, 1
      %p167 = por %p165, %p166
      %p168 = scmp.ne.s32.totalorder %s159, %s160
      %p169 = scmp.eq.s32.totalorder %s23, 0
      %p170 = por %p168, %p169
      %p171 = scmp.ne.s32.totalorder %s159, %s160
      %p172 = scmp.eq.s32.totalorder %s24, 1
      %p173 = por %p171, %p172
      %p175 = scmp.ne.s32.totalorder %s160, %s174
      %p176 = scmp.eq.s32.totalorder %s24, 0
      %p177 = por %p175, %p176
      %s179 = sadd.s32 %s178, 1
      %p182 = scmp.eq.s32.totalorder %s18, 1
      %p183 = scmp.ne.s32.totalorder %s178, %s180
      %p184 = scmp.eq.s32.totalorder %s18, 0
      %p185 = por %p183, %p184
      %p186 = scmp.ne.s32.totalorder %s178, %s180
      %p187 = scmp.eq.s32.totalorder %s23, 1
      %p188 = por %p186, %p187
      %p189 = scmp.ne.s32.totalorder %s180, %s181
      %p190 = scmp.eq.s32.totalorder %s23, 0
      %p191 = por %p189, %p190
      %p192 = scmp.ne.s32.totalorder %s180, %s181
      %p193 = scmp.eq.s32.totalorder %s24, 1
      %p194 = por %p192, %p193
      %p196 = scmp.ne.s32.totalorder %s181, %s195
      %p197 = scmp.eq.s32.totalorder %s24, 0
      %p198 = por %p196, %p197
      %s200 = sadd.s32 %s199, 1
      %p203 = scmp.eq.s32.totalorder %s18, 1
      %p204 = scmp.ne.s32.totalorder %s199, %s201
      %p205 = scmp.eq.s32.totalorder %s18, 0
      %p206 = por %p204, %p205
      %p207 = scmp.ne.s32.totalorder %s199, %s201
      %p208 = scmp.eq.s32.totalorder %s23, 1
      %p209 = por %p207, %p208
      %p210 = scmp.ne.s32.totalorder %s201, %s202
      %p211 = scmp.eq.s32.totalorder %s23, 0
      %p212 = por %p210, %p211
      %p213 = scmp.ne.s32.totalorder %s201, %s202
      %p214 = scmp.eq.s32.totalorder %s24, 1
      %p215 = por %p213, %p214
      %p217 = scmp.ne.s32.totalorder %s202, %s216
      %p218 = scmp.eq.s32.totalorder %s24, 0
      %p219 = por %p217, %p218
      %s220 = ssub.s32 %s18, %s25
      %p221 = scmp.eq.s32.totalorder %s220, 0
      %s223 = sadd.s32 %s222, 1
      %s224 = scalar_select %p221, %s222, %s223
      %p227 = pneg %p221
      %p228 = scmp.eq.s32.totalorder %s18, 1
      %p229 = por %p227, %p228
      %p230 = scmp.ne.s32.totalorder %s222, %s225
      %p231 = scmp.eq.s32.totalorder %s18, 0
      %p232 = por %p230, %p231
      %p233 = scmp.ne.s32.totalorder %s222, %s225
      %p234 = scmp.eq.s32.totalorder %s23, 1
      %p235 = por %p233, %p234
      %p236 = scmp.ne.s32.totalorder %s225, %s226
      %p237 = scmp.eq.s32.totalorder %s23, 0
      %p238 = por %p236, %p237
      %p239 = scmp.ne.s32.totalorder %s225, %s226
      %p240 = scmp.eq.s32.totalorder %s24, 1
      %p241 = por %p239, %p240
      %p243 = scmp.ne.s32.totalorder %s226, %s242
      %p244 = scmp.eq.s32.totalorder %s24, 0
      %p245 = por %p243, %p244
      %p246 = scmp.le.s32.totalorder 1, %s18
      %p247 = scmp.lt.s32.totalorder %s18, 3
      %p248 = pnand %p246, %p247
      %p249 = pneg %p248
      // Predicated region
      $region9: #{net_forward.1} parent=5 // pred_check
        _
      $region10: #{net_forward.1} parent=5 // pred_check_branch
        %251 = sbr.rel (%p248) target = $region12
      $region11: #{net_forward.1} parent=5 // pred_region
        %s252 = ssub.s32 %s18, 1
        // Predicated region
        $region13: #{net_forward.1} parent=11 // pred_check
          %p253 = pneg %p65
        $region14: #{net_forward.1} parent=11 // pred_check_branch
          %255 = sbr.rel (%p253) target = $region16
        $region15: #{net_forward.1} parent=11 // pred_region
          _
        $region16: #{net_forward.1} parent=11 // pred_fallthru
          _
        // Predicated region
        $region17: #{net_forward.1} parent=11 // pred_check
          %p256 = pneg %p86
        $region18: #{net_forward.1} parent=11 // pred_check_branch
          %258 = sbr.rel (%p256) target = $region20
        $region19: #{net_forward.1} parent=11 // pred_region
          _
        $region20: #{net_forward.1} parent=11 // pred_fallthru
          _
        // Predicated region
        $region21: #{net_forward.1} parent=11 // pred_check
          %p259 = pneg %p107
        $region22: #{net_forward.1} parent=11 // pred_check_branch
          %261 = sbr.rel (%p259) target = $region24
        $region23: #{net_forward.1} parent=11 // pred_region
          _
        $region24: #{net_forward.1} parent=11 // pred_fallthru
          _
        // Predicated region
        $region25: #{net_forward.1} parent=11 // pred_check
          %p262 = pneg %p128
        $region26: #{net_forward.1} parent=11 // pred_check_branch
          %264 = sbr.rel (%p262) target = $region28
        $region27: #{net_forward.1} parent=11 // pred_region
          _
        $region28: #{net_forward.1} parent=11 // pred_fallthru
          _
        // Predicated region
        $region29: #{net_forward.1} parent=11 // pred_check
          %p265 = pneg %p149
        $region30: #{net_forward.1} parent=11 // pred_check_branch
          %267 = sbr.rel (%p265) target = $region32
        $region31: #{net_forward.1} parent=11 // pred_region
          _
        $region32: #{net_forward.1} parent=11 // pred_fallthru
          _
        // Predicated region
        $region33: #{net_forward.1} parent=11 // pred_check
          %p268 = pneg %p170
        $region34: #{net_forward.1} parent=11 // pred_check_branch
          %270 = sbr.rel (%p268) target = $region36
        $region35: #{net_forward.1} parent=11 // pred_region
          _
        $region36: #{net_forward.1} parent=11 // pred_fallthru
          _
        // Predicated region
        $region37: #{net_forward.1} parent=11 // pred_check
          %p271 = pneg %p191
        $region38: #{net_forward.1} parent=11 // pred_check_branch
          %273 = sbr.rel (%p271) target = $region40
        $region39: #{net_forward.1} parent=11 // pred_region
          _
        $region40: #{net_forward.1} parent=11 // pred_fallthru
          _
        // Predicated region
        $region41: #{net_forward.1} parent=11 // pred_check
          %p274 = pneg %p212
        $region42: #{net_forward.1} parent=11 // pred_check_branch
          %276 = sbr.rel (%p274) target = $region44
        $region43: #{net_forward.1} parent=11 // pred_region
          _
        $region44: #{net_forward.1} parent=11 // pred_fallthru
          _
      $region12: #{net_forward.1} parent=5 // pred_fallthru
        _
      %p277 = scmp.lt.s32.totalorder %s18, 2
      // Predicated region
      $region45: #{net_forward.1} parent=5 // pred_check
        %p278 = pneg %p277
      $region46: #{net_forward.1} parent=5 // pred_check_branch
        %280 = sbr.rel (%p278) target = $region48
      $region47: #{net_forward.1} parent=5 // pred_region
        // Predicated region
        $region49: #{net_forward.1} parent=47 // pred_check
          %p281 = pneg %p38
        $region50: #{net_forward.1} parent=47 // pred_check_branch
          %283 = sbr.rel (%p281) target = $region52
        $region51: #{net_forward.1} parent=47 // pred_region
          %p284 = scmp.lt.s32.totalorder %s18, 1
          %s285 = scalar_select %p284, %s18, 1
          %s286 = smul.addr %s285, 512
          %s287 = smul.addr %s286, 4
          %s288 = scalar_lea.vmem %s0, %s287
        $region52: #{net_forward.1} parent=47 // pred_fallthru
          _
      $region48: #{net_forward.1} parent=5 // pred_fallthru
        _
      %p289 = scmp.le.s32.totalorder 1, %s18
      %p290 = scmp.lt.s32.totalorder %s18, 3
      %p291 = pnand %p289, %p290
      %p292 = pneg %p291
      // Predicated region
      $region53: #{net_forward.1} parent=5 // pred_check
        _
      $region54: #{net_forward.1} parent=5 // pred_check_branch
        %294 = sbr.rel (%p291) target = $region56
      $region55: #{net_forward.1} parent=5 // pred_region
        %s295 = ssub.s32 %s18, 1
        %p296 = scmp.lt.s32.totalorder %s23, 1
        %s297 = scalar_select %p296, %s23, 1
        %s298 = smul.addr %s297, 512
        %s299 = smul.addr %s298, 4
        %s300 = scalar_lea.vmem %s0, %s299
        %p301 = pneg %p44
        %p302 = pneg %p41
        %p303 = pneg %p65
        %p304 = pneg %p62
        %p305 = pneg %p86
        %p306 = pneg %p83
        %p307 = pneg %p107
        %p308 = pneg %p104
        %p309 = pneg %p128
        %p310 = pneg %p125
        %p311 = pneg %p149
        %p312 = pneg %p146
        %p313 = pneg %p170
        %p314 = pneg %p167
        %p315 = pneg %p191
        %p316 = pneg %p188
        %p317 = pneg %p212
        %p318 = pneg %p209
        %p319 = pneg %p238
        %p320 = pneg %p235
        %s321 = sand.u32 %s225, 1
        %s322 = scalar_lea.sflag [#allocation5], %s321
        %s323 = sand.u32 %s225, 1
        %s324 = scalar_lea.vmem [#allocation4], %s323
        %p325 = scmp.lt.s32.totalorder %s23, 1
        %s326 = scalar_select %p325, %s23, 1
        %s327 = smul.addr %s326, 512
        %s328 = smul.addr %s327, 4
        %s329 = scalar_lea.vmem %s0, %s328
        %v330 = vld [vmem:[%s1] sm:$0xff]
        %v331 = vld [vmem:[%s1 + $0x8] sm:$0xff]
        %v332 = vld [vmem:[%s329] sm:$0xff]
        %v333 = vld [vmem:[%s329 + $0x8] sm:$0xff]
        %v334 = vld [vmem:[%s329 + $0x10] sm:$0xff]
        %v335 = vld [vmem:[%s329 + $0x18] sm:$0xff]
        %v336 = vld [vmem:[%s329 + $0x20] sm:$0xff]
        %v337 = vld [vmem:[%s329 + $0x28] sm:$0xff]
        %v338 = vld [vmem:[%s329 + $0x30] sm:$0xff]
        %v339 = vld [vmem:[%s329 + $0x38] sm:$0xff]
        %v340 = vld [vmem:[%s329 + $0x40] sm:$0xff]
        %v341 = vld [vmem:[%s329 + $0x48] sm:$0xff]
        %v342 = vld [vmem:[%s329 + $0x50] sm:$0xff]
        %v343 = vld [vmem:[%s329 + $0x58] sm:$0xff]
        %v344 = vld [vmem:[%s329 + $0x60] sm:$0xff]
        %v345 = vld [vmem:[%s329 + $0x68] sm:$0xff]
        %v346 = vld [vmem:[%s329 + $0x70] sm:$0xff]
        %v347 = vld [vmem:[%s329 + $0x78] sm:$0xff]
        %v348 = vld [vmem:[%s329 + $0x80] sm:$0xff]
        %v349 = vld [vmem:[%s329 + $0x88] sm:$0xff]
        %v350 = vld [vmem:[%s329 + $0x90] sm:$0xff]
        %v351 = vld [vmem:[%s329 + $0x98] sm:$0xff]
        %v352 = vld [vmem:[%s329 + $0xa0] sm:$0xff]
        %v353 = vld [vmem:[%s329 + $0xa8] sm:$0xff]
        %v354 = vld [vmem:[%s329 + $0xb0] sm:$0xff]
        %v355 = vld [vmem:[%s329 + $0xb8] sm:$0xff]
        %v356 = vld [vmem:[%s329 + $0xc0] sm:$0xff]
        %v357 = vld [vmem:[%s329 + $0xc8] sm:$0xff]
        %v358 = vld [vmem:[%s329 + $0xd0] sm:$0xff]
        %v359 = vld [vmem:[%s329 + $0xd8] sm:$0xff]
        %v360 = vld [vmem:[%s329 + $0xe0] sm:$0xff]
        %v361 = vld [vmem:[%s329 + $0xe8] sm:$0xff]
        %v362 = vld [vmem:[%s329 + $0xf0] sm:$0xff]
        %v363 = vld [vmem:[%s329 + $0xf8] sm:$0xff]
        %v364 = vld [vmem:[%s329 + $0x100] sm:$0xff]
        %v365 = vld [vmem:[%s329 + $0x108] sm:$0xff]
        %v366 = vld [vmem:[%s329 + $0x110] sm:$0xff]
        %v367 = vld [vmem:[%s329 + $0x118] sm:$0xff]
        %v368 = vld [vmem:[%s329 + $0x120] sm:$0xff]
        %v369 = vld [vmem:[%s329 + $0x128] sm:$0xff]
        %v370 = vld [vmem:[%s329 + $0x130] sm:$0xff]
        %v371 = vld [vmem:[%s329 + $0x138] sm:$0xff]
        %v372 = vld [vmem:[%s329 + $0x140] sm:$0xff]
        %v373 = vld [vmem:[%s329 + $0x148] sm:$0xff]
        %v374 = vld [vmem:[%s329 + $0x150] sm:$0xff]
        %v375 = vld [vmem:[%s329 + $0x158] sm:$0xff]
        %v376 = vld [vmem:[%s329 + $0x160] sm:$0xff]
        %v377 = vld [vmem:[%s329 + $0x168] sm:$0xff]
        %v378 = vld [vmem:[%s329 + $0x170] sm:$0xff]
        %v379 = vld [vmem:[%s329 + $0x178] sm:$0xff]
        %v380 = vld [vmem:[%s329 + $0x180] sm:$0xff]
        %v381 = vld [vmem:[%s329 + $0x188] sm:$0xff]
        %v382 = vld [vmem:[%s329 + $0x190] sm:$0xff]
        %v383 = vld [vmem:[%s329 + $0x198] sm:$0xff]
        %v384 = vld [vmem:[%s329 + $0x1a0] sm:$0xff]
        %v385 = vld [vmem:[%s329 + $0x1a8] sm:$0xff]
        %v386 = vld [vmem:[%s329 + $0x1b0] sm:$0xff]
        %v387 = vld [vmem:[%s329 + $0x1b8] sm:$0xff]
        %v388 = vld [vmem:[%s329 + $0x1c0] sm:$0xff]
        %v389 = vld [vmem:[%s329 + $0x1c8] sm:$0xff]
        %v390 = vld [vmem:[%s329 + $0x1d0] sm:$0xff]
        %v391 = vld [vmem:[%s329 + $0x1d8] sm:$0xff]
        %v392 = vld [vmem:[%s329 + $0x1e0] sm:$0xff]
        %v393 = vld [vmem:[%s329 + $0x1e8] sm:$0xff]
        %v394 = vld [vmem:[%s329 + $0x1f0] sm:$0xff]
        %v395 = vld [vmem:[%s329 + $0x1f8] sm:$0xff]
        %v396 = vld [vmem:[%s329 + $0x200] sm:$0xff]
        %v397 = vld [vmem:[%s329 + $0x208] sm:$0xff]
        %v398 = vld [vmem:[%s329 + $0x210] sm:$0xff]
        %v399 = vld [vmem:[%s329 + $0x218] sm:$0xff]
        %v400 = vld [vmem:[%s329 + $0x220] sm:$0xff]
        %v401 = vld [vmem:[%s329 + $0x228] sm:$0xff]
        %v402 = vld [vmem:[%s329 + $0x230] sm:$0xff]
        %v403 = vld [vmem:[%s329 + $0x238] sm:$0xff]
        %v404 = vld [vmem:[%s329 + $0x240] sm:$0xff]
        %v405 = vld [vmem:[%s329 + $0x248] sm:$0xff]
        %v406 = vld [vmem:[%s329 + $0x250] sm:$0xff]
        %v407 = vld [vmem:[%s329 + $0x258] sm:$0xff]
        %v408 = vld [vmem:[%s329 + $0x260] sm:$0xff]
        %v409 = vld [vmem:[%s329 + $0x268] sm:$0xff]
        %v410 = vld [vmem:[%s329 + $0x270] sm:$0xff]
        %v411 = vld [vmem:[%s329 + $0x278] sm:$0xff]
        %v412 = vld [vmem:[%s329 + $0x280] sm:$0xff]
        %v413 = vld [vmem:[%s329 + $0x288] sm:$0xff]
        %v414 = vld [vmem:[%s329 + $0x290] sm:$0xff]
        %v415 = vld [vmem:[%s329 + $0x298] sm:$0xff]
        %v416 = vld [vmem:[%s329 + $0x2a0] sm:$0xff]
        %v417 = vld [vmem:[%s329 + $0x2a8] sm:$0xff]
        %v418 = vld [vmem:[%s329 + $0x2b0] sm:$0xff]
        %v419 = vld [vmem:[%s329 + $0x2b8] sm:$0xff]
        %v420 = vld [vmem:[%s329 + $0x2c0] sm:$0xff]
        %v421 = vld [vmem:[%s329 + $0x2c8] sm:$0xff]
        %v422 = vld [vmem:[%s329 + $0x2d0] sm:$0xff]
        %v423 = vld [vmem:[%s329 + $0x2d8] sm:$0xff]
        %v424 = vld [vmem:[%s329 + $0x2e0] sm:$0xff]
        %v425 = vld [vmem:[%s329 + $0x2e8] sm:$0xff]
        %v426 = vld [vmem:[%s329 + $0x2f0] sm:$0xff]
        %v427 = vld [vmem:[%s329 + $0x2f8] sm:$0xff]
        %v428 = vld [vmem:[%s329 + $0x300] sm:$0xff]
        %v429 = vld [vmem:[%s329 + $0x308] sm:$0xff]
        %v430 = vld [vmem:[%s329 + $0x310] sm:$0xff]
        %v431 = vld [vmem:[%s329 + $0x318] sm:$0xff]
        %v432 = vld [vmem:[%s329 + $0x320] sm:$0xff]
        %v433 = vld [vmem:[%s329 + $0x328] sm:$0xff]
        %v434 = vld [vmem:[%s329 + $0x330] sm:$0xff]
        %v435 = vld [vmem:[%s329 + $0x338] sm:$0xff]
        %v436 = vld [vmem:[%s329 + $0x340] sm:$0xff]
        %v437 = vld [vmem:[%s329 + $0x348] sm:$0xff]
        %v438 = vld [vmem:[%s329 + $0x350] sm:$0xff]
        %v439 = vld [vmem:[%s329 + $0x358] sm:$0xff]
        %v440 = vld [vmem:[%s329 + $0x360] sm:$0xff]
        %v441 = vld [vmem:[%s329 + $0x368] sm:$0xff]
        %v442 = vld [vmem:[%s329 + $0x370] sm:$0xff]
        %v443 = vld [vmem:[%s329 + $0x378] sm:$0xff]
        %v444 = vld [vmem:[%s329 + $0x380] sm:$0xff]
        %v445 = vld [vmem:[%s329 + $0x388] sm:$0xff]
        %v446 = vld [vmem:[%s329 + $0x390] sm:$0xff]
        %v447 = vld [vmem:[%s329 + $0x398] sm:$0xff]
        %v448 = vld [vmem:[%s329 + $0x3a0] sm:$0xff]
        %v449 = vld [vmem:[%s329 + $0x3a8] sm:$0xff]
        %v450 = vld [vmem:[%s329 + $0x3b0] sm:$0xff]
        %v451 = vld [vmem:[%s329 + $0x3b8] sm:$0xff]
        %v452 = vld [vmem:[%s329 + $0x3c0] sm:$0xff]
        %v453 = vld [vmem:[%s329 + $0x3c8] sm:$0xff]
        %v454 = vld [vmem:[%s329 + $0x3d0] sm:$0xff]
        %v455 = vld [vmem:[%s329 + $0x3d8] sm:$0xff]
        %v456 = vld [vmem:[%s329 + $0x3e0] sm:$0xff]
        %v457 = vld [vmem:[%s329 + $0x3e8] sm:$0xff]
        %v458 = vld [vmem:[%s329 + $0x3f0] sm:$0xff]
        %v459 = vld [vmem:[%s329 + $0x3f8] sm:$0xff]
        %v460 = vld [vmem:[%s329 + $0x400] sm:$0xff]
        %v461 = vld [vmem:[%s329 + $0x408] sm:$0xff]
        %v462 = vld [vmem:[%s329 + $0x410] sm:$0xff]
        %v463 = vld [vmem:[%s329 + $0x418] sm:$0xff]
        %v464 = vld [vmem:[%s329 + $0x420] sm:$0xff]
        %v465 = vld [vmem:[%s329 + $0x428] sm:$0xff]
        %v466 = vld [vmem:[%s329 + $0x430] sm:$0xff]
        %v467 = vld [vmem:[%s329 + $0x438] sm:$0xff]
        %v468 = vld [vmem:[%s329 + $0x440] sm:$0xff]
        %v469 = vld [vmem:[%s329 + $0x448] sm:$0xff]
        %v470 = vld [vmem:[%s329 + $0x450] sm:$0xff]
        %v471 = vld [vmem:[%s329 + $0x458] sm:$0xff]
        %v472 = vld [vmem:[%s329 + $0x460] sm:$0xff]
        %v473 = vld [vmem:[%s329 + $0x468] sm:$0xff]
        %v474 = vld [vmem:[%s329 + $0x470] sm:$0xff]
        %v475 = vld [vmem:[%s329 + $0x478] sm:$0xff]
        %v476 = vld [vmem:[%s329 + $0x480] sm:$0xff]
        %v477 = vld [vmem:[%s329 + $0x488] sm:$0xff]
        %v478 = vld [vmem:[%s329 + $0x490] sm:$0xff]
        %v479 = vld [vmem:[%s329 + $0x498] sm:$0xff]
        %v480 = vld [vmem:[%s329 + $0x4a0] sm:$0xff]
        %v481 = vld [vmem:[%s329 + $0x4a8] sm:$0xff]
        %v482 = vld [vmem:[%s329 + $0x4b0] sm:$0xff]
        %v483 = vld [vmem:[%s329 + $0x4b8] sm:$0xff]
        %v484 = vld [vmem:[%s329 + $0x4c0] sm:$0xff]
        %v485 = vld [vmem:[%s329 + $0x4c8] sm:$0xff]
        %v486 = vld [vmem:[%s329 + $0x4d0] sm:$0xff]
        %v487 = vld [vmem:[%s329 + $0x4d8] sm:$0xff]
        %v488 = vld [vmem:[%s329 + $0x4e0] sm:$0xff]
        %v489 = vld [vmem:[%s329 + $0x4e8] sm:$0xff]
        %v490 = vld [vmem:[%s329 + $0x4f0] sm:$0xff]
        %v491 = vld [vmem:[%s329 + $0x4f8] sm:$0xff]
        %v492 = vld [vmem:[%s329 + $0x500] sm:$0xff]
        %v493 = vld [vmem:[%s329 + $0x508] sm:$0xff]
        %v494 = vld [vmem:[%s329 + $0x510] sm:$0xff]
        %v495 = vld [vmem:[%s329 + $0x518] sm:$0xff]
        %v496 = vld [vmem:[%s329 + $0x520] sm:$0xff]
        %v497 = vld [vmem:[%s329 + $0x528] sm:$0xff]
        %v498 = vld [vmem:[%s329 + $0x530] sm:$0xff]
        %v499 = vld [vmem:[%s329 + $0x538] sm:$0xff]
        %v500 = vld [vmem:[%s329 + $0x540] sm:$0xff]
        %v501 = vld [vmem:[%s329 + $0x548] sm:$0xff]
        %v502 = vld [vmem:[%s329 + $0x550] sm:$0xff]
        %v503 = vld [vmem:[%s329 + $0x558] sm:$0xff]
        %v504 = vld [vmem:[%s329 + $0x560] sm:$0xff]
        %v505 = vld [vmem:[%s329 + $0x568] sm:$0xff]
        %v506 = vld [vmem:[%s329 + $0x570] sm:$0xff]
        %v507 = vld [vmem:[%s329 + $0x578] sm:$0xff]
        %v508 = vld [vmem:[%s329 + $0x580] sm:$0xff]
        %v509 = vld [vmem:[%s329 + $0x588] sm:$0xff]
        %v510 = vld [vmem:[%s329 + $0x590] sm:$0xff]
        %v511 = vld [vmem:[%s329 + $0x598] sm:$0xff]
        %v512 = vld [vmem:[%s329 + $0x5a0] sm:$0xff]
        %v513 = vld [vmem:[%s329 + $0x5a8] sm:$0xff]
        %v514 = vld [vmem:[%s329 + $0x5b0] sm:$0xff]
        %v515 = vld [vmem:[%s329 + $0x5b8] sm:$0xff]
        %v516 = vld [vmem:[%s329 + $0x5c0] sm:$0xff]
        %v517 = vld [vmem:[%s329 + $0x5c8] sm:$0xff]
        %v518 = vld [vmem:[%s329 + $0x5d0] sm:$0xff]
        %v519 = vld [vmem:[%s329 + $0x5d8] sm:$0xff]
        %v520 = vld [vmem:[%s329 + $0x5e0] sm:$0xff]
        %v521 = vld [vmem:[%s329 + $0x5e8] sm:$0xff]
        %v522 = vld [vmem:[%s329 + $0x5f0] sm:$0xff]
        %v523 = vld [vmem:[%s329 + $0x5f8] sm:$0xff]
        %v524 = vld [vmem:[%s329 + $0x600] sm:$0xff]
        %v525 = vld [vmem:[%s329 + $0x608] sm:$0xff]
        %v526 = vld [vmem:[%s329 + $0x610] sm:$0xff]
        %v527 = vld [vmem:[%s329 + $0x618] sm:$0xff]
        %v528 = vld [vmem:[%s329 + $0x620] sm:$0xff]
        %v529 = vld [vmem:[%s329 + $0x628] sm:$0xff]
        %v530 = vld [vmem:[%s329 + $0x630] sm:$0xff]
        %v531 = vld [vmem:[%s329 + $0x638] sm:$0xff]
        %v532 = vld [vmem:[%s329 + $0x640] sm:$0xff]
        %v533 = vld [vmem:[%s329 + $0x648] sm:$0xff]
        %v534 = vld [vmem:[%s329 + $0x650] sm:$0xff]
        %v535 = vld [vmem:[%s329 + $0x658] sm:$0xff]
        %v536 = vld [vmem:[%s329 + $0x660] sm:$0xff]
        %v537 = vld [vmem:[%s329 + $0x668] sm:$0xff]
        %v538 = vld [vmem:[%s329 + $0x670] sm:$0xff]
        %v539 = vld [vmem:[%s329 + $0x678] sm:$0xff]
        %v540 = vld [vmem:[%s329 + $0x680] sm:$0xff]
        %v541 = vld [vmem:[%s329 + $0x688] sm:$0xff]
        %v542 = vld [vmem:[%s329 + $0x690] sm:$0xff]
        %v543 = vld [vmem:[%s329 + $0x698] sm:$0xff]
        %v544 = vld [vmem:[%s329 + $0x6a0] sm:$0xff]
        %v545 = vld [vmem:[%s329 + $0x6a8] sm:$0xff]
        %v546 = vld [vmem:[%s329 + $0x6b0] sm:$0xff]
        %v547 = vld [vmem:[%s329 + $0x6b8] sm:$0xff]
        %v548 = vld [vmem:[%s329 + $0x6c0] sm:$0xff]
        %v549 = vld [vmem:[%s329 + $0x6c8] sm:$0xff]
        %v550 = vld [vmem:[%s329 + $0x6d0] sm:$0xff]
        %v551 = vld [vmem:[%s329 + $0x6d8] sm:$0xff]
        %v552 = vld [vmem:[%s329 + $0x6e0] sm:$0xff]
        %v553 = vld [vmem:[%s329 + $0x6e8] sm:$0xff]
        %v554 = vld [vmem:[%s329 + $0x6f0] sm:$0xff]
        %v555 = vld [vmem:[%s329 + $0x6f8] sm:$0xff]
        %v556 = vld [vmem:[%s329 + $0x700] sm:$0xff]
        %v557 = vld [vmem:[%s329 + $0x708] sm:$0xff]
        %v558 = vld [vmem:[%s329 + $0x710] sm:$0xff]
        %v559 = vld [vmem:[%s329 + $0x718] sm:$0xff]
        %v560 = vld [vmem:[%s329 + $0x720] sm:$0xff]
        %v561 = vld [vmem:[%s329 + $0x728] sm:$0xff]
        %v562 = vld [vmem:[%s329 + $0x730] sm:$0xff]
        %v563 = vld [vmem:[%s329 + $0x738] sm:$0xff]
        %v564 = vld [vmem:[%s329 + $0x740] sm:$0xff]
        %v565 = vld [vmem:[%s329 + $0x748] sm:$0xff]
        %v566 = vld [vmem:[%s329 + $0x750] sm:$0xff]
        %v567 = vld [vmem:[%s329 + $0x758] sm:$0xff]
        %v568 = vld [vmem:[%s329 + $0x760] sm:$0xff]
        %v569 = vld [vmem:[%s329 + $0x768] sm:$0xff]
        %v570 = vld [vmem:[%s329 + $0x770] sm:$0xff]
        %v571 = vld [vmem:[%s329 + $0x778] sm:$0xff]
        %v572 = vld [vmem:[%s329 + $0x780] sm:$0xff]
        %v573 = vld [vmem:[%s329 + $0x788] sm:$0xff]
        %v574 = vld [vmem:[%s329 + $0x790] sm:$0xff]
        %v575 = vld [vmem:[%s329 + $0x798] sm:$0xff]
        %v576 = vld [vmem:[%s329 + $0x7a0] sm:$0xff]
        %v577 = vld [vmem:[%s329 + $0x7a8] sm:$0xff]
        %v578 = vld [vmem:[%s329 + $0x7b0] sm:$0xff]
        %v579 = vld [vmem:[%s329 + $0x7b8] sm:$0xff]
        %v580 = vld [vmem:[%s329 + $0x7c0] sm:$0xff]
        %v581 = vld [vmem:[%s329 + $0x7c8] sm:$0xff]
        %v582 = vld [vmem:[%s329 + $0x7d0] sm:$0xff]
        %v583 = vld [vmem:[%s329 + $0x7d8] sm:$0xff]
        %v584 = vld [vmem:[%s329 + $0x7e0] sm:$0xff]
        %v585 = vld [vmem:[%s329 + $0x7e8] sm:$0xff]
        %v586 = vld [vmem:[%s329 + $0x7f0] sm:$0xff]
        %v587 = vld [vmem:[%s329 + $0x7f8] sm:$0xff]
        %v588 = vld [vmem:[%s2] sm:$0xff]
        %v589 = vld [vmem:[%s2 + $0x8] sm:$0xff]
        %591 = vset.pattern.permute.xlu0 0
        %592 = vperm.xlu0 %591, %v588
        %v593 = vpop.permute.xlu0 %592
        %596 = vset.pattern.permute.xlu0 0
        %597 = vperm.xlu0 %596, %v589
        %v598 = vpop.permute.xlu0 %597
        %v602 = vunpack.c.l.b16 %v330
        %v603 = vunpack.c.h.b16 %v330
        %v604 = vunpack.c.l.b16 %v331
        %v605 = vunpack.c.h.b16 %v331
        %v606 = vpack.c.b16 %v604, %v602
        %v607 = vpack.c.b16 %v605, %v603
        %v866 = vunpack.c.l.b16 %v332
        %v867 = vunpack.c.h.b16 %v332
        %v868 = vunpack.c.l.b16 %v333
        %v869 = vunpack.c.h.b16 %v333
        %v870 = vunpack.c.l.b16 %v334
        %v871 = vunpack.c.h.b16 %v334
        %v872 = vunpack.c.l.b16 %v335
        %v873 = vunpack.c.h.b16 %v335
        %v874 = vunpack.c.l.b16 %v336
        %v875 = vunpack.c.h.b16 %v336
        %v876 = vunpack.c.l.b16 %v337
        %v877 = vunpack.c.h.b16 %v337
        %v878 = vunpack.c.l.b16 %v338
        %v879 = vunpack.c.h.b16 %v338
        %v880 = vunpack.c.l.b16 %v339
        %v881 = vunpack.c.h.b16 %v339
        %v882 = vunpack.c.l.b16 %v340
        %v883 = vunpack.c.h.b16 %v340
        %v884 = vunpack.c.l.b16 %v341
        %v885 = vunpack.c.h.b16 %v341
        %v886 = vunpack.c.l.b16 %v342
        %v887 = vunpack.c.h.b16 %v342
        %v888 = vunpack.c.l.b16 %v343
        %v889 = vunpack.c.h.b16 %v343
        %v890 = vunpack.c.l.b16 %v344
        %v891 = vunpack.c.h.b16 %v344
        %v892 = vunpack.c.l.b16 %v345
        %v893 = vunpack.c.h.b16 %v345
        %v894 = vunpack.c.l.b16 %v346
        %v895 = vunpack.c.h.b16 %v346
        %v896 = vunpack.c.l.b16 %v347
        %v897 = vunpack.c.h.b16 %v347
        %v898 = vunpack.c.l.b16 %v348
        %v899 = vunpack.c.h.b16 %v348
        %v900 = vunpack.c.l.b16 %v349
        %v901 = vunpack.c.h.b16 %v349
        %v902 = vunpack.c.l.b16 %v350
        %v903 = vunpack.c.h.b16 %v350
        %v904 = vunpack.c.l.b16 %v351
        %v905 = vunpack.c.h.b16 %v351
        %v906 = vunpack.c.l.b16 %v352
        %v907 = vunpack.c.h.b16 %v352
        %v908 = vunpack.c.l.b16 %v353
        %v909 = vunpack.c.h.b16 %v353
        %v910 = vunpack.c.l.b16 %v354
        %v911 = vunpack.c.h.b16 %v354
        %v912 = vunpack.c.l.b16 %v355
        %v913 = vunpack.c.h.b16 %v355
        %v914 = vunpack.c.l.b16 %v356
        %v915 = vunpack.c.h.b16 %v356
        %v916 = vunpack.c.l.b16 %v357
        %v917 = vunpack.c.h.b16 %v357
        %v918 = vunpack.c.l.b16 %v358
        %v919 = vunpack.c.h.b16 %v358
        %v920 = vunpack.c.l.b16 %v359
        %v921 = vunpack.c.h.b16 %v359
        %v922 = vunpack.c.l.b16 %v360
        %v923 = vunpack.c.h.b16 %v360
        %v924 = vunpack.c.l.b16 %v361
        %v925 = vunpack.c.h.b16 %v361
        %v926 = vunpack.c.l.b16 %v362
        %v927 = vunpack.c.h.b16 %v362
        %v928 = vunpack.c.l.b16 %v363
        %v929 = vunpack.c.h.b16 %v363
        %v930 = vunpack.c.l.b16 %v364
        %v931 = vunpack.c.h.b16 %v364
        %v932 = vunpack.c.l.b16 %v365
        %v933 = vunpack.c.h.b16 %v365
        %v934 = vunpack.c.l.b16 %v366
        %v935 = vunpack.c.h.b16 %v366
        %v936 = vunpack.c.l.b16 %v367
        %v937 = vunpack.c.h.b16 %v367
        %v938 = vunpack.c.l.b16 %v368
        %v939 = vunpack.c.h.b16 %v368
        %v940 = vunpack.c.l.b16 %v369
        %v941 = vunpack.c.h.b16 %v369
        %v942 = vunpack.c.l.b16 %v370
        %v943 = vunpack.c.h.b16 %v370
        %v944 = vunpack.c.l.b16 %v371
        %v945 = vunpack.c.h.b16 %v371
        %v946 = vunpack.c.l.b16 %v372
        %v947 = vunpack.c.h.b16 %v372
        %v948 = vunpack.c.l.b16 %v373
        %v949 = vunpack.c.h.b16 %v373
        %v950 = vunpack.c.l.b16 %v374
        %v951 = vunpack.c.h.b16 %v374
        %v952 = vunpack.c.l.b16 %v375
        %v953 = vunpack.c.h.b16 %v375
        %v954 = vunpack.c.l.b16 %v376
        %v955 = vunpack.c.h.b16 %v376
        %v956 = vunpack.c.l.b16 %v377
        %v957 = vunpack.c.h.b16 %v377
        %v958 = vunpack.c.l.b16 %v378
        %v959 = vunpack.c.h.b16 %v378
        %v960 = vunpack.c.l.b16 %v379
        %v961 = vunpack.c.h.b16 %v379
        %v962 = vunpack.c.l.b16 %v380
        %v963 = vunpack.c.h.b16 %v380
        %v964 = vunpack.c.l.b16 %v381
        %v965 = vunpack.c.h.b16 %v381
        %v966 = vunpack.c.l.b16 %v382
        %v967 = vunpack.c.h.b16 %v382
        %v968 = vunpack.c.l.b16 %v383
        %v969 = vunpack.c.h.b16 %v383
        %v970 = vunpack.c.l.b16 %v384
        %v971 = vunpack.c.h.b16 %v384
        %v972 = vunpack.c.l.b16 %v385
        %v973 = vunpack.c.h.b16 %v385
        %v974 = vunpack.c.l.b16 %v386
        %v975 = vunpack.c.h.b16 %v386
        %v976 = vunpack.c.l.b16 %v387
        %v977 = vunpack.c.h.b16 %v387
        %v978 = vunpack.c.l.b16 %v388
        %v979 = vunpack.c.h.b16 %v388
        %v980 = vunpack.c.l.b16 %v389
        %v981 = vunpack.c.h.b16 %v389
        %v982 = vunpack.c.l.b16 %v390
        %v983 = vunpack.c.h.b16 %v390
        %v984 = vunpack.c.l.b16 %v391
        %v985 = vunpack.c.h.b16 %v391
        %v986 = vunpack.c.l.b16 %v392
        %v987 = vunpack.c.h.b16 %v392
        %v988 = vunpack.c.l.b16 %v393
        %v989 = vunpack.c.h.b16 %v393
        %v990 = vunpack.c.l.b16 %v394
        %v991 = vunpack.c.h.b16 %v394
        %v992 = vunpack.c.l.b16 %v395
        %v993 = vunpack.c.h.b16 %v395
        %v994 = vunpack.c.l.b16 %v396
        %v995 = vunpack.c.h.b16 %v396
        %v996 = vunpack.c.l.b16 %v397
        %v997 = vunpack.c.h.b16 %v397
        %v998 = vunpack.c.l.b16 %v398
        %v999 = vunpack.c.h.b16 %v398
        %v1000 = vunpack.c.l.b16 %v399
        %v1001 = vunpack.c.h.b16 %v399
        %v1002 = vunpack.c.l.b16 %v400
        %v1003 = vunpack.c.h.b16 %v400
        %v1004 = vunpack.c.l.b16 %v401
        %v1005 = vunpack.c.h.b16 %v401
        %v1006 = vunpack.c.l.b16 %v402
        %v1007 = vunpack.c.h.b16 %v402
        %v1008 = vunpack.c.l.b16 %v403
        %v1009 = vunpack.c.h.b16 %v403
        %v1010 = vunpack.c.l.b16 %v404
        %v1011 = vunpack.c.h.b16 %v404
        %v1012 = vunpack.c.l.b16 %v405
        %v1013 = vunpack.c.h.b16 %v405
        %v1014 = vunpack.c.l.b16 %v406
        %v1015 = vunpack.c.h.b16 %v406
        %v1016 = vunpack.c.l.b16 %v407
        %v1017 = vunpack.c.h.b16 %v407
        %v1018 = vunpack.c.l.b16 %v408
        %v1019 = vunpack.c.h.b16 %v408
        %v1020 = vunpack.c.l.b16 %v409
        %v1021 = vunpack.c.h.b16 %v409
        %v1022 = vunpack.c.l.b16 %v410
        %v1023 = vunpack.c.h.b16 %v410
        %v1024 = vunpack.c.l.b16 %v411
        %v1025 = vunpack.c.h.b16 %v411
        %v1026 = vunpack.c.l.b16 %v412
        %v1027 = vunpack.c.h.b16 %v412
        %v1028 = vunpack.c.l.b16 %v413
        %v1029 = vunpack.c.h.b16 %v413
        %v1030 = vunpack.c.l.b16 %v414
        %v1031 = vunpack.c.h.b16 %v414
        %v1032 = vunpack.c.l.b16 %v415
        %v1033 = vunpack.c.h.b16 %v415
        %v1034 = vunpack.c.l.b16 %v416
        %v1035 = vunpack.c.h.b16 %v416
        %v1036 = vunpack.c.l.b16 %v417
        %v1037 = vunpack.c.h.b16 %v417
        %v1038 = vunpack.c.l.b16 %v418
        %v1039 = vunpack.c.h.b16 %v418
        %v1040 = vunpack.c.l.b16 %v419
        %v1041 = vunpack.c.h.b16 %v419
        %v1042 = vunpack.c.l.b16 %v420
        %v1043 = vunpack.c.h.b16 %v420
        %v1044 = vunpack.c.l.b16 %v421
        %v1045 = vunpack.c.h.b16 %v421
        %v1046 = vunpack.c.l.b16 %v422
        %v1047 = vunpack.c.h.b16 %v422
        %v1048 = vunpack.c.l.b16 %v423
        %v1049 = vunpack.c.h.b16 %v423
        %v1050 = vunpack.c.l.b16 %v424
        %v1051 = vunpack.c.h.b16 %v424
        %v1052 = vunpack.c.l.b16 %v425
        %v1053 = vunpack.c.h.b16 %v425
        %v1054 = vunpack.c.l.b16 %v426
        %v1055 = vunpack.c.h.b16 %v426
        %v1056 = vunpack.c.l.b16 %v427
        %v1057 = vunpack.c.h.b16 %v427
        %v1058 = vunpack.c.l.b16 %v428
        %v1059 = vunpack.c.h.b16 %v428
        %v1060 = vunpack.c.l.b16 %v429
        %v1061 = vunpack.c.h.b16 %v429
        %v1062 = vunpack.c.l.b16 %v430
        %v1063 = vunpack.c.h.b16 %v430
        %v1064 = vunpack.c.l.b16 %v431
        %v1065 = vunpack.c.h.b16 %v431
        %v1066 = vunpack.c.l.b16 %v432
        %v1067 = vunpack.c.h.b16 %v432
        %v1068 = vunpack.c.l.b16 %v433
        %v1069 = vunpack.c.h.b16 %v433
        %v1070 = vunpack.c.l.b16 %v434
        %v1071 = vunpack.c.h.b16 %v434
        %v1072 = vunpack.c.l.b16 %v435
        %v1073 = vunpack.c.h.b16 %v435
        %v1074 = vunpack.c.l.b16 %v436
        %v1075 = vunpack.c.h.b16 %v436
        %v1076 = vunpack.c.l.b16 %v437
        %v1077 = vunpack.c.h.b16 %v437
        %v1078 = vunpack.c.l.b16 %v438
        %v1079 = vunpack.c.h.b16 %v438
        %v1080 = vunpack.c.l.b16 %v439
        %v1081 = vunpack.c.h.b16 %v439
        %v1082 = vunpack.c.l.b16 %v440
        %v1083 = vunpack.c.h.b16 %v440
        %v1084 = vunpack.c.l.b16 %v441
        %v1085 = vunpack.c.h.b16 %v441
        %v1086 = vunpack.c.l.b16 %v442
        %v1087 = vunpack.c.h.b16 %v442
        %v1088 = vunpack.c.l.b16 %v443
        %v1089 = vunpack.c.h.b16 %v443
        %v1090 = vunpack.c.l.b16 %v444
        %v1091 = vunpack.c.h.b16 %v444
        %v1092 = vunpack.c.l.b16 %v445
        %v1093 = vunpack.c.h.b16 %v445
        %v1094 = vunpack.c.l.b16 %v446
        %v1095 = vunpack.c.h.b16 %v446
        %v1096 = vunpack.c.l.b16 %v447
        %v1097 = vunpack.c.h.b16 %v447
        %v1098 = vunpack.c.l.b16 %v448
        %v1099 = vunpack.c.h.b16 %v448
        %v1100 = vunpack.c.l.b16 %v449
        %v1101 = vunpack.c.h.b16 %v449
        %v1102 = vunpack.c.l.b16 %v450
        %v1103 = vunpack.c.h.b16 %v450
        %v1104 = vunpack.c.l.b16 %v451
        %v1105 = vunpack.c.h.b16 %v451
        %v1106 = vunpack.c.l.b16 %v452
        %v1107 = vunpack.c.h.b16 %v452
        %v1108 = vunpack.c.l.b16 %v453
        %v1109 = vunpack.c.h.b16 %v453
        %v1110 = vunpack.c.l.b16 %v454
        %v1111 = vunpack.c.h.b16 %v454
        %v1112 = vunpack.c.l.b16 %v455
        %v1113 = vunpack.c.h.b16 %v455
        %v1114 = vunpack.c.l.b16 %v456
        %v1115 = vunpack.c.h.b16 %v456
        %v1116 = vunpack.c.l.b16 %v457
        %v1117 = vunpack.c.h.b16 %v457
        %v1118 = vunpack.c.l.b16 %v458
        %v1119 = vunpack.c.h.b16 %v458
        %v1120 = vunpack.c.l.b16 %v459
        %v1121 = vunpack.c.h.b16 %v459
        %v1122 = vunpack.c.l.b16 %v460
        %v1123 = vunpack.c.h.b16 %v460
        %v1124 = vunpack.c.l.b16 %v461
        %v1125 = vunpack.c.h.b16 %v461
        %v1126 = vunpack.c.l.b16 %v462
        %v1127 = vunpack.c.h.b16 %v462
        %v1128 = vunpack.c.l.b16 %v463
        %v1129 = vunpack.c.h.b16 %v463
        %v1130 = vunpack.c.l.b16 %v464
        %v1131 = vunpack.c.h.b16 %v464
        %v1132 = vunpack.c.l.b16 %v465
        %v1133 = vunpack.c.h.b16 %v465
        %v1134 = vunpack.c.l.b16 %v466
        %v1135 = vunpack.c.h.b16 %v466
        %v1136 = vunpack.c.l.b16 %v467
        %v1137 = vunpack.c.h.b16 %v467
        %v1138 = vunpack.c.l.b16 %v468
        %v1139 = vunpack.c.h.b16 %v468
        %v1140 = vunpack.c.l.b16 %v469
        %v1141 = vunpack.c.h.b16 %v469
        %v1142 = vunpack.c.l.b16 %v470
        %v1143 = vunpack.c.h.b16 %v470
        %v1144 = vunpack.c.l.b16 %v471
        %v1145 = vunpack.c.h.b16 %v471
        %v1146 = vunpack.c.l.b16 %v472
        %v1147 = vunpack.c.h.b16 %v472
        %v1148 = vunpack.c.l.b16 %v473
        %v1149 = vunpack.c.h.b16 %v473
        %v1150 = vunpack.c.l.b16 %v474
        %v1151 = vunpack.c.h.b16 %v474
        %v1152 = vunpack.c.l.b16 %v475
        %v1153 = vunpack.c.h.b16 %v475
        %v1154 = vunpack.c.l.b16 %v476
        %v1155 = vunpack.c.h.b16 %v476
        %v1156 = vunpack.c.l.b16 %v477
        %v1157 = vunpack.c.h.b16 %v477
        %v1158 = vunpack.c.l.b16 %v478
        %v1159 = vunpack.c.h.b16 %v478
        %v1160 = vunpack.c.l.b16 %v479
        %v1161 = vunpack.c.h.b16 %v479
        %v1162 = vunpack.c.l.b16 %v480
        %v1163 = vunpack.c.h.b16 %v480
        %v1164 = vunpack.c.l.b16 %v481
        %v1165 = vunpack.c.h.b16 %v481
        %v1166 = vunpack.c.l.b16 %v482
        %v1167 = vunpack.c.h.b16 %v482
        %v1168 = vunpack.c.l.b16 %v483
        %v1169 = vunpack.c.h.b16 %v483
        %v1170 = vunpack.c.l.b16 %v484
        %v1171 = vunpack.c.h.b16 %v484
        %v1172 = vunpack.c.l.b16 %v485
        %v1173 = vunpack.c.h.b16 %v485
        %v1174 = vunpack.c.l.b16 %v486
        %v1175 = vunpack.c.h.b16 %v486
        %v1176 = vunpack.c.l.b16 %v487
        %v1177 = vunpack.c.h.b16 %v487
        %v1178 = vunpack.c.l.b16 %v488
        %v1179 = vunpack.c.h.b16 %v488
        %v1180 = vunpack.c.l.b16 %v489
        %v1181 = vunpack.c.h.b16 %v489
        %v1182 = vunpack.c.l.b16 %v490
        %v1183 = vunpack.c.h.b16 %v490
        %v1184 = vunpack.c.l.b16 %v491
        %v1185 = vunpack.c.h.b16 %v491
        %v1186 = vunpack.c.l.b16 %v492
        %v1187 = vunpack.c.h.b16 %v492
        %v1188 = vunpack.c.l.b16 %v493
        %v1189 = vunpack.c.h.b16 %v493
        %v1190 = vunpack.c.l.b16 %v494
        %v1191 = vunpack.c.h.b16 %v494
        %v1192 = vunpack.c.l.b16 %v495
        %v1193 = vunpack.c.h.b16 %v495
        %v1194 = vunpack.c.l.b16 %v496
        %v1195 = vunpack.c.h.b16 %v496
        %v1196 = vunpack.c.l.b16 %v497
        %v1197 = vunpack.c.h.b16 %v497
        %v1198 = vunpack.c.l.b16 %v498
        %v1199 = vunpack.c.h.b16 %v498
        %v1200 = vunpack.c.l.b16 %v499
        %v1201 = vunpack.c.h.b16 %v499
        %v1202 = vunpack.c.l.b16 %v500
        %v1203 = vunpack.c.h.b16 %v500
        %v1204 = vunpack.c.l.b16 %v501
        %v1205 = vunpack.c.h.b16 %v501
        %v1206 = vunpack.c.l.b16 %v502
        %v1207 = vunpack.c.h.b16 %v502
        %v1208 = vunpack.c.l.b16 %v503
        %v1209 = vunpack.c.h.b16 %v503
        %v1210 = vunpack.c.l.b16 %v504
        %v1211 = vunpack.c.h.b16 %v504
        %v1212 = vunpack.c.l.b16 %v505
        %v1213 = vunpack.c.h.b16 %v505
        %v1214 = vunpack.c.l.b16 %v506
        %v1215 = vunpack.c.h.b16 %v506
        %v1216 = vunpack.c.l.b16 %v507
        %v1217 = vunpack.c.h.b16 %v507
        %v1218 = vunpack.c.l.b16 %v508
        %v1219 = vunpack.c.h.b16 %v508
        %v1220 = vunpack.c.l.b16 %v509
        %v1221 = vunpack.c.h.b16 %v509
        %v1222 = vunpack.c.l.b16 %v510
        %v1223 = vunpack.c.h.b16 %v510
        %v1224 = vunpack.c.l.b16 %v511
        %v1225 = vunpack.c.h.b16 %v511
        %v1226 = vunpack.c.l.b16 %v512
        %v1227 = vunpack.c.h.b16 %v512
        %v1228 = vunpack.c.l.b16 %v513
        %v1229 = vunpack.c.h.b16 %v513
        %v1230 = vunpack.c.l.b16 %v514
        %v1231 = vunpack.c.h.b16 %v514
        %v1232 = vunpack.c.l.b16 %v515
        %v1233 = vunpack.c.h.b16 %v515
        %v1234 = vunpack.c.l.b16 %v516
        %v1235 = vunpack.c.h.b16 %v516
        %v1236 = vunpack.c.l.b16 %v517
        %v1237 = vunpack.c.h.b16 %v517
        %v1238 = vunpack.c.l.b16 %v518
        %v1239 = vunpack.c.h.b16 %v518
        %v1240 = vunpack.c.l.b16 %v519
        %v1241 = vunpack.c.h.b16 %v519
        %v1242 = vunpack.c.l.b16 %v520
        %v1243 = vunpack.c.h.b16 %v520
        %v1244 = vunpack.c.l.b16 %v521
        %v1245 = vunpack.c.h.b16 %v521
        %v1246 = vunpack.c.l.b16 %v522
        %v1247 = vunpack.c.h.b16 %v522
        %v1248 = vunpack.c.l.b16 %v523
        %v1249 = vunpack.c.h.b16 %v523
        %v1250 = vunpack.c.l.b16 %v524
        %v1251 = vunpack.c.h.b16 %v524
        %v1252 = vunpack.c.l.b16 %v525
        %v1253 = vunpack.c.h.b16 %v525
        %v1254 = vunpack.c.l.b16 %v526
        %v1255 = vunpack.c.h.b16 %v526
        %v1256 = vunpack.c.l.b16 %v527
        %v1257 = vunpack.c.h.b16 %v527
        %v1258 = vunpack.c.l.b16 %v528
        %v1259 = vunpack.c.h.b16 %v528
        %v1260 = vunpack.c.l.b16 %v529
        %v1261 = vunpack.c.h.b16 %v529
        %v1262 = vunpack.c.l.b16 %v530
        %v1263 = vunpack.c.h.b16 %v530
        %v1264 = vunpack.c.l.b16 %v531
        %v1265 = vunpack.c.h.b16 %v531
        %v1266 = vunpack.c.l.b16 %v532
        %v1267 = vunpack.c.h.b16 %v532
        %v1268 = vunpack.c.l.b16 %v533
        %v1269 = vunpack.c.h.b16 %v533
        %v1270 = vunpack.c.l.b16 %v534
        %v1271 = vunpack.c.h.b16 %v534
        %v1272 = vunpack.c.l.b16 %v535
        %v1273 = vunpack.c.h.b16 %v535
        %v1274 = vunpack.c.l.b16 %v536
        %v1275 = vunpack.c.h.b16 %v536
        %v1276 = vunpack.c.l.b16 %v537
        %v1277 = vunpack.c.h.b16 %v537
        %v1278 = vunpack.c.l.b16 %v538
        %v1279 = vunpack.c.h.b16 %v538
        %v1280 = vunpack.c.l.b16 %v539
        %v1281 = vunpack.c.h.b16 %v539
        %v1282 = vunpack.c.l.b16 %v540
        %v1283 = vunpack.c.h.b16 %v540
        %v1284 = vunpack.c.l.b16 %v541
        %v1285 = vunpack.c.h.b16 %v541
        %v1286 = vunpack.c.l.b16 %v542
        %v1287 = vunpack.c.h.b16 %v542
        %v1288 = vunpack.c.l.b16 %v543
        %v1289 = vunpack.c.h.b16 %v543
        %v1290 = vunpack.c.l.b16 %v544
        %v1291 = vunpack.c.h.b16 %v544
        %v1292 = vunpack.c.l.b16 %v545
        %v1293 = vunpack.c.h.b16 %v545
        %v1294 = vunpack.c.l.b16 %v546
        %v1295 = vunpack.c.h.b16 %v546
        %v1296 = vunpack.c.l.b16 %v547
        %v1297 = vunpack.c.h.b16 %v547
        %v1298 = vunpack.c.l.b16 %v548
        %v1299 = vunpack.c.h.b16 %v548
        %v1300 = vunpack.c.l.b16 %v549
        %v1301 = vunpack.c.h.b16 %v549
        %v1302 = vunpack.c.l.b16 %v550
        %v1303 = vunpack.c.h.b16 %v550
        %v1304 = vunpack.c.l.b16 %v551
        %v1305 = vunpack.c.h.b16 %v551
        %v1306 = vunpack.c.l.b16 %v552
        %v1307 = vunpack.c.h.b16 %v552
        %v1308 = vunpack.c.l.b16 %v553
        %v1309 = vunpack.c.h.b16 %v553
        %v1310 = vunpack.c.l.b16 %v554
        %v1311 = vunpack.c.h.b16 %v554
        %v1312 = vunpack.c.l.b16 %v555
        %v1313 = vunpack.c.h.b16 %v555
        %v1314 = vunpack.c.l.b16 %v556
        %v1315 = vunpack.c.h.b16 %v556
        %v1316 = vunpack.c.l.b16 %v557
        %v1317 = vunpack.c.h.b16 %v557
        %v1318 = vunpack.c.l.b16 %v558
        %v1319 = vunpack.c.h.b16 %v558
        %v1320 = vunpack.c.l.b16 %v559
        %v1321 = vunpack.c.h.b16 %v559
        %v1322 = vunpack.c.l.b16 %v560
        %v1323 = vunpack.c.h.b16 %v560
        %v1324 = vunpack.c.l.b16 %v561
        %v1325 = vunpack.c.h.b16 %v561
        %v1326 = vunpack.c.l.b16 %v562
        %v1327 = vunpack.c.h.b16 %v562
        %v1328 = vunpack.c.l.b16 %v563
        %v1329 = vunpack.c.h.b16 %v563
        %v1330 = vunpack.c.l.b16 %v564
        %v1331 = vunpack.c.h.b16 %v564
        %v1332 = vunpack.c.l.b16 %v565
        %v1333 = vunpack.c.h.b16 %v565
        %v1334 = vunpack.c.l.b16 %v566
        %v1335 = vunpack.c.h.b16 %v566
        %v1336 = vunpack.c.l.b16 %v567
        %v1337 = vunpack.c.h.b16 %v567
        %v1338 = vunpack.c.l.b16 %v568
        %v1339 = vunpack.c.h.b16 %v568
        %v1340 = vunpack.c.l.b16 %v569
        %v1341 = vunpack.c.h.b16 %v569
        %v1342 = vunpack.c.l.b16 %v570
        %v1343 = vunpack.c.h.b16 %v570
        %v1344 = vunpack.c.l.b16 %v571
        %v1345 = vunpack.c.h.b16 %v571
        %v1346 = vunpack.c.l.b16 %v572
        %v1347 = vunpack.c.h.b16 %v572
        %v1348 = vunpack.c.l.b16 %v573
        %v1349 = vunpack.c.h.b16 %v573
        %v1350 = vunpack.c.l.b16 %v574
        %v1351 = vunpack.c.h.b16 %v574
        %v1352 = vunpack.c.l.b16 %v575
        %v1353 = vunpack.c.h.b16 %v575
        %v1354 = vunpack.c.l.b16 %v576
        %v1355 = vunpack.c.h.b16 %v576
        %v1356 = vunpack.c.l.b16 %v577
        %v1357 = vunpack.c.h.b16 %v577
        %v1358 = vunpack.c.l.b16 %v578
        %v1359 = vunpack.c.h.b16 %v578
        %v1360 = vunpack.c.l.b16 %v579
        %v1361 = vunpack.c.h.b16 %v579
        %v1362 = vunpack.c.l.b16 %v580
        %v1363 = vunpack.c.h.b16 %v580
        %v1364 = vunpack.c.l.b16 %v581
        %v1365 = vunpack.c.h.b16 %v581
        %v1366 = vunpack.c.l.b16 %v582
        %v1367 = vunpack.c.h.b16 %v582
        %v1368 = vunpack.c.l.b16 %v583
        %v1369 = vunpack.c.h.b16 %v583
        %v1370 = vunpack.c.l.b16 %v584
        %v1371 = vunpack.c.h.b16 %v584
        %v1372 = vunpack.c.l.b16 %v585
        %v1373 = vunpack.c.h.b16 %v585
        %v1374 = vunpack.c.l.b16 %v586
        %v1375 = vunpack.c.h.b16 %v586
        %v1376 = vunpack.c.l.b16 %v587
        %v1377 = vunpack.c.h.b16 %v587
        %v1378 = vpack.c.b16 %v882, %v866
        %v1379 = vpack.c.b16 %v883, %v867
        %v1380 = vpack.c.b16 %v884, %v868
        %v1381 = vpack.c.b16 %v885, %v869
        %v1382 = vpack.c.b16 %v886, %v870
        %v1383 = vpack.c.b16 %v887, %v871
        %v1384 = vpack.c.b16 %v888, %v872
        %v1385 = vpack.c.b16 %v889, %v873
        %v1386 = vpack.c.b16 %v890, %v874
        %v1387 = vpack.c.b16 %v891, %v875
        %v1388 = vpack.c.b16 %v892, %v876
        %v1389 = vpack.c.b16 %v893, %v877
        %v1390 = vpack.c.b16 %v894, %v878
        %v1391 = vpack.c.b16 %v895, %v879
        %v1392 = vpack.c.b16 %v896, %v880
        %v1393 = vpack.c.b16 %v897, %v881
        %v1394 = vpack.c.b16 %v914, %v898
        %v1395 = vpack.c.b16 %v915, %v899
        %v1396 = vpack.c.b16 %v916, %v900
        %v1397 = vpack.c.b16 %v917, %v901
        %v1398 = vpack.c.b16 %v918, %v902
        %v1399 = vpack.c.b16 %v919, %v903
        %v1400 = vpack.c.b16 %v920, %v904
        %v1401 = vpack.c.b16 %v921, %v905
        %v1402 = vpack.c.b16 %v922, %v906
        %v1403 = vpack.c.b16 %v923, %v907
        %v1404 = vpack.c.b16 %v924, %v908
        %v1405 = vpack.c.b16 %v925, %v909
        %v1406 = vpack.c.b16 %v926, %v910
        %v1407 = vpack.c.b16 %v927, %v911
        %v1408 = vpack.c.b16 %v928, %v912
        %v1409 = vpack.c.b16 %v929, %v913
        %v1410 = vpack.c.b16 %v946, %v930
        %v1411 = vpack.c.b16 %v947, %v931
        %v1412 = vpack.c.b16 %v948, %v932
        %v1413 = vpack.c.b16 %v949, %v933
        %v1414 = vpack.c.b16 %v950, %v934
        %v1415 = vpack.c.b16 %v951, %v935
        %v1416 = vpack.c.b16 %v952, %v936
        %v1417 = vpack.c.b16 %v953, %v937
        %v1418 = vpack.c.b16 %v954, %v938
        %v1419 = vpack.c.b16 %v955, %v939
        %v1420 = vpack.c.b16 %v956, %v940
        %v1421 = vpack.c.b16 %v957, %v941
        %v1422 = vpack.c.b16 %v958, %v942
        %v1423 = vpack.c.b16 %v959, %v943
        %v1424 = vpack.c.b16 %v960, %v944
        %v1425 = vpack.c.b16 %v961, %v945
        %v1426 = vpack.c.b16 %v978, %v962
        %v1427 = vpack.c.b16 %v979, %v963
        %v1428 = vpack.c.b16 %v980, %v964
        %v1429 = vpack.c.b16 %v981, %v965
        %v1430 = vpack.c.b16 %v982, %v966
        %v1431 = vpack.c.b16 %v983, %v967
        %v1432 = vpack.c.b16 %v984, %v968
        %v1433 = vpack.c.b16 %v985, %v969
        %v1434 = vpack.c.b16 %v986, %v970
        %v1435 = vpack.c.b16 %v987, %v971
        %v1436 = vpack.c.b16 %v988, %v972
        %v1437 = vpack.c.b16 %v989, %v973
        %v1438 = vpack.c.b16 %v990, %v974
        %v1439 = vpack.c.b16 %v991, %v975
        %v1440 = vpack.c.b16 %v992, %v976
        %v1441 = vpack.c.b16 %v993, %v977
        %v1442 = vpack.c.b16 %v1010, %v994
        %v1443 = vpack.c.b16 %v1011, %v995
        %v1444 = vpack.c.b16 %v1012, %v996
        %v1445 = vpack.c.b16 %v1013, %v997
        %v1446 = vpack.c.b16 %v1014, %v998
        %v1447 = vpack.c.b16 %v1015, %v999
        %v1448 = vpack.c.b16 %v1016, %v1000
        %v1449 = vpack.c.b16 %v1017, %v1001
        %v1450 = vpack.c.b16 %v1018, %v1002
        %v1451 = vpack.c.b16 %v1019, %v1003
        %v1452 = vpack.c.b16 %v1020, %v1004
        %v1453 = vpack.c.b16 %v1021, %v1005
        %v1454 = vpack.c.b16 %v1022, %v1006
        %v1455 = vpack.c.b16 %v1023, %v1007
        %v1456 = vpack.c.b16 %v1024, %v1008
        %v1457 = vpack.c.b16 %v1025, %v1009
        %v1458 = vpack.c.b16 %v1042, %v1026
        %v1459 = vpack.c.b16 %v1043, %v1027
        %v1460 = vpack.c.b16 %v1044, %v1028
        %v1461 = vpack.c.b16 %v1045, %v1029
        %v1462 = vpack.c.b16 %v1046, %v1030
        %v1463 = vpack.c.b16 %v1047, %v1031
        %v1464 = vpack.c.b16 %v1048, %v1032
        %v1465 = vpack.c.b16 %v1049, %v1033
        %v1466 = vpack.c.b16 %v1050, %v1034
        %v1467 = vpack.c.b16 %v1051, %v1035
        %v1468 = vpack.c.b16 %v1052, %v1036
        %v1469 = vpack.c.b16 %v1053, %v1037
        %v1470 = vpack.c.b16 %v1054, %v1038
        %v1471 = vpack.c.b16 %v1055, %v1039
        %v1472 = vpack.c.b16 %v1056, %v1040
        %v1473 = vpack.c.b16 %v1057, %v1041
        %v1474 = vpack.c.b16 %v1074, %v1058
        %v1475 = vpack.c.b16 %v1075, %v1059
        %v1476 = vpack.c.b16 %v1076, %v1060
        %v1477 = vpack.c.b16 %v1077, %v1061
        %v1478 = vpack.c.b16 %v1078, %v1062
        %v1479 = vpack.c.b16 %v1079, %v1063
        %v1480 = vpack.c.b16 %v1080, %v1064
        %v1481 = vpack.c.b16 %v1081, %v1065
        %v1482 = vpack.c.b16 %v1082, %v1066
        %v1483 = vpack.c.b16 %v1083, %v1067
        %v1484 = vpack.c.b16 %v1084, %v1068
        %v1485 = vpack.c.b16 %v1085, %v1069
        %v1486 = vpack.c.b16 %v1086, %v1070
        %v1487 = vpack.c.b16 %v1087, %v1071
        %v1488 = vpack.c.b16 %v1088, %v1072
        %v1489 = vpack.c.b16 %v1089, %v1073
        %v1490 = vpack.c.b16 %v1106, %v1090
        %v1491 = vpack.c.b16 %v1107, %v1091
        %v1492 = vpack.c.b16 %v1108, %v1092
        %v1493 = vpack.c.b16 %v1109, %v1093
        %v1494 = vpack.c.b16 %v1110, %v1094
        %v1495 = vpack.c.b16 %v1111, %v1095
        %v1496 = vpack.c.b16 %v1112, %v1096
        %v1497 = vpack.c.b16 %v1113, %v1097
        %v1498 = vpack.c.b16 %v1114, %v1098
        %v1499 = vpack.c.b16 %v1115, %v1099
        %v1500 = vpack.c.b16 %v1116, %v1100
        %v1501 = vpack.c.b16 %v1117, %v1101
        %v1502 = vpack.c.b16 %v1118, %v1102
        %v1503 = vpack.c.b16 %v1119, %v1103
        %v1504 = vpack.c.b16 %v1120, %v1104
        %v1505 = vpack.c.b16 %v1121, %v1105
        %v1506 = vpack.c.b16 %v1138, %v1122
        %v1507 = vpack.c.b16 %v1139, %v1123
        %v1508 = vpack.c.b16 %v1140, %v1124
        %v1509 = vpack.c.b16 %v1141, %v1125
        %v1510 = vpack.c.b16 %v1142, %v1126
        %v1511 = vpack.c.b16 %v1143, %v1127
        %v1512 = vpack.c.b16 %v1144, %v1128
        %v1513 = vpack.c.b16 %v1145, %v1129
        %v1514 = vpack.c.b16 %v1146, %v1130
        %v1515 = vpack.c.b16 %v1147, %v1131
        %v1516 = vpack.c.b16 %v1148, %v1132
        %v1517 = vpack.c.b16 %v1149, %v1133
        %v1518 = vpack.c.b16 %v1150, %v1134
        %v1519 = vpack.c.b16 %v1151, %v1135
        %v1520 = vpack.c.b16 %v1152, %v1136
        %v1521 = vpack.c.b16 %v1153, %v1137
        %v1522 = vpack.c.b16 %v1170, %v1154
        %v1523 = vpack.c.b16 %v1171, %v1155
        %v1524 = vpack.c.b16 %v1172, %v1156
        %v1525 = vpack.c.b16 %v1173, %v1157
        %v1526 = vpack.c.b16 %v1174, %v1158
        %v1527 = vpack.c.b16 %v1175, %v1159
        %v1528 = vpack.c.b16 %v1176, %v1160
        %v1529 = vpack.c.b16 %v1177, %v1161
        %v1530 = vpack.c.b16 %v1178, %v1162
        %v1531 = vpack.c.b16 %v1179, %v1163
        %v1532 = vpack.c.b16 %v1180, %v1164
        %v1533 = vpack.c.b16 %v1181, %v1165
        %v1534 = vpack.c.b16 %v1182, %v1166
        %v1535 = vpack.c.b16 %v1183, %v1167
        %v1536 = vpack.c.b16 %v1184, %v1168
        %v1537 = vpack.c.b16 %v1185, %v1169
        %v1538 = vpack.c.b16 %v1202, %v1186
        %v1539 = vpack.c.b16 %v1203, %v1187
        %v1540 = vpack.c.b16 %v1204, %v1188
        %v1541 = vpack.c.b16 %v1205, %v1189
        %v1542 = vpack.c.b16 %v1206, %v1190
        %v1543 = vpack.c.b16 %v1207, %v1191
        %v1544 = vpack.c.b16 %v1208, %v1192
        %v1545 = vpack.c.b16 %v1209, %v1193
        %v1546 = vpack.c.b16 %v1210, %v1194
        %v1547 = vpack.c.b16 %v1211, %v1195
        %v1548 = vpack.c.b16 %v1212, %v1196
        %v1549 = vpack.c.b16 %v1213, %v1197
        %v1550 = vpack.c.b16 %v1214, %v1198
        %v1551 = vpack.c.b16 %v1215, %v1199
        %v1552 = vpack.c.b16 %v1216, %v1200
        %v1553 = vpack.c.b16 %v1217, %v1201
        %v1554 = vpack.c.b16 %v1234, %v1218
        %v1555 = vpack.c.b16 %v1235, %v1219
        %v1556 = vpack.c.b16 %v1236, %v1220
        %v1557 = vpack.c.b16 %v1237, %v1221
        %v1558 = vpack.c.b16 %v1238, %v1222
        %v1559 = vpack.c.b16 %v1239, %v1223
        %v1560 = vpack.c.b16 %v1240, %v1224
        %v1561 = vpack.c.b16 %v1241, %v1225
        %v1562 = vpack.c.b16 %v1242, %v1226
        %v1563 = vpack.c.b16 %v1243, %v1227
        %v1564 = vpack.c.b16 %v1244, %v1228
        %v1565 = vpack.c.b16 %v1245, %v1229
        %v1566 = vpack.c.b16 %v1246, %v1230
        %v1567 = vpack.c.b16 %v1247, %v1231
        %v1568 = vpack.c.b16 %v1248, %v1232
        %v1569 = vpack.c.b16 %v1249, %v1233
        %v1570 = vpack.c.b16 %v1266, %v1250
        %v1571 = vpack.c.b16 %v1267, %v1251
        %v1572 = vpack.c.b16 %v1268, %v1252
        %v1573 = vpack.c.b16 %v1269, %v1253
        %v1574 = vpack.c.b16 %v1270, %v1254
        %v1575 = vpack.c.b16 %v1271, %v1255
        %v1576 = vpack.c.b16 %v1272, %v1256
        %v1577 = vpack.c.b16 %v1273, %v1257
        %v1578 = vpack.c.b16 %v1274, %v1258
        %v1579 = vpack.c.b16 %v1275, %v1259
        %v1580 = vpack.c.b16 %v1276, %v1260
        %v1581 = vpack.c.b16 %v1277, %v1261
        %v1582 = vpack.c.b16 %v1278, %v1262
        %v1583 = vpack.c.b16 %v1279, %v1263
        %v1584 = vpack.c.b16 %v1280, %v1264
        %v1585 = vpack.c.b16 %v1281, %v1265
        %v1586 = vpack.c.b16 %v1298, %v1282
        %v1587 = vpack.c.b16 %v1299, %v1283
        %v1588 = vpack.c.b16 %v1300, %v1284
        %v1589 = vpack.c.b16 %v1301, %v1285
        %v1590 = vpack.c.b16 %v1302, %v1286
        %v1591 = vpack.c.b16 %v1303, %v1287
        %v1592 = vpack.c.b16 %v1304, %v1288
        %v1593 = vpack.c.b16 %v1305, %v1289
        %v1594 = vpack.c.b16 %v1306, %v1290
        %v1595 = vpack.c.b16 %v1307, %v1291
        %v1596 = vpack.c.b16 %v1308, %v1292
        %v1597 = vpack.c.b16 %v1309, %v1293
        %v1598 = vpack.c.b16 %v1310, %v1294
        %v1599 = vpack.c.b16 %v1311, %v1295
        %v1600 = vpack.c.b16 %v1312, %v1296
        %v1601 = vpack.c.b16 %v1313, %v1297
        %v1602 = vpack.c.b16 %v1330, %v1314
        %v1603 = vpack.c.b16 %v1331, %v1315
        %v1604 = vpack.c.b16 %v1332, %v1316
        %v1605 = vpack.c.b16 %v1333, %v1317
        %v1606 = vpack.c.b16 %v1334, %v1318
        %v1607 = vpack.c.b16 %v1335, %v1319
        %v1608 = vpack.c.b16 %v1336, %v1320
        %v1609 = vpack.c.b16 %v1337, %v1321
        %v1610 = vpack.c.b16 %v1338, %v1322
        %v1611 = vpack.c.b16 %v1339, %v1323
        %v1612 = vpack.c.b16 %v1340, %v1324
        %v1613 = vpack.c.b16 %v1341, %v1325
        %v1614 = vpack.c.b16 %v1342, %v1326
        %v1615 = vpack.c.b16 %v1343, %v1327
        %v1616 = vpack.c.b16 %v1344, %v1328
        %v1617 = vpack.c.b16 %v1345, %v1329
        %v1618 = vpack.c.b16 %v1362, %v1346
        %v1619 = vpack.c.b16 %v1363, %v1347
        %v1620 = vpack.c.b16 %v1364, %v1348
        %v1621 = vpack.c.b16 %v1365, %v1349
        %v1622 = vpack.c.b16 %v1366, %v1350
        %v1623 = vpack.c.b16 %v1367, %v1351
        %v1624 = vpack.c.b16 %v1368, %v1352
        %v1625 = vpack.c.b16 %v1369, %v1353
        %v1626 = vpack.c.b16 %v1370, %v1354
        %v1627 = vpack.c.b16 %v1371, %v1355
        %v1628 = vpack.c.b16 %v1372, %v1356
        %v1629 = vpack.c.b16 %v1373, %v1357
        %v1630 = vpack.c.b16 %v1374, %v1358
        %v1631 = vpack.c.b16 %v1375, %v1359
        %v1632 = vpack.c.b16 %v1376, %v1360
        %v1633 = vpack.c.b16 %v1377, %v1361
        %1890 = vmatpush.bf16.msra.mxu0 %v1490
        %1891 = vmatpush.bf16.msra.mxu0 %v1474
        %1892 = vmatpush.bf16.msra.mxu0 %v1458
        %1893 = vmatpush.bf16.msra.mxu0 %v1442
        %1894 = vmatpush.bf16.msra.mxu0 %v1426
        %1895 = vmatpush.bf16.msra.mxu0 %v1410
        %1896 = vmatpush.bf16.msra.mxu0 %v1394
        %1897 = vmatpush.bf16.msra.mxu0 %v1378
        %1898 = vmatmul.bf16.gmra.mxu0 %v606
        %v1899 = vpop.f32.mrf.mxu0
        %v1900 = vadd.f32 %v593, %v1899
        %v1901 = vpop.f32.mrf.mxu0
        %v1902 = vadd.f32 %v598, %v1901
        %1903 = vdwg.mxu0
        %1904 = vmatpush.bf16.msra.mxu0 %v1618
        %1905 = vmatpush.bf16.msra.mxu0 %v1602
        %1906 = vmatpush.bf16.msra.mxu0 %v1586
        %1907 = vmatpush.bf16.msra.mxu0 %v1570
        %1908 = vmatpush.bf16.msra.mxu0 %v1554
        %1909 = vmatpush.bf16.msra.mxu0 %v1538
        %1910 = vmatpush.bf16.msra.mxu0 %v1522
        %1911 = vmatpush.bf16.msra.mxu0 %v1506
        %1912 = vmatmul.bf16.gmra.mxu0 %v607
        %v1913 = vpop.f32.mrf.mxu0
        %v1914 = vadd.f32 %v1900, %v1913
        %v1915 = vpop.f32.mrf.mxu0
        %v1916 = vadd.f32 %v1902, %v1915
        %1917 = vdwg.mxu0
        %1918 = vmatpush.bf16.msra.mxu0 %v1491
        %1919 = vmatpush.bf16.msra.mxu0 %v1475
        %1920 = vmatpush.bf16.msra.mxu0 %v1459
        %1921 = vmatpush.bf16.msra.mxu0 %v1443
        %1922 = vmatpush.bf16.msra.mxu0 %v1427
        %1923 = vmatpush.bf16.msra.mxu0 %v1411
        %1924 = vmatpush.bf16.msra.mxu0 %v1395
        %1925 = vmatpush.bf16.msra.mxu0 %v1379
        %1926 = vmatmul.bf16.gmra.mxu0 %v606
        %v1927 = vpop.f32.mrf.mxu0
        %v1928 = vadd.f32 %v593, %v1927
        %v1929 = vpop.f32.mrf.mxu0
        %v1930 = vadd.f32 %v598, %v1929
        %1931 = vdwg.mxu0
        %1932 = vmatpush.bf16.msra.mxu0 %v1619
        %1933 = vmatpush.bf16.msra.mxu0 %v1603
        %1934 = vmatpush.bf16.msra.mxu0 %v1587
        %1935 = vmatpush.bf16.msra.mxu0 %v1571
        %1936 = vmatpush.bf16.msra.mxu0 %v1555
        %1937 = vmatpush.bf16.msra.mxu0 %v1539
        %1938 = vmatpush.bf16.msra.mxu0 %v1523
        %1939 = vmatpush.bf16.msra.mxu0 %v1507
        %1940 = vmatmul.bf16.gmra.mxu0 %v607
        %v1941 = vpop.f32.mrf.mxu0
        %v1942 = vadd.f32 %v1928, %v1941
        %v1943 = vpop.f32.mrf.mxu0
        %v1944 = vadd.f32 %v1930, %v1943
        %1945 = vdwg.mxu0
        %1946 = vmatpush.bf16.msra.mxu0 %v1492
        %1947 = vmatpush.bf16.msra.mxu0 %v1476
        %1948 = vmatpush.bf16.msra.mxu0 %v1460
        %1949 = vmatpush.bf16.msra.mxu0 %v1444
        %1950 = vmatpush.bf16.msra.mxu0 %v1428
        %1951 = vmatpush.bf16.msra.mxu0 %v1412
        %1952 = vmatpush.bf16.msra.mxu0 %v1396
        %1953 = vmatpush.bf16.msra.mxu0 %v1380
        %1954 = vmatmul.bf16.gmra.mxu0 %v606
        %v1955 = vpop.f32.mrf.mxu0
        %v1956 = vadd.f32 %v593, %v1955
        %v1957 = vpop.f32.mrf.mxu0
        %v1958 = vadd.f32 %v598, %v1957
        %1959 = vdwg.mxu0
        %1960 = vmatpush.bf16.msra.mxu0 %v1620
        %1961 = vmatpush.bf16.msra.mxu0 %v1604
        %1962 = vmatpush.bf16.msra.mxu0 %v1588
        %1963 = vmatpush.bf16.msra.mxu0 %v1572
        %1964 = vmatpush.bf16.msra.mxu0 %v1556
        %1965 = vmatpush.bf16.msra.mxu0 %v1540
        %1966 = vmatpush.bf16.msra.mxu0 %v1524
        %1967 = vmatpush.bf16.msra.mxu0 %v1508
        %1968 = vmatmul.bf16.gmra.mxu0 %v607
        %v1969 = vpop.f32.mrf.mxu0
        %v1970 = vadd.f32 %v1956, %v1969
        %v1971 = vpop.f32.mrf.mxu0
        %v1972 = vadd.f32 %v1958, %v1971
        %1973 = vdwg.mxu0
        %1974 = vmatpush.bf16.msra.mxu0 %v1493
        %1975 = vmatpush.bf16.msra.mxu0 %v1477
        %1976 = vmatpush.bf16.msra.mxu0 %v1461
        %1977 = vmatpush.bf16.msra.mxu0 %v1445
        %1978 = vmatpush.bf16.msra.mxu0 %v1429
        %1979 = vmatpush.bf16.msra.mxu0 %v1413
        %1980 = vmatpush.bf16.msra.mxu0 %v1397
        %1981 = vmatpush.bf16.msra.mxu0 %v1381
        %1982 = vmatmul.bf16.gmra.mxu0 %v606
        %v1983 = vpop.f32.mrf.mxu0
        %v1984 = vadd.f32 %v593, %v1983
        %v1985 = vpop.f32.mrf.mxu0
        %v1986 = vadd.f32 %v598, %v1985
        %1987 = vdwg.mxu0
        %1988 = vmatpush.bf16.msra.mxu0 %v1621
        %1989 = vmatpush.bf16.msra.mxu0 %v1605
        %1990 = vmatpush.bf16.msra.mxu0 %v1589
        %1991 = vmatpush.bf16.msra.mxu0 %v1573
        %1992 = vmatpush.bf16.msra.mxu0 %v1557
        %1993 = vmatpush.bf16.msra.mxu0 %v1541
        %1994 = vmatpush.bf16.msra.mxu0 %v1525
        %1995 = vmatpush.bf16.msra.mxu0 %v1509
        %1996 = vmatmul.bf16.gmra.mxu0 %v607
        %v1997 = vpop.f32.mrf.mxu0
        %v1998 = vadd.f32 %v1984, %v1997
        %v1999 = vpop.f32.mrf.mxu0
        %v2000 = vadd.f32 %v1986, %v1999
        %2001 = vdwg.mxu0
        %2002 = vmatpush.bf16.msra.mxu0 %v1494
        %2003 = vmatpush.bf16.msra.mxu0 %v1478
        %2004 = vmatpush.bf16.msra.mxu0 %v1462
        %2005 = vmatpush.bf16.msra.mxu0 %v1446
        %2006 = vmatpush.bf16.msra.mxu0 %v1430
        %2007 = vmatpush.bf16.msra.mxu0 %v1414
        %2008 = vmatpush.bf16.msra.mxu0 %v1398
        %2009 = vmatpush.bf16.msra.mxu0 %v1382
        %2010 = vmatmul.bf16.gmra.mxu0 %v606
        %v2011 = vpop.f32.mrf.mxu0
        %v2012 = vadd.f32 %v593, %v2011
        %v2013 = vpop.f32.mrf.mxu0
        %v2014 = vadd.f32 %v598, %v2013
        %2015 = vdwg.mxu0
        %2016 = vmatpush.bf16.msra.mxu0 %v1622
        %2017 = vmatpush.bf16.msra.mxu0 %v1606
        %2018 = vmatpush.bf16.msra.mxu0 %v1590
        %2019 = vmatpush.bf16.msra.mxu0 %v1574
        %2020 = vmatpush.bf16.msra.mxu0 %v1558
        %2021 = vmatpush.bf16.msra.mxu0 %v1542
        %2022 = vmatpush.bf16.msra.mxu0 %v1526
        %2023 = vmatpush.bf16.msra.mxu0 %v1510
        %2024 = vmatmul.bf16.gmra.mxu0 %v607
        %v2025 = vpop.f32.mrf.mxu0
        %v2026 = vadd.f32 %v2012, %v2025
        %v2027 = vpop.f32.mrf.mxu0
        %v2028 = vadd.f32 %v2014, %v2027
        %2029 = vdwg.mxu0
        %2030 = vmatpush.bf16.msra.mxu0 %v1495
        %2031 = vmatpush.bf16.msra.mxu0 %v1479
        %2032 = vmatpush.bf16.msra.mxu0 %v1463
        %2033 = vmatpush.bf16.msra.mxu0 %v1447
        %2034 = vmatpush.bf16.msra.mxu0 %v1431
        %2035 = vmatpush.bf16.msra.mxu0 %v1415
        %2036 = vmatpush.bf16.msra.mxu0 %v1399
        %2037 = vmatpush.bf16.msra.mxu0 %v1383
        %2038 = vmatmul.bf16.gmra.mxu0 %v606
        %v2039 = vpop.f32.mrf.mxu0
        %v2040 = vadd.f32 %v593, %v2039
        %v2041 = vpop.f32.mrf.mxu0
        %v2042 = vadd.f32 %v598, %v2041
        %2043 = vdwg.mxu0
        %2044 = vmatpush.bf16.msra.mxu0 %v1623
        %2045 = vmatpush.bf16.msra.mxu0 %v1607
        %2046 = vmatpush.bf16.msra.mxu0 %v1591
        %2047 = vmatpush.bf16.msra.mxu0 %v1575
        %2048 = vmatpush.bf16.msra.mxu0 %v1559
        %2049 = vmatpush.bf16.msra.mxu0 %v1543
        %2050 = vmatpush.bf16.msra.mxu0 %v1527
        %2051 = vmatpush.bf16.msra.mxu0 %v1511
        %2052 = vmatmul.bf16.gmra.mxu0 %v607
        %v2053 = vpop.f32.mrf.mxu0
        %v2054 = vadd.f32 %v2040, %v2053
        %v2055 = vpop.f32.mrf.mxu0
        %v2056 = vadd.f32 %v2042, %v2055
        %2057 = vdwg.mxu0
        %2058 = vmatpush.bf16.msra.mxu0 %v1496
        %2059 = vmatpush.bf16.msra.mxu0 %v1480
        %2060 = vmatpush.bf16.msra.mxu0 %v1464
        %2061 = vmatpush.bf16.msra.mxu0 %v1448
        %2062 = vmatpush.bf16.msra.mxu0 %v1432
        %2063 = vmatpush.bf16.msra.mxu0 %v1416
        %2064 = vmatpush.bf16.msra.mxu0 %v1400
        %2065 = vmatpush.bf16.msra.mxu0 %v1384
        %2066 = vmatmul.bf16.gmra.mxu0 %v606
        %v2067 = vpop.f32.mrf.mxu0
        %v2068 = vadd.f32 %v593, %v2067
        %v2069 = vpop.f32.mrf.mxu0
        %v2070 = vadd.f32 %v598, %v2069
        %2071 = vdwg.mxu0
        %2072 = vmatpush.bf16.msra.mxu0 %v1624
        %2073 = vmatpush.bf16.msra.mxu0 %v1608
        %2074 = vmatpush.bf16.msra.mxu0 %v1592
        %2075 = vmatpush.bf16.msra.mxu0 %v1576
        %2076 = vmatpush.bf16.msra.mxu0 %v1560
        %2077 = vmatpush.bf16.msra.mxu0 %v1544
        %2078 = vmatpush.bf16.msra.mxu0 %v1528
        %2079 = vmatpush.bf16.msra.mxu0 %v1512
        %2080 = vmatmul.bf16.gmra.mxu0 %v607
        %v2081 = vpop.f32.mrf.mxu0
        %v2082 = vadd.f32 %v2068, %v2081
        %v2083 = vpop.f32.mrf.mxu0
        %v2084 = vadd.f32 %v2070, %v2083
        %2085 = vdwg.mxu0
        %2086 = vmatpush.bf16.msra.mxu0 %v1497
        %2087 = vmatpush.bf16.msra.mxu0 %v1481
        %2088 = vmatpush.bf16.msra.mxu0 %v1465
        %2089 = vmatpush.bf16.msra.mxu0 %v1449
        %2090 = vmatpush.bf16.msra.mxu0 %v1433
        %2091 = vmatpush.bf16.msra.mxu0 %v1417
        %2092 = vmatpush.bf16.msra.mxu0 %v1401
        %2093 = vmatpush.bf16.msra.mxu0 %v1385
        %2094 = vmatmul.bf16.gmra.mxu0 %v606
        %v2095 = vpop.f32.mrf.mxu0
        %v2096 = vadd.f32 %v593, %v2095
        %v2097 = vpop.f32.mrf.mxu0
        %v2098 = vadd.f32 %v598, %v2097
        %2099 = vdwg.mxu0
        %2100 = vmatpush.bf16.msra.mxu0 %v1625
        %2101 = vmatpush.bf16.msra.mxu0 %v1609
        %2102 = vmatpush.bf16.msra.mxu0 %v1593
        %2103 = vmatpush.bf16.msra.mxu0 %v1577
        %2104 = vmatpush.bf16.msra.mxu0 %v1561
        %2105 = vmatpush.bf16.msra.mxu0 %v1545
        %2106 = vmatpush.bf16.msra.mxu0 %v1529
        %2107 = vmatpush.bf16.msra.mxu0 %v1513
        %2108 = vmatmul.bf16.gmra.mxu0 %v607
        %v2109 = vpop.f32.mrf.mxu0
        %v2110 = vadd.f32 %v2096, %v2109
        %v2111 = vpop.f32.mrf.mxu0
        %v2112 = vadd.f32 %v2098, %v2111
        %2113 = vdwg.mxu0
        %2114 = vmatpush.bf16.msra.mxu0 %v1498
        %2115 = vmatpush.bf16.msra.mxu0 %v1482
        %2116 = vmatpush.bf16.msra.mxu0 %v1466
        %2117 = vmatpush.bf16.msra.mxu0 %v1450
        %2118 = vmatpush.bf16.msra.mxu0 %v1434
        %2119 = vmatpush.bf16.msra.mxu0 %v1418
        %2120 = vmatpush.bf16.msra.mxu0 %v1402
        %2121 = vmatpush.bf16.msra.mxu0 %v1386
        %2122 = vmatmul.bf16.gmra.mxu0 %v606
        %v2123 = vpop.f32.mrf.mxu0
        %v2124 = vadd.f32 %v593, %v2123
        %v2125 = vpop.f32.mrf.mxu0
        %v2126 = vadd.f32 %v598, %v2125
        %2127 = vdwg.mxu0
        %2128 = vmatpush.bf16.msra.mxu0 %v1626
        %2129 = vmatpush.bf16.msra.mxu0 %v1610
        %2130 = vmatpush.bf16.msra.mxu0 %v1594
        %2131 = vmatpush.bf16.msra.mxu0 %v1578
        %2132 = vmatpush.bf16.msra.mxu0 %v1562
        %2133 = vmatpush.bf16.msra.mxu0 %v1546
        %2134 = vmatpush.bf16.msra.mxu0 %v1530
        %2135 = vmatpush.bf16.msra.mxu0 %v1514
        %2136 = vmatmul.bf16.gmra.mxu0 %v607
        %v2137 = vpop.f32.mrf.mxu0
        %v2138 = vadd.f32 %v2124, %v2137
        %v2139 = vpop.f32.mrf.mxu0
        %v2140 = vadd.f32 %v2126, %v2139
        %2141 = vdwg.mxu0
        %2142 = vmatpush.bf16.msra.mxu0 %v1499
        %2143 = vmatpush.bf16.msra.mxu0 %v1483
        %2144 = vmatpush.bf16.msra.mxu0 %v1467
        %2145 = vmatpush.bf16.msra.mxu0 %v1451
        %2146 = vmatpush.bf16.msra.mxu0 %v1435
        %2147 = vmatpush.bf16.msra.mxu0 %v1419
        %2148 = vmatpush.bf16.msra.mxu0 %v1403
        %2149 = vmatpush.bf16.msra.mxu0 %v1387
        %2150 = vmatmul.bf16.gmra.mxu0 %v606
        %v2151 = vpop.f32.mrf.mxu0
        %v2152 = vadd.f32 %v593, %v2151
        %v2153 = vpop.f32.mrf.mxu0
        %v2154 = vadd.f32 %v598, %v2153
        %2155 = vdwg.mxu0
        %2156 = vmatpush.bf16.msra.mxu0 %v1627
        %2157 = vmatpush.bf16.msra.mxu0 %v1611
        %2158 = vmatpush.bf16.msra.mxu0 %v1595
        %2159 = vmatpush.bf16.msra.mxu0 %v1579
        %2160 = vmatpush.bf16.msra.mxu0 %v1563
        %2161 = vmatpush.bf16.msra.mxu0 %v1547
        %2162 = vmatpush.bf16.msra.mxu0 %v1531
        %2163 = vmatpush.bf16.msra.mxu0 %v1515
        %2164 = vmatmul.bf16.gmra.mxu0 %v607
        %v2165 = vpop.f32.mrf.mxu0
        %v2166 = vadd.f32 %v2152, %v2165
        %v2167 = vpop.f32.mrf.mxu0
        %v2168 = vadd.f32 %v2154, %v2167
        %2169 = vdwg.mxu0
        %2170 = vmatpush.bf16.msra.mxu0 %v1500
        %2171 = vmatpush.bf16.msra.mxu0 %v1484
        %2172 = vmatpush.bf16.msra.mxu0 %v1468
        %2173 = vmatpush.bf16.msra.mxu0 %v1452
        %2174 = vmatpush.bf16.msra.mxu0 %v1436
        %2175 = vmatpush.bf16.msra.mxu0 %v1420
        %2176 = vmatpush.bf16.msra.mxu0 %v1404
        %2177 = vmatpush.bf16.msra.mxu0 %v1388
        %2178 = vmatmul.bf16.gmra.mxu0 %v606
        %v2179 = vpop.f32.mrf.mxu0
        %v2180 = vadd.f32 %v593, %v2179
        %v2181 = vpop.f32.mrf.mxu0
        %v2182 = vadd.f32 %v598, %v2181
        %2183 = vdwg.mxu0
        %2184 = vmatpush.bf16.msra.mxu0 %v1628
        %2185 = vmatpush.bf16.msra.mxu0 %v1612
        %2186 = vmatpush.bf16.msra.mxu0 %v1596
        %2187 = vmatpush.bf16.msra.mxu0 %v1580
        %2188 = vmatpush.bf16.msra.mxu0 %v1564
        %2189 = vmatpush.bf16.msra.mxu0 %v1548
        %2190 = vmatpush.bf16.msra.mxu0 %v1532
        %2191 = vmatpush.bf16.msra.mxu0 %v1516
        %2192 = vmatmul.bf16.gmra.mxu0 %v607
        %v2193 = vpop.f32.mrf.mxu0
        %v2194 = vadd.f32 %v2180, %v2193
        %v2195 = vpop.f32.mrf.mxu0
        %v2196 = vadd.f32 %v2182, %v2195
        %2197 = vdwg.mxu0
        %2198 = vmatpush.bf16.msra.mxu0 %v1501
        %2199 = vmatpush.bf16.msra.mxu0 %v1485
        %2200 = vmatpush.bf16.msra.mxu0 %v1469
        %2201 = vmatpush.bf16.msra.mxu0 %v1453
        %2202 = vmatpush.bf16.msra.mxu0 %v1437
        %2203 = vmatpush.bf16.msra.mxu0 %v1421
        %2204 = vmatpush.bf16.msra.mxu0 %v1405
        %2205 = vmatpush.bf16.msra.mxu0 %v1389
        %2206 = vmatmul.bf16.gmra.mxu0 %v606
        %v2207 = vpop.f32.mrf.mxu0
        %v2208 = vadd.f32 %v593, %v2207
        %v2209 = vpop.f32.mrf.mxu0
        %v2210 = vadd.f32 %v598, %v2209
        %2211 = vdwg.mxu0
        %2212 = vmatpush.bf16.msra.mxu0 %v1629
        %2213 = vmatpush.bf16.msra.mxu0 %v1613
        %2214 = vmatpush.bf16.msra.mxu0 %v1597
        %2215 = vmatpush.bf16.msra.mxu0 %v1581
        %2216 = vmatpush.bf16.msra.mxu0 %v1565
        %2217 = vmatpush.bf16.msra.mxu0 %v1549
        %2218 = vmatpush.bf16.msra.mxu0 %v1533
        %2219 = vmatpush.bf16.msra.mxu0 %v1517
        %2220 = vmatmul.bf16.gmra.mxu0 %v607
        %v2221 = vpop.f32.mrf.mxu0
        %v2222 = vadd.f32 %v2208, %v2221
        %v2223 = vpop.f32.mrf.mxu0
        %v2224 = vadd.f32 %v2210, %v2223
        %2225 = vdwg.mxu0
        %2226 = vmatpush.bf16.msra.mxu0 %v1502
        %2227 = vmatpush.bf16.msra.mxu0 %v1486
        %2228 = vmatpush.bf16.msra.mxu0 %v1470
        %2229 = vmatpush.bf16.msra.mxu0 %v1454
        %2230 = vmatpush.bf16.msra.mxu0 %v1438
        %2231 = vmatpush.bf16.msra.mxu0 %v1422
        %2232 = vmatpush.bf16.msra.mxu0 %v1406
        %2233 = vmatpush.bf16.msra.mxu0 %v1390
        %2234 = vmatmul.bf16.gmra.mxu0 %v606
        %v2235 = vpop.f32.mrf.mxu0
        %v2236 = vadd.f32 %v593, %v2235
        %v2237 = vpop.f32.mrf.mxu0
        %v2238 = vadd.f32 %v598, %v2237
        %2239 = vdwg.mxu0
        %2240 = vmatpush.bf16.msra.mxu0 %v1630
        %2241 = vmatpush.bf16.msra.mxu0 %v1614
        %2242 = vmatpush.bf16.msra.mxu0 %v1598
        %2243 = vmatpush.bf16.msra.mxu0 %v1582
        %2244 = vmatpush.bf16.msra.mxu0 %v1566
        %2245 = vmatpush.bf16.msra.mxu0 %v1550
        %2246 = vmatpush.bf16.msra.mxu0 %v1534
        %2247 = vmatpush.bf16.msra.mxu0 %v1518
        %2248 = vmatmul.bf16.gmra.mxu0 %v607
        %v2249 = vpop.f32.mrf.mxu0
        %v2250 = vadd.f32 %v2236, %v2249
        %v2251 = vpop.f32.mrf.mxu0
        %v2252 = vadd.f32 %v2238, %v2251
        %2253 = vdwg.mxu0
        %2254 = vmatpush.bf16.msra.mxu0 %v1503
        %2255 = vmatpush.bf16.msra.mxu0 %v1487
        %2256 = vmatpush.bf16.msra.mxu0 %v1471
        %2257 = vmatpush.bf16.msra.mxu0 %v1455
        %2258 = vmatpush.bf16.msra.mxu0 %v1439
        %2259 = vmatpush.bf16.msra.mxu0 %v1423
        %2260 = vmatpush.bf16.msra.mxu0 %v1407
        %2261 = vmatpush.bf16.msra.mxu0 %v1391
        %2262 = vmatmul.bf16.gmra.mxu0 %v606
        %v2263 = vpop.f32.mrf.mxu0
        %v2264 = vadd.f32 %v593, %v2263
        %v2265 = vpop.f32.mrf.mxu0
        %v2266 = vadd.f32 %v598, %v2265
        %2267 = vdwg.mxu0
        %2268 = vmatpush.bf16.msra.mxu0 %v1631
        %2269 = vmatpush.bf16.msra.mxu0 %v1615
        %2270 = vmatpush.bf16.msra.mxu0 %v1599
        %2271 = vmatpush.bf16.msra.mxu0 %v1583
        %2272 = vmatpush.bf16.msra.mxu0 %v1567
        %2273 = vmatpush.bf16.msra.mxu0 %v1551
        %2274 = vmatpush.bf16.msra.mxu0 %v1535
        %2275 = vmatpush.bf16.msra.mxu0 %v1519
        %2276 = vmatmul.bf16.gmra.mxu0 %v607
        %v2277 = vpop.f32.mrf.mxu0
        %v2278 = vadd.f32 %v2264, %v2277
        %v2279 = vpop.f32.mrf.mxu0
        %v2280 = vadd.f32 %v2266, %v2279
        %2281 = vdwg.mxu0
        %2282 = vmatpush.bf16.msra.mxu0 %v1504
        %2283 = vmatpush.bf16.msra.mxu0 %v1488
        %2284 = vmatpush.bf16.msra.mxu0 %v1472
        %2285 = vmatpush.bf16.msra.mxu0 %v1456
        %2286 = vmatpush.bf16.msra.mxu0 %v1440
        %2287 = vmatpush.bf16.msra.mxu0 %v1424
        %2288 = vmatpush.bf16.msra.mxu0 %v1408
        %2289 = vmatpush.bf16.msra.mxu0 %v1392
        %2290 = vmatmul.bf16.gmra.mxu0 %v606
        %v2291 = vpop.f32.mrf.mxu0
        %v2292 = vadd.f32 %v593, %v2291
        %v2293 = vpop.f32.mrf.mxu0
        %v2294 = vadd.f32 %v598, %v2293
        %2295 = vdwg.mxu0
        %2296 = vmatpush.bf16.msra.mxu0 %v1632
        %2297 = vmatpush.bf16.msra.mxu0 %v1616
        %2298 = vmatpush.bf16.msra.mxu0 %v1600
        %2299 = vmatpush.bf16.msra.mxu0 %v1584
        %2300 = vmatpush.bf16.msra.mxu0 %v1568
        %2301 = vmatpush.bf16.msra.mxu0 %v1552
        %2302 = vmatpush.bf16.msra.mxu0 %v1536
        %2303 = vmatpush.bf16.msra.mxu0 %v1520
        %2304 = vmatmul.bf16.gmra.mxu0 %v607
        %v2305 = vpop.f32.mrf.mxu0
        %v2306 = vadd.f32 %v2292, %v2305
        %v2307 = vpop.f32.mrf.mxu0
        %v2308 = vadd.f32 %v2294, %v2307
        %2309 = vdwg.mxu0
        %2310 = vmatpush.bf16.msra.mxu0 %v1505
        %2311 = vmatpush.bf16.msra.mxu0 %v1489
        %2312 = vmatpush.bf16.msra.mxu0 %v1473
        %2313 = vmatpush.bf16.msra.mxu0 %v1457
        %2314 = vmatpush.bf16.msra.mxu0 %v1441
        %2315 = vmatpush.bf16.msra.mxu0 %v1425
        %2316 = vmatpush.bf16.msra.mxu0 %v1409
        %2317 = vmatpush.bf16.msra.mxu0 %v1393
        %2318 = vmatmul.bf16.gmra.mxu0 %v606
        %v2319 = vpop.f32.mrf.mxu0
        %v2320 = vadd.f32 %v593, %v2319
        %v2321 = vpop.f32.mrf.mxu0
        %v2322 = vadd.f32 %v598, %v2321
        %2323 = vdwg.mxu0
        %2324 = vmatpush.bf16.msra.mxu0 %v1633
        %2325 = vmatpush.bf16.msra.mxu0 %v1617
        %2326 = vmatpush.bf16.msra.mxu0 %v1601
        %2327 = vmatpush.bf16.msra.mxu0 %v1585
        %2328 = vmatpush.bf16.msra.mxu0 %v1569
        %2329 = vmatpush.bf16.msra.mxu0 %v1553
        %2330 = vmatpush.bf16.msra.mxu0 %v1537
        %2331 = vmatpush.bf16.msra.mxu0 %v1521
        %2332 = vmatmul.bf16.gmra.mxu0 %v607
        %v2333 = vpop.f32.mrf.mxu0
        %v2334 = vadd.f32 %v2320, %v2333
        %v2335 = vpop.f32.mrf.mxu0
        %v2336 = vadd.f32 %v2322, %v2335
        %2337 = vdwg.mxu0
        %v2338 = vmax.f32 %v1914, 0.0
        %v2339 = vmax.f32 %v1942, 0.0
        %v2340 = vmax.f32 %v1970, 0.0
        %v2341 = vmax.f32 %v1998, 0.0
        %v2342 = vmax.f32 %v2026, 0.0
        %v2343 = vmax.f32 %v2054, 0.0
        %v2344 = vmax.f32 %v2082, 0.0
        %v2345 = vmax.f32 %v2110, 0.0
        %v2346 = vmax.f32 %v2138, 0.0
        %v2347 = vmax.f32 %v2166, 0.0
        %v2348 = vmax.f32 %v2194, 0.0
        %v2349 = vmax.f32 %v2222, 0.0
        %v2350 = vmax.f32 %v2250, 0.0
        %v2351 = vmax.f32 %v2278, 0.0
        %v2352 = vmax.f32 %v2306, 0.0
        %v2353 = vmax.f32 %v2334, 0.0
        %v2354 = vmax.f32 %v1916, 0.0
        %v2355 = vmax.f32 %v1944, 0.0
        %v2356 = vmax.f32 %v1972, 0.0
        %v2357 = vmax.f32 %v2000, 0.0
        %v2358 = vmax.f32 %v2028, 0.0
        %v2359 = vmax.f32 %v2056, 0.0
        %v2360 = vmax.f32 %v2084, 0.0
        %v2361 = vmax.f32 %v2112, 0.0
        %v2362 = vmax.f32 %v2140, 0.0
        %v2363 = vmax.f32 %v2168, 0.0
        %v2364 = vmax.f32 %v2196, 0.0
        %v2365 = vmax.f32 %v2224, 0.0
        %v2366 = vmax.f32 %v2252, 0.0
        %v2367 = vmax.f32 %v2280, 0.0
        %v2368 = vmax.f32 %v2308, 0.0
        %v2369 = vmax.f32 %v2336, 0.0
        %2370 = vst [vmem:[#allocation2] sm:$0xff] %v2338
        %2371 = vst [vmem:[#allocation2 + $0x8] sm:$0xff] %v2354
        %2372 = vst [vmem:[#allocation2 + $0x10] sm:$0xff] %v2339
        %2373 = vst [vmem:[#allocation2 + $0x18] sm:$0xff] %v2355
        %2374 = vst [vmem:[#allocation2 + $0x20] sm:$0xff] %v2340
        %2375 = vst [vmem:[#allocation2 + $0x28] sm:$0xff] %v2356
        %2376 = vst [vmem:[#allocation2 + $0x30] sm:$0xff] %v2341
        %2377 = vst [vmem:[#allocation2 + $0x38] sm:$0xff] %v2357
        %2378 = vst [vmem:[#allocation2 + $0x40] sm:$0xff] %v2342
        %2379 = vst [vmem:[#allocation2 + $0x48] sm:$0xff] %v2358
        %2380 = vst [vmem:[#allocation2 + $0x50] sm:$0xff] %v2343
        %2381 = vst [vmem:[#allocation2 + $0x58] sm:$0xff] %v2359
        %2382 = vst [vmem:[#allocation2 + $0x60] sm:$0xff] %v2344
        %2383 = vst [vmem:[#allocation2 + $0x68] sm:$0xff] %v2360
        %2384 = vst [vmem:[#allocation2 + $0x70] sm:$0xff] %v2345
        %2385 = vst [vmem:[#allocation2 + $0x78] sm:$0xff] %v2361
        %2386 = vst [vmem:[#allocation2 + $0x80] sm:$0xff] %v2346
        %2387 = vst [vmem:[#allocation2 + $0x88] sm:$0xff] %v2362
        %2388 = vst [vmem:[#allocation2 + $0x90] sm:$0xff] %v2347
        %2389 = vst [vmem:[#allocation2 + $0x98] sm:$0xff] %v2363
        %2390 = vst [vmem:[#allocation2 + $0xa0] sm:$0xff] %v2348
        %2391 = vst [vmem:[#allocation2 + $0xa8] sm:$0xff] %v2364
        %2392 = vst [vmem:[#allocation2 + $0xb0] sm:$0xff] %v2349
        %2393 = vst [vmem:[#allocation2 + $0xb8] sm:$0xff] %v2365
        %2394 = vst [vmem:[#allocation2 + $0xc0] sm:$0xff] %v2350
        %2395 = vst [vmem:[#allocation2 + $0xc8] sm:$0xff] %v2366
        %2396 = vst [vmem:[#allocation2 + $0xd0] sm:$0xff] %v2351
        %2397 = vst [vmem:[#allocation2 + $0xd8] sm:$0xff] %v2367
        %2398 = vst [vmem:[#allocation2 + $0xe0] sm:$0xff] %v2352
        %2399 = vst [vmem:[#allocation2 + $0xe8] sm:$0xff] %v2368
        %2400 = vst [vmem:[#allocation2 + $0xf0] sm:$0xff] %v2353
        %2401 = vst [vmem:[#allocation2 + $0xf8] sm:$0xff] %v2369
        %v2402 = vld [vmem:[%s3] sm:$0xff]
        %v2403 = vld [vmem:[%s3 + $0x8] sm:$0xff]
        %v2404 = vld [vmem:[%s3 + $0x10] sm:$0xff]
        %v2405 = vld [vmem:[%s3 + $0x18] sm:$0xff]
        %v2406 = vld [vmem:[%s3 + $0x20] sm:$0xff]
        %v2407 = vld [vmem:[%s3 + $0x28] sm:$0xff]
        %v2408 = vld [vmem:[%s3 + $0x30] sm:$0xff]
        %v2409 = vld [vmem:[%s3 + $0x38] sm:$0xff]
        %v2410 = vld [vmem:[#allocation2] sm:$0xff]
        %v2411 = vld [vmem:[#allocation2 + $0x8] sm:$0xff]
        %v2412 = vld [vmem:[#allocation2 + $0x10] sm:$0xff]
        %v2413 = vld [vmem:[#allocation2 + $0x18] sm:$0xff]
        %v2414 = vld [vmem:[#allocation2 + $0x20] sm:$0xff]
        %v2415 = vld [vmem:[#allocation2 + $0x28] sm:$0xff]
        %v2416 = vld [vmem:[#allocation2 + $0x30] sm:$0xff]
        %v2417 = vld [vmem:[#allocation2 + $0x38] sm:$0xff]
        %v2418 = vld [vmem:[#allocation2 + $0x40] sm:$0xff]
        %v2419 = vld [vmem:[#allocation2 + $0x48] sm:$0xff]
        %v2420 = vld [vmem:[#allocation2 + $0x50] sm:$0xff]
        %v2421 = vld [vmem:[#allocation2 + $0x58] sm:$0xff]
        %v2422 = vld [vmem:[#allocation2 + $0x60] sm:$0xff]
        %v2423 = vld [vmem:[#allocation2 + $0x68] sm:$0xff]
        %v2424 = vld [vmem:[#allocation2 + $0x70] sm:$0xff]
        %v2425 = vld [vmem:[#allocation2 + $0x78] sm:$0xff]
        %v2426 = vld [vmem:[#allocation2 + $0x80] sm:$0xff]
        %v2427 = vld [vmem:[#allocation2 + $0x88] sm:$0xff]
        %v2428 = vld [vmem:[#allocation2 + $0x90] sm:$0xff]
        %v2429 = vld [vmem:[#allocation2 + $0x98] sm:$0xff]
        %v2430 = vld [vmem:[#allocation2 + $0xa0] sm:$0xff]
        %v2431 = vld [vmem:[#allocation2 + $0xa8] sm:$0xff]
        %v2432 = vld [vmem:[#allocation2 + $0xb0] sm:$0xff]
        %v2433 = vld [vmem:[#allocation2 + $0xb8] sm:$0xff]
        %v2434 = vld [vmem:[#allocation2 + $0xc0] sm:$0xff]
        %v2435 = vld [vmem:[#allocation2 + $0xc8] sm:$0xff]
        %v2436 = vld [vmem:[#allocation2 + $0xd0] sm:$0xff]
        %v2437 = vld [vmem:[#allocation2 + $0xd8] sm:$0xff]
        %v2438 = vld [vmem:[#allocation2 + $0xe0] sm:$0xff]
        %v2439 = vld [vmem:[#allocation2 + $0xe8] sm:$0xff]
        %v2440 = vld [vmem:[#allocation2 + $0xf0] sm:$0xff]
        %v2441 = vld [vmem:[#allocation2 + $0xf8] sm:$0xff]
        %v2442 = vld [vmem:[%s4] sm:$0xff]
        %v2443 = vld [vmem:[%s4 + $0x8] sm:$0xff]
        %v2444 = vld [vmem:[%s4 + $0x10] sm:$0xff]
        %v2445 = vld [vmem:[%s4 + $0x18] sm:$0xff]
        %2447 = vset.pattern.permute.xlu0 0
        %2448 = vperm.xlu0 %2447, %v2442
        %v2449 = vpop.permute.xlu0 %2448
        %2452 = vset.pattern.permute.xlu0 0
        %2453 = vperm.xlu0 %2452, %v2443
        %v2454 = vpop.permute.xlu0 %2453
        %2457 = vset.pattern.permute.xlu0 0
        %2458 = vperm.xlu0 %2457, %v2444
        %v2459 = vpop.permute.xlu0 %2458
        %2462 = vset.pattern.permute.xlu0 0
        %2463 = vperm.xlu0 %2462, %v2445
        %v2464 = vpop.permute.xlu0 %2463
        %2466 = vmatpush.msra.mxu0 %v2425
        %2467 = vmatpush.msra.mxu0 %v2424
        %2468 = vmatpush.msra.mxu0 %v2423
        %2469 = vmatpush.msra.mxu0 %v2422
        %2470 = vmatpush.msra.mxu0 %v2421
        %2471 = vmatpush.msra.mxu0 %v2420
        %2472 = vmatpush.msra.mxu0 %v2419
        %2473 = vmatpush.msra.mxu0 %v2418
        %2474 = vmatpush.msra.mxu0 %v2417
        %2475 = vmatpush.msra.mxu0 %v2416
        %2476 = vmatpush.msra.mxu0 %v2415
        %2477 = vmatpush.msra.mxu0 %v2414
        %2478 = vmatpush.msra.mxu0 %v2413
        %2479 = vmatpush.msra.mxu0 %v2412
        %2480 = vmatpush.msra.mxu0 %v2411
        %2481 = vmatpush.msra.mxu0 %v2410
        %2482 = vmatmul.f32.gmra.mxu0 %v2402
        %v2483 = vpop.f32.mrf.mxu0
        %v2484 = vadd.f32 %v2449, %v2483
        %2485 = vmatmul.f32.gmra.mxu0 %v2404
        %v2486 = vpop.f32.mrf.mxu0
        %v2487 = vadd.f32 %v2454, %v2486
        %2488 = vmatmul.f32.gmra.mxu0 %v2406
        %v2489 = vpop.f32.mrf.mxu0
        %v2490 = vadd.f32 %v2459, %v2489
        %2491 = vmatmul.f32.gmra.mxu0 %v2408
        %v2492 = vpop.f32.mrf.mxu0
        %v2493 = vadd.f32 %v2464, %v2492
        %2494 = vdwg.mxu0
        %2495 = vmatpush.msra.mxu0 %v2441
        %2496 = vmatpush.msra.mxu0 %v2440
        %2497 = vmatpush.msra.mxu0 %v2439
        %2498 = vmatpush.msra.mxu0 %v2438
        %2499 = vmatpush.msra.mxu0 %v2437
        %2500 = vmatpush.msra.mxu0 %v2436
        %2501 = vmatpush.msra.mxu0 %v2435
        %2502 = vmatpush.msra.mxu0 %v2434
        %2503 = vmatpush.msra.mxu0 %v2433
        %2504 = vmatpush.msra.mxu0 %v2432
        %2505 = vmatpush.msra.mxu0 %v2431
        %2506 = vmatpush.msra.mxu0 %v2430
        %2507 = vmatpush.msra.mxu0 %v2429
        %2508 = vmatpush.msra.mxu0 %v2428
        %2509 = vmatpush.msra.mxu0 %v2427
        %2510 = vmatpush.msra.mxu0 %v2426
        %2511 = vmatmul.f32.gmra.mxu0 %v2403
        %v2512 = vpop.f32.mrf.mxu0
        %v2513 = vadd.f32 %v2484, %v2512
        %2514 = vmatmul.f32.gmra.mxu0 %v2405
        %v2515 = vpop.f32.mrf.mxu0
        %v2516 = vadd.f32 %v2487, %v2515
        %2517 = vmatmul.f32.gmra.mxu0 %v2407
        %v2518 = vpop.f32.mrf.mxu0
        %v2519 = vadd.f32 %v2490, %v2518
        %2520 = vmatmul.f32.gmra.mxu0 %v2409
        %v2521 = vpop.f32.mrf.mxu0
        %v2522 = vadd.f32 %v2493, %v2521
        %2523 = vdwg.mxu0
        %v2524 = vmax.f32 %v2513, 0.0
        %v2525 = vmax.f32 %v2516, 0.0
        %v2526 = vmax.f32 %v2519, 0.0
        %v2527 = vmax.f32 %v2522, 0.0
        %v2528 = vlaneseq
        %vm2529 = vcmp.ge.s32.totalorder %v2528, 0
        %vm2530 = vcmp.lt.s32.totalorder %v2528, 128
        %vm2531 = vmand %vm2529, %vm2530
        %2532 = vst.msk [vmem:[#allocation3] sm:$0x1] %vm2531, %v2524
        %2534 = vst [vmem:[#allocation1] sm:$0xff] %v2524
        %s2535 = scalar_lea.vmem [#allocation1], 1
        %v2536 = vld [vmem:[%s2535] ss:$9 sm:$0xff]
        %2538 = vst.msk [vmem:[#allocation3 + $0x1] sm:$0x1] %vm2531, %v2536
        %2539 = vst [vmem:[#allocation1] sm:$0xff] %v2524
        %s2540 = scalar_lea.vmem [#allocation1], 2
        %v2541 = vld [vmem:[%s2540] ss:$9 sm:$0xff]
        %2543 = vst.msk [vmem:[#allocation3 + $0x2] sm:$0x1] %vm2531, %v2541
        %2544 = vst [vmem:[#allocation1] sm:$0xff] %v2524
        %s2545 = scalar_lea.vmem [#allocation1], 3
        %v2546 = vld [vmem:[%s2545] ss:$9 sm:$0xff]
        %2548 = vst.msk [vmem:[#allocation3 + $0x3] sm:$0x1] %vm2531, %v2546
        %2549 = vst [vmem:[#allocation1] sm:$0xff] %v2524
        %s2550 = scalar_lea.vmem [#allocation1], 4
        %v2551 = vld [vmem:[%s2550] ss:$9 sm:$0xff]
        %2553 = vst.msk [vmem:[#allocation3 + $0x4] sm:$0x1] %vm2531, %v2551
        %2554 = vst [vmem:[#allocation1] sm:$0xff] %v2524
        %s2555 = scalar_lea.vmem [#allocation1], 5
        %v2556 = vld [vmem:[%s2555] ss:$9 sm:$0xff]
        %2558 = vst.msk [vmem:[#allocation3 + $0x5] sm:$0x1] %vm2531, %v2556
        %2559 = vst [vmem:[#allocation1] sm:$0xff] %v2524
        %s2560 = scalar_lea.vmem [#allocation1], 6
        %v2561 = vld [vmem:[%s2560] ss:$9 sm:$0xff]
        %2563 = vst.msk [vmem:[#allocation3 + $0x6] sm:$0x1] %vm2531, %v2561
        %2564 = vst [vmem:[#allocation1] sm:$0xff] %v2524
        %s2565 = scalar_lea.vmem [#allocation1], 7
        %v2566 = vld [vmem:[%s2565] ss:$9 sm:$0xff]
        %2568 = vst.msk [vmem:[#allocation3 + $0x7] sm:$0x1] %vm2531, %v2566
        %2569 = vst.msk [vmem:[#allocation3 + $0x8] sm:$0x1] %vm2531, %v2525
        %2571 = vst [vmem:[#allocation1] sm:$0xff] %v2525
        %s2572 = scalar_lea.vmem [#allocation1], 1
        %v2573 = vld [vmem:[%s2572] ss:$9 sm:$0xff]
        %2575 = vst.msk [vmem:[#allocation3 + $0x9] sm:$0x1] %vm2531, %v2573
        %2576 = vst [vmem:[#allocation1] sm:$0xff] %v2525
        %s2577 = scalar_lea.vmem [#allocation1], 2
        %v2578 = vld [vmem:[%s2577] ss:$9 sm:$0xff]
        %2580 = vst.msk [vmem:[#allocation3 + $0xa] sm:$0x1] %vm2531, %v2578
        %2581 = vst [vmem:[#allocation1] sm:$0xff] %v2525
        %s2582 = scalar_lea.vmem [#allocation1], 3
        %v2583 = vld [vmem:[%s2582] ss:$9 sm:$0xff]
        %2585 = vst.msk [vmem:[#allocation3 + $0xb] sm:$0x1] %vm2531, %v2583
        %2586 = vst [vmem:[#allocation1] sm:$0xff] %v2525
        %s2587 = scalar_lea.vmem [#allocation1], 4
        %v2588 = vld [vmem:[%s2587] ss:$9 sm:$0xff]
        %2590 = vst.msk [vmem:[#allocation3 + $0xc] sm:$0x1] %vm2531, %v2588
        %2591 = vst [vmem:[#allocation1] sm:$0xff] %v2525
        %s2592 = scalar_lea.vmem [#allocation1], 5
        %v2593 = vld [vmem:[%s2592] ss:$9 sm:$0xff]
        %2595 = vst.msk [vmem:[#allocation3 + $0xd] sm:$0x1] %vm2531, %v2593
        %2596 = vst [vmem:[#allocation1] sm:$0xff] %v2525
        %s2597 = scalar_lea.vmem [#allocation1], 6
        %v2598 = vld [vmem:[%s2597] ss:$9 sm:$0xff]
        %2600 = vst.msk [vmem:[#allocation3 + $0xe] sm:$0x1] %vm2531, %v2598
        %2601 = vst [vmem:[#allocation1] sm:$0xff] %v2525
        %s2602 = scalar_lea.vmem [#allocation1], 7
        %v2603 = vld [vmem:[%s2602] ss:$9 sm:$0xff]
        %2605 = vst.msk [vmem:[#allocation3 + $0xf] sm:$0x1] %vm2531, %v2603
        %2606 = vst.msk [vmem:[#allocation3 + $0x10] sm:$0x1] %vm2531, %v2526
        %2608 = vst [vmem:[#allocation1] sm:$0xff] %v2526
        %s2609 = scalar_lea.vmem [#allocation1], 1
        %v2610 = vld [vmem:[%s2609] ss:$9 sm:$0xff]
        %2612 = vst.msk [vmem:[#allocation3 + $0x11] sm:$0x1] %vm2531, %v2610
        %2613 = vst [vmem:[#allocation1] sm:$0xff] %v2526
        %s2614 = scalar_lea.vmem [#allocation1], 2
        %v2615 = vld [vmem:[%s2614] ss:$9 sm:$0xff]
        %2617 = vst.msk [vmem:[#allocation3 + $0x12] sm:$0x1] %vm2531, %v2615
        %2618 = vst [vmem:[#allocation1] sm:$0xff] %v2526
        %s2619 = scalar_lea.vmem [#allocation1], 3
        %v2620 = vld [vmem:[%s2619] ss:$9 sm:$0xff]
        %2622 = vst.msk [vmem:[#allocation3 + $0x13] sm:$0x1] %vm2531, %v2620
        %2623 = vst [vmem:[#allocation1] sm:$0xff] %v2526
        %s2624 = scalar_lea.vmem [#allocation1], 4
        %v2625 = vld [vmem:[%s2624] ss:$9 sm:$0xff]
        %2627 = vst.msk [vmem:[#allocation3 + $0x14] sm:$0x1] %vm2531, %v2625
        %2628 = vst [vmem:[#allocation1] sm:$0xff] %v2526
        %s2629 = scalar_lea.vmem [#allocation1], 5
        %v2630 = vld [vmem:[%s2629] ss:$9 sm:$0xff]
        %2632 = vst.msk [vmem:[#allocation3 + $0x15] sm:$0x1] %vm2531, %v2630
        %2633 = vst [vmem:[#allocation1] sm:$0xff] %v2526
        %s2634 = scalar_lea.vmem [#allocation1], 6
        %v2635 = vld [vmem:[%s2634] ss:$9 sm:$0xff]
        %2637 = vst.msk [vmem:[#allocation3 + $0x16] sm:$0x1] %vm2531, %v2635
        %2638 = vst [vmem:[#allocation1] sm:$0xff] %v2526
        %s2639 = scalar_lea.vmem [#allocation1], 7
        %v2640 = vld [vmem:[%s2639] ss:$9 sm:$0xff]
        %2642 = vst.msk [vmem:[#allocation3 + $0x17] sm:$0x1] %vm2531, %v2640
        %2643 = vst.msk [vmem:[#allocation3 + $0x18] sm:$0x1] %vm2531, %v2527
        %2645 = vst [vmem:[#allocation1] sm:$0xff] %v2527
        %s2646 = scalar_lea.vmem [#allocation1], 1
        %v2647 = vld [vmem:[%s2646] ss:$9 sm:$0xff]
        %2649 = vst.msk [vmem:[#allocation3 + $0x19] sm:$0x1] %vm2531, %v2647
        %2650 = vst [vmem:[#allocation1] sm:$0xff] %v2527
        %s2651 = scalar_lea.vmem [#allocation1], 2
        %v2652 = vld [vmem:[%s2651] ss:$9 sm:$0xff]
        %2654 = vst.msk [vmem:[#allocation3 + $0x1a] sm:$0x1] %vm2531, %v2652
        %2655 = vst [vmem:[#allocation1] sm:$0xff] %v2527
        %s2656 = scalar_lea.vmem [#allocation1], 3
        %v2657 = vld [vmem:[%s2656] ss:$9 sm:$0xff]
        %2659 = vst.msk [vmem:[#allocation3 + $0x1b] sm:$0x1] %vm2531, %v2657
        %2660 = vst [vmem:[#allocation1] sm:$0xff] %v2527
        %s2661 = scalar_lea.vmem [#allocation1], 4
        %v2662 = vld [vmem:[%s2661] ss:$9 sm:$0xff]
        %2664 = vst.msk [vmem:[#allocation3 + $0x1c] sm:$0x1] %vm2531, %v2662
        %2665 = vst [vmem:[#allocation1] sm:$0xff] %v2527
        %s2666 = scalar_lea.vmem [#allocation1], 5
        %v2667 = vld [vmem:[%s2666] ss:$9 sm:$0xff]
        %2669 = vst.msk [vmem:[#allocation3 + $0x1d] sm:$0x1] %vm2531, %v2667
        %2670 = vst [vmem:[#allocation1] sm:$0xff] %v2527
        %s2671 = scalar_lea.vmem [#allocation1], 6
        %v2672 = vld [vmem:[%s2671] ss:$9 sm:$0xff]
        %2674 = vst.msk [vmem:[#allocation3 + $0x1e] sm:$0x1] %vm2531, %v2672
        %2675 = vst [vmem:[#allocation1] sm:$0xff] %v2527
        %s2676 = scalar_lea.vmem [#allocation1], 7
        %v2677 = vld [vmem:[%s2676] ss:$9 sm:$0xff]
        %2679 = vst.msk [vmem:[#allocation3 + $0x1f] sm:$0x1] %vm2531, %v2677
        %v2680 = vld [vmem:[#allocation3] sm:$0xff]
        %v2681 = vld [vmem:[#allocation3 + $0x8] sm:$0xff]
        %v2682 = vld [vmem:[#allocation3 + $0x10] sm:$0xff]
        %v2683 = vld [vmem:[#allocation3 + $0x18] sm:$0xff]
        %v2688 = vperm.slane %v2680, 0
        %v2689 = vperm.slane %v2680, 1
        %v2690 = vperm.slane %v2680, 2
        %v2691 = vperm.slane %v2680, 3
        %v2692 = vperm.slane %v2680, 4
        %v2693 = vperm.slane %v2680, 5
        %v2694 = vperm.slane %v2680, 6
        %v2695 = vperm.slane %v2680, 7
        %v2696 = vperm.slane %v2681, 0
        %v2697 = vperm.slane %v2681, 1
        %v2698 = vperm.slane %v2681, 2
        %v2699 = vperm.slane %v2681, 3
        %v2700 = vperm.slane %v2681, 4
        %v2701 = vperm.slane %v2681, 5
        %v2702 = vperm.slane %v2681, 6
        %v2703 = vperm.slane %v2681, 7
        %v2704 = vperm.slane %v2682, 0
        %v2705 = vperm.slane %v2682, 1
        %v2706 = vperm.slane %v2682, 2
        %v2707 = vperm.slane %v2682, 3
        %v2708 = vperm.slane %v2682, 4
        %v2709 = vperm.slane %v2682, 5
        %v2710 = vperm.slane %v2682, 6
        %v2711 = vperm.slane %v2682, 7
        %v2712 = vperm.slane %v2683, 0
        %v2713 = vperm.slane %v2683, 1
        %v2714 = vperm.slane %v2683, 2
        %v2715 = vperm.slane %v2683, 3
        %v2716 = vperm.slane %v2683, 4
        %v2717 = vperm.slane %v2683, 5
        %v2718 = vperm.slane %v2683, 6
        %v2719 = vperm.slane %v2683, 7
        %v2752 = vpack.c.bf16 %v2688, %v2688
        %v2753 = vpack.c.bf16 %v2689, %v2689
        %v2754 = vpack.c.bf16 %v2690, %v2690
        %v2755 = vpack.c.bf16 %v2691, %v2691
        %v2756 = vpack.c.bf16 %v2692, %v2692
        %v2757 = vpack.c.bf16 %v2693, %v2693
        %v2758 = vpack.c.bf16 %v2694, %v2694
        %v2759 = vpack.c.bf16 %v2695, %v2695
        %v2760 = vpack.c.bf16 %v2696, %v2696
        %v2761 = vpack.c.bf16 %v2697, %v2697
        %v2762 = vpack.c.bf16 %v2698, %v2698
        %v2763 = vpack.c.bf16 %v2699, %v2699
        %v2764 = vpack.c.bf16 %v2700, %v2700
        %v2765 = vpack.c.bf16 %v2701, %v2701
        %v2766 = vpack.c.bf16 %v2702, %v2702
        %v2767 = vpack.c.bf16 %v2703, %v2703
        %v2768 = vpack.c.bf16 %v2704, %v2704
        %v2769 = vpack.c.bf16 %v2705, %v2705
        %v2770 = vpack.c.bf16 %v2706, %v2706
        %v2771 = vpack.c.bf16 %v2707, %v2707
        %v2772 = vpack.c.bf16 %v2708, %v2708
        %v2773 = vpack.c.bf16 %v2709, %v2709
        %v2774 = vpack.c.bf16 %v2710, %v2710
        %v2775 = vpack.c.bf16 %v2711, %v2711
        %v2776 = vpack.c.bf16 %v2712, %v2712
        %v2777 = vpack.c.bf16 %v2713, %v2713
        %v2778 = vpack.c.bf16 %v2714, %v2714
        %v2779 = vpack.c.bf16 %v2715, %v2715
        %v2780 = vpack.c.bf16 %v2716, %v2716
        %v2781 = vpack.c.bf16 %v2717, %v2717
        %v2782 = vpack.c.bf16 %v2718, %v2718
        %v2783 = vpack.c.bf16 %v2719, %v2719
        %v2784 = vld [vmem:[%s5] sm:$0xff]
        %v2785 = vld [vmem:[%s5 + $0x8] sm:$0xff]
        %v2786 = vld [vmem:[%s5 + $0x10] sm:$0xff]
        %v2787 = vld [vmem:[%s5 + $0x18] sm:$0xff]
        %v2788 = vld [vmem:[%s5 + $0x20] sm:$0xff]
        %v2789 = vld [vmem:[%s5 + $0x28] sm:$0xff]
        %v2790 = vld [vmem:[%s5 + $0x30] sm:$0xff]
        %v2791 = vld [vmem:[%s5 + $0x38] sm:$0xff]
        %v2792 = vld [vmem:[%s5 + $0x40] sm:$0xff]
        %v2793 = vld [vmem:[%s5 + $0x48] sm:$0xff]
        %v2794 = vld [vmem:[%s5 + $0x50] sm:$0xff]
        %v2795 = vld [vmem:[%s5 + $0x58] sm:$0xff]
        %v2796 = vld [vmem:[%s5 + $0x60] sm:$0xff]
        %v2797 = vld [vmem:[%s5 + $0x68] sm:$0xff]
        %v2798 = vld [vmem:[%s5 + $0x70] sm:$0xff]
        %v2799 = vld [vmem:[%s5 + $0x78] sm:$0xff]
        %v2800 = vld [vmem:[%s5 + $0x80] sm:$0xff]
        %v2801 = vld [vmem:[%s5 + $0x88] sm:$0xff]
        %v2802 = vld [vmem:[%s5 + $0x90] sm:$0xff]
        %v2803 = vld [vmem:[%s5 + $0x98] sm:$0xff]
        %v2804 = vld [vmem:[%s5 + $0xa0] sm:$0xff]
        %v2805 = vld [vmem:[%s5 + $0xa8] sm:$0xff]
        %v2806 = vld [vmem:[%s5 + $0xb0] sm:$0xff]
        %v2807 = vld [vmem:[%s5 + $0xb8] sm:$0xff]
        %v2808 = vld [vmem:[%s5 + $0xc0] sm:$0xff]
        %v2809 = vld [vmem:[%s5 + $0xc8] sm:$0xff]
        %v2810 = vld [vmem:[%s5 + $0xd0] sm:$0xff]
        %v2811 = vld [vmem:[%s5 + $0xd8] sm:$0xff]
        %v2812 = vld [vmem:[%s5 + $0xe0] sm:$0xff]
        %v2813 = vld [vmem:[%s5 + $0xe8] sm:$0xff]
        %v2814 = vld [vmem:[%s5 + $0xf0] sm:$0xff]
        %v2815 = vld [vmem:[%s5 + $0xf8] sm:$0xff]
        %v2816 = vld [vmem:[%s5 + $0x100] sm:$0xff]
        %v2817 = vld [vmem:[%s5 + $0x108] sm:$0xff]
        %v2818 = vld [vmem:[%s5 + $0x110] sm:$0xff]
        %v2819 = vld [vmem:[%s5 + $0x118] sm:$0xff]
        %v2820 = vld [vmem:[%s5 + $0x120] sm:$0xff]
        %v2821 = vld [vmem:[%s5 + $0x128] sm:$0xff]
        %v2822 = vld [vmem:[%s5 + $0x130] sm:$0xff]
        %v2823 = vld [vmem:[%s5 + $0x138] sm:$0xff]
        %v2824 = vld [vmem:[%s5 + $0x140] sm:$0xff]
        %v2825 = vld [vmem:[%s5 + $0x148] sm:$0xff]
        %v2826 = vld [vmem:[%s5 + $0x150] sm:$0xff]
        %v2827 = vld [vmem:[%s5 + $0x158] sm:$0xff]
        %v2828 = vld [vmem:[%s5 + $0x160] sm:$0xff]
        %v2829 = vld [vmem:[%s5 + $0x168] sm:$0xff]
        %v2830 = vld [vmem:[%s5 + $0x170] sm:$0xff]
        %v2831 = vld [vmem:[%s5 + $0x178] sm:$0xff]
        %v2832 = vld [vmem:[%s5 + $0x180] sm:$0xff]
        %v2833 = vld [vmem:[%s5 + $0x188] sm:$0xff]
        %v2834 = vld [vmem:[%s5 + $0x190] sm:$0xff]
        %v2835 = vld [vmem:[%s5 + $0x198] sm:$0xff]
        %v2836 = vld [vmem:[%s5 + $0x1a0] sm:$0xff]
        %v2837 = vld [vmem:[%s5 + $0x1a8] sm:$0xff]
        %v2838 = vld [vmem:[%s5 + $0x1b0] sm:$0xff]
        %v2839 = vld [vmem:[%s5 + $0x1b8] sm:$0xff]
        %v2840 = vld [vmem:[%s5 + $0x1c0] sm:$0xff]
        %v2841 = vld [vmem:[%s5 + $0x1c8] sm:$0xff]
        %v2842 = vld [vmem:[%s5 + $0x1d0] sm:$0xff]
        %v2843 = vld [vmem:[%s5 + $0x1d8] sm:$0xff]
        %v2844 = vld [vmem:[%s5 + $0x1e0] sm:$0xff]
        %v2845 = vld [vmem:[%s5 + $0x1e8] sm:$0xff]
        %v2846 = vld [vmem:[%s5 + $0x1f0] sm:$0xff]
        %v2847 = vld [vmem:[%s5 + $0x1f8] sm:$0xff]
        %v2848 = vld [vmem:[%s5 + $0x200] sm:$0xff]
        %v2849 = vld [vmem:[%s5 + $0x208] sm:$0xff]
        %v2850 = vld [vmem:[%s5 + $0x210] sm:$0xff]
        %v2851 = vld [vmem:[%s5 + $0x218] sm:$0xff]
        %v2852 = vld [vmem:[%s5 + $0x220] sm:$0xff]
        %v2853 = vld [vmem:[%s5 + $0x228] sm:$0xff]
        %v2854 = vld [vmem:[%s5 + $0x230] sm:$0xff]
        %v2855 = vld [vmem:[%s5 + $0x238] sm:$0xff]
        %v2856 = vld [vmem:[%s5 + $0x240] sm:$0xff]
        %v2857 = vld [vmem:[%s5 + $0x248] sm:$0xff]
        %v2858 = vld [vmem:[%s5 + $0x250] sm:$0xff]
        %v2859 = vld [vmem:[%s5 + $0x258] sm:$0xff]
        %v2860 = vld [vmem:[%s5 + $0x260] sm:$0xff]
        %v2861 = vld [vmem:[%s5 + $0x268] sm:$0xff]
        %v2862 = vld [vmem:[%s5 + $0x270] sm:$0xff]
        %v2863 = vld [vmem:[%s5 + $0x278] sm:$0xff]
        %v2864 = vld [vmem:[%s5 + $0x280] sm:$0xff]
        %v2865 = vld [vmem:[%s5 + $0x288] sm:$0xff]
        %v2866 = vld [vmem:[%s5 + $0x290] sm:$0xff]
        %v2867 = vld [vmem:[%s5 + $0x298] sm:$0xff]
        %v2868 = vld [vmem:[%s5 + $0x2a0] sm:$0xff]
        %v2869 = vld [vmem:[%s5 + $0x2a8] sm:$0xff]
        %v2870 = vld [vmem:[%s5 + $0x2b0] sm:$0xff]
        %v2871 = vld [vmem:[%s5 + $0x2b8] sm:$0xff]
        %v2872 = vld [vmem:[%s5 + $0x2c0] sm:$0xff]
        %v2873 = vld [vmem:[%s5 + $0x2c8] sm:$0xff]
        %v2874 = vld [vmem:[%s5 + $0x2d0] sm:$0xff]
        %v2875 = vld [vmem:[%s5 + $0x2d8] sm:$0xff]
        %v2876 = vld [vmem:[%s5 + $0x2e0] sm:$0xff]
        %v2877 = vld [vmem:[%s5 + $0x2e8] sm:$0xff]
        %v2878 = vld [vmem:[%s5 + $0x2f0] sm:$0xff]
        %v2879 = vld [vmem:[%s5 + $0x2f8] sm:$0xff]
        %v2880 = vld [vmem:[%s5 + $0x300] sm:$0xff]
        %v2881 = vld [vmem:[%s5 + $0x308] sm:$0xff]
        %v2882 = vld [vmem:[%s5 + $0x310] sm:$0xff]
        %v2883 = vld [vmem:[%s5 + $0x318] sm:$0xff]
        %v2884 = vld [vmem:[%s5 + $0x320] sm:$0xff]
        %v2885 = vld [vmem:[%s5 + $0x328] sm:$0xff]
        %v2886 = vld [vmem:[%s5 + $0x330] sm:$0xff]
        %v2887 = vld [vmem:[%s5 + $0x338] sm:$0xff]
        %v2888 = vld [vmem:[%s5 + $0x340] sm:$0xff]
        %v2889 = vld [vmem:[%s5 + $0x348] sm:$0xff]
        %v2890 = vld [vmem:[%s5 + $0x350] sm:$0xff]
        %v2891 = vld [vmem:[%s5 + $0x358] sm:$0xff]
        %v2892 = vld [vmem:[%s5 + $0x360] sm:$0xff]
        %v2893 = vld [vmem:[%s5 + $0x368] sm:$0xff]
        %v2894 = vld [vmem:[%s5 + $0x370] sm:$0xff]
        %v2895 = vld [vmem:[%s5 + $0x378] sm:$0xff]
        %v2896 = vld [vmem:[%s5 + $0x380] sm:$0xff]
        %v2897 = vld [vmem:[%s5 + $0x388] sm:$0xff]
        %v2898 = vld [vmem:[%s5 + $0x390] sm:$0xff]
        %v2899 = vld [vmem:[%s5 + $0x398] sm:$0xff]
        %v2900 = vld [vmem:[%s5 + $0x3a0] sm:$0xff]
        %v2901 = vld [vmem:[%s5 + $0x3a8] sm:$0xff]
        %v2902 = vld [vmem:[%s5 + $0x3b0] sm:$0xff]
        %v2903 = vld [vmem:[%s5 + $0x3b8] sm:$0xff]
        %v2904 = vld [vmem:[%s5 + $0x3c0] sm:$0xff]
        %v2905 = vld [vmem:[%s5 + $0x3c8] sm:$0xff]
        %v2906 = vld [vmem:[%s5 + $0x3d0] sm:$0xff]
        %v2907 = vld [vmem:[%s5 + $0x3d8] sm:$0xff]
        %v2908 = vld [vmem:[%s5 + $0x3e0] sm:$0xff]
        %v2909 = vld [vmem:[%s5 + $0x3e8] sm:$0xff]
        %v2910 = vld [vmem:[%s5 + $0x3f0] sm:$0xff]
        %v2911 = vld [vmem:[%s5 + $0x3f8] sm:$0xff]
        %v2912 = vld [vmem:[%s5 + $0x400] sm:$0xff]
        %v2913 = vld [vmem:[%s5 + $0x408] sm:$0xff]
        %v2914 = vld [vmem:[%s5 + $0x410] sm:$0xff]
        %v2915 = vld [vmem:[%s5 + $0x418] sm:$0xff]
        %v2916 = vld [vmem:[%s5 + $0x420] sm:$0xff]
        %v2917 = vld [vmem:[%s5 + $0x428] sm:$0xff]
        %v2918 = vld [vmem:[%s5 + $0x430] sm:$0xff]
        %v2919 = vld [vmem:[%s5 + $0x438] sm:$0xff]
        %v2920 = vld [vmem:[%s5 + $0x440] sm:$0xff]
        %v2921 = vld [vmem:[%s5 + $0x448] sm:$0xff]
        %v2922 = vld [vmem:[%s5 + $0x450] sm:$0xff]
        %v2923 = vld [vmem:[%s5 + $0x458] sm:$0xff]
        %v2924 = vld [vmem:[%s5 + $0x460] sm:$0xff]
        %v2925 = vld [vmem:[%s5 + $0x468] sm:$0xff]
        %v2926 = vld [vmem:[%s5 + $0x470] sm:$0xff]
        %v2927 = vld [vmem:[%s5 + $0x478] sm:$0xff]
        %v2928 = vld [vmem:[%s5 + $0x480] sm:$0xff]
        %v2929 = vld [vmem:[%s5 + $0x488] sm:$0xff]
        %v2930 = vld [vmem:[%s5 + $0x490] sm:$0xff]
        %v2931 = vld [vmem:[%s5 + $0x498] sm:$0xff]
        %v2932 = vld [vmem:[%s5 + $0x4a0] sm:$0xff]
        %v2933 = vld [vmem:[%s5 + $0x4a8] sm:$0xff]
        %v2934 = vld [vmem:[%s5 + $0x4b0] sm:$0xff]
        %v2935 = vld [vmem:[%s5 + $0x4b8] sm:$0xff]
        %v2936 = vld [vmem:[%s5 + $0x4c0] sm:$0xff]
        %v2937 = vld [vmem:[%s5 + $0x4c8] sm:$0xff]
        %v2938 = vld [vmem:[%s5 + $0x4d0] sm:$0xff]
        %v2939 = vld [vmem:[%s5 + $0x4d8] sm:$0xff]
        %v2940 = vld [vmem:[%s5 + $0x4e0] sm:$0xff]
        %v2941 = vld [vmem:[%s5 + $0x4e8] sm:$0xff]
        %v2942 = vld [vmem:[%s5 + $0x4f0] sm:$0xff]
        %v2943 = vld [vmem:[%s5 + $0x4f8] sm:$0xff]
        %v2944 = vld [vmem:[%s5 + $0x500] sm:$0xff]
        %v2945 = vld [vmem:[%s5 + $0x508] sm:$0xff]
        %v2946 = vld [vmem:[%s5 + $0x510] sm:$0xff]
        %v2947 = vld [vmem:[%s5 + $0x518] sm:$0xff]
        %v2948 = vld [vmem:[%s5 + $0x520] sm:$0xff]
        %v2949 = vld [vmem:[%s5 + $0x528] sm:$0xff]
        %v2950 = vld [vmem:[%s5 + $0x530] sm:$0xff]
        %v2951 = vld [vmem:[%s5 + $0x538] sm:$0xff]
        %v2952 = vld [vmem:[%s5 + $0x540] sm:$0xff]
        %v2953 = vld [vmem:[%s5 + $0x548] sm:$0xff]
        %v2954 = vld [vmem:[%s5 + $0x550] sm:$0xff]
        %v2955 = vld [vmem:[%s5 + $0x558] sm:$0xff]
        %v2956 = vld [vmem:[%s5 + $0x560] sm:$0xff]
        %v2957 = vld [vmem:[%s5 + $0x568] sm:$0xff]
        %v2958 = vld [vmem:[%s5 + $0x570] sm:$0xff]
        %v2959 = vld [vmem:[%s5 + $0x578] sm:$0xff]
        %v2960 = vld [vmem:[%s5 + $0x580] sm:$0xff]
        %v2961 = vld [vmem:[%s5 + $0x588] sm:$0xff]
        %v2962 = vld [vmem:[%s5 + $0x590] sm:$0xff]
        %v2963 = vld [vmem:[%s5 + $0x598] sm:$0xff]
        %v2964 = vld [vmem:[%s5 + $0x5a0] sm:$0xff]
        %v2965 = vld [vmem:[%s5 + $0x5a8] sm:$0xff]
        %v2966 = vld [vmem:[%s5 + $0x5b0] sm:$0xff]
        %v2967 = vld [vmem:[%s5 + $0x5b8] sm:$0xff]
        %v2968 = vld [vmem:[%s5 + $0x5c0] sm:$0xff]
        %v2969 = vld [vmem:[%s5 + $0x5c8] sm:$0xff]
        %v2970 = vld [vmem:[%s5 + $0x5d0] sm:$0xff]
        %v2971 = vld [vmem:[%s5 + $0x5d8] sm:$0xff]
        %v2972 = vld [vmem:[%s5 + $0x5e0] sm:$0xff]
        %v2973 = vld [vmem:[%s5 + $0x5e8] sm:$0xff]
        %v2974 = vld [vmem:[%s5 + $0x5f0] sm:$0xff]
        %v2975 = vld [vmem:[%s5 + $0x5f8] sm:$0xff]
        %v2976 = vld [vmem:[%s5 + $0x600] sm:$0xff]
        %v2977 = vld [vmem:[%s5 + $0x608] sm:$0xff]
        %v2978 = vld [vmem:[%s5 + $0x610] sm:$0xff]
        %v2979 = vld [vmem:[%s5 + $0x618] sm:$0xff]
        %v2980 = vld [vmem:[%s5 + $0x620] sm:$0xff]
        %v2981 = vld [vmem:[%s5 + $0x628] sm:$0xff]
        %v2982 = vld [vmem:[%s5 + $0x630] sm:$0xff]
        %v2983 = vld [vmem:[%s5 + $0x638] sm:$0xff]
        %v2984 = vld [vmem:[%s5 + $0x640] sm:$0xff]
        %v2985 = vld [vmem:[%s5 + $0x648] sm:$0xff]
        %v2986 = vld [vmem:[%s5 + $0x650] sm:$0xff]
        %v2987 = vld [vmem:[%s5 + $0x658] sm:$0xff]
        %v2988 = vld [vmem:[%s5 + $0x660] sm:$0xff]
        %v2989 = vld [vmem:[%s5 + $0x668] sm:$0xff]
        %v2990 = vld [vmem:[%s5 + $0x670] sm:$0xff]
        %v2991 = vld [vmem:[%s5 + $0x678] sm:$0xff]
        %v2992 = vld [vmem:[%s5 + $0x680] sm:$0xff]
        %v2993 = vld [vmem:[%s5 + $0x688] sm:$0xff]
        %v2994 = vld [vmem:[%s5 + $0x690] sm:$0xff]
        %v2995 = vld [vmem:[%s5 + $0x698] sm:$0xff]
        %v2996 = vld [vmem:[%s5 + $0x6a0] sm:$0xff]
        %v2997 = vld [vmem:[%s5 + $0x6a8] sm:$0xff]
        %v2998 = vld [vmem:[%s5 + $0x6b0] sm:$0xff]
        %v2999 = vld [vmem:[%s5 + $0x6b8] sm:$0xff]
        %v3000 = vld [vmem:[%s5 + $0x6c0] sm:$0xff]
        %v3001 = vld [vmem:[%s5 + $0x6c8] sm:$0xff]
        %v3002 = vld [vmem:[%s5 + $0x6d0] sm:$0xff]
        %v3003 = vld [vmem:[%s5 + $0x6d8] sm:$0xff]
        %v3004 = vld [vmem:[%s5 + $0x6e0] sm:$0xff]
        %v3005 = vld [vmem:[%s5 + $0x6e8] sm:$0xff]
        %v3006 = vld [vmem:[%s5 + $0x6f0] sm:$0xff]
        %v3007 = vld [vmem:[%s5 + $0x6f8] sm:$0xff]
        %v3008 = vld [vmem:[%s5 + $0x700] sm:$0xff]
        %v3009 = vld [vmem:[%s5 + $0x708] sm:$0xff]
        %v3010 = vld [vmem:[%s5 + $0x710] sm:$0xff]
        %v3011 = vld [vmem:[%s5 + $0x718] sm:$0xff]
        %v3012 = vld [vmem:[%s5 + $0x720] sm:$0xff]
        %v3013 = vld [vmem:[%s5 + $0x728] sm:$0xff]
        %v3014 = vld [vmem:[%s5 + $0x730] sm:$0xff]
        %v3015 = vld [vmem:[%s5 + $0x738] sm:$0xff]
        %v3016 = vld [vmem:[%s5 + $0x740] sm:$0xff]
        %v3017 = vld [vmem:[%s5 + $0x748] sm:$0xff]
        %v3018 = vld [vmem:[%s5 + $0x750] sm:$0xff]
        %v3019 = vld [vmem:[%s5 + $0x758] sm:$0xff]
        %v3020 = vld [vmem:[%s5 + $0x760] sm:$0xff]
        %v3021 = vld [vmem:[%s5 + $0x768] sm:$0xff]
        %v3022 = vld [vmem:[%s5 + $0x770] sm:$0xff]
        %v3023 = vld [vmem:[%s5 + $0x778] sm:$0xff]
        %v3024 = vld [vmem:[%s5 + $0x780] sm:$0xff]
        %v3025 = vld [vmem:[%s5 + $0x788] sm:$0xff]
        %v3026 = vld [vmem:[%s5 + $0x790] sm:$0xff]
        %v3027 = vld [vmem:[%s5 + $0x798] sm:$0xff]
        %v3028 = vld [vmem:[%s5 + $0x7a0] sm:$0xff]
        %v3029 = vld [vmem:[%s5 + $0x7a8] sm:$0xff]
        %v3030 = vld [vmem:[%s5 + $0x7b0] sm:$0xff]
        %v3031 = vld [vmem:[%s5 + $0x7b8] sm:$0xff]
        %v3032 = vld [vmem:[%s5 + $0x7c0] sm:$0xff]
        %v3033 = vld [vmem:[%s5 + $0x7c8] sm:$0xff]
        %v3034 = vld [vmem:[%s5 + $0x7d0] sm:$0xff]
        %v3035 = vld [vmem:[%s5 + $0x7d8] sm:$0xff]
        %v3036 = vld [vmem:[%s5 + $0x7e0] sm:$0xff]
        %v3037 = vld [vmem:[%s5 + $0x7e8] sm:$0xff]
        %v3038 = vld [vmem:[%s5 + $0x7f0] sm:$0xff]
        %v3039 = vld [vmem:[%s5 + $0x7f8] sm:$0xff]
        %v3040 = vld [vmem:[%s5 + $0x800] sm:$0xff]
        %v3041 = vld [vmem:[%s5 + $0x808] sm:$0xff]
        %v3042 = vld [vmem:[%s5 + $0x810] sm:$0xff]
        %v3043 = vld [vmem:[%s5 + $0x818] sm:$0xff]
        %v3044 = vld [vmem:[%s5 + $0x820] sm:$0xff]
        %v3045 = vld [vmem:[%s5 + $0x828] sm:$0xff]
        %v3046 = vld [vmem:[%s5 + $0x830] sm:$0xff]
        %v3047 = vld [vmem:[%s5 + $0x838] sm:$0xff]
        %v3048 = vld [vmem:[%s5 + $0x840] sm:$0xff]
        %v3049 = vld [vmem:[%s5 + $0x848] sm:$0xff]
        %v3050 = vld [vmem:[%s5 + $0x850] sm:$0xff]
        %v3051 = vld [vmem:[%s5 + $0x858] sm:$0xff]
        %v3052 = vld [vmem:[%s5 + $0x860] sm:$0xff]
        %v3053 = vld [vmem:[%s5 + $0x868] sm:$0xff]
        %v3054 = vld [vmem:[%s5 + $0x870] sm:$0xff]
        %v3055 = vld [vmem:[%s5 + $0x878] sm:$0xff]
        %v3056 = vld [vmem:[%s5 + $0x880] sm:$0xff]
        %v3057 = vld [vmem:[%s5 + $0x888] sm:$0xff]
        %v3058 = vld [vmem:[%s5 + $0x890] sm:$0xff]
        %v3059 = vld [vmem:[%s5 + $0x898] sm:$0xff]
        %v3060 = vld [vmem:[%s5 + $0x8a0] sm:$0xff]
        %v3061 = vld [vmem:[%s5 + $0x8a8] sm:$0xff]
        %v3062 = vld [vmem:[%s5 + $0x8b0] sm:$0xff]
        %v3063 = vld [vmem:[%s5 + $0x8b8] sm:$0xff]
        %v3064 = vld [vmem:[%s5 + $0x8c0] sm:$0xff]
        %v3065 = vld [vmem:[%s5 + $0x8c8] sm:$0xff]
        %v3066 = vld [vmem:[%s5 + $0x8d0] sm:$0xff]
        %v3067 = vld [vmem:[%s5 + $0x8d8] sm:$0xff]
        %v3068 = vld [vmem:[%s5 + $0x8e0] sm:$0xff]
        %v3069 = vld [vmem:[%s5 + $0x8e8] sm:$0xff]
        %v3070 = vld [vmem:[%s5 + $0x8f0] sm:$0xff]
        %v3071 = vld [vmem:[%s5 + $0x8f8] sm:$0xff]
        %v3072 = vld [vmem:[%s5 + $0x900] sm:$0xff]
        %v3073 = vld [vmem:[%s5 + $0x908] sm:$0xff]
        %v3074 = vld [vmem:[%s5 + $0x910] sm:$0xff]
        %v3075 = vld [vmem:[%s5 + $0x918] sm:$0xff]
        %v3076 = vld [vmem:[%s5 + $0x920] sm:$0xff]
        %v3077 = vld [vmem:[%s5 + $0x928] sm:$0xff]
        %v3078 = vld [vmem:[%s5 + $0x930] sm:$0xff]
        %v3079 = vld [vmem:[%s5 + $0x938] sm:$0xff]
        %v3080 = vld [vmem:[%s5 + $0x940] sm:$0xff]
        %v3081 = vld [vmem:[%s5 + $0x948] sm:$0xff]
        %v3082 = vld [vmem:[%s5 + $0x950] sm:$0xff]
        %v3083 = vld [vmem:[%s5 + $0x958] sm:$0xff]
        %v3084 = vld [vmem:[%s5 + $0x960] sm:$0xff]
        %v3085 = vld [vmem:[%s5 + $0x968] sm:$0xff]
        %v3086 = vld [vmem:[%s5 + $0x970] sm:$0xff]
        %v3087 = vld [vmem:[%s5 + $0x978] sm:$0xff]
        %v3088 = vld [vmem:[%s5 + $0x980] sm:$0xff]
        %v3089 = vld [vmem:[%s5 + $0x988] sm:$0xff]
        %v3090 = vld [vmem:[%s5 + $0x990] sm:$0xff]
        %v3091 = vld [vmem:[%s5 + $0x998] sm:$0xff]
        %v3092 = vld [vmem:[%s5 + $0x9a0] sm:$0xff]
        %v3093 = vld [vmem:[%s5 + $0x9a8] sm:$0xff]
        %v3094 = vld [vmem:[%s5 + $0x9b0] sm:$0xff]
        %v3095 = vld [vmem:[%s5 + $0x9b8] sm:$0xff]
        %v3096 = vld [vmem:[%s5 + $0x9c0] sm:$0xff]
        %v3097 = vld [vmem:[%s5 + $0x9c8] sm:$0xff]
        %v3098 = vld [vmem:[%s5 + $0x9d0] sm:$0xff]
        %v3099 = vld [vmem:[%s5 + $0x9d8] sm:$0xff]
        %v3100 = vld [vmem:[%s5 + $0x9e0] sm:$0xff]
        %v3101 = vld [vmem:[%s5 + $0x9e8] sm:$0xff]
        %v3102 = vld [vmem:[%s5 + $0x9f0] sm:$0xff]
        %v3103 = vld [vmem:[%s5 + $0x9f8] sm:$0xff]
        %v3104 = vld [vmem:[%s5 + $0xa00] sm:$0xff]
        %v3105 = vld [vmem:[%s5 + $0xa08] sm:$0xff]
        %v3106 = vld [vmem:[%s5 + $0xa10] sm:$0xff]
        %v3107 = vld [vmem:[%s5 + $0xa18] sm:$0xff]
        %v3108 = vld [vmem:[%s5 + $0xa20] sm:$0xff]
        %v3109 = vld [vmem:[%s5 + $0xa28] sm:$0xff]
        %v3110 = vld [vmem:[%s5 + $0xa30] sm:$0xff]
        %v3111 = vld [vmem:[%s5 + $0xa38] sm:$0xff]
        %v3112 = vld [vmem:[%s5 + $0xa40] sm:$0xff]
        %v3113 = vld [vmem:[%s5 + $0xa48] sm:$0xff]
        %v3114 = vld [vmem:[%s5 + $0xa50] sm:$0xff]
        %v3115 = vld [vmem:[%s5 + $0xa58] sm:$0xff]
        %v3116 = vld [vmem:[%s5 + $0xa60] sm:$0xff]
        %v3117 = vld [vmem:[%s5 + $0xa68] sm:$0xff]
        %v3118 = vld [vmem:[%s5 + $0xa70] sm:$0xff]
        %v3119 = vld [vmem:[%s5 + $0xa78] sm:$0xff]
        %v3120 = vld [vmem:[%s5 + $0xa80] sm:$0xff]
        %v3121 = vld [vmem:[%s5 + $0xa88] sm:$0xff]
        %v3122 = vld [vmem:[%s5 + $0xa90] sm:$0xff]
        %v3123 = vld [vmem:[%s5 + $0xa98] sm:$0xff]
        %v3124 = vld [vmem:[%s5 + $0xaa0] sm:$0xff]
        %v3125 = vld [vmem:[%s5 + $0xaa8] sm:$0xff]
        %v3126 = vld [vmem:[%s5 + $0xab0] sm:$0xff]
        %v3127 = vld [vmem:[%s5 + $0xab8] sm:$0xff]
        %v3128 = vld [vmem:[%s5 + $0xac0] sm:$0xff]
        %v3129 = vld [vmem:[%s5 + $0xac8] sm:$0xff]
        %v3130 = vld [vmem:[%s5 + $0xad0] sm:$0xff]
        %v3131 = vld [vmem:[%s5 + $0xad8] sm:$0xff]
        %v3132 = vld [vmem:[%s5 + $0xae0] sm:$0xff]
        %v3133 = vld [vmem:[%s5 + $0xae8] sm:$0xff]
        %v3134 = vld [vmem:[%s5 + $0xaf0] sm:$0xff]
        %v3135 = vld [vmem:[%s5 + $0xaf8] sm:$0xff]
        %v3136 = vld [vmem:[%s5 + $0xb00] sm:$0xff]
        %v3137 = vld [vmem:[%s5 + $0xb08] sm:$0xff]
        %v3138 = vld [vmem:[%s5 + $0xb10] sm:$0xff]
        %v3139 = vld [vmem:[%s5 + $0xb18] sm:$0xff]
        %v3140 = vld [vmem:[%s5 + $0xb20] sm:$0xff]
        %v3141 = vld [vmem:[%s5 + $0xb28] sm:$0xff]
        %v3142 = vld [vmem:[%s5 + $0xb30] sm:$0xff]
        %v3143 = vld [vmem:[%s5 + $0xb38] sm:$0xff]
        %v3144 = vld [vmem:[%s5 + $0xb40] sm:$0xff]
        %v3145 = vld [vmem:[%s5 + $0xb48] sm:$0xff]
        %v3146 = vld [vmem:[%s5 + $0xb50] sm:$0xff]
        %v3147 = vld [vmem:[%s5 + $0xb58] sm:$0xff]
        %v3148 = vld [vmem:[%s5 + $0xb60] sm:$0xff]
        %v3149 = vld [vmem:[%s5 + $0xb68] sm:$0xff]
        %v3150 = vld [vmem:[%s5 + $0xb70] sm:$0xff]
        %v3151 = vld [vmem:[%s5 + $0xb78] sm:$0xff]
        %v3152 = vld [vmem:[%s5 + $0xb80] sm:$0xff]
        %v3153 = vld [vmem:[%s5 + $0xb88] sm:$0xff]
        %v3154 = vld [vmem:[%s5 + $0xb90] sm:$0xff]
        %v3155 = vld [vmem:[%s5 + $0xb98] sm:$0xff]
        %v3156 = vld [vmem:[%s5 + $0xba0] sm:$0xff]
        %v3157 = vld [vmem:[%s5 + $0xba8] sm:$0xff]
        %v3158 = vld [vmem:[%s5 + $0xbb0] sm:$0xff]
        %v3159 = vld [vmem:[%s5 + $0xbb8] sm:$0xff]
        %v3160 = vld [vmem:[%s5 + $0xbc0] sm:$0xff]
        %v3161 = vld [vmem:[%s5 + $0xbc8] sm:$0xff]
        %v3162 = vld [vmem:[%s5 + $0xbd0] sm:$0xff]
        %v3163 = vld [vmem:[%s5 + $0xbd8] sm:$0xff]
        %v3164 = vld [vmem:[%s5 + $0xbe0] sm:$0xff]
        %v3165 = vld [vmem:[%s5 + $0xbe8] sm:$0xff]
        %v3166 = vld [vmem:[%s5 + $0xbf0] sm:$0xff]
        %v3167 = vld [vmem:[%s5 + $0xbf8] sm:$0xff]
        %v3168 = vld [vmem:[%s5 + $0xc00] sm:$0xff]
        %v3169 = vld [vmem:[%s5 + $0xc08] sm:$0xff]
        %v3170 = vld [vmem:[%s5 + $0xc10] sm:$0xff]
        %v3171 = vld [vmem:[%s5 + $0xc18] sm:$0xff]
        %v3172 = vld [vmem:[%s5 + $0xc20] sm:$0xff]
        %v3173 = vld [vmem:[%s5 + $0xc28] sm:$0xff]
        %v3174 = vld [vmem:[%s5 + $0xc30] sm:$0xff]
        %v3175 = vld [vmem:[%s5 + $0xc38] sm:$0xff]
        %v3176 = vld [vmem:[%s5 + $0xc40] sm:$0xff]
        %v3177 = vld [vmem:[%s5 + $0xc48] sm:$0xff]
        %v3178 = vld [vmem:[%s5 + $0xc50] sm:$0xff]
        %v3179 = vld [vmem:[%s5 + $0xc58] sm:$0xff]
        %v3180 = vld [vmem:[%s5 + $0xc60] sm:$0xff]
        %v3181 = vld [vmem:[%s5 + $0xc68] sm:$0xff]
        %v3182 = vld [vmem:[%s5 + $0xc70] sm:$0xff]
        %v3183 = vld [vmem:[%s5 + $0xc78] sm:$0xff]
        %v3184 = vld [vmem:[%s5 + $0xc80] sm:$0xff]
        %v3185 = vld [vmem:[%s5 + $0xc88] sm:$0xff]
        %v3186 = vld [vmem:[%s5 + $0xc90] sm:$0xff]
        %v3187 = vld [vmem:[%s5 + $0xc98] sm:$0xff]
        %v3188 = vld [vmem:[%s5 + $0xca0] sm:$0xff]
        %v3189 = vld [vmem:[%s5 + $0xca8] sm:$0xff]
        %v3190 = vld [vmem:[%s5 + $0xcb0] sm:$0xff]
        %v3191 = vld [vmem:[%s5 + $0xcb8] sm:$0xff]
        %v3192 = vld [vmem:[%s5 + $0xcc0] sm:$0xff]
        %v3193 = vld [vmem:[%s5 + $0xcc8] sm:$0xff]
        %v3194 = vld [vmem:[%s5 + $0xcd0] sm:$0xff]
        %v3195 = vld [vmem:[%s5 + $0xcd8] sm:$0xff]
        %v3196 = vld [vmem:[%s5 + $0xce0] sm:$0xff]
        %v3197 = vld [vmem:[%s5 + $0xce8] sm:$0xff]
        %v3198 = vld [vmem:[%s5 + $0xcf0] sm:$0xff]
        %v3199 = vld [vmem:[%s5 + $0xcf8] sm:$0xff]
        %v3200 = vld [vmem:[%s5 + $0xd00] sm:$0xff]
        %v3201 = vld [vmem:[%s5 + $0xd08] sm:$0xff]
        %v3202 = vld [vmem:[%s5 + $0xd10] sm:$0xff]
        %v3203 = vld [vmem:[%s5 + $0xd18] sm:$0xff]
        %v3204 = vld [vmem:[%s5 + $0xd20] sm:$0xff]
        %v3205 = vld [vmem:[%s5 + $0xd28] sm:$0xff]
        %v3206 = vld [vmem:[%s5 + $0xd30] sm:$0xff]
        %v3207 = vld [vmem:[%s5 + $0xd38] sm:$0xff]
        %v3208 = vld [vmem:[%s5 + $0xd40] sm:$0xff]
        %v3209 = vld [vmem:[%s5 + $0xd48] sm:$0xff]
        %v3210 = vld [vmem:[%s5 + $0xd50] sm:$0xff]
        %v3211 = vld [vmem:[%s5 + $0xd58] sm:$0xff]
        %v3212 = vld [vmem:[%s5 + $0xd60] sm:$0xff]
        %v3213 = vld [vmem:[%s5 + $0xd68] sm:$0xff]
        %v3214 = vld [vmem:[%s5 + $0xd70] sm:$0xff]
        %v3215 = vld [vmem:[%s5 + $0xd78] sm:$0xff]
        %v3216 = vld [vmem:[%s5 + $0xd80] sm:$0xff]
        %v3217 = vld [vmem:[%s5 + $0xd88] sm:$0xff]
        %v3218 = vld [vmem:[%s5 + $0xd90] sm:$0xff]
        %v3219 = vld [vmem:[%s5 + $0xd98] sm:$0xff]
        %v3220 = vld [vmem:[%s5 + $0xda0] sm:$0xff]
        %v3221 = vld [vmem:[%s5 + $0xda8] sm:$0xff]
        %v3222 = vld [vmem:[%s5 + $0xdb0] sm:$0xff]
        %v3223 = vld [vmem:[%s5 + $0xdb8] sm:$0xff]
        %v3224 = vld [vmem:[%s5 + $0xdc0] sm:$0xff]
        %v3225 = vld [vmem:[%s5 + $0xdc8] sm:$0xff]
        %v3226 = vld [vmem:[%s5 + $0xdd0] sm:$0xff]
        %v3227 = vld [vmem:[%s5 + $0xdd8] sm:$0xff]
        %v3228 = vld [vmem:[%s5 + $0xde0] sm:$0xff]
        %v3229 = vld [vmem:[%s5 + $0xde8] sm:$0xff]
        %v3230 = vld [vmem:[%s5 + $0xdf0] sm:$0xff]
        %v3231 = vld [vmem:[%s5 + $0xdf8] sm:$0xff]
        %v3232 = vld [vmem:[%s5 + $0xe00] sm:$0xff]
        %v3233 = vld [vmem:[%s5 + $0xe08] sm:$0xff]
        %v3234 = vld [vmem:[%s5 + $0xe10] sm:$0xff]
        %v3235 = vld [vmem:[%s5 + $0xe18] sm:$0xff]
        %v3236 = vld [vmem:[%s5 + $0xe20] sm:$0xff]
        %v3237 = vld [vmem:[%s5 + $0xe28] sm:$0xff]
        %v3238 = vld [vmem:[%s5 + $0xe30] sm:$0xff]
        %v3239 = vld [vmem:[%s5 + $0xe38] sm:$0xff]
        %v3240 = vld [vmem:[%s5 + $0xe40] sm:$0xff]
        %v3241 = vld [vmem:[%s5 + $0xe48] sm:$0xff]
        %v3242 = vld [vmem:[%s5 + $0xe50] sm:$0xff]
        %v3243 = vld [vmem:[%s5 + $0xe58] sm:$0xff]
        %v3244 = vld [vmem:[%s5 + $0xe60] sm:$0xff]
        %v3245 = vld [vmem:[%s5 + $0xe68] sm:$0xff]
        %v3246 = vld [vmem:[%s5 + $0xe70] sm:$0xff]
        %v3247 = vld [vmem:[%s5 + $0xe78] sm:$0xff]
        %v3248 = vld [vmem:[%s5 + $0xe80] sm:$0xff]
        %v3249 = vld [vmem:[%s5 + $0xe88] sm:$0xff]
        %v3250 = vld [vmem:[%s5 + $0xe90] sm:$0xff]
        %v3251 = vld [vmem:[%s5 + $0xe98] sm:$0xff]
        %v3252 = vld [vmem:[%s5 + $0xea0] sm:$0xff]
        %v3253 = vld [vmem:[%s5 + $0xea8] sm:$0xff]
        %v3254 = vld [vmem:[%s5 + $0xeb0] sm:$0xff]
        %v3255 = vld [vmem:[%s5 + $0xeb8] sm:$0xff]
        %v3256 = vld [vmem:[%s5 + $0xec0] sm:$0xff]
        %v3257 = vld [vmem:[%s5 + $0xec8] sm:$0xff]
        %v3258 = vld [vmem:[%s5 + $0xed0] sm:$0xff]
        %v3259 = vld [vmem:[%s5 + $0xed8] sm:$0xff]
        %v3260 = vld [vmem:[%s5 + $0xee0] sm:$0xff]
        %v3261 = vld [vmem:[%s5 + $0xee8] sm:$0xff]
        %v3262 = vld [vmem:[%s5 + $0xef0] sm:$0xff]
        %v3263 = vld [vmem:[%s5 + $0xef8] sm:$0xff]
        %v3264 = vld [vmem:[%s5 + $0xf00] sm:$0xff]
        %v3265 = vld [vmem:[%s5 + $0xf08] sm:$0xff]
        %v3266 = vld [vmem:[%s5 + $0xf10] sm:$0xff]
        %v3267 = vld [vmem:[%s5 + $0xf18] sm:$0xff]
        %v3268 = vld [vmem:[%s5 + $0xf20] sm:$0xff]
        %v3269 = vld [vmem:[%s5 + $0xf28] sm:$0xff]
        %v3270 = vld [vmem:[%s5 + $0xf30] sm:$0xff]
        %v3271 = vld [vmem:[%s5 + $0xf38] sm:$0xff]
        %v3272 = vld [vmem:[%s5 + $0xf40] sm:$0xff]
        %v3273 = vld [vmem:[%s5 + $0xf48] sm:$0xff]
        %v3274 = vld [vmem:[%s5 + $0xf50] sm:$0xff]
        %v3275 = vld [vmem:[%s5 + $0xf58] sm:$0xff]
        %v3276 = vld [vmem:[%s5 + $0xf60] sm:$0xff]
        %v3277 = vld [vmem:[%s5 + $0xf68] sm:$0xff]
        %v3278 = vld [vmem:[%s5 + $0xf70] sm:$0xff]
        %v3279 = vld [vmem:[%s5 + $0xf78] sm:$0xff]
        %v3280 = vld [vmem:[%s5 + $0xf80] sm:$0xff]
        %v3281 = vld [vmem:[%s5 + $0xf88] sm:$0xff]
        %v3282 = vld [vmem:[%s5 + $0xf90] sm:$0xff]
        %v3283 = vld [vmem:[%s5 + $0xf98] sm:$0xff]
        %v3284 = vld [vmem:[%s5 + $0xfa0] sm:$0xff]
        %v3285 = vld [vmem:[%s5 + $0xfa8] sm:$0xff]
        %v3286 = vld [vmem:[%s5 + $0xfb0] sm:$0xff]
        %v3287 = vld [vmem:[%s5 + $0xfb8] sm:$0xff]
        %v3288 = vld [vmem:[%s5 + $0xfc0] sm:$0xff]
        %v3289 = vld [vmem:[%s5 + $0xfc8] sm:$0xff]
        %v3290 = vld [vmem:[%s5 + $0xfd0] sm:$0xff]
        %v3291 = vld [vmem:[%s5 + $0xfd8] sm:$0xff]
        %v3292 = vld [vmem:[%s5 + $0xfe0] sm:$0xff]
        %v3293 = vld [vmem:[%s5 + $0xfe8] sm:$0xff]
        %v3294 = vld [vmem:[%s5 + $0xff0] sm:$0xff]
        %v3295 = vld [vmem:[%s5 + $0xff8] sm:$0xff]
        %v3296 = vld [vmem:[%s5 + $0x1000] sm:$0xff]
        %v3297 = vld [vmem:[%s5 + $0x1008] sm:$0xff]
        %v3298 = vld [vmem:[%s5 + $0x1010] sm:$0xff]
        %v3299 = vld [vmem:[%s5 + $0x1018] sm:$0xff]
        %v3300 = vld [vmem:[%s5 + $0x1020] sm:$0xff]
        %v3301 = vld [vmem:[%s5 + $0x1028] sm:$0xff]
        %v3302 = vld [vmem:[%s5 + $0x1030] sm:$0xff]
        %v3303 = vld [vmem:[%s5 + $0x1038] sm:$0xff]
        %v3304 = vld [vmem:[%s5 + $0x1040] sm:$0xff]
        %v3305 = vld [vmem:[%s5 + $0x1048] sm:$0xff]
        %v3306 = vld [vmem:[%s5 + $0x1050] sm:$0xff]
        %v3307 = vld [vmem:[%s5 + $0x1058] sm:$0xff]
        %v3308 = vld [vmem:[%s5 + $0x1060] sm:$0xff]
        %v3309 = vld [vmem:[%s5 + $0x1068] sm:$0xff]
        %v3310 = vld [vmem:[%s5 + $0x1070] sm:$0xff]
        %v3311 = vld [vmem:[%s5 + $0x1078] sm:$0xff]
        %v3312 = vld [vmem:[%s5 + $0x1080] sm:$0xff]
        %v3313 = vld [vmem:[%s5 + $0x1088] sm:$0xff]
        %v3314 = vld [vmem:[%s5 + $0x1090] sm:$0xff]
        %v3315 = vld [vmem:[%s5 + $0x1098] sm:$0xff]
        %v3316 = vld [vmem:[%s5 + $0x10a0] sm:$0xff]
        %v3317 = vld [vmem:[%s5 + $0x10a8] sm:$0xff]
        %v3318 = vld [vmem:[%s5 + $0x10b0] sm:$0xff]
        %v3319 = vld [vmem:[%s5 + $0x10b8] sm:$0xff]
        %v3320 = vld [vmem:[%s5 + $0x10c0] sm:$0xff]
        %v3321 = vld [vmem:[%s5 + $0x10c8] sm:$0xff]
        %v3322 = vld [vmem:[%s5 + $0x10d0] sm:$0xff]
        %v3323 = vld [vmem:[%s5 + $0x10d8] sm:$0xff]
        %v3324 = vld [vmem:[%s5 + $0x10e0] sm:$0xff]
        %v3325 = vld [vmem:[%s5 + $0x10e8] sm:$0xff]
        %v3326 = vld [vmem:[%s5 + $0x10f0] sm:$0xff]
        %v3327 = vld [vmem:[%s5 + $0x10f8] sm:$0xff]
        %v3328 = vld [vmem:[%s5 + $0x1100] sm:$0xff]
        %v3329 = vld [vmem:[%s5 + $0x1108] sm:$0xff]
        %v3330 = vld [vmem:[%s5 + $0x1110] sm:$0xff]
        %v3331 = vld [vmem:[%s5 + $0x1118] sm:$0xff]
        %v3332 = vld [vmem:[%s5 + $0x1120] sm:$0xff]
        %v3333 = vld [vmem:[%s5 + $0x1128] sm:$0xff]
        %v3334 = vld [vmem:[%s5 + $0x1130] sm:$0xff]
        %v3335 = vld [vmem:[%s5 + $0x1138] sm:$0xff]
        %v3336 = vld [vmem:[%s5 + $0x1140] sm:$0xff]
        %v3337 = vld [vmem:[%s5 + $0x1148] sm:$0xff]
        %v3338 = vld [vmem:[%s5 + $0x1150] sm:$0xff]
        %v3339 = vld [vmem:[%s5 + $0x1158] sm:$0xff]
        %v3340 = vld [vmem:[%s5 + $0x1160] sm:$0xff]
        %v3341 = vld [vmem:[%s5 + $0x1168] sm:$0xff]
        %v3342 = vld [vmem:[%s5 + $0x1170] sm:$0xff]
        %v3343 = vld [vmem:[%s5 + $0x1178] sm:$0xff]
        %v3344 = vld [vmem:[%s5 + $0x1180] sm:$0xff]
        %v3345 = vld [vmem:[%s5 + $0x1188] sm:$0xff]
        %v3346 = vld [vmem:[%s5 + $0x1190] sm:$0xff]
        %v3347 = vld [vmem:[%s5 + $0x1198] sm:$0xff]
        %v3348 = vld [vmem:[%s5 + $0x11a0] sm:$0xff]
        %v3349 = vld [vmem:[%s5 + $0x11a8] sm:$0xff]
        %v3350 = vld [vmem:[%s5 + $0x11b0] sm:$0xff]
        %v3351 = vld [vmem:[%s5 + $0x11b8] sm:$0xff]
        %v3352 = vld [vmem:[%s5 + $0x11c0] sm:$0xff]
        %v3353 = vld [vmem:[%s5 + $0x11c8] sm:$0xff]
        %v3354 = vld [vmem:[%s5 + $0x11d0] sm:$0xff]
        %v3355 = vld [vmem:[%s5 + $0x11d8] sm:$0xff]
        %v3356 = vld [vmem:[%s5 + $0x11e0] sm:$0xff]
        %v3357 = vld [vmem:[%s5 + $0x11e8] sm:$0xff]
        %v3358 = vld [vmem:[%s5 + $0x11f0] sm:$0xff]
        %v3359 = vld [vmem:[%s5 + $0x11f8] sm:$0xff]
        %v3360 = vld [vmem:[%s5 + $0x1200] sm:$0xff]
        %v3361 = vld [vmem:[%s5 + $0x1208] sm:$0xff]
        %v3362 = vld [vmem:[%s5 + $0x1210] sm:$0xff]
        %v3363 = vld [vmem:[%s5 + $0x1218] sm:$0xff]
        %v3364 = vld [vmem:[%s5 + $0x1220] sm:$0xff]
        %v3365 = vld [vmem:[%s5 + $0x1228] sm:$0xff]
        %v3366 = vld [vmem:[%s5 + $0x1230] sm:$0xff]
        %v3367 = vld [vmem:[%s5 + $0x1238] sm:$0xff]
        %v3368 = vld [vmem:[%s5 + $0x1240] sm:$0xff]
        %v3369 = vld [vmem:[%s5 + $0x1248] sm:$0xff]
        %v3370 = vld [vmem:[%s5 + $0x1250] sm:$0xff]
        %v3371 = vld [vmem:[%s5 + $0x1258] sm:$0xff]
        %v3372 = vld [vmem:[%s5 + $0x1260] sm:$0xff]
        %v3373 = vld [vmem:[%s5 + $0x1268] sm:$0xff]
        %v3374 = vld [vmem:[%s5 + $0x1270] sm:$0xff]
        %v3375 = vld [vmem:[%s5 + $0x1278] sm:$0xff]
        %v3376 = vld [vmem:[%s5 + $0x1280] sm:$0xff]
        %v3377 = vld [vmem:[%s5 + $0x1288] sm:$0xff]
        %v3378 = vld [vmem:[%s5 + $0x1290] sm:$0xff]
        %v3379 = vld [vmem:[%s5 + $0x1298] sm:$0xff]
        %v3380 = vld [vmem:[%s5 + $0x12a0] sm:$0xff]
        %v3381 = vld [vmem:[%s5 + $0x12a8] sm:$0xff]
        %v3382 = vld [vmem:[%s5 + $0x12b0] sm:$0xff]
        %v3383 = vld [vmem:[%s5 + $0x12b8] sm:$0xff]
        %v3384 = vld [vmem:[%s5 + $0x12c0] sm:$0xff]
        %v3385 = vld [vmem:[%s5 + $0x12c8] sm:$0xff]
        %v3386 = vld [vmem:[%s5 + $0x12d0] sm:$0xff]
        %v3387 = vld [vmem:[%s5 + $0x12d8] sm:$0xff]
        %v3388 = vld [vmem:[%s5 + $0x12e0] sm:$0xff]
        %v3389 = vld [vmem:[%s5 + $0x12e8] sm:$0xff]
        %v3390 = vld [vmem:[%s5 + $0x12f0] sm:$0xff]
        %v3391 = vld [vmem:[%s5 + $0x12f8] sm:$0xff]
        %v3392 = vld [vmem:[%s5 + $0x1300] sm:$0xff]
        %v3393 = vld [vmem:[%s5 + $0x1308] sm:$0xff]
        %v3394 = vld [vmem:[%s5 + $0x1310] sm:$0xff]
        %v3395 = vld [vmem:[%s5 + $0x1318] sm:$0xff]
        %v3396 = vld [vmem:[%s5 + $0x1320] sm:$0xff]
        %v3397 = vld [vmem:[%s5 + $0x1328] sm:$0xff]
        %v3398 = vld [vmem:[%s5 + $0x1330] sm:$0xff]
        %v3399 = vld [vmem:[%s5 + $0x1338] sm:$0xff]
        %v3400 = vld [vmem:[%s5 + $0x1340] sm:$0xff]
        %v3401 = vld [vmem:[%s5 + $0x1348] sm:$0xff]
        %v3402 = vld [vmem:[%s5 + $0x1350] sm:$0xff]
        %v3403 = vld [vmem:[%s5 + $0x1358] sm:$0xff]
        %v3404 = vld [vmem:[%s5 + $0x1360] sm:$0xff]
        %v3405 = vld [vmem:[%s5 + $0x1368] sm:$0xff]
        %v3406 = vld [vmem:[%s5 + $0x1370] sm:$0xff]
        %v3407 = vld [vmem:[%s5 + $0x1378] sm:$0xff]
        %v3408 = vld [vmem:[%s5 + $0x1380] sm:$0xff]
        %v3409 = vld [vmem:[%s5 + $0x1388] sm:$0xff]
        %v3410 = vld [vmem:[%s5 + $0x1390] sm:$0xff]
        %v3411 = vld [vmem:[%s5 + $0x1398] sm:$0xff]
        %v3412 = vld [vmem:[%s5 + $0x13a0] sm:$0xff]
        %v3413 = vld [vmem:[%s5 + $0x13a8] sm:$0xff]
        %v3414 = vld [vmem:[%s5 + $0x13b0] sm:$0xff]
        %v3415 = vld [vmem:[%s5 + $0x13b8] sm:$0xff]
        %v3416 = vld [vmem:[%s5 + $0x13c0] sm:$0xff]
        %v3417 = vld [vmem:[%s5 + $0x13c8] sm:$0xff]
        %v3418 = vld [vmem:[%s5 + $0x13d0] sm:$0xff]
        %v3419 = vld [vmem:[%s5 + $0x13d8] sm:$0xff]
        %v3420 = vld [vmem:[%s5 + $0x13e0] sm:$0xff]
        %v3421 = vld [vmem:[%s5 + $0x13e8] sm:$0xff]
        %v3422 = vld [vmem:[%s5 + $0x13f0] sm:$0xff]
        %v3423 = vld [vmem:[%s5 + $0x13f8] sm:$0xff]
        %v3424 = vld [vmem:[%s5 + $0x1400] sm:$0xff]
        %v3425 = vld [vmem:[%s5 + $0x1408] sm:$0xff]
        %v3426 = vld [vmem:[%s5 + $0x1410] sm:$0xff]
        %v3427 = vld [vmem:[%s5 + $0x1418] sm:$0xff]
        %v3428 = vld [vmem:[%s5 + $0x1420] sm:$0xff]
        %v3429 = vld [vmem:[%s5 + $0x1428] sm:$0xff]
        %v3430 = vld [vmem:[%s5 + $0x1430] sm:$0xff]
        %v3431 = vld [vmem:[%s5 + $0x1438] sm:$0xff]
        %v3432 = vld [vmem:[%s5 + $0x1440] sm:$0xff]
        %v3433 = vld [vmem:[%s5 + $0x1448] sm:$0xff]
        %v3434 = vld [vmem:[%s5 + $0x1450] sm:$0xff]
        %v3435 = vld [vmem:[%s5 + $0x1458] sm:$0xff]
        %v3436 = vld [vmem:[%s5 + $0x1460] sm:$0xff]
        %v3437 = vld [vmem:[%s5 + $0x1468] sm:$0xff]
        %v3438 = vld [vmem:[%s5 + $0x1470] sm:$0xff]
        %v3439 = vld [vmem:[%s5 + $0x1478] sm:$0xff]
        %v3440 = vld [vmem:[%s5 + $0x1480] sm:$0xff]
        %v3441 = vld [vmem:[%s5 + $0x1488] sm:$0xff]
        %v3442 = vld [vmem:[%s5 + $0x1490] sm:$0xff]
        %v3443 = vld [vmem:[%s5 + $0x1498] sm:$0xff]
        %v3444 = vld [vmem:[%s5 + $0x14a0] sm:$0xff]
        %v3445 = vld [vmem:[%s5 + $0x14a8] sm:$0xff]
        %v3446 = vld [vmem:[%s5 + $0x14b0] sm:$0xff]
        %v3447 = vld [vmem:[%s5 + $0x14b8] sm:$0xff]
        %v3448 = vld [vmem:[%s5 + $0x14c0] sm:$0xff]
        %v3449 = vld [vmem:[%s5 + $0x14c8] sm:$0xff]
        %v3450 = vld [vmem:[%s5 + $0x14d0] sm:$0xff]
        %v3451 = vld [vmem:[%s5 + $0x14d8] sm:$0xff]
        %v3452 = vld [vmem:[%s5 + $0x14e0] sm:$0xff]
        %v3453 = vld [vmem:[%s5 + $0x14e8] sm:$0xff]
        %v3454 = vld [vmem:[%s5 + $0x14f0] sm:$0xff]
        %v3455 = vld [vmem:[%s5 + $0x14f8] sm:$0xff]
        %v3456 = vld [vmem:[%s5 + $0x1500] sm:$0xff]
        %v3457 = vld [vmem:[%s5 + $0x1508] sm:$0xff]
        %v3458 = vld [vmem:[%s5 + $0x1510] sm:$0xff]
        %v3459 = vld [vmem:[%s5 + $0x1518] sm:$0xff]
        %v3460 = vld [vmem:[%s5 + $0x1520] sm:$0xff]
        %v3461 = vld [vmem:[%s5 + $0x1528] sm:$0xff]
        %v3462 = vld [vmem:[%s5 + $0x1530] sm:$0xff]
        %v3463 = vld [vmem:[%s5 + $0x1538] sm:$0xff]
        %v3464 = vld [vmem:[%s5 + $0x1540] sm:$0xff]
        %v3465 = vld [vmem:[%s5 + $0x1548] sm:$0xff]
        %v3466 = vld [vmem:[%s5 + $0x1550] sm:$0xff]
        %v3467 = vld [vmem:[%s5 + $0x1558] sm:$0xff]
        %v3468 = vld [vmem:[%s5 + $0x1560] sm:$0xff]
        %v3469 = vld [vmem:[%s5 + $0x1568] sm:$0xff]
        %v3470 = vld [vmem:[%s5 + $0x1570] sm:$0xff]
        %v3471 = vld [vmem:[%s5 + $0x1578] sm:$0xff]
        %v3472 = vld [vmem:[%s5 + $0x1580] sm:$0xff]
        %v3473 = vld [vmem:[%s5 + $0x1588] sm:$0xff]
        %v3474 = vld [vmem:[%s5 + $0x1590] sm:$0xff]
        %v3475 = vld [vmem:[%s5 + $0x1598] sm:$0xff]
        %v3476 = vld [vmem:[%s5 + $0x15a0] sm:$0xff]
        %v3477 = vld [vmem:[%s5 + $0x15a8] sm:$0xff]
        %v3478 = vld [vmem:[%s5 + $0x15b0] sm:$0xff]
        %v3479 = vld [vmem:[%s5 + $0x15b8] sm:$0xff]
        %v3480 = vld [vmem:[%s5 + $0x15c0] sm:$0xff]
        %v3481 = vld [vmem:[%s5 + $0x15c8] sm:$0xff]
        %v3482 = vld [vmem:[%s5 + $0x15d0] sm:$0xff]
        %v3483 = vld [vmem:[%s5 + $0x15d8] sm:$0xff]
        %v3484 = vld [vmem:[%s5 + $0x15e0] sm:$0xff]
        %v3485 = vld [vmem:[%s5 + $0x15e8] sm:$0xff]
        %v3486 = vld [vmem:[%s5 + $0x15f0] sm:$0xff]
        %v3487 = vld [vmem:[%s5 + $0x15f8] sm:$0xff]
        %v3488 = vld [vmem:[%s5 + $0x1600] sm:$0xff]
        %v3489 = vld [vmem:[%s5 + $0x1608] sm:$0xff]
        %v3490 = vld [vmem:[%s5 + $0x1610] sm:$0xff]
        %v3491 = vld [vmem:[%s5 + $0x1618] sm:$0xff]
        %v3492 = vld [vmem:[%s5 + $0x1620] sm:$0xff]
        %v3493 = vld [vmem:[%s5 + $0x1628] sm:$0xff]
        %v3494 = vld [vmem:[%s5 + $0x1630] sm:$0xff]
        %v3495 = vld [vmem:[%s5 + $0x1638] sm:$0xff]
        %v3496 = vld [vmem:[%s5 + $0x1640] sm:$0xff]
        %v3497 = vld [vmem:[%s5 + $0x1648] sm:$0xff]
        %v3498 = vld [vmem:[%s5 + $0x1650] sm:$0xff]
        %v3499 = vld [vmem:[%s5 + $0x1658] sm:$0xff]
        %v3500 = vld [vmem:[%s5 + $0x1660] sm:$0xff]
        %v3501 = vld [vmem:[%s5 + $0x1668] sm:$0xff]
        %v3502 = vld [vmem:[%s5 + $0x1670] sm:$0xff]
        %v3503 = vld [vmem:[%s5 + $0x1678] sm:$0xff]
        %v3504 = vld [vmem:[%s5 + $0x1680] sm:$0xff]
        %v3505 = vld [vmem:[%s5 + $0x1688] sm:$0xff]
        %v3506 = vld [vmem:[%s5 + $0x1690] sm:$0xff]
        %v3507 = vld [vmem:[%s5 + $0x1698] sm:$0xff]
        %v3508 = vld [vmem:[%s5 + $0x16a0] sm:$0xff]
        %v3509 = vld [vmem:[%s5 + $0x16a8] sm:$0xff]
        %v3510 = vld [vmem:[%s5 + $0x16b0] sm:$0xff]
        %v3511 = vld [vmem:[%s5 + $0x16b8] sm:$0xff]
        %v3512 = vld [vmem:[%s5 + $0x16c0] sm:$0xff]
        %v3513 = vld [vmem:[%s5 + $0x16c8] sm:$0xff]
        %v3514 = vld [vmem:[%s5 + $0x16d0] sm:$0xff]
        %v3515 = vld [vmem:[%s5 + $0x16d8] sm:$0xff]
        %v3516 = vld [vmem:[%s5 + $0x16e0] sm:$0xff]
        %v3517 = vld [vmem:[%s5 + $0x16e8] sm:$0xff]
        %v3518 = vld [vmem:[%s5 + $0x16f0] sm:$0xff]
        %v3519 = vld [vmem:[%s5 + $0x16f8] sm:$0xff]
        %v3520 = vld [vmem:[%s5 + $0x1700] sm:$0xff]
        %v3521 = vld [vmem:[%s5 + $0x1708] sm:$0xff]
        %v3522 = vld [vmem:[%s5 + $0x1710] sm:$0xff]
        %v3523 = vld [vmem:[%s5 + $0x1718] sm:$0xff]
        %v3524 = vld [vmem:[%s5 + $0x1720] sm:$0xff]
        %v3525 = vld [vmem:[%s5 + $0x1728] sm:$0xff]
        %v3526 = vld [vmem:[%s5 + $0x1730] sm:$0xff]
        %v3527 = vld [vmem:[%s5 + $0x1738] sm:$0xff]
        %v3528 = vld [vmem:[%s5 + $0x1740] sm:$0xff]
        %v3529 = vld [vmem:[%s5 + $0x1748] sm:$0xff]
        %v3530 = vld [vmem:[%s5 + $0x1750] sm:$0xff]
        %v3531 = vld [vmem:[%s5 + $0x1758] sm:$0xff]
        %v3532 = vld [vmem:[%s5 + $0x1760] sm:$0xff]
        %v3533 = vld [vmem:[%s5 + $0x1768] sm:$0xff]
        %v3534 = vld [vmem:[%s5 + $0x1770] sm:$0xff]
        %v3535 = vld [vmem:[%s5 + $0x1778] sm:$0xff]
        %v3536 = vld [vmem:[%s5 + $0x1780] sm:$0xff]
        %v3537 = vld [vmem:[%s5 + $0x1788] sm:$0xff]
        %v3538 = vld [vmem:[%s5 + $0x1790] sm:$0xff]
        %v3539 = vld [vmem:[%s5 + $0x1798] sm:$0xff]
        %v3540 = vld [vmem:[%s5 + $0x17a0] sm:$0xff]
        %v3541 = vld [vmem:[%s5 + $0x17a8] sm:$0xff]
        %v3542 = vld [vmem:[%s5 + $0x17b0] sm:$0xff]
        %v3543 = vld [vmem:[%s5 + $0x17b8] sm:$0xff]
        %v3544 = vld [vmem:[%s5 + $0x17c0] sm:$0xff]
        %v3545 = vld [vmem:[%s5 + $0x17c8] sm:$0xff]
        %v3546 = vld [vmem:[%s5 + $0x17d0] sm:$0xff]
        %v3547 = vld [vmem:[%s5 + $0x17d8] sm:$0xff]
        %v3548 = vld [vmem:[%s5 + $0x17e0] sm:$0xff]
        %v3549 = vld [vmem:[%s5 + $0x17e8] sm:$0xff]
        %v3550 = vld [vmem:[%s5 + $0x17f0] sm:$0xff]
        %v3551 = vld [vmem:[%s5 + $0x17f8] sm:$0xff]
        %v3552 = vld [vmem:[%s5 + $0x1800] sm:$0xff]
        %v3553 = vld [vmem:[%s5 + $0x1808] sm:$0xff]
        %v3554 = vld [vmem:[%s5 + $0x1810] sm:$0xff]
        %v3555 = vld [vmem:[%s5 + $0x1818] sm:$0xff]
        %v3556 = vld [vmem:[%s5 + $0x1820] sm:$0xff]
        %v3557 = vld [vmem:[%s5 + $0x1828] sm:$0xff]
        %v3558 = vld [vmem:[%s5 + $0x1830] sm:$0xff]
        %v3559 = vld [vmem:[%s5 + $0x1838] sm:$0xff]
        %v3560 = vld [vmem:[%s5 + $0x1840] sm:$0xff]
        %v3561 = vld [vmem:[%s5 + $0x1848] sm:$0xff]
        %v3562 = vld [vmem:[%s5 + $0x1850] sm:$0xff]
        %v3563 = vld [vmem:[%s5 + $0x1858] sm:$0xff]
        %v3564 = vld [vmem:[%s5 + $0x1860] sm:$0xff]
        %v3565 = vld [vmem:[%s5 + $0x1868] sm:$0xff]
        %v3566 = vld [vmem:[%s5 + $0x1870] sm:$0xff]
        %v3567 = vld [vmem:[%s5 + $0x1878] sm:$0xff]
        %v3568 = vld [vmem:[%s5 + $0x1880] sm:$0xff]
        %v3569 = vld [vmem:[%s5 + $0x1888] sm:$0xff]
        %v3570 = vld [vmem:[%s5 + $0x1890] sm:$0xff]
        %v3571 = vld [vmem:[%s5 + $0x1898] sm:$0xff]
        %v3572 = vld [vmem:[%s5 + $0x18a0] sm:$0xff]
        %v3573 = vld [vmem:[%s5 + $0x18a8] sm:$0xff]
        %v3574 = vld [vmem:[%s5 + $0x18b0] sm:$0xff]
        %v3575 = vld [vmem:[%s5 + $0x18b8] sm:$0xff]
        %v3576 = vld [vmem:[%s5 + $0x18c0] sm:$0xff]
        %v3577 = vld [vmem:[%s5 + $0x18c8] sm:$0xff]
        %v3578 = vld [vmem:[%s5 + $0x18d0] sm:$0xff]
        %v3579 = vld [vmem:[%s5 + $0x18d8] sm:$0xff]
        %v3580 = vld [vmem:[%s5 + $0x18e0] sm:$0xff]
        %v3581 = vld [vmem:[%s5 + $0x18e8] sm:$0xff]
        %v3582 = vld [vmem:[%s5 + $0x18f0] sm:$0xff]
        %v3583 = vld [vmem:[%s5 + $0x18f8] sm:$0xff]
        %v3584 = vld [vmem:[%s5 + $0x1900] sm:$0xff]
        %v3585 = vld [vmem:[%s5 + $0x1908] sm:$0xff]
        %v3586 = vld [vmem:[%s5 + $0x1910] sm:$0xff]
        %v3587 = vld [vmem:[%s5 + $0x1918] sm:$0xff]
        %v3588 = vld [vmem:[%s5 + $0x1920] sm:$0xff]
        %v3589 = vld [vmem:[%s5 + $0x1928] sm:$0xff]
        %v3590 = vld [vmem:[%s5 + $0x1930] sm:$0xff]
        %v3591 = vld [vmem:[%s5 + $0x1938] sm:$0xff]
        %v3592 = vld [vmem:[%s5 + $0x1940] sm:$0xff]
        %v3593 = vld [vmem:[%s5 + $0x1948] sm:$0xff]
        %v3594 = vld [vmem:[%s5 + $0x1950] sm:$0xff]
        %v3595 = vld [vmem:[%s5 + $0x1958] sm:$0xff]
        %v3596 = vld [vmem:[%s5 + $0x1960] sm:$0xff]
        %v3597 = vld [vmem:[%s5 + $0x1968] sm:$0xff]
        %v3598 = vld [vmem:[%s5 + $0x1970] sm:$0xff]
        %v3599 = vld [vmem:[%s5 + $0x1978] sm:$0xff]
        %v3600 = vld [vmem:[%s5 + $0x1980] sm:$0xff]
        %v3601 = vld [vmem:[%s5 + $0x1988] sm:$0xff]
        %v3602 = vld [vmem:[%s5 + $0x1990] sm:$0xff]
        %v3603 = vld [vmem:[%s5 + $0x1998] sm:$0xff]
        %v3604 = vld [vmem:[%s5 + $0x19a0] sm:$0xff]
        %v3605 = vld [vmem:[%s5 + $0x19a8] sm:$0xff]
        %v3606 = vld [vmem:[%s5 + $0x19b0] sm:$0xff]
        %v3607 = vld [vmem:[%s5 + $0x19b8] sm:$0xff]
        %v3608 = vld [vmem:[%s5 + $0x19c0] sm:$0xff]
        %v3609 = vld [vmem:[%s5 + $0x19c8] sm:$0xff]
        %v3610 = vld [vmem:[%s5 + $0x19d0] sm:$0xff]
        %v3611 = vld [vmem:[%s5 + $0x19d8] sm:$0xff]
        %v3612 = vld [vmem:[%s5 + $0x19e0] sm:$0xff]
        %v3613 = vld [vmem:[%s5 + $0x19e8] sm:$0xff]
        %v3614 = vld [vmem:[%s5 + $0x19f0] sm:$0xff]
        %v3615 = vld [vmem:[%s5 + $0x19f8] sm:$0xff]
        %v3616 = vld [vmem:[%s5 + $0x1a00] sm:$0xff]
        %v3617 = vld [vmem:[%s5 + $0x1a08] sm:$0xff]
        %v3618 = vld [vmem:[%s5 + $0x1a10] sm:$0xff]
        %v3619 = vld [vmem:[%s5 + $0x1a18] sm:$0xff]
        %v3620 = vld [vmem:[%s5 + $0x1a20] sm:$0xff]
        %v3621 = vld [vmem:[%s5 + $0x1a28] sm:$0xff]
        %v3622 = vld [vmem:[%s5 + $0x1a30] sm:$0xff]
        %v3623 = vld [vmem:[%s5 + $0x1a38] sm:$0xff]
        %v3624 = vld [vmem:[%s5 + $0x1a40] sm:$0xff]
        %v3625 = vld [vmem:[%s5 + $0x1a48] sm:$0xff]
        %v3626 = vld [vmem:[%s5 + $0x1a50] sm:$0xff]
        %v3627 = vld [vmem:[%s5 + $0x1a58] sm:$0xff]
        %v3628 = vld [vmem:[%s5 + $0x1a60] sm:$0xff]
        %v3629 = vld [vmem:[%s5 + $0x1a68] sm:$0xff]
        %v3630 = vld [vmem:[%s5 + $0x1a70] sm:$0xff]
        %v3631 = vld [vmem:[%s5 + $0x1a78] sm:$0xff]
        %v3632 = vld [vmem:[%s5 + $0x1a80] sm:$0xff]
        %v3633 = vld [vmem:[%s5 + $0x1a88] sm:$0xff]
        %v3634 = vld [vmem:[%s5 + $0x1a90] sm:$0xff]
        %v3635 = vld [vmem:[%s5 + $0x1a98] sm:$0xff]
        %v3636 = vld [vmem:[%s5 + $0x1aa0] sm:$0xff]
        %v3637 = vld [vmem:[%s5 + $0x1aa8] sm:$0xff]
        %v3638 = vld [vmem:[%s5 + $0x1ab0] sm:$0xff]
        %v3639 = vld [vmem:[%s5 + $0x1ab8] sm:$0xff]
        %v3640 = vld [vmem:[%s5 + $0x1ac0] sm:$0xff]
        %v3641 = vld [vmem:[%s5 + $0x1ac8] sm:$0xff]
        %v3642 = vld [vmem:[%s5 + $0x1ad0] sm:$0xff]
        %v3643 = vld [vmem:[%s5 + $0x1ad8] sm:$0xff]
        %v3644 = vld [vmem:[%s5 + $0x1ae0] sm:$0xff]
        %v3645 = vld [vmem:[%s5 + $0x1ae8] sm:$0xff]
        %v3646 = vld [vmem:[%s5 + $0x1af0] sm:$0xff]
        %v3647 = vld [vmem:[%s5 + $0x1af8] sm:$0xff]
        %v3648 = vld [vmem:[%s5 + $0x1b00] sm:$0xff]
        %v3649 = vld [vmem:[%s5 + $0x1b08] sm:$0xff]
        %v3650 = vld [vmem:[%s5 + $0x1b10] sm:$0xff]
        %v3651 = vld [vmem:[%s5 + $0x1b18] sm:$0xff]
        %v3652 = vld [vmem:[%s5 + $0x1b20] sm:$0xff]
        %v3653 = vld [vmem:[%s5 + $0x1b28] sm:$0xff]
        %v3654 = vld [vmem:[%s5 + $0x1b30] sm:$0xff]
        %v3655 = vld [vmem:[%s5 + $0x1b38] sm:$0xff]
        %v3656 = vld [vmem:[%s5 + $0x1b40] sm:$0xff]
        %v3657 = vld [vmem:[%s5 + $0x1b48] sm:$0xff]
        %v3658 = vld [vmem:[%s5 + $0x1b50] sm:$0xff]
        %v3659 = vld [vmem:[%s5 + $0x1b58] sm:$0xff]
        %v3660 = vld [vmem:[%s5 + $0x1b60] sm:$0xff]
        %v3661 = vld [vmem:[%s5 + $0x1b68] sm:$0xff]
        %v3662 = vld [vmem:[%s5 + $0x1b70] sm:$0xff]
        %v3663 = vld [vmem:[%s5 + $0x1b78] sm:$0xff]
        %v3664 = vld [vmem:[%s5 + $0x1b80] sm:$0xff]
        %v3665 = vld [vmem:[%s5 + $0x1b88] sm:$0xff]
        %v3666 = vld [vmem:[%s5 + $0x1b90] sm:$0xff]
        %v3667 = vld [vmem:[%s5 + $0x1b98] sm:$0xff]
        %v3668 = vld [vmem:[%s5 + $0x1ba0] sm:$0xff]
        %v3669 = vld [vmem:[%s5 + $0x1ba8] sm:$0xff]
        %v3670 = vld [vmem:[%s5 + $0x1bb0] sm:$0xff]
        %v3671 = vld [vmem:[%s5 + $0x1bb8] sm:$0xff]
        %v3672 = vld [vmem:[%s5 + $0x1bc0] sm:$0xff]
        %v3673 = vld [vmem:[%s5 + $0x1bc8] sm:$0xff]
        %v3674 = vld [vmem:[%s5 + $0x1bd0] sm:$0xff]
        %v3675 = vld [vmem:[%s5 + $0x1bd8] sm:$0xff]
        %v3676 = vld [vmem:[%s5 + $0x1be0] sm:$0xff]
        %v3677 = vld [vmem:[%s5 + $0x1be8] sm:$0xff]
        %v3678 = vld [vmem:[%s5 + $0x1bf0] sm:$0xff]
        %v3679 = vld [vmem:[%s5 + $0x1bf8] sm:$0xff]
        %v3680 = vld [vmem:[%s5 + $0x1c00] sm:$0xff]
        %v3681 = vld [vmem:[%s5 + $0x1c08] sm:$0xff]
        %v3682 = vld [vmem:[%s5 + $0x1c10] sm:$0xff]
        %v3683 = vld [vmem:[%s5 + $0x1c18] sm:$0xff]
        %v3684 = vld [vmem:[%s5 + $0x1c20] sm:$0xff]
        %v3685 = vld [vmem:[%s5 + $0x1c28] sm:$0xff]
        %v3686 = vld [vmem:[%s5 + $0x1c30] sm:$0xff]
        %v3687 = vld [vmem:[%s5 + $0x1c38] sm:$0xff]
        %v3688 = vld [vmem:[%s5 + $0x1c40] sm:$0xff]
        %v3689 = vld [vmem:[%s5 + $0x1c48] sm:$0xff]
        %v3690 = vld [vmem:[%s5 + $0x1c50] sm:$0xff]
        %v3691 = vld [vmem:[%s5 + $0x1c58] sm:$0xff]
        %v3692 = vld [vmem:[%s5 + $0x1c60] sm:$0xff]
        %v3693 = vld [vmem:[%s5 + $0x1c68] sm:$0xff]
        %v3694 = vld [vmem:[%s5 + $0x1c70] sm:$0xff]
        %v3695 = vld [vmem:[%s5 + $0x1c78] sm:$0xff]
        %v3696 = vld [vmem:[%s5 + $0x1c80] sm:$0xff]
        %v3697 = vld [vmem:[%s5 + $0x1c88] sm:$0xff]
        %v3698 = vld [vmem:[%s5 + $0x1c90] sm:$0xff]
        %v3699 = vld [vmem:[%s5 + $0x1c98] sm:$0xff]
        %v3700 = vld [vmem:[%s5 + $0x1ca0] sm:$0xff]
        %v3701 = vld [vmem:[%s5 + $0x1ca8] sm:$0xff]
        %v3702 = vld [vmem:[%s5 + $0x1cb0] sm:$0xff]
        %v3703 = vld [vmem:[%s5 + $0x1cb8] sm:$0xff]
        %v3704 = vld [vmem:[%s5 + $0x1cc0] sm:$0xff]
        %v3705 = vld [vmem:[%s5 + $0x1cc8] sm:$0xff]
        %v3706 = vld [vmem:[%s5 + $0x1cd0] sm:$0xff]
        %v3707 = vld [vmem:[%s5 + $0x1cd8] sm:$0xff]
        %v3708 = vld [vmem:[%s5 + $0x1ce0] sm:$0xff]
        %v3709 = vld [vmem:[%s5 + $0x1ce8] sm:$0xff]
        %v3710 = vld [vmem:[%s5 + $0x1cf0] sm:$0xff]
        %v3711 = vld [vmem:[%s5 + $0x1cf8] sm:$0xff]
        %v3712 = vld [vmem:[%s5 + $0x1d00] sm:$0xff]
        %v3713 = vld [vmem:[%s5 + $0x1d08] sm:$0xff]
        %v3714 = vld [vmem:[%s5 + $0x1d10] sm:$0xff]
        %v3715 = vld [vmem:[%s5 + $0x1d18] sm:$0xff]
        %v3716 = vld [vmem:[%s5 + $0x1d20] sm:$0xff]
        %v3717 = vld [vmem:[%s5 + $0x1d28] sm:$0xff]
        %v3718 = vld [vmem:[%s5 + $0x1d30] sm:$0xff]
        %v3719 = vld [vmem:[%s5 + $0x1d38] sm:$0xff]
        %v3720 = vld [vmem:[%s5 + $0x1d40] sm:$0xff]
        %v3721 = vld [vmem:[%s5 + $0x1d48] sm:$0xff]
        %v3722 = vld [vmem:[%s5 + $0x1d50] sm:$0xff]
        %v3723 = vld [vmem:[%s5 + $0x1d58] sm:$0xff]
        %v3724 = vld [vmem:[%s5 + $0x1d60] sm:$0xff]
        %v3725 = vld [vmem:[%s5 + $0x1d68] sm:$0xff]
        %v3726 = vld [vmem:[%s5 + $0x1d70] sm:$0xff]
        %v3727 = vld [vmem:[%s5 + $0x1d78] sm:$0xff]
        %v3728 = vld [vmem:[%s5 + $0x1d80] sm:$0xff]
        %v3729 = vld [vmem:[%s5 + $0x1d88] sm:$0xff]
        %v3730 = vld [vmem:[%s5 + $0x1d90] sm:$0xff]
        %v3731 = vld [vmem:[%s5 + $0x1d98] sm:$0xff]
        %v3732 = vld [vmem:[%s5 + $0x1da0] sm:$0xff]
        %v3733 = vld [vmem:[%s5 + $0x1da8] sm:$0xff]
        %v3734 = vld [vmem:[%s5 + $0x1db0] sm:$0xff]
        %v3735 = vld [vmem:[%s5 + $0x1db8] sm:$0xff]
        %v3736 = vld [vmem:[%s5 + $0x1dc0] sm:$0xff]
        %v3737 = vld [vmem:[%s5 + $0x1dc8] sm:$0xff]
        %v3738 = vld [vmem:[%s5 + $0x1dd0] sm:$0xff]
        %v3739 = vld [vmem:[%s5 + $0x1dd8] sm:$0xff]
        %v3740 = vld [vmem:[%s5 + $0x1de0] sm:$0xff]
        %v3741 = vld [vmem:[%s5 + $0x1de8] sm:$0xff]
        %v3742 = vld [vmem:[%s5 + $0x1df0] sm:$0xff]
        %v3743 = vld [vmem:[%s5 + $0x1df8] sm:$0xff]
        %v3744 = vld [vmem:[%s5 + $0x1e00] sm:$0xff]
        %v3745 = vld [vmem:[%s5 + $0x1e08] sm:$0xff]
        %v3746 = vld [vmem:[%s5 + $0x1e10] sm:$0xff]
        %v3747 = vld [vmem:[%s5 + $0x1e18] sm:$0xff]
        %v3748 = vld [vmem:[%s5 + $0x1e20] sm:$0xff]
        %v3749 = vld [vmem:[%s5 + $0x1e28] sm:$0xff]
        %v3750 = vld [vmem:[%s5 + $0x1e30] sm:$0xff]
        %v3751 = vld [vmem:[%s5 + $0x1e38] sm:$0xff]
        %v3752 = vld [vmem:[%s5 + $0x1e40] sm:$0xff]
        %v3753 = vld [vmem:[%s5 + $0x1e48] sm:$0xff]
        %v3754 = vld [vmem:[%s5 + $0x1e50] sm:$0xff]
        %v3755 = vld [vmem:[%s5 + $0x1e58] sm:$0xff]
        %v3756 = vld [vmem:[%s5 + $0x1e60] sm:$0xff]
        %v3757 = vld [vmem:[%s5 + $0x1e68] sm:$0xff]
        %v3758 = vld [vmem:[%s5 + $0x1e70] sm:$0xff]
        %v3759 = vld [vmem:[%s5 + $0x1e78] sm:$0xff]
        %v3760 = vld [vmem:[%s5 + $0x1e80] sm:$0xff]
        %v3761 = vld [vmem:[%s5 + $0x1e88] sm:$0xff]
        %v3762 = vld [vmem:[%s5 + $0x1e90] sm:$0xff]
        %v3763 = vld [vmem:[%s5 + $0x1e98] sm:$0xff]
        %v3764 = vld [vmem:[%s5 + $0x1ea0] sm:$0xff]
        %v3765 = vld [vmem:[%s5 + $0x1ea8] sm:$0xff]
        %v3766 = vld [vmem:[%s5 + $0x1eb0] sm:$0xff]
        %v3767 = vld [vmem:[%s5 + $0x1eb8] sm:$0xff]
        %v3768 = vld [vmem:[%s5 + $0x1ec0] sm:$0xff]
        %v3769 = vld [vmem:[%s5 + $0x1ec8] sm:$0xff]
        %v3770 = vld [vmem:[%s5 + $0x1ed0] sm:$0xff]
        %v3771 = vld [vmem:[%s5 + $0x1ed8] sm:$0xff]
        %v3772 = vld [vmem:[%s5 + $0x1ee0] sm:$0xff]
        %v3773 = vld [vmem:[%s5 + $0x1ee8] sm:$0xff]
        %v3774 = vld [vmem:[%s5 + $0x1ef0] sm:$0xff]
        %v3775 = vld [vmem:[%s5 + $0x1ef8] sm:$0xff]
        %v3776 = vld [vmem:[%s5 + $0x1f00] sm:$0xff]
        %v3777 = vld [vmem:[%s5 + $0x1f08] sm:$0xff]
        %v3778 = vld [vmem:[%s5 + $0x1f10] sm:$0xff]
        %v3779 = vld [vmem:[%s5 + $0x1f18] sm:$0xff]
        %v3780 = vld [vmem:[%s5 + $0x1f20] sm:$0xff]
        %v3781 = vld [vmem:[%s5 + $0x1f28] sm:$0xff]
        %v3782 = vld [vmem:[%s5 + $0x1f30] sm:$0xff]
        %v3783 = vld [vmem:[%s5 + $0x1f38] sm:$0xff]
        %v3784 = vld [vmem:[%s5 + $0x1f40] sm:$0xff]
        %v3785 = vld [vmem:[%s5 + $0x1f48] sm:$0xff]
        %v3786 = vld [vmem:[%s5 + $0x1f50] sm:$0xff]
        %v3787 = vld [vmem:[%s5 + $0x1f58] sm:$0xff]
        %v3788 = vld [vmem:[%s5 + $0x1f60] sm:$0xff]
        %v3789 = vld [vmem:[%s5 + $0x1f68] sm:$0xff]
        %v3790 = vld [vmem:[%s5 + $0x1f70] sm:$0xff]
        %v3791 = vld [vmem:[%s5 + $0x1f78] sm:$0xff]
        %v3792 = vld [vmem:[%s5 + $0x1f80] sm:$0xff]
        %v3793 = vld [vmem:[%s5 + $0x1f88] sm:$0xff]
        %v3794 = vld [vmem:[%s5 + $0x1f90] sm:$0xff]
        %v3795 = vld [vmem:[%s5 + $0x1f98] sm:$0xff]
        %v3796 = vld [vmem:[%s5 + $0x1fa0] sm:$0xff]
        %v3797 = vld [vmem:[%s5 + $0x1fa8] sm:$0xff]
        %v3798 = vld [vmem:[%s5 + $0x1fb0] sm:$0xff]
        %v3799 = vld [vmem:[%s5 + $0x1fb8] sm:$0xff]
        %v3800 = vld [vmem:[%s5 + $0x1fc0] sm:$0xff]
        %v3801 = vld [vmem:[%s5 + $0x1fc8] sm:$0xff]
        %v3802 = vld [vmem:[%s5 + $0x1fd0] sm:$0xff]
        %v3803 = vld [vmem:[%s5 + $0x1fd8] sm:$0xff]
        %v3804 = vld [vmem:[%s5 + $0x1fe0] sm:$0xff]
        %v3805 = vld [vmem:[%s5 + $0x1fe8] sm:$0xff]
        %v3806 = vld [vmem:[%s5 + $0x1ff0] sm:$0xff]
        %v3807 = vld [vmem:[%s5 + $0x1ff8] sm:$0xff]
        %v3808 = vld [vmem:[%s6] sm:$0xf]
        %v4833 = vunpack.c.l.b16 %v2784
        %v4834 = vunpack.c.h.b16 %v2784
        %v4835 = vunpack.c.l.b16 %v2785
        %v4836 = vunpack.c.h.b16 %v2785
        %v4837 = vunpack.c.l.b16 %v2786
        %v4838 = vunpack.c.h.b16 %v2786
        %v4839 = vunpack.c.l.b16 %v2787
        %v4840 = vunpack.c.h.b16 %v2787
        %v4841 = vunpack.c.l.b16 %v2788
        %v4842 = vunpack.c.h.b16 %v2788
        %v4843 = vunpack.c.l.b16 %v2789
        %v4844 = vunpack.c.h.b16 %v2789
        %v4845 = vunpack.c.l.b16 %v2790
        %v4846 = vunpack.c.h.b16 %v2790
        %v4847 = vunpack.c.l.b16 %v2791
        %v4848 = vunpack.c.h.b16 %v2791
        %v4849 = vunpack.c.l.b16 %v2792
        %v4850 = vunpack.c.h.b16 %v2792
        %v4851 = vunpack.c.l.b16 %v2793
        %v4852 = vunpack.c.h.b16 %v2793
        %v4853 = vunpack.c.l.b16 %v2794
        %v4854 = vunpack.c.h.b16 %v2794
        %v4855 = vunpack.c.l.b16 %v2795
        %v4856 = vunpack.c.h.b16 %v2795
        %v4857 = vunpack.c.l.b16 %v2796
        %v4858 = vunpack.c.h.b16 %v2796
        %v4859 = vunpack.c.l.b16 %v2797
        %v4860 = vunpack.c.h.b16 %v2797
        %v4861 = vunpack.c.l.b16 %v2798
        %v4862 = vunpack.c.h.b16 %v2798
        %v4863 = vunpack.c.l.b16 %v2799
        %v4864 = vunpack.c.h.b16 %v2799
        %v4865 = vunpack.c.l.b16 %v2800
        %v4866 = vunpack.c.h.b16 %v2800
        %v4867 = vunpack.c.l.b16 %v2801
        %v4868 = vunpack.c.h.b16 %v2801
        %v4869 = vunpack.c.l.b16 %v2802
        %v4870 = vunpack.c.h.b16 %v2802
        %v4871 = vunpack.c.l.b16 %v2803
        %v4872 = vunpack.c.h.b16 %v2803
        %v4873 = vunpack.c.l.b16 %v2804
        %v4874 = vunpack.c.h.b16 %v2804
        %v4875 = vunpack.c.l.b16 %v2805
        %v4876 = vunpack.c.h.b16 %v2805
        %v4877 = vunpack.c.l.b16 %v2806
        %v4878 = vunpack.c.h.b16 %v2806
        %v4879 = vunpack.c.l.b16 %v2807
        %v4880 = vunpack.c.h.b16 %v2807
        %v4881 = vunpack.c.l.b16 %v2808
        %v4882 = vunpack.c.h.b16 %v2808
        %v4883 = vunpack.c.l.b16 %v2809
        %v4884 = vunpack.c.h.b16 %v2809
        %v4885 = vunpack.c.l.b16 %v2810
        %v4886 = vunpack.c.h.b16 %v2810
        %v4887 = vunpack.c.l.b16 %v2811
        %v4888 = vunpack.c.h.b16 %v2811
        %v4889 = vunpack.c.l.b16 %v2812
        %v4890 = vunpack.c.h.b16 %v2812
        %v4891 = vunpack.c.l.b16 %v2813
        %v4892 = vunpack.c.h.b16 %v2813
        %v4893 = vunpack.c.l.b16 %v2814
        %v4894 = vunpack.c.h.b16 %v2814
        %v4895 = vunpack.c.l.b16 %v2815
        %v4896 = vunpack.c.h.b16 %v2815
        %v4897 = vunpack.c.l.b16 %v2816
        %v4898 = vunpack.c.h.b16 %v2816
        %v4899 = vunpack.c.l.b16 %v2817
        %v4900 = vunpack.c.h.b16 %v2817
        %v4901 = vunpack.c.l.b16 %v2818
        %v4902 = vunpack.c.h.b16 %v2818
        %v4903 = vunpack.c.l.b16 %v2819
        %v4904 = vunpack.c.h.b16 %v2819
        %v4905 = vunpack.c.l.b16 %v2820
        %v4906 = vunpack.c.h.b16 %v2820
        %v4907 = vunpack.c.l.b16 %v2821
        %v4908 = vunpack.c.h.b16 %v2821
        %v4909 = vunpack.c.l.b16 %v2822
        %v4910 = vunpack.c.h.b16 %v2822
        %v4911 = vunpack.c.l.b16 %v2823
        %v4912 = vunpack.c.h.b16 %v2823
        %v4913 = vunpack.c.l.b16 %v2824
        %v4914 = vunpack.c.h.b16 %v2824
        %v4915 = vunpack.c.l.b16 %v2825
        %v4916 = vunpack.c.h.b16 %v2825
        %v4917 = vunpack.c.l.b16 %v2826
        %v4918 = vunpack.c.h.b16 %v2826
        %v4919 = vunpack.c.l.b16 %v2827
        %v4920 = vunpack.c.h.b16 %v2827
        %v4921 = vunpack.c.l.b16 %v2828
        %v4922 = vunpack.c.h.b16 %v2828
        %v4923 = vunpack.c.l.b16 %v2829
        %v4924 = vunpack.c.h.b16 %v2829
        %v4925 = vunpack.c.l.b16 %v2830
        %v4926 = vunpack.c.h.b16 %v2830
        %v4927 = vunpack.c.l.b16 %v2831
        %v4928 = vunpack.c.h.b16 %v2831
        %v4929 = vunpack.c.l.b16 %v2832
        %v4930 = vunpack.c.h.b16 %v2832
        %v4931 = vunpack.c.l.b16 %v2833
        %v4932 = vunpack.c.h.b16 %v2833
        %v4933 = vunpack.c.l.b16 %v2834
        %v4934 = vunpack.c.h.b16 %v2834
        %v4935 = vunpack.c.l.b16 %v2835
        %v4936 = vunpack.c.h.b16 %v2835
        %v4937 = vunpack.c.l.b16 %v2836
        %v4938 = vunpack.c.h.b16 %v2836
        %v4939 = vunpack.c.l.b16 %v2837
        %v4940 = vunpack.c.h.b16 %v2837
        %v4941 = vunpack.c.l.b16 %v2838
        %v4942 = vunpack.c.h.b16 %v2838
        %v4943 = vunpack.c.l.b16 %v2839
        %v4944 = vunpack.c.h.b16 %v2839
        %v4945 = vunpack.c.l.b16 %v2840
        %v4946 = vunpack.c.h.b16 %v2840
        %v4947 = vunpack.c.l.b16 %v2841
        %v4948 = vunpack.c.h.b16 %v2841
        %v4949 = vunpack.c.l.b16 %v2842
        %v4950 = vunpack.c.h.b16 %v2842
        %v4951 = vunpack.c.l.b16 %v2843
        %v4952 = vunpack.c.h.b16 %v2843
        %v4953 = vunpack.c.l.b16 %v2844
        %v4954 = vunpack.c.h.b16 %v2844
        %v4955 = vunpack.c.l.b16 %v2845
        %v4956 = vunpack.c.h.b16 %v2845
        %v4957 = vunpack.c.l.b16 %v2846
        %v4958 = vunpack.c.h.b16 %v2846
        %v4959 = vunpack.c.l.b16 %v2847
        %v4960 = vunpack.c.h.b16 %v2847
        %v4961 = vunpack.c.l.b16 %v2848
        %v4962 = vunpack.c.h.b16 %v2848
        %v4963 = vunpack.c.l.b16 %v2849
        %v4964 = vunpack.c.h.b16 %v2849
        %v4965 = vunpack.c.l.b16 %v2850
        %v4966 = vunpack.c.h.b16 %v2850
        %v4967 = vunpack.c.l.b16 %v2851
        %v4968 = vunpack.c.h.b16 %v2851
        %v4969 = vunpack.c.l.b16 %v2852
        %v4970 = vunpack.c.h.b16 %v2852
        %v4971 = vunpack.c.l.b16 %v2853
        %v4972 = vunpack.c.h.b16 %v2853
        %v4973 = vunpack.c.l.b16 %v2854
        %v4974 = vunpack.c.h.b16 %v2854
        %v4975 = vunpack.c.l.b16 %v2855
        %v4976 = vunpack.c.h.b16 %v2855
        %v4977 = vunpack.c.l.b16 %v2856
        %v4978 = vunpack.c.h.b16 %v2856
        %v4979 = vunpack.c.l.b16 %v2857
        %v4980 = vunpack.c.h.b16 %v2857
        %v4981 = vunpack.c.l.b16 %v2858
        %v4982 = vunpack.c.h.b16 %v2858
        %v4983 = vunpack.c.l.b16 %v2859
        %v4984 = vunpack.c.h.b16 %v2859
        %v4985 = vunpack.c.l.b16 %v2860
        %v4986 = vunpack.c.h.b16 %v2860
        %v4987 = vunpack.c.l.b16 %v2861
        %v4988 = vunpack.c.h.b16 %v2861
        %v4989 = vunpack.c.l.b16 %v2862
        %v4990 = vunpack.c.h.b16 %v2862
        %v4991 = vunpack.c.l.b16 %v2863
        %v4992 = vunpack.c.h.b16 %v2863
        %v4993 = vunpack.c.l.b16 %v2864
        %v4994 = vunpack.c.h.b16 %v2864
        %v4995 = vunpack.c.l.b16 %v2865
        %v4996 = vunpack.c.h.b16 %v2865
        %v4997 = vunpack.c.l.b16 %v2866
        %v4998 = vunpack.c.h.b16 %v2866
        %v4999 = vunpack.c.l.b16 %v2867
        %v5000 = vunpack.c.h.b16 %v2867
        %v5001 = vunpack.c.l.b16 %v2868
        %v5002 = vunpack.c.h.b16 %v2868
        %v5003 = vunpack.c.l.b16 %v2869
        %v5004 = vunpack.c.h.b16 %v2869
        %v5005 = vunpack.c.l.b16 %v2870
        %v5006 = vunpack.c.h.b16 %v2870
        %v5007 = vunpack.c.l.b16 %v2871
        %v5008 = vunpack.c.h.b16 %v2871
        %v5009 = vunpack.c.l.b16 %v2872
        %v5010 = vunpack.c.h.b16 %v2872
        %v5011 = vunpack.c.l.b16 %v2873
        %v5012 = vunpack.c.h.b16 %v2873
        %v5013 = vunpack.c.l.b16 %v2874
        %v5014 = vunpack.c.h.b16 %v2874
        %v5015 = vunpack.c.l.b16 %v2875
        %v5016 = vunpack.c.h.b16 %v2875
        %v5017 = vunpack.c.l.b16 %v2876
        %v5018 = vunpack.c.h.b16 %v2876
        %v5019 = vunpack.c.l.b16 %v2877
        %v5020 = vunpack.c.h.b16 %v2877
        %v5021 = vunpack.c.l.b16 %v2878
        %v5022 = vunpack.c.h.b16 %v2878
        %v5023 = vunpack.c.l.b16 %v2879
        %v5024 = vunpack.c.h.b16 %v2879
        %v5025 = vunpack.c.l.b16 %v2880
        %v5026 = vunpack.c.h.b16 %v2880
        %v5027 = vunpack.c.l.b16 %v2881
        %v5028 = vunpack.c.h.b16 %v2881
        %v5029 = vunpack.c.l.b16 %v2882
        %v5030 = vunpack.c.h.b16 %v2882
        %v5031 = vunpack.c.l.b16 %v2883
        %v5032 = vunpack.c.h.b16 %v2883
        %v5033 = vunpack.c.l.b16 %v2884
        %v5034 = vunpack.c.h.b16 %v2884
        %v5035 = vunpack.c.l.b16 %v2885
        %v5036 = vunpack.c.h.b16 %v2885
        %v5037 = vunpack.c.l.b16 %v2886
        %v5038 = vunpack.c.h.b16 %v2886
        %v5039 = vunpack.c.l.b16 %v2887
        %v5040 = vunpack.c.h.b16 %v2887
        %v5041 = vunpack.c.l.b16 %v2888
        %v5042 = vunpack.c.h.b16 %v2888
        %v5043 = vunpack.c.l.b16 %v2889
        %v5044 = vunpack.c.h.b16 %v2889
        %v5045 = vunpack.c.l.b16 %v2890
        %v5046 = vunpack.c.h.b16 %v2890
        %v5047 = vunpack.c.l.b16 %v2891
        %v5048 = vunpack.c.h.b16 %v2891
        %v5049 = vunpack.c.l.b16 %v2892
        %v5050 = vunpack.c.h.b16 %v2892
        %v5051 = vunpack.c.l.b16 %v2893
        %v5052 = vunpack.c.h.b16 %v2893
        %v5053 = vunpack.c.l.b16 %v2894
        %v5054 = vunpack.c.h.b16 %v2894
        %v5055 = vunpack.c.l.b16 %v2895
        %v5056 = vunpack.c.h.b16 %v2895
        %v5057 = vunpack.c.l.b16 %v2896
        %v5058 = vunpack.c.h.b16 %v2896
        %v5059 = vunpack.c.l.b16 %v2897
        %v5060 = vunpack.c.h.b16 %v2897
        %v5061 = vunpack.c.l.b16 %v2898
        %v5062 = vunpack.c.h.b16 %v2898
        %v5063 = vunpack.c.l.b16 %v2899
        %v5064 = vunpack.c.h.b16 %v2899
        %v5065 = vunpack.c.l.b16 %v2900
        %v5066 = vunpack.c.h.b16 %v2900
        %v5067 = vunpack.c.l.b16 %v2901
        %v5068 = vunpack.c.h.b16 %v2901
        %v5069 = vunpack.c.l.b16 %v2902
        %v5070 = vunpack.c.h.b16 %v2902
        %v5071 = vunpack.c.l.b16 %v2903
        %v5072 = vunpack.c.h.b16 %v2903
        %v5073 = vunpack.c.l.b16 %v2904
        %v5074 = vunpack.c.h.b16 %v2904
        %v5075 = vunpack.c.l.b16 %v2905
        %v5076 = vunpack.c.h.b16 %v2905
        %v5077 = vunpack.c.l.b16 %v2906
        %v5078 = vunpack.c.h.b16 %v2906
        %v5079 = vunpack.c.l.b16 %v2907
        %v5080 = vunpack.c.h.b16 %v2907
        %v5081 = vunpack.c.l.b16 %v2908
        %v5082 = vunpack.c.h.b16 %v2908
        %v5083 = vunpack.c.l.b16 %v2909
        %v5084 = vunpack.c.h.b16 %v2909
        %v5085 = vunpack.c.l.b16 %v2910
        %v5086 = vunpack.c.h.b16 %v2910
        %v5087 = vunpack.c.l.b16 %v2911
        %v5088 = vunpack.c.h.b16 %v2911
        %v5089 = vunpack.c.l.b16 %v2912
        %v5090 = vunpack.c.h.b16 %v2912
        %v5091 = vunpack.c.l.b16 %v2913
        %v5092 = vunpack.c.h.b16 %v2913
        %v5093 = vunpack.c.l.b16 %v2914
        %v5094 = vunpack.c.h.b16 %v2914
        %v5095 = vunpack.c.l.b16 %v2915
        %v5096 = vunpack.c.h.b16 %v2915
        %v5097 = vunpack.c.l.b16 %v2916
        %v5098 = vunpack.c.h.b16 %v2916
        %v5099 = vunpack.c.l.b16 %v2917
        %v5100 = vunpack.c.h.b16 %v2917
        %v5101 = vunpack.c.l.b16 %v2918
        %v5102 = vunpack.c.h.b16 %v2918
        %v5103 = vunpack.c.l.b16 %v2919
        %v5104 = vunpack.c.h.b16 %v2919
        %v5105 = vunpack.c.l.b16 %v2920
        %v5106 = vunpack.c.h.b16 %v2920
        %v5107 = vunpack.c.l.b16 %v2921
        %v5108 = vunpack.c.h.b16 %v2921
        %v5109 = vunpack.c.l.b16 %v2922
        %v5110 = vunpack.c.h.b16 %v2922
        %v5111 = vunpack.c.l.b16 %v2923
        %v5112 = vunpack.c.h.b16 %v2923
        %v5113 = vunpack.c.l.b16 %v2924
        %v5114 = vunpack.c.h.b16 %v2924
        %v5115 = vunpack.c.l.b16 %v2925
        %v5116 = vunpack.c.h.b16 %v2925
        %v5117 = vunpack.c.l.b16 %v2926
        %v5118 = vunpack.c.h.b16 %v2926
        %v5119 = vunpack.c.l.b16 %v2927
        %v5120 = vunpack.c.h.b16 %v2927
        %v5121 = vunpack.c.l.b16 %v2928
        %v5122 = vunpack.c.h.b16 %v2928
        %v5123 = vunpack.c.l.b16 %v2929
        %v5124 = vunpack.c.h.b16 %v2929
        %v5125 = vunpack.c.l.b16 %v2930
        %v5126 = vunpack.c.h.b16 %v2930
        %v5127 = vunpack.c.l.b16 %v2931
        %v5128 = vunpack.c.h.b16 %v2931
        %v5129 = vunpack.c.l.b16 %v2932
        %v5130 = vunpack.c.h.b16 %v2932
        %v5131 = vunpack.c.l.b16 %v2933
        %v5132 = vunpack.c.h.b16 %v2933
        %v5133 = vunpack.c.l.b16 %v2934
        %v5134 = vunpack.c.h.b16 %v2934
        %v5135 = vunpack.c.l.b16 %v2935
        %v5136 = vunpack.c.h.b16 %v2935
        %v5137 = vunpack.c.l.b16 %v2936
        %v5138 = vunpack.c.h.b16 %v2936
        %v5139 = vunpack.c.l.b16 %v2937
        %v5140 = vunpack.c.h.b16 %v2937
        %v5141 = vunpack.c.l.b16 %v2938
        %v5142 = vunpack.c.h.b16 %v2938
        %v5143 = vunpack.c.l.b16 %v2939
        %v5144 = vunpack.c.h.b16 %v2939
        %v5145 = vunpack.c.l.b16 %v2940
        %v5146 = vunpack.c.h.b16 %v2940
        %v5147 = vunpack.c.l.b16 %v2941
        %v5148 = vunpack.c.h.b16 %v2941
        %v5149 = vunpack.c.l.b16 %v2942
        %v5150 = vunpack.c.h.b16 %v2942
        %v5151 = vunpack.c.l.b16 %v2943
        %v5152 = vunpack.c.h.b16 %v2943
        %v5153 = vunpack.c.l.b16 %v2944
        %v5154 = vunpack.c.h.b16 %v2944
        %v5155 = vunpack.c.l.b16 %v2945
        %v5156 = vunpack.c.h.b16 %v2945
        %v5157 = vunpack.c.l.b16 %v2946
        %v5158 = vunpack.c.h.b16 %v2946
        %v5159 = vunpack.c.l.b16 %v2947
        %v5160 = vunpack.c.h.b16 %v2947
        %v5161 = vunpack.c.l.b16 %v2948
        %v5162 = vunpack.c.h.b16 %v2948
        %v5163 = vunpack.c.l.b16 %v2949
        %v5164 = vunpack.c.h.b16 %v2949
        %v5165 = vunpack.c.l.b16 %v2950
        %v5166 = vunpack.c.h.b16 %v2950
        %v5167 = vunpack.c.l.b16 %v2951
        %v5168 = vunpack.c.h.b16 %v2951
        %v5169 = vunpack.c.l.b16 %v2952
        %v5170 = vunpack.c.h.b16 %v2952
        %v5171 = vunpack.c.l.b16 %v2953
        %v5172 = vunpack.c.h.b16 %v2953
        %v5173 = vunpack.c.l.b16 %v2954
        %v5174 = vunpack.c.h.b16 %v2954
        %v5175 = vunpack.c.l.b16 %v2955
        %v5176 = vunpack.c.h.b16 %v2955
        %v5177 = vunpack.c.l.b16 %v2956
        %v5178 = vunpack.c.h.b16 %v2956
        %v5179 = vunpack.c.l.b16 %v2957
        %v5180 = vunpack.c.h.b16 %v2957
        %v5181 = vunpack.c.l.b16 %v2958
        %v5182 = vunpack.c.h.b16 %v2958
        %v5183 = vunpack.c.l.b16 %v2959
        %v5184 = vunpack.c.h.b16 %v2959
        %v5185 = vunpack.c.l.b16 %v2960
        %v5186 = vunpack.c.h.b16 %v2960
        %v5187 = vunpack.c.l.b16 %v2961
        %v5188 = vunpack.c.h.b16 %v2961
        %v5189 = vunpack.c.l.b16 %v2962
        %v5190 = vunpack.c.h.b16 %v2962
        %v5191 = vunpack.c.l.b16 %v2963
        %v5192 = vunpack.c.h.b16 %v2963
        %v5193 = vunpack.c.l.b16 %v2964
        %v5194 = vunpack.c.h.b16 %v2964
        %v5195 = vunpack.c.l.b16 %v2965
        %v5196 = vunpack.c.h.b16 %v2965
        %v5197 = vunpack.c.l.b16 %v2966
        %v5198 = vunpack.c.h.b16 %v2966
        %v5199 = vunpack.c.l.b16 %v2967
        %v5200 = vunpack.c.h.b16 %v2967
        %v5201 = vunpack.c.l.b16 %v2968
        %v5202 = vunpack.c.h.b16 %v2968
        %v5203 = vunpack.c.l.b16 %v2969
        %v5204 = vunpack.c.h.b16 %v2969
        %v5205 = vunpack.c.l.b16 %v2970
        %v5206 = vunpack.c.h.b16 %v2970
        %v5207 = vunpack.c.l.b16 %v2971
        %v5208 = vunpack.c.h.b16 %v2971
        %v5209 = vunpack.c.l.b16 %v2972
        %v5210 = vunpack.c.h.b16 %v2972
        %v5211 = vunpack.c.l.b16 %v2973
        %v5212 = vunpack.c.h.b16 %v2973
        %v5213 = vunpack.c.l.b16 %v2974
        %v5214 = vunpack.c.h.b16 %v2974
        %v5215 = vunpack.c.l.b16 %v2975
        %v5216 = vunpack.c.h.b16 %v2975
        %v5217 = vunpack.c.l.b16 %v2976
        %v5218 = vunpack.c.h.b16 %v2976
        %v5219 = vunpack.c.l.b16 %v2977
        %v5220 = vunpack.c.h.b16 %v2977
        %v5221 = vunpack.c.l.b16 %v2978
        %v5222 = vunpack.c.h.b16 %v2978
        %v5223 = vunpack.c.l.b16 %v2979
        %v5224 = vunpack.c.h.b16 %v2979
        %v5225 = vunpack.c.l.b16 %v2980
        %v5226 = vunpack.c.h.b16 %v2980
        %v5227 = vunpack.c.l.b16 %v2981
        %v5228 = vunpack.c.h.b16 %v2981
        %v5229 = vunpack.c.l.b16 %v2982
        %v5230 = vunpack.c.h.b16 %v2982
        %v5231 = vunpack.c.l.b16 %v2983
        %v5232 = vunpack.c.h.b16 %v2983
        %v5233 = vunpack.c.l.b16 %v2984
        %v5234 = vunpack.c.h.b16 %v2984
        %v5235 = vunpack.c.l.b16 %v2985
        %v5236 = vunpack.c.h.b16 %v2985
        %v5237 = vunpack.c.l.b16 %v2986
        %v5238 = vunpack.c.h.b16 %v2986
        %v5239 = vunpack.c.l.b16 %v2987
        %v5240 = vunpack.c.h.b16 %v2987
        %v5241 = vunpack.c.l.b16 %v2988
        %v5242 = vunpack.c.h.b16 %v2988
        %v5243 = vunpack.c.l.b16 %v2989
        %v5244 = vunpack.c.h.b16 %v2989
        %v5245 = vunpack.c.l.b16 %v2990
        %v5246 = vunpack.c.h.b16 %v2990
        %v5247 = vunpack.c.l.b16 %v2991
        %v5248 = vunpack.c.h.b16 %v2991
        %v5249 = vunpack.c.l.b16 %v2992
        %v5250 = vunpack.c.h.b16 %v2992
        %v5251 = vunpack.c.l.b16 %v2993
        %v5252 = vunpack.c.h.b16 %v2993
        %v5253 = vunpack.c.l.b16 %v2994
        %v5254 = vunpack.c.h.b16 %v2994
        %v5255 = vunpack.c.l.b16 %v2995
        %v5256 = vunpack.c.h.b16 %v2995
        %v5257 = vunpack.c.l.b16 %v2996
        %v5258 = vunpack.c.h.b16 %v2996
        %v5259 = vunpack.c.l.b16 %v2997
        %v5260 = vunpack.c.h.b16 %v2997
        %v5261 = vunpack.c.l.b16 %v2998
        %v5262 = vunpack.c.h.b16 %v2998
        %v5263 = vunpack.c.l.b16 %v2999
        %v5264 = vunpack.c.h.b16 %v2999
        %v5265 = vunpack.c.l.b16 %v3000
        %v5266 = vunpack.c.h.b16 %v3000
        %v5267 = vunpack.c.l.b16 %v3001
        %v5268 = vunpack.c.h.b16 %v3001
        %v5269 = vunpack.c.l.b16 %v3002
        %v5270 = vunpack.c.h.b16 %v3002
        %v5271 = vunpack.c.l.b16 %v3003
        %v5272 = vunpack.c.h.b16 %v3003
        %v5273 = vunpack.c.l.b16 %v3004
        %v5274 = vunpack.c.h.b16 %v3004
        %v5275 = vunpack.c.l.b16 %v3005
        %v5276 = vunpack.c.h.b16 %v3005
        %v5277 = vunpack.c.l.b16 %v3006
        %v5278 = vunpack.c.h.b16 %v3006
        %v5279 = vunpack.c.l.b16 %v3007
        %v5280 = vunpack.c.h.b16 %v3007
        %v5281 = vunpack.c.l.b16 %v3008
        %v5282 = vunpack.c.h.b16 %v3008
        %v5283 = vunpack.c.l.b16 %v3009
        %v5284 = vunpack.c.h.b16 %v3009
        %v5285 = vunpack.c.l.b16 %v3010
        %v5286 = vunpack.c.h.b16 %v3010
        %v5287 = vunpack.c.l.b16 %v3011
        %v5288 = vunpack.c.h.b16 %v3011
        %v5289 = vunpack.c.l.b16 %v3012
        %v5290 = vunpack.c.h.b16 %v3012
        %v5291 = vunpack.c.l.b16 %v3013
        %v5292 = vunpack.c.h.b16 %v3013
        %v5293 = vunpack.c.l.b16 %v3014
        %v5294 = vunpack.c.h.b16 %v3014
        %v5295 = vunpack.c.l.b16 %v3015
        %v5296 = vunpack.c.h.b16 %v3015
        %v5297 = vunpack.c.l.b16 %v3016
        %v5298 = vunpack.c.h.b16 %v3016
        %v5299 = vunpack.c.l.b16 %v3017
        %v5300 = vunpack.c.h.b16 %v3017
        %v5301 = vunpack.c.l.b16 %v3018
        %v5302 = vunpack.c.h.b16 %v3018
        %v5303 = vunpack.c.l.b16 %v3019
        %v5304 = vunpack.c.h.b16 %v3019
        %v5305 = vunpack.c.l.b16 %v3020
        %v5306 = vunpack.c.h.b16 %v3020
        %v5307 = vunpack.c.l.b16 %v3021
        %v5308 = vunpack.c.h.b16 %v3021
        %v5309 = vunpack.c.l.b16 %v3022
        %v5310 = vunpack.c.h.b16 %v3022
        %v5311 = vunpack.c.l.b16 %v3023
        %v5312 = vunpack.c.h.b16 %v3023
        %v5313 = vunpack.c.l.b16 %v3024
        %v5314 = vunpack.c.h.b16 %v3024
        %v5315 = vunpack.c.l.b16 %v3025
        %v5316 = vunpack.c.h.b16 %v3025
        %v5317 = vunpack.c.l.b16 %v3026
        %v5318 = vunpack.c.h.b16 %v3026
        %v5319 = vunpack.c.l.b16 %v3027
        %v5320 = vunpack.c.h.b16 %v3027
        %v5321 = vunpack.c.l.b16 %v3028
        %v5322 = vunpack.c.h.b16 %v3028
        %v5323 = vunpack.c.l.b16 %v3029
        %v5324 = vunpack.c.h.b16 %v3029
        %v5325 = vunpack.c.l.b16 %v3030
        %v5326 = vunpack.c.h.b16 %v3030
        %v5327 = vunpack.c.l.b16 %v3031
        %v5328 = vunpack.c.h.b16 %v3031
        %v5329 = vunpack.c.l.b16 %v3032
        %v5330 = vunpack.c.h.b16 %v3032
        %v5331 = vunpack.c.l.b16 %v3033
        %v5332 = vunpack.c.h.b16 %v3033
        %v5333 = vunpack.c.l.b16 %v3034
        %v5334 = vunpack.c.h.b16 %v3034
        %v5335 = vunpack.c.l.b16 %v3035
        %v5336 = vunpack.c.h.b16 %v3035
        %v5337 = vunpack.c.l.b16 %v3036
        %v5338 = vunpack.c.h.b16 %v3036
        %v5339 = vunpack.c.l.b16 %v3037
        %v5340 = vunpack.c.h.b16 %v3037
        %v5341 = vunpack.c.l.b16 %v3038
        %v5342 = vunpack.c.h.b16 %v3038
        %v5343 = vunpack.c.l.b16 %v3039
        %v5344 = vunpack.c.h.b16 %v3039
        %v5345 = vunpack.c.l.b16 %v3040
        %v5346 = vunpack.c.h.b16 %v3040
        %v5347 = vunpack.c.l.b16 %v3041
        %v5348 = vunpack.c.h.b16 %v3041
        %v5349 = vunpack.c.l.b16 %v3042
        %v5350 = vunpack.c.h.b16 %v3042
        %v5351 = vunpack.c.l.b16 %v3043
        %v5352 = vunpack.c.h.b16 %v3043
        %v5353 = vunpack.c.l.b16 %v3044
        %v5354 = vunpack.c.h.b16 %v3044
        %v5355 = vunpack.c.l.b16 %v3045
        %v5356 = vunpack.c.h.b16 %v3045
        %v5357 = vunpack.c.l.b16 %v3046
        %v5358 = vunpack.c.h.b16 %v3046
        %v5359 = vunpack.c.l.b16 %v3047
        %v5360 = vunpack.c.h.b16 %v3047
        %v5361 = vunpack.c.l.b16 %v3048
        %v5362 = vunpack.c.h.b16 %v3048
        %v5363 = vunpack.c.l.b16 %v3049
        %v5364 = vunpack.c.h.b16 %v3049
        %v5365 = vunpack.c.l.b16 %v3050
        %v5366 = vunpack.c.h.b16 %v3050
        %v5367 = vunpack.c.l.b16 %v3051
        %v5368 = vunpack.c.h.b16 %v3051
        %v5369 = vunpack.c.l.b16 %v3052
        %v5370 = vunpack.c.h.b16 %v3052
        %v5371 = vunpack.c.l.b16 %v3053
        %v5372 = vunpack.c.h.b16 %v3053
        %v5373 = vunpack.c.l.b16 %v3054
        %v5374 = vunpack.c.h.b16 %v3054
        %v5375 = vunpack.c.l.b16 %v3055
        %v5376 = vunpack.c.h.b16 %v3055
        %v5377 = vunpack.c.l.b16 %v3056
        %v5378 = vunpack.c.h.b16 %v3056
        %v5379 = vunpack.c.l.b16 %v3057
        %v5380 = vunpack.c.h.b16 %v3057
        %v5381 = vunpack.c.l.b16 %v3058
        %v5382 = vunpack.c.h.b16 %v3058
        %v5383 = vunpack.c.l.b16 %v3059
        %v5384 = vunpack.c.h.b16 %v3059
        %v5385 = vunpack.c.l.b16 %v3060
        %v5386 = vunpack.c.h.b16 %v3060
        %v5387 = vunpack.c.l.b16 %v3061
        %v5388 = vunpack.c.h.b16 %v3061
        %v5389 = vunpack.c.l.b16 %v3062
        %v5390 = vunpack.c.h.b16 %v3062
        %v5391 = vunpack.c.l.b16 %v3063
        %v5392 = vunpack.c.h.b16 %v3063
        %v5393 = vunpack.c.l.b16 %v3064
        %v5394 = vunpack.c.h.b16 %v3064
        %v5395 = vunpack.c.l.b16 %v3065
        %v5396 = vunpack.c.h.b16 %v3065
        %v5397 = vunpack.c.l.b16 %v3066
        %v5398 = vunpack.c.h.b16 %v3066
        %v5399 = vunpack.c.l.b16 %v3067
        %v5400 = vunpack.c.h.b16 %v3067
        %v5401 = vunpack.c.l.b16 %v3068
        %v5402 = vunpack.c.h.b16 %v3068
        %v5403 = vunpack.c.l.b16 %v3069
        %v5404 = vunpack.c.h.b16 %v3069
        %v5405 = vunpack.c.l.b16 %v3070
        %v5406 = vunpack.c.h.b16 %v3070
        %v5407 = vunpack.c.l.b16 %v3071
        %v5408 = vunpack.c.h.b16 %v3071
        %v5409 = vunpack.c.l.b16 %v3072
        %v5410 = vunpack.c.h.b16 %v3072
        %v5411 = vunpack.c.l.b16 %v3073
        %v5412 = vunpack.c.h.b16 %v3073
        %v5413 = vunpack.c.l.b16 %v3074
        %v5414 = vunpack.c.h.b16 %v3074
        %v5415 = vunpack.c.l.b16 %v3075
        %v5416 = vunpack.c.h.b16 %v3075
        %v5417 = vunpack.c.l.b16 %v3076
        %v5418 = vunpack.c.h.b16 %v3076
        %v5419 = vunpack.c.l.b16 %v3077
        %v5420 = vunpack.c.h.b16 %v3077
        %v5421 = vunpack.c.l.b16 %v3078
        %v5422 = vunpack.c.h.b16 %v3078
        %v5423 = vunpack.c.l.b16 %v3079
        %v5424 = vunpack.c.h.b16 %v3079
        %v5425 = vunpack.c.l.b16 %v3080
        %v5426 = vunpack.c.h.b16 %v3080
        %v5427 = vunpack.c.l.b16 %v3081
        %v5428 = vunpack.c.h.b16 %v3081
        %v5429 = vunpack.c.l.b16 %v3082
        %v5430 = vunpack.c.h.b16 %v3082
        %v5431 = vunpack.c.l.b16 %v3083
        %v5432 = vunpack.c.h.b16 %v3083
        %v5433 = vunpack.c.l.b16 %v3084
        %v5434 = vunpack.c.h.b16 %v3084
        %v5435 = vunpack.c.l.b16 %v3085
        %v5436 = vunpack.c.h.b16 %v3085
        %v5437 = vunpack.c.l.b16 %v3086
        %v5438 = vunpack.c.h.b16 %v3086
        %v5439 = vunpack.c.l.b16 %v3087
        %v5440 = vunpack.c.h.b16 %v3087
        %v5441 = vunpack.c.l.b16 %v3088
        %v5442 = vunpack.c.h.b16 %v3088
        %v5443 = vunpack.c.l.b16 %v3089
        %v5444 = vunpack.c.h.b16 %v3089
        %v5445 = vunpack.c.l.b16 %v3090
        %v5446 = vunpack.c.h.b16 %v3090
        %v5447 = vunpack.c.l.b16 %v3091
        %v5448 = vunpack.c.h.b16 %v3091
        %v5449 = vunpack.c.l.b16 %v3092
        %v5450 = vunpack.c.h.b16 %v3092
        %v5451 = vunpack.c.l.b16 %v3093
        %v5452 = vunpack.c.h.b16 %v3093
        %v5453 = vunpack.c.l.b16 %v3094
        %v5454 = vunpack.c.h.b16 %v3094
        %v5455 = vunpack.c.l.b16 %v3095
        %v5456 = vunpack.c.h.b16 %v3095
        %v5457 = vunpack.c.l.b16 %v3096
        %v5458 = vunpack.c.h.b16 %v3096
        %v5459 = vunpack.c.l.b16 %v3097
        %v5460 = vunpack.c.h.b16 %v3097
        %v5461 = vunpack.c.l.b16 %v3098
        %v5462 = vunpack.c.h.b16 %v3098
        %v5463 = vunpack.c.l.b16 %v3099
        %v5464 = vunpack.c.h.b16 %v3099
        %v5465 = vunpack.c.l.b16 %v3100
        %v5466 = vunpack.c.h.b16 %v3100
        %v5467 = vunpack.c.l.b16 %v3101
        %v5468 = vunpack.c.h.b16 %v3101
        %v5469 = vunpack.c.l.b16 %v3102
        %v5470 = vunpack.c.h.b16 %v3102
        %v5471 = vunpack.c.l.b16 %v3103
        %v5472 = vunpack.c.h.b16 %v3103
        %v5473 = vunpack.c.l.b16 %v3104
        %v5474 = vunpack.c.h.b16 %v3104
        %v5475 = vunpack.c.l.b16 %v3105
        %v5476 = vunpack.c.h.b16 %v3105
        %v5477 = vunpack.c.l.b16 %v3106
        %v5478 = vunpack.c.h.b16 %v3106
        %v5479 = vunpack.c.l.b16 %v3107
        %v5480 = vunpack.c.h.b16 %v3107
        %v5481 = vunpack.c.l.b16 %v3108
        %v5482 = vunpack.c.h.b16 %v3108
        %v5483 = vunpack.c.l.b16 %v3109
        %v5484 = vunpack.c.h.b16 %v3109
        %v5485 = vunpack.c.l.b16 %v3110
        %v5486 = vunpack.c.h.b16 %v3110
        %v5487 = vunpack.c.l.b16 %v3111
        %v5488 = vunpack.c.h.b16 %v3111
        %v5489 = vunpack.c.l.b16 %v3112
        %v5490 = vunpack.c.h.b16 %v3112
        %v5491 = vunpack.c.l.b16 %v3113
        %v5492 = vunpack.c.h.b16 %v3113
        %v5493 = vunpack.c.l.b16 %v3114
        %v5494 = vunpack.c.h.b16 %v3114
        %v5495 = vunpack.c.l.b16 %v3115
        %v5496 = vunpack.c.h.b16 %v3115
        %v5497 = vunpack.c.l.b16 %v3116
        %v5498 = vunpack.c.h.b16 %v3116
        %v5499 = vunpack.c.l.b16 %v3117
        %v5500 = vunpack.c.h.b16 %v3117
        %v5501 = vunpack.c.l.b16 %v3118
        %v5502 = vunpack.c.h.b16 %v3118
        %v5503 = vunpack.c.l.b16 %v3119
        %v5504 = vunpack.c.h.b16 %v3119
        %v5505 = vunpack.c.l.b16 %v3120
        %v5506 = vunpack.c.h.b16 %v3120
        %v5507 = vunpack.c.l.b16 %v3121
        %v5508 = vunpack.c.h.b16 %v3121
        %v5509 = vunpack.c.l.b16 %v3122
        %v5510 = vunpack.c.h.b16 %v3122
        %v5511 = vunpack.c.l.b16 %v3123
        %v5512 = vunpack.c.h.b16 %v3123
        %v5513 = vunpack.c.l.b16 %v3124
        %v5514 = vunpack.c.h.b16 %v3124
        %v5515 = vunpack.c.l.b16 %v3125
        %v5516 = vunpack.c.h.b16 %v3125
        %v5517 = vunpack.c.l.b16 %v3126
        %v5518 = vunpack.c.h.b16 %v3126
        %v5519 = vunpack.c.l.b16 %v3127
        %v5520 = vunpack.c.h.b16 %v3127
        %v5521 = vunpack.c.l.b16 %v3128
        %v5522 = vunpack.c.h.b16 %v3128
        %v5523 = vunpack.c.l.b16 %v3129
        %v5524 = vunpack.c.h.b16 %v3129
        %v5525 = vunpack.c.l.b16 %v3130
        %v5526 = vunpack.c.h.b16 %v3130
        %v5527 = vunpack.c.l.b16 %v3131
        %v5528 = vunpack.c.h.b16 %v3131
        %v5529 = vunpack.c.l.b16 %v3132
        %v5530 = vunpack.c.h.b16 %v3132
        %v5531 = vunpack.c.l.b16 %v3133
        %v5532 = vunpack.c.h.b16 %v3133
        %v5533 = vunpack.c.l.b16 %v3134
        %v5534 = vunpack.c.h.b16 %v3134
        %v5535 = vunpack.c.l.b16 %v3135
        %v5536 = vunpack.c.h.b16 %v3135
        %v5537 = vunpack.c.l.b16 %v3136
        %v5538 = vunpack.c.h.b16 %v3136
        %v5539 = vunpack.c.l.b16 %v3137
        %v5540 = vunpack.c.h.b16 %v3137
        %v5541 = vunpack.c.l.b16 %v3138
        %v5542 = vunpack.c.h.b16 %v3138
        %v5543 = vunpack.c.l.b16 %v3139
        %v5544 = vunpack.c.h.b16 %v3139
        %v5545 = vunpack.c.l.b16 %v3140
        %v5546 = vunpack.c.h.b16 %v3140
        %v5547 = vunpack.c.l.b16 %v3141
        %v5548 = vunpack.c.h.b16 %v3141
        %v5549 = vunpack.c.l.b16 %v3142
        %v5550 = vunpack.c.h.b16 %v3142
        %v5551 = vunpack.c.l.b16 %v3143
        %v5552 = vunpack.c.h.b16 %v3143
        %v5553 = vunpack.c.l.b16 %v3144
        %v5554 = vunpack.c.h.b16 %v3144
        %v5555 = vunpack.c.l.b16 %v3145
        %v5556 = vunpack.c.h.b16 %v3145
        %v5557 = vunpack.c.l.b16 %v3146
        %v5558 = vunpack.c.h.b16 %v3146
        %v5559 = vunpack.c.l.b16 %v3147
        %v5560 = vunpack.c.h.b16 %v3147
        %v5561 = vunpack.c.l.b16 %v3148
        %v5562 = vunpack.c.h.b16 %v3148
        %v5563 = vunpack.c.l.b16 %v3149
        %v5564 = vunpack.c.h.b16 %v3149
        %v5565 = vunpack.c.l.b16 %v3150
        %v5566 = vunpack.c.h.b16 %v3150
        %v5567 = vunpack.c.l.b16 %v3151
        %v5568 = vunpack.c.h.b16 %v3151
        %v5569 = vunpack.c.l.b16 %v3152
        %v5570 = vunpack.c.h.b16 %v3152
        %v5571 = vunpack.c.l.b16 %v3153
        %v5572 = vunpack.c.h.b16 %v3153
        %v5573 = vunpack.c.l.b16 %v3154
        %v5574 = vunpack.c.h.b16 %v3154
        %v5575 = vunpack.c.l.b16 %v3155
        %v5576 = vunpack.c.h.b16 %v3155
        %v5577 = vunpack.c.l.b16 %v3156
        %v5578 = vunpack.c.h.b16 %v3156
        %v5579 = vunpack.c.l.b16 %v3157
        %v5580 = vunpack.c.h.b16 %v3157
        %v5581 = vunpack.c.l.b16 %v3158
        %v5582 = vunpack.c.h.b16 %v3158
        %v5583 = vunpack.c.l.b16 %v3159
        %v5584 = vunpack.c.h.b16 %v3159
        %v5585 = vunpack.c.l.b16 %v3160
        %v5586 = vunpack.c.h.b16 %v3160
        %v5587 = vunpack.c.l.b16 %v3161
        %v5588 = vunpack.c.h.b16 %v3161
        %v5589 = vunpack.c.l.b16 %v3162
        %v5590 = vunpack.c.h.b16 %v3162
        %v5591 = vunpack.c.l.b16 %v3163
        %v5592 = vunpack.c.h.b16 %v3163
        %v5593 = vunpack.c.l.b16 %v3164
        %v5594 = vunpack.c.h.b16 %v3164
        %v5595 = vunpack.c.l.b16 %v3165
        %v5596 = vunpack.c.h.b16 %v3165
        %v5597 = vunpack.c.l.b16 %v3166
        %v5598 = vunpack.c.h.b16 %v3166
        %v5599 = vunpack.c.l.b16 %v3167
        %v5600 = vunpack.c.h.b16 %v3167
        %v5601 = vunpack.c.l.b16 %v3168
        %v5602 = vunpack.c.h.b16 %v3168
        %v5603 = vunpack.c.l.b16 %v3169
        %v5604 = vunpack.c.h.b16 %v3169
        %v5605 = vunpack.c.l.b16 %v3170
        %v5606 = vunpack.c.h.b16 %v3170
        %v5607 = vunpack.c.l.b16 %v3171
        %v5608 = vunpack.c.h.b16 %v3171
        %v5609 = vunpack.c.l.b16 %v3172
        %v5610 = vunpack.c.h.b16 %v3172
        %v5611 = vunpack.c.l.b16 %v3173
        %v5612 = vunpack.c.h.b16 %v3173
        %v5613 = vunpack.c.l.b16 %v3174
        %v5614 = vunpack.c.h.b16 %v3174
        %v5615 = vunpack.c.l.b16 %v3175
        %v5616 = vunpack.c.h.b16 %v3175
        %v5617 = vunpack.c.l.b16 %v3176
        %v5618 = vunpack.c.h.b16 %v3176
        %v5619 = vunpack.c.l.b16 %v3177
        %v5620 = vunpack.c.h.b16 %v3177
        %v5621 = vunpack.c.l.b16 %v3178
        %v5622 = vunpack.c.h.b16 %v3178
        %v5623 = vunpack.c.l.b16 %v3179
        %v5624 = vunpack.c.h.b16 %v3179
        %v5625 = vunpack.c.l.b16 %v3180
        %v5626 = vunpack.c.h.b16 %v3180
        %v5627 = vunpack.c.l.b16 %v3181
        %v5628 = vunpack.c.h.b16 %v3181
        %v5629 = vunpack.c.l.b16 %v3182
        %v5630 = vunpack.c.h.b16 %v3182
        %v5631 = vunpack.c.l.b16 %v3183
        %v5632 = vunpack.c.h.b16 %v3183
        %v5633 = vunpack.c.l.b16 %v3184
        %v5634 = vunpack.c.h.b16 %v3184
        %v5635 = vunpack.c.l.b16 %v3185
        %v5636 = vunpack.c.h.b16 %v3185
        %v5637 = vunpack.c.l.b16 %v3186
        %v5638 = vunpack.c.h.b16 %v3186
        %v5639 = vunpack.c.l.b16 %v3187
        %v5640 = vunpack.c.h.b16 %v3187
        %v5641 = vunpack.c.l.b16 %v3188
        %v5642 = vunpack.c.h.b16 %v3188
        %v5643 = vunpack.c.l.b16 %v3189
        %v5644 = vunpack.c.h.b16 %v3189
        %v5645 = vunpack.c.l.b16 %v3190
        %v5646 = vunpack.c.h.b16 %v3190
        %v5647 = vunpack.c.l.b16 %v3191
        %v5648 = vunpack.c.h.b16 %v3191
        %v5649 = vunpack.c.l.b16 %v3192
        %v5650 = vunpack.c.h.b16 %v3192
        %v5651 = vunpack.c.l.b16 %v3193
        %v5652 = vunpack.c.h.b16 %v3193
        %v5653 = vunpack.c.l.b16 %v3194
        %v5654 = vunpack.c.h.b16 %v3194
        %v5655 = vunpack.c.l.b16 %v3195
        %v5656 = vunpack.c.h.b16 %v3195
        %v5657 = vunpack.c.l.b16 %v3196
        %v5658 = vunpack.c.h.b16 %v3196
        %v5659 = vunpack.c.l.b16 %v3197
        %v5660 = vunpack.c.h.b16 %v3197
        %v5661 = vunpack.c.l.b16 %v3198
        %v5662 = vunpack.c.h.b16 %v3198
        %v5663 = vunpack.c.l.b16 %v3199
        %v5664 = vunpack.c.h.b16 %v3199
        %v5665 = vunpack.c.l.b16 %v3200
        %v5666 = vunpack.c.h.b16 %v3200
        %v5667 = vunpack.c.l.b16 %v3201
        %v5668 = vunpack.c.h.b16 %v3201
        %v5669 = vunpack.c.l.b16 %v3202
        %v5670 = vunpack.c.h.b16 %v3202
        %v5671 = vunpack.c.l.b16 %v3203
        %v5672 = vunpack.c.h.b16 %v3203
        %v5673 = vunpack.c.l.b16 %v3204
        %v5674 = vunpack.c.h.b16 %v3204
        %v5675 = vunpack.c.l.b16 %v3205
        %v5676 = vunpack.c.h.b16 %v3205
        %v5677 = vunpack.c.l.b16 %v3206
        %v5678 = vunpack.c.h.b16 %v3206
        %v5679 = vunpack.c.l.b16 %v3207
        %v5680 = vunpack.c.h.b16 %v3207
        %v5681 = vunpack.c.l.b16 %v3208
        %v5682 = vunpack.c.h.b16 %v3208
        %v5683 = vunpack.c.l.b16 %v3209
        %v5684 = vunpack.c.h.b16 %v3209
        %v5685 = vunpack.c.l.b16 %v3210
        %v5686 = vunpack.c.h.b16 %v3210
        %v5687 = vunpack.c.l.b16 %v3211
        %v5688 = vunpack.c.h.b16 %v3211
        %v5689 = vunpack.c.l.b16 %v3212
        %v5690 = vunpack.c.h.b16 %v3212
        %v5691 = vunpack.c.l.b16 %v3213
        %v5692 = vunpack.c.h.b16 %v3213
        %v5693 = vunpack.c.l.b16 %v3214
        %v5694 = vunpack.c.h.b16 %v3214
        %v5695 = vunpack.c.l.b16 %v3215
        %v5696 = vunpack.c.h.b16 %v3215
        %v5697 = vunpack.c.l.b16 %v3216
        %v5698 = vunpack.c.h.b16 %v3216
        %v5699 = vunpack.c.l.b16 %v3217
        %v5700 = vunpack.c.h.b16 %v3217
        %v5701 = vunpack.c.l.b16 %v3218
        %v5702 = vunpack.c.h.b16 %v3218
        %v5703 = vunpack.c.l.b16 %v3219
        %v5704 = vunpack.c.h.b16 %v3219
        %v5705 = vunpack.c.l.b16 %v3220
        %v5706 = vunpack.c.h.b16 %v3220
        %v5707 = vunpack.c.l.b16 %v3221
        %v5708 = vunpack.c.h.b16 %v3221
        %v5709 = vunpack.c.l.b16 %v3222
        %v5710 = vunpack.c.h.b16 %v3222
        %v5711 = vunpack.c.l.b16 %v3223
        %v5712 = vunpack.c.h.b16 %v3223
        %v5713 = vunpack.c.l.b16 %v3224
        %v5714 = vunpack.c.h.b16 %v3224
        %v5715 = vunpack.c.l.b16 %v3225
        %v5716 = vunpack.c.h.b16 %v3225
        %v5717 = vunpack.c.l.b16 %v3226
        %v5718 = vunpack.c.h.b16 %v3226
        %v5719 = vunpack.c.l.b16 %v3227
        %v5720 = vunpack.c.h.b16 %v3227
        %v5721 = vunpack.c.l.b16 %v3228
        %v5722 = vunpack.c.h.b16 %v3228
        %v5723 = vunpack.c.l.b16 %v3229
        %v5724 = vunpack.c.h.b16 %v3229
        %v5725 = vunpack.c.l.b16 %v3230
        %v5726 = vunpack.c.h.b16 %v3230
        %v5727 = vunpack.c.l.b16 %v3231
        %v5728 = vunpack.c.h.b16 %v3231
        %v5729 = vunpack.c.l.b16 %v3232
        %v5730 = vunpack.c.h.b16 %v3232
        %v5731 = vunpack.c.l.b16 %v3233
        %v5732 = vunpack.c.h.b16 %v3233
        %v5733 = vunpack.c.l.b16 %v3234
        %v5734 = vunpack.c.h.b16 %v3234
        %v5735 = vunpack.c.l.b16 %v3235
        %v5736 = vunpack.c.h.b16 %v3235
        %v5737 = vunpack.c.l.b16 %v3236
        %v5738 = vunpack.c.h.b16 %v3236
        %v5739 = vunpack.c.l.b16 %v3237
        %v5740 = vunpack.c.h.b16 %v3237
        %v5741 = vunpack.c.l.b16 %v3238
        %v5742 = vunpack.c.h.b16 %v3238
        %v5743 = vunpack.c.l.b16 %v3239
        %v5744 = vunpack.c.h.b16 %v3239
        %v5745 = vunpack.c.l.b16 %v3240
        %v5746 = vunpack.c.h.b16 %v3240
        %v5747 = vunpack.c.l.b16 %v3241
        %v5748 = vunpack.c.h.b16 %v3241
        %v5749 = vunpack.c.l.b16 %v3242
        %v5750 = vunpack.c.h.b16 %v3242
        %v5751 = vunpack.c.l.b16 %v3243
        %v5752 = vunpack.c.h.b16 %v3243
        %v5753 = vunpack.c.l.b16 %v3244
        %v5754 = vunpack.c.h.b16 %v3244
        %v5755 = vunpack.c.l.b16 %v3245
        %v5756 = vunpack.c.h.b16 %v3245
        %v5757 = vunpack.c.l.b16 %v3246
        %v5758 = vunpack.c.h.b16 %v3246
        %v5759 = vunpack.c.l.b16 %v3247
        %v5760 = vunpack.c.h.b16 %v3247
        %v5761 = vunpack.c.l.b16 %v3248
        %v5762 = vunpack.c.h.b16 %v3248
        %v5763 = vunpack.c.l.b16 %v3249
        %v5764 = vunpack.c.h.b16 %v3249
        %v5765 = vunpack.c.l.b16 %v3250
        %v5766 = vunpack.c.h.b16 %v3250
        %v5767 = vunpack.c.l.b16 %v3251
        %v5768 = vunpack.c.h.b16 %v3251
        %v5769 = vunpack.c.l.b16 %v3252
        %v5770 = vunpack.c.h.b16 %v3252
        %v5771 = vunpack.c.l.b16 %v3253
        %v5772 = vunpack.c.h.b16 %v3253
        %v5773 = vunpack.c.l.b16 %v3254
        %v5774 = vunpack.c.h.b16 %v3254
        %v5775 = vunpack.c.l.b16 %v3255
        %v5776 = vunpack.c.h.b16 %v3255
        %v5777 = vunpack.c.l.b16 %v3256
        %v5778 = vunpack.c.h.b16 %v3256
        %v5779 = vunpack.c.l.b16 %v3257
        %v5780 = vunpack.c.h.b16 %v3257
        %v5781 = vunpack.c.l.b16 %v3258
        %v5782 = vunpack.c.h.b16 %v3258
        %v5783 = vunpack.c.l.b16 %v3259
        %v5784 = vunpack.c.h.b16 %v3259
        %v5785 = vunpack.c.l.b16 %v3260
        %v5786 = vunpack.c.h.b16 %v3260
        %v5787 = vunpack.c.l.b16 %v3261
        %v5788 = vunpack.c.h.b16 %v3261
        %v5789 = vunpack.c.l.b16 %v3262
        %v5790 = vunpack.c.h.b16 %v3262
        %v5791 = vunpack.c.l.b16 %v3263
        %v5792 = vunpack.c.h.b16 %v3263
        %v5793 = vunpack.c.l.b16 %v3264
        %v5794 = vunpack.c.h.b16 %v3264
        %v5795 = vunpack.c.l.b16 %v3265
        %v5796 = vunpack.c.h.b16 %v3265
        %v5797 = vunpack.c.l.b16 %v3266
        %v5798 = vunpack.c.h.b16 %v3266
        %v5799 = vunpack.c.l.b16 %v3267
        %v5800 = vunpack.c.h.b16 %v3267
        %v5801 = vunpack.c.l.b16 %v3268
        %v5802 = vunpack.c.h.b16 %v3268
        %v5803 = vunpack.c.l.b16 %v3269
        %v5804 = vunpack.c.h.b16 %v3269
        %v5805 = vunpack.c.l.b16 %v3270
        %v5806 = vunpack.c.h.b16 %v3270
        %v5807 = vunpack.c.l.b16 %v3271
        %v5808 = vunpack.c.h.b16 %v3271
        %v5809 = vunpack.c.l.b16 %v3272
        %v5810 = vunpack.c.h.b16 %v3272
        %v5811 = vunpack.c.l.b16 %v3273
        %v5812 = vunpack.c.h.b16 %v3273
        %v5813 = vunpack.c.l.b16 %v3274
        %v5814 = vunpack.c.h.b16 %v3274
        %v5815 = vunpack.c.l.b16 %v3275
        %v5816 = vunpack.c.h.b16 %v3275
        %v5817 = vunpack.c.l.b16 %v3276
        %v5818 = vunpack.c.h.b16 %v3276
        %v5819 = vunpack.c.l.b16 %v3277
        %v5820 = vunpack.c.h.b16 %v3277
        %v5821 = vunpack.c.l.b16 %v3278
        %v5822 = vunpack.c.h.b16 %v3278
        %v5823 = vunpack.c.l.b16 %v3279
        %v5824 = vunpack.c.h.b16 %v3279
        %v5825 = vunpack.c.l.b16 %v3280
        %v5826 = vunpack.c.h.b16 %v3280
        %v5827 = vunpack.c.l.b16 %v3281
        %v5828 = vunpack.c.h.b16 %v3281
        %v5829 = vunpack.c.l.b16 %v3282
        %v5830 = vunpack.c.h.b16 %v3282
        %v5831 = vunpack.c.l.b16 %v3283
        %v5832 = vunpack.c.h.b16 %v3283
        %v5833 = vunpack.c.l.b16 %v3284
        %v5834 = vunpack.c.h.b16 %v3284
        %v5835 = vunpack.c.l.b16 %v3285
        %v5836 = vunpack.c.h.b16 %v3285
        %v5837 = vunpack.c.l.b16 %v3286
        %v5838 = vunpack.c.h.b16 %v3286
        %v5839 = vunpack.c.l.b16 %v3287
        %v5840 = vunpack.c.h.b16 %v3287
        %v5841 = vunpack.c.l.b16 %v3288
        %v5842 = vunpack.c.h.b16 %v3288
        %v5843 = vunpack.c.l.b16 %v3289
        %v5844 = vunpack.c.h.b16 %v3289
        %v5845 = vunpack.c.l.b16 %v3290
        %v5846 = vunpack.c.h.b16 %v3290
        %v5847 = vunpack.c.l.b16 %v3291
        %v5848 = vunpack.c.h.b16 %v3291
        %v5849 = vunpack.c.l.b16 %v3292
        %v5850 = vunpack.c.h.b16 %v3292
        %v5851 = vunpack.c.l.b16 %v3293
        %v5852 = vunpack.c.h.b16 %v3293
        %v5853 = vunpack.c.l.b16 %v3294
        %v5854 = vunpack.c.h.b16 %v3294
        %v5855 = vunpack.c.l.b16 %v3295
        %v5856 = vunpack.c.h.b16 %v3295
        %v5857 = vunpack.c.l.b16 %v3296
        %v5858 = vunpack.c.h.b16 %v3296
        %v5859 = vunpack.c.l.b16 %v3297
        %v5860 = vunpack.c.h.b16 %v3297
        %v5861 = vunpack.c.l.b16 %v3298
        %v5862 = vunpack.c.h.b16 %v3298
        %v5863 = vunpack.c.l.b16 %v3299
        %v5864 = vunpack.c.h.b16 %v3299
        %v5865 = vunpack.c.l.b16 %v3300
        %v5866 = vunpack.c.h.b16 %v3300
        %v5867 = vunpack.c.l.b16 %v3301
        %v5868 = vunpack.c.h.b16 %v3301
        %v5869 = vunpack.c.l.b16 %v3302
        %v5870 = vunpack.c.h.b16 %v3302
        %v5871 = vunpack.c.l.b16 %v3303
        %v5872 = vunpack.c.h.b16 %v3303
        %v5873 = vunpack.c.l.b16 %v3304
        %v5874 = vunpack.c.h.b16 %v3304
        %v5875 = vunpack.c.l.b16 %v3305
        %v5876 = vunpack.c.h.b16 %v3305
        %v5877 = vunpack.c.l.b16 %v3306
        %v5878 = vunpack.c.h.b16 %v3306
        %v5879 = vunpack.c.l.b16 %v3307
        %v5880 = vunpack.c.h.b16 %v3307
        %v5881 = vunpack.c.l.b16 %v3308
        %v5882 = vunpack.c.h.b16 %v3308
        %v5883 = vunpack.c.l.b16 %v3309
        %v5884 = vunpack.c.h.b16 %v3309
        %v5885 = vunpack.c.l.b16 %v3310
        %v5886 = vunpack.c.h.b16 %v3310
        %v5887 = vunpack.c.l.b16 %v3311
        %v5888 = vunpack.c.h.b16 %v3311
        %v5889 = vunpack.c.l.b16 %v3312
        %v5890 = vunpack.c.h.b16 %v3312
        %v5891 = vunpack.c.l.b16 %v3313
        %v5892 = vunpack.c.h.b16 %v3313
        %v5893 = vunpack.c.l.b16 %v3314
        %v5894 = vunpack.c.h.b16 %v3314
        %v5895 = vunpack.c.l.b16 %v3315
        %v5896 = vunpack.c.h.b16 %v3315
        %v5897 = vunpack.c.l.b16 %v3316
        %v5898 = vunpack.c.h.b16 %v3316
        %v5899 = vunpack.c.l.b16 %v3317
        %v5900 = vunpack.c.h.b16 %v3317
        %v5901 = vunpack.c.l.b16 %v3318
        %v5902 = vunpack.c.h.b16 %v3318
        %v5903 = vunpack.c.l.b16 %v3319
        %v5904 = vunpack.c.h.b16 %v3319
        %v5905 = vunpack.c.l.b16 %v3320
        %v5906 = vunpack.c.h.b16 %v3320
        %v5907 = vunpack.c.l.b16 %v3321
        %v5908 = vunpack.c.h.b16 %v3321
        %v5909 = vunpack.c.l.b16 %v3322
        %v5910 = vunpack.c.h.b16 %v3322
        %v5911 = vunpack.c.l.b16 %v3323
        %v5912 = vunpack.c.h.b16 %v3323
        %v5913 = vunpack.c.l.b16 %v3324
        %v5914 = vunpack.c.h.b16 %v3324
        %v5915 = vunpack.c.l.b16 %v3325
        %v5916 = vunpack.c.h.b16 %v3325
        %v5917 = vunpack.c.l.b16 %v3326
        %v5918 = vunpack.c.h.b16 %v3326
        %v5919 = vunpack.c.l.b16 %v3327
        %v5920 = vunpack.c.h.b16 %v3327
        %v5921 = vunpack.c.l.b16 %v3328
        %v5922 = vunpack.c.h.b16 %v3328
        %v5923 = vunpack.c.l.b16 %v3329
        %v5924 = vunpack.c.h.b16 %v3329
        %v5925 = vunpack.c.l.b16 %v3330
        %v5926 = vunpack.c.h.b16 %v3330
        %v5927 = vunpack.c.l.b16 %v3331
        %v5928 = vunpack.c.h.b16 %v3331
        %v5929 = vunpack.c.l.b16 %v3332
        %v5930 = vunpack.c.h.b16 %v3332
        %v5931 = vunpack.c.l.b16 %v3333
        %v5932 = vunpack.c.h.b16 %v3333
        %v5933 = vunpack.c.l.b16 %v3334
        %v5934 = vunpack.c.h.b16 %v3334
        %v5935 = vunpack.c.l.b16 %v3335
        %v5936 = vunpack.c.h.b16 %v3335
        %v5937 = vunpack.c.l.b16 %v3336
        %v5938 = vunpack.c.h.b16 %v3336
        %v5939 = vunpack.c.l.b16 %v3337
        %v5940 = vunpack.c.h.b16 %v3337
        %v5941 = vunpack.c.l.b16 %v3338
        %v5942 = vunpack.c.h.b16 %v3338
        %v5943 = vunpack.c.l.b16 %v3339
        %v5944 = vunpack.c.h.b16 %v3339
        %v5945 = vunpack.c.l.b16 %v3340
        %v5946 = vunpack.c.h.b16 %v3340
        %v5947 = vunpack.c.l.b16 %v3341
        %v5948 = vunpack.c.h.b16 %v3341
        %v5949 = vunpack.c.l.b16 %v3342
        %v5950 = vunpack.c.h.b16 %v3342
        %v5951 = vunpack.c.l.b16 %v3343
        %v5952 = vunpack.c.h.b16 %v3343
        %v5953 = vunpack.c.l.b16 %v3344
        %v5954 = vunpack.c.h.b16 %v3344
        %v5955 = vunpack.c.l.b16 %v3345
        %v5956 = vunpack.c.h.b16 %v3345
        %v5957 = vunpack.c.l.b16 %v3346
        %v5958 = vunpack.c.h.b16 %v3346
        %v5959 = vunpack.c.l.b16 %v3347
        %v5960 = vunpack.c.h.b16 %v3347
        %v5961 = vunpack.c.l.b16 %v3348
        %v5962 = vunpack.c.h.b16 %v3348
        %v5963 = vunpack.c.l.b16 %v3349
        %v5964 = vunpack.c.h.b16 %v3349
        %v5965 = vunpack.c.l.b16 %v3350
        %v5966 = vunpack.c.h.b16 %v3350
        %v5967 = vunpack.c.l.b16 %v3351
        %v5968 = vunpack.c.h.b16 %v3351
        %v5969 = vunpack.c.l.b16 %v3352
        %v5970 = vunpack.c.h.b16 %v3352
        %v5971 = vunpack.c.l.b16 %v3353
        %v5972 = vunpack.c.h.b16 %v3353
        %v5973 = vunpack.c.l.b16 %v3354
        %v5974 = vunpack.c.h.b16 %v3354
        %v5975 = vunpack.c.l.b16 %v3355
        %v5976 = vunpack.c.h.b16 %v3355
        %v5977 = vunpack.c.l.b16 %v3356
        %v5978 = vunpack.c.h.b16 %v3356
        %v5979 = vunpack.c.l.b16 %v3357
        %v5980 = vunpack.c.h.b16 %v3357
        %v5981 = vunpack.c.l.b16 %v3358
        %v5982 = vunpack.c.h.b16 %v3358
        %v5983 = vunpack.c.l.b16 %v3359
        %v5984 = vunpack.c.h.b16 %v3359
        %v5985 = vunpack.c.l.b16 %v3360
        %v5986 = vunpack.c.h.b16 %v3360
        %v5987 = vunpack.c.l.b16 %v3361
        %v5988 = vunpack.c.h.b16 %v3361
        %v5989 = vunpack.c.l.b16 %v3362
        %v5990 = vunpack.c.h.b16 %v3362
        %v5991 = vunpack.c.l.b16 %v3363
        %v5992 = vunpack.c.h.b16 %v3363
        %v5993 = vunpack.c.l.b16 %v3364
        %v5994 = vunpack.c.h.b16 %v3364
        %v5995 = vunpack.c.l.b16 %v3365
        %v5996 = vunpack.c.h.b16 %v3365
        %v5997 = vunpack.c.l.b16 %v3366
        %v5998 = vunpack.c.h.b16 %v3366
        %v5999 = vunpack.c.l.b16 %v3367
        %v6000 = vunpack.c.h.b16 %v3367
        %v6001 = vunpack.c.l.b16 %v3368
        %v6002 = vunpack.c.h.b16 %v3368
        %v6003 = vunpack.c.l.b16 %v3369
        %v6004 = vunpack.c.h.b16 %v3369
        %v6005 = vunpack.c.l.b16 %v3370
        %v6006 = vunpack.c.h.b16 %v3370
        %v6007 = vunpack.c.l.b16 %v3371
        %v6008 = vunpack.c.h.b16 %v3371
        %v6009 = vunpack.c.l.b16 %v3372
        %v6010 = vunpack.c.h.b16 %v3372
        %v6011 = vunpack.c.l.b16 %v3373
        %v6012 = vunpack.c.h.b16 %v3373
        %v6013 = vunpack.c.l.b16 %v3374
        %v6014 = vunpack.c.h.b16 %v3374
        %v6015 = vunpack.c.l.b16 %v3375
        %v6016 = vunpack.c.h.b16 %v3375
        %v6017 = vunpack.c.l.b16 %v3376
        %v6018 = vunpack.c.h.b16 %v3376
        %v6019 = vunpack.c.l.b16 %v3377
        %v6020 = vunpack.c.h.b16 %v3377
        %v6021 = vunpack.c.l.b16 %v3378
        %v6022 = vunpack.c.h.b16 %v3378
        %v6023 = vunpack.c.l.b16 %v3379
        %v6024 = vunpack.c.h.b16 %v3379
        %v6025 = vunpack.c.l.b16 %v3380
        %v6026 = vunpack.c.h.b16 %v3380
        %v6027 = vunpack.c.l.b16 %v3381
        %v6028 = vunpack.c.h.b16 %v3381
        %v6029 = vunpack.c.l.b16 %v3382
        %v6030 = vunpack.c.h.b16 %v3382
        %v6031 = vunpack.c.l.b16 %v3383
        %v6032 = vunpack.c.h.b16 %v3383
        %v6033 = vunpack.c.l.b16 %v3384
        %v6034 = vunpack.c.h.b16 %v3384
        %v6035 = vunpack.c.l.b16 %v3385
        %v6036 = vunpack.c.h.b16 %v3385
        %v6037 = vunpack.c.l.b16 %v3386
        %v6038 = vunpack.c.h.b16 %v3386
        %v6039 = vunpack.c.l.b16 %v3387
        %v6040 = vunpack.c.h.b16 %v3387
        %v6041 = vunpack.c.l.b16 %v3388
        %v6042 = vunpack.c.h.b16 %v3388
        %v6043 = vunpack.c.l.b16 %v3389
        %v6044 = vunpack.c.h.b16 %v3389
        %v6045 = vunpack.c.l.b16 %v3390
        %v6046 = vunpack.c.h.b16 %v3390
        %v6047 = vunpack.c.l.b16 %v3391
        %v6048 = vunpack.c.h.b16 %v3391
        %v6049 = vunpack.c.l.b16 %v3392
        %v6050 = vunpack.c.h.b16 %v3392
        %v6051 = vunpack.c.l.b16 %v3393
        %v6052 = vunpack.c.h.b16 %v3393
        %v6053 = vunpack.c.l.b16 %v3394
        %v6054 = vunpack.c.h.b16 %v3394
        %v6055 = vunpack.c.l.b16 %v3395
        %v6056 = vunpack.c.h.b16 %v3395
        %v6057 = vunpack.c.l.b16 %v3396
        %v6058 = vunpack.c.h.b16 %v3396
        %v6059 = vunpack.c.l.b16 %v3397
        %v6060 = vunpack.c.h.b16 %v3397
        %v6061 = vunpack.c.l.b16 %v3398
        %v6062 = vunpack.c.h.b16 %v3398
        %v6063 = vunpack.c.l.b16 %v3399
        %v6064 = vunpack.c.h.b16 %v3399
        %v6065 = vunpack.c.l.b16 %v3400
        %v6066 = vunpack.c.h.b16 %v3400
        %v6067 = vunpack.c.l.b16 %v3401
        %v6068 = vunpack.c.h.b16 %v3401
        %v6069 = vunpack.c.l.b16 %v3402
        %v6070 = vunpack.c.h.b16 %v3402
        %v6071 = vunpack.c.l.b16 %v3403
        %v6072 = vunpack.c.h.b16 %v3403
        %v6073 = vunpack.c.l.b16 %v3404
        %v6074 = vunpack.c.h.b16 %v3404
        %v6075 = vunpack.c.l.b16 %v3405
        %v6076 = vunpack.c.h.b16 %v3405
        %v6077 = vunpack.c.l.b16 %v3406
        %v6078 = vunpack.c.h.b16 %v3406
        %v6079 = vunpack.c.l.b16 %v3407
        %v6080 = vunpack.c.h.b16 %v3407
        %v6081 = vunpack.c.l.b16 %v3408
        %v6082 = vunpack.c.h.b16 %v3408
        %v6083 = vunpack.c.l.b16 %v3409
        %v6084 = vunpack.c.h.b16 %v3409
        %v6085 = vunpack.c.l.b16 %v3410
        %v6086 = vunpack.c.h.b16 %v3410
        %v6087 = vunpack.c.l.b16 %v3411
        %v6088 = vunpack.c.h.b16 %v3411
        %v6089 = vunpack.c.l.b16 %v3412
        %v6090 = vunpack.c.h.b16 %v3412
        %v6091 = vunpack.c.l.b16 %v3413
        %v6092 = vunpack.c.h.b16 %v3413
        %v6093 = vunpack.c.l.b16 %v3414
        %v6094 = vunpack.c.h.b16 %v3414
        %v6095 = vunpack.c.l.b16 %v3415
        %v6096 = vunpack.c.h.b16 %v3415
        %v6097 = vunpack.c.l.b16 %v3416
        %v6098 = vunpack.c.h.b16 %v3416
        %v6099 = vunpack.c.l.b16 %v3417
        %v6100 = vunpack.c.h.b16 %v3417
        %v6101 = vunpack.c.l.b16 %v3418
        %v6102 = vunpack.c.h.b16 %v3418
        %v6103 = vunpack.c.l.b16 %v3419
        %v6104 = vunpack.c.h.b16 %v3419
        %v6105 = vunpack.c.l.b16 %v3420
        %v6106 = vunpack.c.h.b16 %v3420
        %v6107 = vunpack.c.l.b16 %v3421
        %v6108 = vunpack.c.h.b16 %v3421
        %v6109 = vunpack.c.l.b16 %v3422
        %v6110 = vunpack.c.h.b16 %v3422
        %v6111 = vunpack.c.l.b16 %v3423
        %v6112 = vunpack.c.h.b16 %v3423
        %v6113 = vunpack.c.l.b16 %v3424
        %v6114 = vunpack.c.h.b16 %v3424
        %v6115 = vunpack.c.l.b16 %v3425
        %v6116 = vunpack.c.h.b16 %v3425
        %v6117 = vunpack.c.l.b16 %v3426
        %v6118 = vunpack.c.h.b16 %v3426
        %v6119 = vunpack.c.l.b16 %v3427
        %v6120 = vunpack.c.h.b16 %v3427
        %v6121 = vunpack.c.l.b16 %v3428
        %v6122 = vunpack.c.h.b16 %v3428
        %v6123 = vunpack.c.l.b16 %v3429
        %v6124 = vunpack.c.h.b16 %v3429
        %v6125 = vunpack.c.l.b16 %v3430
        %v6126 = vunpack.c.h.b16 %v3430
        %v6127 = vunpack.c.l.b16 %v3431
        %v6128 = vunpack.c.h.b16 %v3431
        %v6129 = vunpack.c.l.b16 %v3432
        %v6130 = vunpack.c.h.b16 %v3432
        %v6131 = vunpack.c.l.b16 %v3433
        %v6132 = vunpack.c.h.b16 %v3433
        %v6133 = vunpack.c.l.b16 %v3434
        %v6134 = vunpack.c.h.b16 %v3434
        %v6135 = vunpack.c.l.b16 %v3435
        %v6136 = vunpack.c.h.b16 %v3435
        %v6137 = vunpack.c.l.b16 %v3436
        %v6138 = vunpack.c.h.b16 %v3436
        %v6139 = vunpack.c.l.b16 %v3437
        %v6140 = vunpack.c.h.b16 %v3437
        %v6141 = vunpack.c.l.b16 %v3438
        %v6142 = vunpack.c.h.b16 %v3438
        %v6143 = vunpack.c.l.b16 %v3439
        %v6144 = vunpack.c.h.b16 %v3439
        %v6145 = vunpack.c.l.b16 %v3440
        %v6146 = vunpack.c.h.b16 %v3440
        %v6147 = vunpack.c.l.b16 %v3441
        %v6148 = vunpack.c.h.b16 %v3441
        %v6149 = vunpack.c.l.b16 %v3442
        %v6150 = vunpack.c.h.b16 %v3442
        %v6151 = vunpack.c.l.b16 %v3443
        %v6152 = vunpack.c.h.b16 %v3443
        %v6153 = vunpack.c.l.b16 %v3444
        %v6154 = vunpack.c.h.b16 %v3444
        %v6155 = vunpack.c.l.b16 %v3445
        %v6156 = vunpack.c.h.b16 %v3445
        %v6157 = vunpack.c.l.b16 %v3446
        %v6158 = vunpack.c.h.b16 %v3446
        %v6159 = vunpack.c.l.b16 %v3447
        %v6160 = vunpack.c.h.b16 %v3447
        %v6161 = vunpack.c.l.b16 %v3448
        %v6162 = vunpack.c.h.b16 %v3448
        %v6163 = vunpack.c.l.b16 %v3449
        %v6164 = vunpack.c.h.b16 %v3449
        %v6165 = vunpack.c.l.b16 %v3450
        %v6166 = vunpack.c.h.b16 %v3450
        %v6167 = vunpack.c.l.b16 %v3451
        %v6168 = vunpack.c.h.b16 %v3451
        %v6169 = vunpack.c.l.b16 %v3452
        %v6170 = vunpack.c.h.b16 %v3452
        %v6171 = vunpack.c.l.b16 %v3453
        %v6172 = vunpack.c.h.b16 %v3453
        %v6173 = vunpack.c.l.b16 %v3454
        %v6174 = vunpack.c.h.b16 %v3454
        %v6175 = vunpack.c.l.b16 %v3455
        %v6176 = vunpack.c.h.b16 %v3455
        %v6177 = vunpack.c.l.b16 %v3456
        %v6178 = vunpack.c.h.b16 %v3456
        %v6179 = vunpack.c.l.b16 %v3457
        %v6180 = vunpack.c.h.b16 %v3457
        %v6181 = vunpack.c.l.b16 %v3458
        %v6182 = vunpack.c.h.b16 %v3458
        %v6183 = vunpack.c.l.b16 %v3459
        %v6184 = vunpack.c.h.b16 %v3459
        %v6185 = vunpack.c.l.b16 %v3460
        %v6186 = vunpack.c.h.b16 %v3460
        %v6187 = vunpack.c.l.b16 %v3461
        %v6188 = vunpack.c.h.b16 %v3461
        %v6189 = vunpack.c.l.b16 %v3462
        %v6190 = vunpack.c.h.b16 %v3462
        %v6191 = vunpack.c.l.b16 %v3463
        %v6192 = vunpack.c.h.b16 %v3463
        %v6193 = vunpack.c.l.b16 %v3464
        %v6194 = vunpack.c.h.b16 %v3464
        %v6195 = vunpack.c.l.b16 %v3465
        %v6196 = vunpack.c.h.b16 %v3465
        %v6197 = vunpack.c.l.b16 %v3466
        %v6198 = vunpack.c.h.b16 %v3466
        %v6199 = vunpack.c.l.b16 %v3467
        %v6200 = vunpack.c.h.b16 %v3467
        %v6201 = vunpack.c.l.b16 %v3468
        %v6202 = vunpack.c.h.b16 %v3468
        %v6203 = vunpack.c.l.b16 %v3469
        %v6204 = vunpack.c.h.b16 %v3469
        %v6205 = vunpack.c.l.b16 %v3470
        %v6206 = vunpack.c.h.b16 %v3470
        %v6207 = vunpack.c.l.b16 %v3471
        %v6208 = vunpack.c.h.b16 %v3471
        %v6209 = vunpack.c.l.b16 %v3472
        %v6210 = vunpack.c.h.b16 %v3472
        %v6211 = vunpack.c.l.b16 %v3473
        %v6212 = vunpack.c.h.b16 %v3473
        %v6213 = vunpack.c.l.b16 %v3474
        %v6214 = vunpack.c.h.b16 %v3474
        %v6215 = vunpack.c.l.b16 %v3475
        %v6216 = vunpack.c.h.b16 %v3475
        %v6217 = vunpack.c.l.b16 %v3476
        %v6218 = vunpack.c.h.b16 %v3476
        %v6219 = vunpack.c.l.b16 %v3477
        %v6220 = vunpack.c.h.b16 %v3477
        %v6221 = vunpack.c.l.b16 %v3478
        %v6222 = vunpack.c.h.b16 %v3478
        %v6223 = vunpack.c.l.b16 %v3479
        %v6224 = vunpack.c.h.b16 %v3479
        %v6225 = vunpack.c.l.b16 %v3480
        %v6226 = vunpack.c.h.b16 %v3480
        %v6227 = vunpack.c.l.b16 %v3481
        %v6228 = vunpack.c.h.b16 %v3481
        %v6229 = vunpack.c.l.b16 %v3482
        %v6230 = vunpack.c.h.b16 %v3482
        %v6231 = vunpack.c.l.b16 %v3483
        %v6232 = vunpack.c.h.b16 %v3483
        %v6233 = vunpack.c.l.b16 %v3484
        %v6234 = vunpack.c.h.b16 %v3484
        %v6235 = vunpack.c.l.b16 %v3485
        %v6236 = vunpack.c.h.b16 %v3485
        %v6237 = vunpack.c.l.b16 %v3486
        %v6238 = vunpack.c.h.b16 %v3486
        %v6239 = vunpack.c.l.b16 %v3487
        %v6240 = vunpack.c.h.b16 %v3487
        %v6241 = vunpack.c.l.b16 %v3488
        %v6242 = vunpack.c.h.b16 %v3488
        %v6243 = vunpack.c.l.b16 %v3489
        %v6244 = vunpack.c.h.b16 %v3489
        %v6245 = vunpack.c.l.b16 %v3490
        %v6246 = vunpack.c.h.b16 %v3490
        %v6247 = vunpack.c.l.b16 %v3491
        %v6248 = vunpack.c.h.b16 %v3491
        %v6249 = vunpack.c.l.b16 %v3492
        %v6250 = vunpack.c.h.b16 %v3492
        %v6251 = vunpack.c.l.b16 %v3493
        %v6252 = vunpack.c.h.b16 %v3493
        %v6253 = vunpack.c.l.b16 %v3494
        %v6254 = vunpack.c.h.b16 %v3494
        %v6255 = vunpack.c.l.b16 %v3495
        %v6256 = vunpack.c.h.b16 %v3495
        %v6257 = vunpack.c.l.b16 %v3496
        %v6258 = vunpack.c.h.b16 %v3496
        %v6259 = vunpack.c.l.b16 %v3497
        %v6260 = vunpack.c.h.b16 %v3497
        %v6261 = vunpack.c.l.b16 %v3498
        %v6262 = vunpack.c.h.b16 %v3498
        %v6263 = vunpack.c.l.b16 %v3499
        %v6264 = vunpack.c.h.b16 %v3499
        %v6265 = vunpack.c.l.b16 %v3500
        %v6266 = vunpack.c.h.b16 %v3500
        %v6267 = vunpack.c.l.b16 %v3501
        %v6268 = vunpack.c.h.b16 %v3501
        %v6269 = vunpack.c.l.b16 %v3502
        %v6270 = vunpack.c.h.b16 %v3502
        %v6271 = vunpack.c.l.b16 %v3503
        %v6272 = vunpack.c.h.b16 %v3503
        %v6273 = vunpack.c.l.b16 %v3504
        %v6274 = vunpack.c.h.b16 %v3504
        %v6275 = vunpack.c.l.b16 %v3505
        %v6276 = vunpack.c.h.b16 %v3505
        %v6277 = vunpack.c.l.b16 %v3506
        %v6278 = vunpack.c.h.b16 %v3506
        %v6279 = vunpack.c.l.b16 %v3507
        %v6280 = vunpack.c.h.b16 %v3507
        %v6281 = vunpack.c.l.b16 %v3508
        %v6282 = vunpack.c.h.b16 %v3508
        %v6283 = vunpack.c.l.b16 %v3509
        %v6284 = vunpack.c.h.b16 %v3509
        %v6285 = vunpack.c.l.b16 %v3510
        %v6286 = vunpack.c.h.b16 %v3510
        %v6287 = vunpack.c.l.b16 %v3511
        %v6288 = vunpack.c.h.b16 %v3511
        %v6289 = vunpack.c.l.b16 %v3512
        %v6290 = vunpack.c.h.b16 %v3512
        %v6291 = vunpack.c.l.b16 %v3513
        %v6292 = vunpack.c.h.b16 %v3513
        %v6293 = vunpack.c.l.b16 %v3514
        %v6294 = vunpack.c.h.b16 %v3514
        %v6295 = vunpack.c.l.b16 %v3515
        %v6296 = vunpack.c.h.b16 %v3515
        %v6297 = vunpack.c.l.b16 %v3516
        %v6298 = vunpack.c.h.b16 %v3516
        %v6299 = vunpack.c.l.b16 %v3517
        %v6300 = vunpack.c.h.b16 %v3517
        %v6301 = vunpack.c.l.b16 %v3518
        %v6302 = vunpack.c.h.b16 %v3518
        %v6303 = vunpack.c.l.b16 %v3519
        %v6304 = vunpack.c.h.b16 %v3519
        %v6305 = vunpack.c.l.b16 %v3520
        %v6306 = vunpack.c.h.b16 %v3520
        %v6307 = vunpack.c.l.b16 %v3521
        %v6308 = vunpack.c.h.b16 %v3521
        %v6309 = vunpack.c.l.b16 %v3522
        %v6310 = vunpack.c.h.b16 %v3522
        %v6311 = vunpack.c.l.b16 %v3523
        %v6312 = vunpack.c.h.b16 %v3523
        %v6313 = vunpack.c.l.b16 %v3524
        %v6314 = vunpack.c.h.b16 %v3524
        %v6315 = vunpack.c.l.b16 %v3525
        %v6316 = vunpack.c.h.b16 %v3525
        %v6317 = vunpack.c.l.b16 %v3526
        %v6318 = vunpack.c.h.b16 %v3526
        %v6319 = vunpack.c.l.b16 %v3527
        %v6320 = vunpack.c.h.b16 %v3527
        %v6321 = vunpack.c.l.b16 %v3528
        %v6322 = vunpack.c.h.b16 %v3528
        %v6323 = vunpack.c.l.b16 %v3529
        %v6324 = vunpack.c.h.b16 %v3529
        %v6325 = vunpack.c.l.b16 %v3530
        %v6326 = vunpack.c.h.b16 %v3530
        %v6327 = vunpack.c.l.b16 %v3531
        %v6328 = vunpack.c.h.b16 %v3531
        %v6329 = vunpack.c.l.b16 %v3532
        %v6330 = vunpack.c.h.b16 %v3532
        %v6331 = vunpack.c.l.b16 %v3533
        %v6332 = vunpack.c.h.b16 %v3533
        %v6333 = vunpack.c.l.b16 %v3534
        %v6334 = vunpack.c.h.b16 %v3534
        %v6335 = vunpack.c.l.b16 %v3535
        %v6336 = vunpack.c.h.b16 %v3535
        %v6337 = vunpack.c.l.b16 %v3536
        %v6338 = vunpack.c.h.b16 %v3536
        %v6339 = vunpack.c.l.b16 %v3537
        %v6340 = vunpack.c.h.b16 %v3537
        %v6341 = vunpack.c.l.b16 %v3538
        %v6342 = vunpack.c.h.b16 %v3538
        %v6343 = vunpack.c.l.b16 %v3539
        %v6344 = vunpack.c.h.b16 %v3539
        %v6345 = vunpack.c.l.b16 %v3540
        %v6346 = vunpack.c.h.b16 %v3540
        %v6347 = vunpack.c.l.b16 %v3541
        %v6348 = vunpack.c.h.b16 %v3541
        %v6349 = vunpack.c.l.b16 %v3542
        %v6350 = vunpack.c.h.b16 %v3542
        %v6351 = vunpack.c.l.b16 %v3543
        %v6352 = vunpack.c.h.b16 %v3543
        %v6353 = vunpack.c.l.b16 %v3544
        %v6354 = vunpack.c.h.b16 %v3544
        %v6355 = vunpack.c.l.b16 %v3545
        %v6356 = vunpack.c.h.b16 %v3545
        %v6357 = vunpack.c.l.b16 %v3546
        %v6358 = vunpack.c.h.b16 %v3546
        %v6359 = vunpack.c.l.b16 %v3547
        %v6360 = vunpack.c.h.b16 %v3547
        %v6361 = vunpack.c.l.b16 %v3548
        %v6362 = vunpack.c.h.b16 %v3548
        %v6363 = vunpack.c.l.b16 %v3549
        %v6364 = vunpack.c.h.b16 %v3549
        %v6365 = vunpack.c.l.b16 %v3550
        %v6366 = vunpack.c.h.b16 %v3550
        %v6367 = vunpack.c.l.b16 %v3551
        %v6368 = vunpack.c.h.b16 %v3551
        %v6369 = vunpack.c.l.b16 %v3552
        %v6370 = vunpack.c.h.b16 %v3552
        %v6371 = vunpack.c.l.b16 %v3553
        %v6372 = vunpack.c.h.b16 %v3553
        %v6373 = vunpack.c.l.b16 %v3554
        %v6374 = vunpack.c.h.b16 %v3554
        %v6375 = vunpack.c.l.b16 %v3555
        %v6376 = vunpack.c.h.b16 %v3555
        %v6377 = vunpack.c.l.b16 %v3556
        %v6378 = vunpack.c.h.b16 %v3556
        %v6379 = vunpack.c.l.b16 %v3557
        %v6380 = vunpack.c.h.b16 %v3557
        %v6381 = vunpack.c.l.b16 %v3558
        %v6382 = vunpack.c.h.b16 %v3558
        %v6383 = vunpack.c.l.b16 %v3559
        %v6384 = vunpack.c.h.b16 %v3559
        %v6385 = vunpack.c.l.b16 %v3560
        %v6386 = vunpack.c.h.b16 %v3560
        %v6387 = vunpack.c.l.b16 %v3561
        %v6388 = vunpack.c.h.b16 %v3561
        %v6389 = vunpack.c.l.b16 %v3562
        %v6390 = vunpack.c.h.b16 %v3562
        %v6391 = vunpack.c.l.b16 %v3563
        %v6392 = vunpack.c.h.b16 %v3563
        %v6393 = vunpack.c.l.b16 %v3564
        %v6394 = vunpack.c.h.b16 %v3564
        %v6395 = vunpack.c.l.b16 %v3565
        %v6396 = vunpack.c.h.b16 %v3565
        %v6397 = vunpack.c.l.b16 %v3566
        %v6398 = vunpack.c.h.b16 %v3566
        %v6399 = vunpack.c.l.b16 %v3567
        %v6400 = vunpack.c.h.b16 %v3567
        %v6401 = vunpack.c.l.b16 %v3568
        %v6402 = vunpack.c.h.b16 %v3568
        %v6403 = vunpack.c.l.b16 %v3569
        %v6404 = vunpack.c.h.b16 %v3569
        %v6405 = vunpack.c.l.b16 %v3570
        %v6406 = vunpack.c.h.b16 %v3570
        %v6407 = vunpack.c.l.b16 %v3571
        %v6408 = vunpack.c.h.b16 %v3571
        %v6409 = vunpack.c.l.b16 %v3572
        %v6410 = vunpack.c.h.b16 %v3572
        %v6411 = vunpack.c.l.b16 %v3573
        %v6412 = vunpack.c.h.b16 %v3573
        %v6413 = vunpack.c.l.b16 %v3574
        %v6414 = vunpack.c.h.b16 %v3574
        %v6415 = vunpack.c.l.b16 %v3575
        %v6416 = vunpack.c.h.b16 %v3575
        %v6417 = vunpack.c.l.b16 %v3576
        %v6418 = vunpack.c.h.b16 %v3576
        %v6419 = vunpack.c.l.b16 %v3577
        %v6420 = vunpack.c.h.b16 %v3577
        %v6421 = vunpack.c.l.b16 %v3578
        %v6422 = vunpack.c.h.b16 %v3578
        %v6423 = vunpack.c.l.b16 %v3579
        %v6424 = vunpack.c.h.b16 %v3579
        %v6425 = vunpack.c.l.b16 %v3580
        %v6426 = vunpack.c.h.b16 %v3580
        %v6427 = vunpack.c.l.b16 %v3581
        %v6428 = vunpack.c.h.b16 %v3581
        %v6429 = vunpack.c.l.b16 %v3582
        %v6430 = vunpack.c.h.b16 %v3582
        %v6431 = vunpack.c.l.b16 %v3583
        %v6432 = vunpack.c.h.b16 %v3583
        %v6433 = vunpack.c.l.b16 %v3584
        %v6434 = vunpack.c.h.b16 %v3584
        %v6435 = vunpack.c.l.b16 %v3585
        %v6436 = vunpack.c.h.b16 %v3585
        %v6437 = vunpack.c.l.b16 %v3586
        %v6438 = vunpack.c.h.b16 %v3586
        %v6439 = vunpack.c.l.b16 %v3587
        %v6440 = vunpack.c.h.b16 %v3587
        %v6441 = vunpack.c.l.b16 %v3588
        %v6442 = vunpack.c.h.b16 %v3588
        %v6443 = vunpack.c.l.b16 %v3589
        %v6444 = vunpack.c.h.b16 %v3589
        %v6445 = vunpack.c.l.b16 %v3590
        %v6446 = vunpack.c.h.b16 %v3590
        %v6447 = vunpack.c.l.b16 %v3591
        %v6448 = vunpack.c.h.b16 %v3591
        %v6449 = vunpack.c.l.b16 %v3592
        %v6450 = vunpack.c.h.b16 %v3592
        %v6451 = vunpack.c.l.b16 %v3593
        %v6452 = vunpack.c.h.b16 %v3593
        %v6453 = vunpack.c.l.b16 %v3594
        %v6454 = vunpack.c.h.b16 %v3594
        %v6455 = vunpack.c.l.b16 %v3595
        %v6456 = vunpack.c.h.b16 %v3595
        %v6457 = vunpack.c.l.b16 %v3596
        %v6458 = vunpack.c.h.b16 %v3596
        %v6459 = vunpack.c.l.b16 %v3597
        %v6460 = vunpack.c.h.b16 %v3597
        %v6461 = vunpack.c.l.b16 %v3598
        %v6462 = vunpack.c.h.b16 %v3598
        %v6463 = vunpack.c.l.b16 %v3599
        %v6464 = vunpack.c.h.b16 %v3599
        %v6465 = vunpack.c.l.b16 %v3600
        %v6466 = vunpack.c.h.b16 %v3600
        %v6467 = vunpack.c.l.b16 %v3601
        %v6468 = vunpack.c.h.b16 %v3601
        %v6469 = vunpack.c.l.b16 %v3602
        %v6470 = vunpack.c.h.b16 %v3602
        %v6471 = vunpack.c.l.b16 %v3603
        %v6472 = vunpack.c.h.b16 %v3603
        %v6473 = vunpack.c.l.b16 %v3604
        %v6474 = vunpack.c.h.b16 %v3604
        %v6475 = vunpack.c.l.b16 %v3605
        %v6476 = vunpack.c.h.b16 %v3605
        %v6477 = vunpack.c.l.b16 %v3606
        %v6478 = vunpack.c.h.b16 %v3606
        %v6479 = vunpack.c.l.b16 %v3607
        %v6480 = vunpack.c.h.b16 %v3607
        %v6481 = vunpack.c.l.b16 %v3608
        %v6482 = vunpack.c.h.b16 %v3608
        %v6483 = vunpack.c.l.b16 %v3609
        %v6484 = vunpack.c.h.b16 %v3609
        %v6485 = vunpack.c.l.b16 %v3610
        %v6486 = vunpack.c.h.b16 %v3610
        %v6487 = vunpack.c.l.b16 %v3611
        %v6488 = vunpack.c.h.b16 %v3611
        %v6489 = vunpack.c.l.b16 %v3612
        %v6490 = vunpack.c.h.b16 %v3612
        %v6491 = vunpack.c.l.b16 %v3613
        %v6492 = vunpack.c.h.b16 %v3613
        %v6493 = vunpack.c.l.b16 %v3614
        %v6494 = vunpack.c.h.b16 %v3614
        %v6495 = vunpack.c.l.b16 %v3615
        %v6496 = vunpack.c.h.b16 %v3615
        %v6497 = vunpack.c.l.b16 %v3616
        %v6498 = vunpack.c.h.b16 %v3616
        %v6499 = vunpack.c.l.b16 %v3617
        %v6500 = vunpack.c.h.b16 %v3617
        %v6501 = vunpack.c.l.b16 %v3618
        %v6502 = vunpack.c.h.b16 %v3618
        %v6503 = vunpack.c.l.b16 %v3619
        %v6504 = vunpack.c.h.b16 %v3619
        %v6505 = vunpack.c.l.b16 %v3620
        %v6506 = vunpack.c.h.b16 %v3620
        %v6507 = vunpack.c.l.b16 %v3621
        %v6508 = vunpack.c.h.b16 %v3621
        %v6509 = vunpack.c.l.b16 %v3622
        %v6510 = vunpack.c.h.b16 %v3622
        %v6511 = vunpack.c.l.b16 %v3623
        %v6512 = vunpack.c.h.b16 %v3623
        %v6513 = vunpack.c.l.b16 %v3624
        %v6514 = vunpack.c.h.b16 %v3624
        %v6515 = vunpack.c.l.b16 %v3625
        %v6516 = vunpack.c.h.b16 %v3625
        %v6517 = vunpack.c.l.b16 %v3626
        %v6518 = vunpack.c.h.b16 %v3626
        %v6519 = vunpack.c.l.b16 %v3627
        %v6520 = vunpack.c.h.b16 %v3627
        %v6521 = vunpack.c.l.b16 %v3628
        %v6522 = vunpack.c.h.b16 %v3628
        %v6523 = vunpack.c.l.b16 %v3629
        %v6524 = vunpack.c.h.b16 %v3629
        %v6525 = vunpack.c.l.b16 %v3630
        %v6526 = vunpack.c.h.b16 %v3630
        %v6527 = vunpack.c.l.b16 %v3631
        %v6528 = vunpack.c.h.b16 %v3631
        %v6529 = vunpack.c.l.b16 %v3632
        %v6530 = vunpack.c.h.b16 %v3632
        %v6531 = vunpack.c.l.b16 %v3633
        %v6532 = vunpack.c.h.b16 %v3633
        %v6533 = vunpack.c.l.b16 %v3634
        %v6534 = vunpack.c.h.b16 %v3634
        %v6535 = vunpack.c.l.b16 %v3635
        %v6536 = vunpack.c.h.b16 %v3635
        %v6537 = vunpack.c.l.b16 %v3636
        %v6538 = vunpack.c.h.b16 %v3636
        %v6539 = vunpack.c.l.b16 %v3637
        %v6540 = vunpack.c.h.b16 %v3637
        %v6541 = vunpack.c.l.b16 %v3638
        %v6542 = vunpack.c.h.b16 %v3638
        %v6543 = vunpack.c.l.b16 %v3639
        %v6544 = vunpack.c.h.b16 %v3639
        %v6545 = vunpack.c.l.b16 %v3640
        %v6546 = vunpack.c.h.b16 %v3640
        %v6547 = vunpack.c.l.b16 %v3641
        %v6548 = vunpack.c.h.b16 %v3641
        %v6549 = vunpack.c.l.b16 %v3642
        %v6550 = vunpack.c.h.b16 %v3642
        %v6551 = vunpack.c.l.b16 %v3643
        %v6552 = vunpack.c.h.b16 %v3643
        %v6553 = vunpack.c.l.b16 %v3644
        %v6554 = vunpack.c.h.b16 %v3644
        %v6555 = vunpack.c.l.b16 %v3645
        %v6556 = vunpack.c.h.b16 %v3645
        %v6557 = vunpack.c.l.b16 %v3646
        %v6558 = vunpack.c.h.b16 %v3646
        %v6559 = vunpack.c.l.b16 %v3647
        %v6560 = vunpack.c.h.b16 %v3647
        %v6561 = vunpack.c.l.b16 %v3648
        %v6562 = vunpack.c.h.b16 %v3648
        %v6563 = vunpack.c.l.b16 %v3649
        %v6564 = vunpack.c.h.b16 %v3649
        %v6565 = vunpack.c.l.b16 %v3650
        %v6566 = vunpack.c.h.b16 %v3650
        %v6567 = vunpack.c.l.b16 %v3651
        %v6568 = vunpack.c.h.b16 %v3651
        %v6569 = vunpack.c.l.b16 %v3652
        %v6570 = vunpack.c.h.b16 %v3652
        %v6571 = vunpack.c.l.b16 %v3653
        %v6572 = vunpack.c.h.b16 %v3653
        %v6573 = vunpack.c.l.b16 %v3654
        %v6574 = vunpack.c.h.b16 %v3654
        %v6575 = vunpack.c.l.b16 %v3655
        %v6576 = vunpack.c.h.b16 %v3655
        %v6577 = vunpack.c.l.b16 %v3656
        %v6578 = vunpack.c.h.b16 %v3656
        %v6579 = vunpack.c.l.b16 %v3657
        %v6580 = vunpack.c.h.b16 %v3657
        %v6581 = vunpack.c.l.b16 %v3658
        %v6582 = vunpack.c.h.b16 %v3658
        %v6583 = vunpack.c.l.b16 %v3659
        %v6584 = vunpack.c.h.b16 %v3659
        %v6585 = vunpack.c.l.b16 %v3660
        %v6586 = vunpack.c.h.b16 %v3660
        %v6587 = vunpack.c.l.b16 %v3661
        %v6588 = vunpack.c.h.b16 %v3661
        %v6589 = vunpack.c.l.b16 %v3662
        %v6590 = vunpack.c.h.b16 %v3662
        %v6591 = vunpack.c.l.b16 %v3663
        %v6592 = vunpack.c.h.b16 %v3663
        %v6593 = vunpack.c.l.b16 %v3664
        %v6594 = vunpack.c.h.b16 %v3664
        %v6595 = vunpack.c.l.b16 %v3665
        %v6596 = vunpack.c.h.b16 %v3665
        %v6597 = vunpack.c.l.b16 %v3666
        %v6598 = vunpack.c.h.b16 %v3666
        %v6599 = vunpack.c.l.b16 %v3667
        %v6600 = vunpack.c.h.b16 %v3667
        %v6601 = vunpack.c.l.b16 %v3668
        %v6602 = vunpack.c.h.b16 %v3668
        %v6603 = vunpack.c.l.b16 %v3669
        %v6604 = vunpack.c.h.b16 %v3669
        %v6605 = vunpack.c.l.b16 %v3670
        %v6606 = vunpack.c.h.b16 %v3670
        %v6607 = vunpack.c.l.b16 %v3671
        %v6608 = vunpack.c.h.b16 %v3671
        %v6609 = vunpack.c.l.b16 %v3672
        %v6610 = vunpack.c.h.b16 %v3672
        %v6611 = vunpack.c.l.b16 %v3673
        %v6612 = vunpack.c.h.b16 %v3673
        %v6613 = vunpack.c.l.b16 %v3674
        %v6614 = vunpack.c.h.b16 %v3674
        %v6615 = vunpack.c.l.b16 %v3675
        %v6616 = vunpack.c.h.b16 %v3675
        %v6617 = vunpack.c.l.b16 %v3676
        %v6618 = vunpack.c.h.b16 %v3676
        %v6619 = vunpack.c.l.b16 %v3677
        %v6620 = vunpack.c.h.b16 %v3677
        %v6621 = vunpack.c.l.b16 %v3678
        %v6622 = vunpack.c.h.b16 %v3678
        %v6623 = vunpack.c.l.b16 %v3679
        %v6624 = vunpack.c.h.b16 %v3679
        %v6625 = vunpack.c.l.b16 %v3680
        %v6626 = vunpack.c.h.b16 %v3680
        %v6627 = vunpack.c.l.b16 %v3681
        %v6628 = vunpack.c.h.b16 %v3681
        %v6629 = vunpack.c.l.b16 %v3682
        %v6630 = vunpack.c.h.b16 %v3682
        %v6631 = vunpack.c.l.b16 %v3683
        %v6632 = vunpack.c.h.b16 %v3683
        %v6633 = vunpack.c.l.b16 %v3684
        %v6634 = vunpack.c.h.b16 %v3684
        %v6635 = vunpack.c.l.b16 %v3685
        %v6636 = vunpack.c.h.b16 %v3685
        %v6637 = vunpack.c.l.b16 %v3686
        %v6638 = vunpack.c.h.b16 %v3686
        %v6639 = vunpack.c.l.b16 %v3687
        %v6640 = vunpack.c.h.b16 %v3687
        %v6641 = vunpack.c.l.b16 %v3688
        %v6642 = vunpack.c.h.b16 %v3688
        %v6643 = vunpack.c.l.b16 %v3689
        %v6644 = vunpack.c.h.b16 %v3689
        %v6645 = vunpack.c.l.b16 %v3690
        %v6646 = vunpack.c.h.b16 %v3690
        %v6647 = vunpack.c.l.b16 %v3691
        %v6648 = vunpack.c.h.b16 %v3691
        %v6649 = vunpack.c.l.b16 %v3692
        %v6650 = vunpack.c.h.b16 %v3692
        %v6651 = vunpack.c.l.b16 %v3693
        %v6652 = vunpack.c.h.b16 %v3693
        %v6653 = vunpack.c.l.b16 %v3694
        %v6654 = vunpack.c.h.b16 %v3694
        %v6655 = vunpack.c.l.b16 %v3695
        %v6656 = vunpack.c.h.b16 %v3695
        %v6657 = vunpack.c.l.b16 %v3696
        %v6658 = vunpack.c.h.b16 %v3696
        %v6659 = vunpack.c.l.b16 %v3697
        %v6660 = vunpack.c.h.b16 %v3697
        %v6661 = vunpack.c.l.b16 %v3698
        %v6662 = vunpack.c.h.b16 %v3698
        %v6663 = vunpack.c.l.b16 %v3699
        %v6664 = vunpack.c.h.b16 %v3699
        %v6665 = vunpack.c.l.b16 %v3700
        %v6666 = vunpack.c.h.b16 %v3700
        %v6667 = vunpack.c.l.b16 %v3701
        %v6668 = vunpack.c.h.b16 %v3701
        %v6669 = vunpack.c.l.b16 %v3702
        %v6670 = vunpack.c.h.b16 %v3702
        %v6671 = vunpack.c.l.b16 %v3703
        %v6672 = vunpack.c.h.b16 %v3703
        %v6673 = vunpack.c.l.b16 %v3704
        %v6674 = vunpack.c.h.b16 %v3704
        %v6675 = vunpack.c.l.b16 %v3705
        %v6676 = vunpack.c.h.b16 %v3705
        %v6677 = vunpack.c.l.b16 %v3706
        %v6678 = vunpack.c.h.b16 %v3706
        %v6679 = vunpack.c.l.b16 %v3707
        %v6680 = vunpack.c.h.b16 %v3707
        %v6681 = vunpack.c.l.b16 %v3708
        %v6682 = vunpack.c.h.b16 %v3708
        %v6683 = vunpack.c.l.b16 %v3709
        %v6684 = vunpack.c.h.b16 %v3709
        %v6685 = vunpack.c.l.b16 %v3710
        %v6686 = vunpack.c.h.b16 %v3710
        %v6687 = vunpack.c.l.b16 %v3711
        %v6688 = vunpack.c.h.b16 %v3711
        %v6689 = vunpack.c.l.b16 %v3712
        %v6690 = vunpack.c.h.b16 %v3712
        %v6691 = vunpack.c.l.b16 %v3713
        %v6692 = vunpack.c.h.b16 %v3713
        %v6693 = vunpack.c.l.b16 %v3714
        %v6694 = vunpack.c.h.b16 %v3714
        %v6695 = vunpack.c.l.b16 %v3715
        %v6696 = vunpack.c.h.b16 %v3715
        %v6697 = vunpack.c.l.b16 %v3716
        %v6698 = vunpack.c.h.b16 %v3716
        %v6699 = vunpack.c.l.b16 %v3717
        %v6700 = vunpack.c.h.b16 %v3717
        %v6701 = vunpack.c.l.b16 %v3718
        %v6702 = vunpack.c.h.b16 %v3718
        %v6703 = vunpack.c.l.b16 %v3719
        %v6704 = vunpack.c.h.b16 %v3719
        %v6705 = vunpack.c.l.b16 %v3720
        %v6706 = vunpack.c.h.b16 %v3720
        %v6707 = vunpack.c.l.b16 %v3721
        %v6708 = vunpack.c.h.b16 %v3721
        %v6709 = vunpack.c.l.b16 %v3722
        %v6710 = vunpack.c.h.b16 %v3722
        %v6711 = vunpack.c.l.b16 %v3723
        %v6712 = vunpack.c.h.b16 %v3723
        %v6713 = vunpack.c.l.b16 %v3724
        %v6714 = vunpack.c.h.b16 %v3724
        %v6715 = vunpack.c.l.b16 %v3725
        %v6716 = vunpack.c.h.b16 %v3725
        %v6717 = vunpack.c.l.b16 %v3726
        %v6718 = vunpack.c.h.b16 %v3726
        %v6719 = vunpack.c.l.b16 %v3727
        %v6720 = vunpack.c.h.b16 %v3727
        %v6721 = vunpack.c.l.b16 %v3728
        %v6722 = vunpack.c.h.b16 %v3728
        %v6723 = vunpack.c.l.b16 %v3729
        %v6724 = vunpack.c.h.b16 %v3729
        %v6725 = vunpack.c.l.b16 %v3730
        %v6726 = vunpack.c.h.b16 %v3730
        %v6727 = vunpack.c.l.b16 %v3731
        %v6728 = vunpack.c.h.b16 %v3731
        %v6729 = vunpack.c.l.b16 %v3732
        %v6730 = vunpack.c.h.b16 %v3732
        %v6731 = vunpack.c.l.b16 %v3733
        %v6732 = vunpack.c.h.b16 %v3733
        %v6733 = vunpack.c.l.b16 %v3734
        %v6734 = vunpack.c.h.b16 %v3734
        %v6735 = vunpack.c.l.b16 %v3735
        %v6736 = vunpack.c.h.b16 %v3735
        %v6737 = vunpack.c.l.b16 %v3736
        %v6738 = vunpack.c.h.b16 %v3736
        %v6739 = vunpack.c.l.b16 %v3737
        %v6740 = vunpack.c.h.b16 %v3737
        %v6741 = vunpack.c.l.b16 %v3738
        %v6742 = vunpack.c.h.b16 %v3738
        %v6743 = vunpack.c.l.b16 %v3739
        %v6744 = vunpack.c.h.b16 %v3739
        %v6745 = vunpack.c.l.b16 %v3740
        %v6746 = vunpack.c.h.b16 %v3740
        %v6747 = vunpack.c.l.b16 %v3741
        %v6748 = vunpack.c.h.b16 %v3741
        %v6749 = vunpack.c.l.b16 %v3742
        %v6750 = vunpack.c.h.b16 %v3742
        %v6751 = vunpack.c.l.b16 %v3743
        %v6752 = vunpack.c.h.b16 %v3743
        %v6753 = vunpack.c.l.b16 %v3744
        %v6754 = vunpack.c.h.b16 %v3744
        %v6755 = vunpack.c.l.b16 %v3745
        %v6756 = vunpack.c.h.b16 %v3745
        %v6757 = vunpack.c.l.b16 %v3746
        %v6758 = vunpack.c.h.b16 %v3746
        %v6759 = vunpack.c.l.b16 %v3747
        %v6760 = vunpack.c.h.b16 %v3747
        %v6761 = vunpack.c.l.b16 %v3748
        %v6762 = vunpack.c.h.b16 %v3748
        %v6763 = vunpack.c.l.b16 %v3749
        %v6764 = vunpack.c.h.b16 %v3749
        %v6765 = vunpack.c.l.b16 %v3750
        %v6766 = vunpack.c.h.b16 %v3750
        %v6767 = vunpack.c.l.b16 %v3751
        %v6768 = vunpack.c.h.b16 %v3751
        %v6769 = vunpack.c.l.b16 %v3752
        %v6770 = vunpack.c.h.b16 %v3752
        %v6771 = vunpack.c.l.b16 %v3753
        %v6772 = vunpack.c.h.b16 %v3753
        %v6773 = vunpack.c.l.b16 %v3754
        %v6774 = vunpack.c.h.b16 %v3754
        %v6775 = vunpack.c.l.b16 %v3755
        %v6776 = vunpack.c.h.b16 %v3755
        %v6777 = vunpack.c.l.b16 %v3756
        %v6778 = vunpack.c.h.b16 %v3756
        %v6779 = vunpack.c.l.b16 %v3757
        %v6780 = vunpack.c.h.b16 %v3757
        %v6781 = vunpack.c.l.b16 %v3758
        %v6782 = vunpack.c.h.b16 %v3758
        %v6783 = vunpack.c.l.b16 %v3759
        %v6784 = vunpack.c.h.b16 %v3759
        %v6785 = vunpack.c.l.b16 %v3760
        %v6786 = vunpack.c.h.b16 %v3760
        %v6787 = vunpack.c.l.b16 %v3761
        %v6788 = vunpack.c.h.b16 %v3761
        %v6789 = vunpack.c.l.b16 %v3762
        %v6790 = vunpack.c.h.b16 %v3762
        %v6791 = vunpack.c.l.b16 %v3763
        %v6792 = vunpack.c.h.b16 %v3763
        %v6793 = vunpack.c.l.b16 %v3764
        %v6794 = vunpack.c.h.b16 %v3764
        %v6795 = vunpack.c.l.b16 %v3765
        %v6796 = vunpack.c.h.b16 %v3765
        %v6797 = vunpack.c.l.b16 %v3766
        %v6798 = vunpack.c.h.b16 %v3766
        %v6799 = vunpack.c.l.b16 %v3767
        %v6800 = vunpack.c.h.b16 %v3767
        %v6801 = vunpack.c.l.b16 %v3768
        %v6802 = vunpack.c.h.b16 %v3768
        %v6803 = vunpack.c.l.b16 %v3769
        %v6804 = vunpack.c.h.b16 %v3769
        %v6805 = vunpack.c.l.b16 %v3770
        %v6806 = vunpack.c.h.b16 %v3770
        %v6807 = vunpack.c.l.b16 %v3771
        %v6808 = vunpack.c.h.b16 %v3771
        %v6809 = vunpack.c.l.b16 %v3772
        %v6810 = vunpack.c.h.b16 %v3772
        %v6811 = vunpack.c.l.b16 %v3773
        %v6812 = vunpack.c.h.b16 %v3773
        %v6813 = vunpack.c.l.b16 %v3774
        %v6814 = vunpack.c.h.b16 %v3774
        %v6815 = vunpack.c.l.b16 %v3775
        %v6816 = vunpack.c.h.b16 %v3775
        %v6817 = vunpack.c.l.b16 %v3776
        %v6818 = vunpack.c.h.b16 %v3776
        %v6819 = vunpack.c.l.b16 %v3777
        %v6820 = vunpack.c.h.b16 %v3777
        %v6821 = vunpack.c.l.b16 %v3778
        %v6822 = vunpack.c.h.b16 %v3778
        %v6823 = vunpack.c.l.b16 %v3779
        %v6824 = vunpack.c.h.b16 %v3779
        %v6825 = vunpack.c.l.b16 %v3780
        %v6826 = vunpack.c.h.b16 %v3780
        %v6827 = vunpack.c.l.b16 %v3781
        %v6828 = vunpack.c.h.b16 %v3781
        %v6829 = vunpack.c.l.b16 %v3782
        %v6830 = vunpack.c.h.b16 %v3782
        %v6831 = vunpack.c.l.b16 %v3783
        %v6832 = vunpack.c.h.b16 %v3783
        %v6833 = vunpack.c.l.b16 %v3784
        %v6834 = vunpack.c.h.b16 %v3784
        %v6835 = vunpack.c.l.b16 %v3785
        %v6836 = vunpack.c.h.b16 %v3785
        %v6837 = vunpack.c.l.b16 %v3786
        %v6838 = vunpack.c.h.b16 %v3786
        %v6839 = vunpack.c.l.b16 %v3787
        %v6840 = vunpack.c.h.b16 %v3787
        %v6841 = vunpack.c.l.b16 %v3788
        %v6842 = vunpack.c.h.b16 %v3788
        %v6843 = vunpack.c.l.b16 %v3789
        %v6844 = vunpack.c.h.b16 %v3789
        %v6845 = vunpack.c.l.b16 %v3790
        %v6846 = vunpack.c.h.b16 %v3790
        %v6847 = vunpack.c.l.b16 %v3791
        %v6848 = vunpack.c.h.b16 %v3791
        %v6849 = vunpack.c.l.b16 %v3792
        %v6850 = vunpack.c.h.b16 %v3792
        %v6851 = vunpack.c.l.b16 %v3793
        %v6852 = vunpack.c.h.b16 %v3793
        %v6853 = vunpack.c.l.b16 %v3794
        %v6854 = vunpack.c.h.b16 %v3794
        %v6855 = vunpack.c.l.b16 %v3795
        %v6856 = vunpack.c.h.b16 %v3795
        %v6857 = vunpack.c.l.b16 %v3796
        %v6858 = vunpack.c.h.b16 %v3796
        %v6859 = vunpack.c.l.b16 %v3797
        %v6860 = vunpack.c.h.b16 %v3797
        %v6861 = vunpack.c.l.b16 %v3798
        %v6862 = vunpack.c.h.b16 %v3798
        %v6863 = vunpack.c.l.b16 %v3799
        %v6864 = vunpack.c.h.b16 %v3799
        %v6865 = vunpack.c.l.b16 %v3800
        %v6866 = vunpack.c.h.b16 %v3800
        %v6867 = vunpack.c.l.b16 %v3801
        %v6868 = vunpack.c.h.b16 %v3801
        %v6869 = vunpack.c.l.b16 %v3802
        %v6870 = vunpack.c.h.b16 %v3802
        %v6871 = vunpack.c.l.b16 %v3803
        %v6872 = vunpack.c.h.b16 %v3803
        %v6873 = vunpack.c.l.b16 %v3804
        %v6874 = vunpack.c.h.b16 %v3804
        %v6875 = vunpack.c.l.b16 %v3805
        %v6876 = vunpack.c.h.b16 %v3805
        %v6877 = vunpack.c.l.b16 %v3806
        %v6878 = vunpack.c.h.b16 %v3806
        %v6879 = vunpack.c.l.b16 %v3807
        %v6880 = vunpack.c.h.b16 %v3807
        %v6881 = vpack.c.b16 %v4837, %v4833
        %v6882 = vpack.c.b16 %v4838, %v4834
        %v6883 = vpack.c.b16 %v4839, %v4835
        %v6884 = vpack.c.b16 %v4840, %v4836
        %v6885 = vpack.c.b16 %v4845, %v4841
        %v6886 = vpack.c.b16 %v4846, %v4842
        %v6887 = vpack.c.b16 %v4847, %v4843
        %v6888 = vpack.c.b16 %v4848, %v4844
        %v6889 = vpack.c.b16 %v4853, %v4849
        %v6890 = vpack.c.b16 %v4854, %v4850
        %v6891 = vpack.c.b16 %v4855, %v4851
        %v6892 = vpack.c.b16 %v4856, %v4852
        %v6893 = vpack.c.b16 %v4861, %v4857
        %v6894 = vpack.c.b16 %v4862, %v4858
        %v6895 = vpack.c.b16 %v4863, %v4859
        %v6896 = vpack.c.b16 %v4864, %v4860
        %v6897 = vpack.c.b16 %v4869, %v4865
        %v6898 = vpack.c.b16 %v4870, %v4866
        %v6899 = vpack.c.b16 %v4871, %v4867
        %v6900 = vpack.c.b16 %v4872, %v4868
        %v6901 = vpack.c.b16 %v4877, %v4873
        %v6902 = vpack.c.b16 %v4878, %v4874
        %v6903 = vpack.c.b16 %v4879, %v4875
        %v6904 = vpack.c.b16 %v4880, %v4876
        %v6905 = vpack.c.b16 %v4885, %v4881
        %v6906 = vpack.c.b16 %v4886, %v4882
        %v6907 = vpack.c.b16 %v4887, %v4883
        %v6908 = vpack.c.b16 %v4888, %v4884
        %v6909 = vpack.c.b16 %v4893, %v4889
        %v6910 = vpack.c.b16 %v4894, %v4890
        %v6911 = vpack.c.b16 %v4895, %v4891
        %v6912 = vpack.c.b16 %v4896, %v4892
        %v6913 = vpack.c.b16 %v4901, %v4897
        %v6914 = vpack.c.b16 %v4902, %v4898
        %v6915 = vpack.c.b16 %v4903, %v4899
        %v6916 = vpack.c.b16 %v4904, %v4900
        %v6917 = vpack.c.b16 %v4909, %v4905
        %v6918 = vpack.c.b16 %v4910, %v4906
        %v6919 = vpack.c.b16 %v4911, %v4907
        %v6920 = vpack.c.b16 %v4912, %v4908
        %v6921 = vpack.c.b16 %v4917, %v4913
        %v6922 = vpack.c.b16 %v4918, %v4914
        %v6923 = vpack.c.b16 %v4919, %v4915
        %v6924 = vpack.c.b16 %v4920, %v4916
        %v6925 = vpack.c.b16 %v4925, %v4921
        %v6926 = vpack.c.b16 %v4926, %v4922
        %v6927 = vpack.c.b16 %v4927, %v4923
        %v6928 = vpack.c.b16 %v4928, %v4924
        %v6929 = vpack.c.b16 %v4933, %v4929
        %v6930 = vpack.c.b16 %v4934, %v4930
        %v6931 = vpack.c.b16 %v4935, %v4931
        %v6932 = vpack.c.b16 %v4936, %v4932
        %v6933 = vpack.c.b16 %v4941, %v4937
        %v6934 = vpack.c.b16 %v4942, %v4938
        %v6935 = vpack.c.b16 %v4943, %v4939
        %v6936 = vpack.c.b16 %v4944, %v4940
        %v6937 = vpack.c.b16 %v4949, %v4945
        %v6938 = vpack.c.b16 %v4950, %v4946
        %v6939 = vpack.c.b16 %v4951, %v4947
        %v6940 = vpack.c.b16 %v4952, %v4948
        %v6941 = vpack.c.b16 %v4957, %v4953
        %v6942 = vpack.c.b16 %v4958, %v4954
        %v6943 = vpack.c.b16 %v4959, %v4955
        %v6944 = vpack.c.b16 %v4960, %v4956
        %v6945 = vpack.c.b16 %v4965, %v4961
        %v6946 = vpack.c.b16 %v4966, %v4962
        %v6947 = vpack.c.b16 %v4967, %v4963
        %v6948 = vpack.c.b16 %v4968, %v4964
        %v6949 = vpack.c.b16 %v4973, %v4969
        %v6950 = vpack.c.b16 %v4974, %v4970
        %v6951 = vpack.c.b16 %v4975, %v4971
        %v6952 = vpack.c.b16 %v4976, %v4972
        %v6953 = vpack.c.b16 %v4981, %v4977
        %v6954 = vpack.c.b16 %v4982, %v4978
        %v6955 = vpack.c.b16 %v4983, %v4979
        %v6956 = vpack.c.b16 %v4984, %v4980
        %v6957 = vpack.c.b16 %v4989, %v4985
        %v6958 = vpack.c.b16 %v4990, %v4986
        %v6959 = vpack.c.b16 %v4991, %v4987
        %v6960 = vpack.c.b16 %v4992, %v4988
        %v6961 = vpack.c.b16 %v4997, %v4993
        %v6962 = vpack.c.b16 %v4998, %v4994
        %v6963 = vpack.c.b16 %v4999, %v4995
        %v6964 = vpack.c.b16 %v5000, %v4996
        %v6965 = vpack.c.b16 %v5005, %v5001
        %v6966 = vpack.c.b16 %v5006, %v5002
        %v6967 = vpack.c.b16 %v5007, %v5003
        %v6968 = vpack.c.b16 %v5008, %v5004
        %v6969 = vpack.c.b16 %v5013, %v5009
        %v6970 = vpack.c.b16 %v5014, %v5010
        %v6971 = vpack.c.b16 %v5015, %v5011
        %v6972 = vpack.c.b16 %v5016, %v5012
        %v6973 = vpack.c.b16 %v5021, %v5017
        %v6974 = vpack.c.b16 %v5022, %v5018
        %v6975 = vpack.c.b16 %v5023, %v5019
        %v6976 = vpack.c.b16 %v5024, %v5020
        %v6977 = vpack.c.b16 %v5029, %v5025
        %v6978 = vpack.c.b16 %v5030, %v5026
        %v6979 = vpack.c.b16 %v5031, %v5027
        %v6980 = vpack.c.b16 %v5032, %v5028
        %v6981 = vpack.c.b16 %v5037, %v5033
        %v6982 = vpack.c.b16 %v5038, %v5034
        %v6983 = vpack.c.b16 %v5039, %v5035
        %v6984 = vpack.c.b16 %v5040, %v5036
        %v6985 = vpack.c.b16 %v5045, %v5041
        %v6986 = vpack.c.b16 %v5046, %v5042
        %v6987 = vpack.c.b16 %v5047, %v5043
        %v6988 = vpack.c.b16 %v5048, %v5044
        %v6989 = vpack.c.b16 %v5053, %v5049
        %v6990 = vpack.c.b16 %v5054, %v5050
        %v6991 = vpack.c.b16 %v5055, %v5051
        %v6992 = vpack.c.b16 %v5056, %v5052
        %v6993 = vpack.c.b16 %v5061, %v5057
        %v6994 = vpack.c.b16 %v5062, %v5058
        %v6995 = vpack.c.b16 %v5063, %v5059
        %v6996 = vpack.c.b16 %v5064, %v5060
        %v6997 = vpack.c.b16 %v5069, %v5065
        %v6998 = vpack.c.b16 %v5070, %v5066
        %v6999 = vpack.c.b16 %v5071, %v5067
        %v7000 = vpack.c.b16 %v5072, %v5068
        %v7001 = vpack.c.b16 %v5077, %v5073
        %v7002 = vpack.c.b16 %v5078, %v5074
        %v7003 = vpack.c.b16 %v5079, %v5075
        %v7004 = vpack.c.b16 %v5080, %v5076
        %v7005 = vpack.c.b16 %v5085, %v5081
        %v7006 = vpack.c.b16 %v5086, %v5082
        %v7007 = vpack.c.b16 %v5087, %v5083
        %v7008 = vpack.c.b16 %v5088, %v5084
        %v7009 = vpack.c.b16 %v5093, %v5089
        %v7010 = vpack.c.b16 %v5094, %v5090
        %v7011 = vpack.c.b16 %v5095, %v5091
        %v7012 = vpack.c.b16 %v5096, %v5092
        %v7013 = vpack.c.b16 %v5101, %v5097
        %v7014 = vpack.c.b16 %v5102, %v5098
        %v7015 = vpack.c.b16 %v5103, %v5099
        %v7016 = vpack.c.b16 %v5104, %v5100
        %v7017 = vpack.c.b16 %v5109, %v5105
        %v7018 = vpack.c.b16 %v5110, %v5106
        %v7019 = vpack.c.b16 %v5111, %v5107
        %v7020 = vpack.c.b16 %v5112, %v5108
        %v7021 = vpack.c.b16 %v5117, %v5113
        %v7022 = vpack.c.b16 %v5118, %v5114
        %v7023 = vpack.c.b16 %v5119, %v5115
        %v7024 = vpack.c.b16 %v5120, %v5116
        %v7025 = vpack.c.b16 %v5125, %v5121
        %v7026 = vpack.c.b16 %v5126, %v5122
        %v7027 = vpack.c.b16 %v5127, %v5123
        %v7028 = vpack.c.b16 %v5128, %v5124
        %v7029 = vpack.c.b16 %v5133, %v5129
        %v7030 = vpack.c.b16 %v5134, %v5130
        %v7031 = vpack.c.b16 %v5135, %v5131
        %v7032 = vpack.c.b16 %v5136, %v5132
        %v7033 = vpack.c.b16 %v5141, %v5137
        %v7034 = vpack.c.b16 %v5142, %v5138
        %v7035 = vpack.c.b16 %v5143, %v5139
        %v7036 = vpack.c.b16 %v5144, %v5140
        %v7037 = vpack.c.b16 %v5149, %v5145
        %v7038 = vpack.c.b16 %v5150, %v5146
        %v7039 = vpack.c.b16 %v5151, %v5147
        %v7040 = vpack.c.b16 %v5152, %v5148
        %v7041 = vpack.c.b16 %v5157, %v5153
        %v7042 = vpack.c.b16 %v5158, %v5154
        %v7043 = vpack.c.b16 %v5159, %v5155
        %v7044 = vpack.c.b16 %v5160, %v5156
        %v7045 = vpack.c.b16 %v5165, %v5161
        %v7046 = vpack.c.b16 %v5166, %v5162
        %v7047 = vpack.c.b16 %v5167, %v5163
        %v7048 = vpack.c.b16 %v5168, %v5164
        %v7049 = vpack.c.b16 %v5173, %v5169
        %v7050 = vpack.c.b16 %v5174, %v5170
        %v7051 = vpack.c.b16 %v5175, %v5171
        %v7052 = vpack.c.b16 %v5176, %v5172
        %v7053 = vpack.c.b16 %v5181, %v5177
        %v7054 = vpack.c.b16 %v5182, %v5178
        %v7055 = vpack.c.b16 %v5183, %v5179
        %v7056 = vpack.c.b16 %v5184, %v5180
        %v7057 = vpack.c.b16 %v5189, %v5185
        %v7058 = vpack.c.b16 %v5190, %v5186
        %v7059 = vpack.c.b16 %v5191, %v5187
        %v7060 = vpack.c.b16 %v5192, %v5188
        %v7061 = vpack.c.b16 %v5197, %v5193
        %v7062 = vpack.c.b16 %v5198, %v5194
        %v7063 = vpack.c.b16 %v5199, %v5195
        %v7064 = vpack.c.b16 %v5200, %v5196
        %v7065 = vpack.c.b16 %v5205, %v5201
        %v7066 = vpack.c.b16 %v5206, %v5202
        %v7067 = vpack.c.b16 %v5207, %v5203
        %v7068 = vpack.c.b16 %v5208, %v5204
        %v7069 = vpack.c.b16 %v5213, %v5209
        %v7070 = vpack.c.b16 %v5214, %v5210
        %v7071 = vpack.c.b16 %v5215, %v5211
        %v7072 = vpack.c.b16 %v5216, %v5212
        %v7073 = vpack.c.b16 %v5221, %v5217
        %v7074 = vpack.c.b16 %v5222, %v5218
        %v7075 = vpack.c.b16 %v5223, %v5219
        %v7076 = vpack.c.b16 %v5224, %v5220
        %v7077 = vpack.c.b16 %v5229, %v5225
        %v7078 = vpack.c.b16 %v5230, %v5226
        %v7079 = vpack.c.b16 %v5231, %v5227
        %v7080 = vpack.c.b16 %v5232, %v5228
        %v7081 = vpack.c.b16 %v5237, %v5233
        %v7082 = vpack.c.b16 %v5238, %v5234
        %v7083 = vpack.c.b16 %v5239, %v5235
        %v7084 = vpack.c.b16 %v5240, %v5236
        %v7085 = vpack.c.b16 %v5245, %v5241
        %v7086 = vpack.c.b16 %v5246, %v5242
        %v7087 = vpack.c.b16 %v5247, %v5243
        %v7088 = vpack.c.b16 %v5248, %v5244
        %v7089 = vpack.c.b16 %v5253, %v5249
        %v7090 = vpack.c.b16 %v5254, %v5250
        %v7091 = vpack.c.b16 %v5255, %v5251
        %v7092 = vpack.c.b16 %v5256, %v5252
        %v7093 = vpack.c.b16 %v5261, %v5257
        %v7094 = vpack.c.b16 %v5262, %v5258
        %v7095 = vpack.c.b16 %v5263, %v5259
        %v7096 = vpack.c.b16 %v5264, %v5260
        %v7097 = vpack.c.b16 %v5269, %v5265
        %v7098 = vpack.c.b16 %v5270, %v5266
        %v7099 = vpack.c.b16 %v5271, %v5267
        %v7100 = vpack.c.b16 %v5272, %v5268
        %v7101 = vpack.c.b16 %v5277, %v5273
        %v7102 = vpack.c.b16 %v5278, %v5274
        %v7103 = vpack.c.b16 %v5279, %v5275
        %v7104 = vpack.c.b16 %v5280, %v5276
        %v7105 = vpack.c.b16 %v5285, %v5281
        %v7106 = vpack.c.b16 %v5286, %v5282
        %v7107 = vpack.c.b16 %v5287, %v5283
        %v7108 = vpack.c.b16 %v5288, %v5284
        %v7109 = vpack.c.b16 %v5293, %v5289
        %v7110 = vpack.c.b16 %v5294, %v5290
        %v7111 = vpack.c.b16 %v5295, %v5291
        %v7112 = vpack.c.b16 %v5296, %v5292
        %v7113 = vpack.c.b16 %v5301, %v5297
        %v7114 = vpack.c.b16 %v5302, %v5298
        %v7115 = vpack.c.b16 %v5303, %v5299
        %v7116 = vpack.c.b16 %v5304, %v5300
        %v7117 = vpack.c.b16 %v5309, %v5305
        %v7118 = vpack.c.b16 %v5310, %v5306
        %v7119 = vpack.c.b16 %v5311, %v5307
        %v7120 = vpack.c.b16 %v5312, %v5308
        %v7121 = vpack.c.b16 %v5317, %v5313
        %v7122 = vpack.c.b16 %v5318, %v5314
        %v7123 = vpack.c.b16 %v5319, %v5315
        %v7124 = vpack.c.b16 %v5320, %v5316
        %v7125 = vpack.c.b16 %v5325, %v5321
        %v7126 = vpack.c.b16 %v5326, %v5322
        %v7127 = vpack.c.b16 %v5327, %v5323
        %v7128 = vpack.c.b16 %v5328, %v5324
        %v7129 = vpack.c.b16 %v5333, %v5329
        %v7130 = vpack.c.b16 %v5334, %v5330
        %v7131 = vpack.c.b16 %v5335, %v5331
        %v7132 = vpack.c.b16 %v5336, %v5332
        %v7133 = vpack.c.b16 %v5341, %v5337
        %v7134 = vpack.c.b16 %v5342, %v5338
        %v7135 = vpack.c.b16 %v5343, %v5339
        %v7136 = vpack.c.b16 %v5344, %v5340
        %v7137 = vpack.c.b16 %v5349, %v5345
        %v7138 = vpack.c.b16 %v5350, %v5346
        %v7139 = vpack.c.b16 %v5351, %v5347
        %v7140 = vpack.c.b16 %v5352, %v5348
        %v7141 = vpack.c.b16 %v5357, %v5353
        %v7142 = vpack.c.b16 %v5358, %v5354
        %v7143 = vpack.c.b16 %v5359, %v5355
        %v7144 = vpack.c.b16 %v5360, %v5356
        %v7145 = vpack.c.b16 %v5365, %v5361
        %v7146 = vpack.c.b16 %v5366, %v5362
        %v7147 = vpack.c.b16 %v5367, %v5363
        %v7148 = vpack.c.b16 %v5368, %v5364
        %v7149 = vpack.c.b16 %v5373, %v5369
        %v7150 = vpack.c.b16 %v5374, %v5370
        %v7151 = vpack.c.b16 %v5375, %v5371
        %v7152 = vpack.c.b16 %v5376, %v5372
        %v7153 = vpack.c.b16 %v5381, %v5377
        %v7154 = vpack.c.b16 %v5382, %v5378
        %v7155 = vpack.c.b16 %v5383, %v5379
        %v7156 = vpack.c.b16 %v5384, %v5380
        %v7157 = vpack.c.b16 %v5389, %v5385
        %v7158 = vpack.c.b16 %v5390, %v5386
        %v7159 = vpack.c.b16 %v5391, %v5387
        %v7160 = vpack.c.b16 %v5392, %v5388
        %v7161 = vpack.c.b16 %v5397, %v5393
        %v7162 = vpack.c.b16 %v5398, %v5394
        %v7163 = vpack.c.b16 %v5399, %v5395
        %v7164 = vpack.c.b16 %v5400, %v5396
        %v7165 = vpack.c.b16 %v5405, %v5401
        %v7166 = vpack.c.b16 %v5406, %v5402
        %v7167 = vpack.c.b16 %v5407, %v5403
        %v7168 = vpack.c.b16 %v5408, %v5404
        %v7169 = vpack.c.b16 %v5413, %v5409
        %v7170 = vpack.c.b16 %v5414, %v5410
        %v7171 = vpack.c.b16 %v5415, %v5411
        %v7172 = vpack.c.b16 %v5416, %v5412
        %v7173 = vpack.c.b16 %v5421, %v5417
        %v7174 = vpack.c.b16 %v5422, %v5418
        %v7175 = vpack.c.b16 %v5423, %v5419
        %v7176 = vpack.c.b16 %v5424, %v5420
        %v7177 = vpack.c.b16 %v5429, %v5425
        %v7178 = vpack.c.b16 %v5430, %v5426
        %v7179 = vpack.c.b16 %v5431, %v5427
        %v7180 = vpack.c.b16 %v5432, %v5428
        %v7181 = vpack.c.b16 %v5437, %v5433
        %v7182 = vpack.c.b16 %v5438, %v5434
        %v7183 = vpack.c.b16 %v5439, %v5435
        %v7184 = vpack.c.b16 %v5440, %v5436
        %v7185 = vpack.c.b16 %v5445, %v5441
        %v7186 = vpack.c.b16 %v5446, %v5442
        %v7187 = vpack.c.b16 %v5447, %v5443
        %v7188 = vpack.c.b16 %v5448, %v5444
        %v7189 = vpack.c.b16 %v5453, %v5449
        %v7190 = vpack.c.b16 %v5454, %v5450
        %v7191 = vpack.c.b16 %v5455, %v5451
        %v7192 = vpack.c.b16 %v5456, %v5452
        %v7193 = vpack.c.b16 %v5461, %v5457
        %v7194 = vpack.c.b16 %v5462, %v5458
        %v7195 = vpack.c.b16 %v5463, %v5459
        %v7196 = vpack.c.b16 %v5464, %v5460
        %v7197 = vpack.c.b16 %v5469, %v5465
        %v7198 = vpack.c.b16 %v5470, %v5466
        %v7199 = vpack.c.b16 %v5471, %v5467
        %v7200 = vpack.c.b16 %v5472, %v5468
        %v7201 = vpack.c.b16 %v5477, %v5473
        %v7202 = vpack.c.b16 %v5478, %v5474
        %v7203 = vpack.c.b16 %v5479, %v5475
        %v7204 = vpack.c.b16 %v5480, %v5476
        %v7205 = vpack.c.b16 %v5485, %v5481
        %v7206 = vpack.c.b16 %v5486, %v5482
        %v7207 = vpack.c.b16 %v5487, %v5483
        %v7208 = vpack.c.b16 %v5488, %v5484
        %v7209 = vpack.c.b16 %v5493, %v5489
        %v7210 = vpack.c.b16 %v5494, %v5490
        %v7211 = vpack.c.b16 %v5495, %v5491
        %v7212 = vpack.c.b16 %v5496, %v5492
        %v7213 = vpack.c.b16 %v5501, %v5497
        %v7214 = vpack.c.b16 %v5502, %v5498
        %v7215 = vpack.c.b16 %v5503, %v5499
        %v7216 = vpack.c.b16 %v5504, %v5500
        %v7217 = vpack.c.b16 %v5509, %v5505
        %v7218 = vpack.c.b16 %v5510, %v5506
        %v7219 = vpack.c.b16 %v5511, %v5507
        %v7220 = vpack.c.b16 %v5512, %v5508
        %v7221 = vpack.c.b16 %v5517, %v5513
        %v7222 = vpack.c.b16 %v5518, %v5514
        %v7223 = vpack.c.b16 %v5519, %v5515
        %v7224 = vpack.c.b16 %v5520, %v5516
        %v7225 = vpack.c.b16 %v5525, %v5521
        %v7226 = vpack.c.b16 %v5526, %v5522
        %v7227 = vpack.c.b16 %v5527, %v5523
        %v7228 = vpack.c.b16 %v5528, %v5524
        %v7229 = vpack.c.b16 %v5533, %v5529
        %v7230 = vpack.c.b16 %v5534, %v5530
        %v7231 = vpack.c.b16 %v5535, %v5531
        %v7232 = vpack.c.b16 %v5536, %v5532
        %v7233 = vpack.c.b16 %v5541, %v5537
        %v7234 = vpack.c.b16 %v5542, %v5538
        %v7235 = vpack.c.b16 %v5543, %v5539
        %v7236 = vpack.c.b16 %v5544, %v5540
        %v7237 = vpack.c.b16 %v5549, %v5545
        %v7238 = vpack.c.b16 %v5550, %v5546
        %v7239 = vpack.c.b16 %v5551, %v5547
        %v7240 = vpack.c.b16 %v5552, %v5548
        %v7241 = vpack.c.b16 %v5557, %v5553
        %v7242 = vpack.c.b16 %v5558, %v5554
        %v7243 = vpack.c.b16 %v5559, %v5555
        %v7244 = vpack.c.b16 %v5560, %v5556
        %v7245 = vpack.c.b16 %v5565, %v5561
        %v7246 = vpack.c.b16 %v5566, %v5562
        %v7247 = vpack.c.b16 %v5567, %v5563
        %v7248 = vpack.c.b16 %v5568, %v5564
        %v7249 = vpack.c.b16 %v5573, %v5569
        %v7250 = vpack.c.b16 %v5574, %v5570
        %v7251 = vpack.c.b16 %v5575, %v5571
        %v7252 = vpack.c.b16 %v5576, %v5572
        %v7253 = vpack.c.b16 %v5581, %v5577
        %v7254 = vpack.c.b16 %v5582, %v5578
        %v7255 = vpack.c.b16 %v5583, %v5579
        %v7256 = vpack.c.b16 %v5584, %v5580
        %v7257 = vpack.c.b16 %v5589, %v5585
        %v7258 = vpack.c.b16 %v5590, %v5586
        %v7259 = vpack.c.b16 %v5591, %v5587
        %v7260 = vpack.c.b16 %v5592, %v5588
        %v7261 = vpack.c.b16 %v5597, %v5593
        %v7262 = vpack.c.b16 %v5598, %v5594
        %v7263 = vpack.c.b16 %v5599, %v5595
        %v7264 = vpack.c.b16 %v5600, %v5596
        %v7265 = vpack.c.b16 %v5605, %v5601
        %v7266 = vpack.c.b16 %v5606, %v5602
        %v7267 = vpack.c.b16 %v5607, %v5603
        %v7268 = vpack.c.b16 %v5608, %v5604
        %v7269 = vpack.c.b16 %v5613, %v5609
        %v7270 = vpack.c.b16 %v5614, %v5610
        %v7271 = vpack.c.b16 %v5615, %v5611
        %v7272 = vpack.c.b16 %v5616, %v5612
        %v7273 = vpack.c.b16 %v5621, %v5617
        %v7274 = vpack.c.b16 %v5622, %v5618
        %v7275 = vpack.c.b16 %v5623, %v5619
        %v7276 = vpack.c.b16 %v5624, %v5620
        %v7277 = vpack.c.b16 %v5629, %v5625
        %v7278 = vpack.c.b16 %v5630, %v5626
        %v7279 = vpack.c.b16 %v5631, %v5627
        %v7280 = vpack.c.b16 %v5632, %v5628
        %v7281 = vpack.c.b16 %v5637, %v5633
        %v7282 = vpack.c.b16 %v5638, %v5634
        %v7283 = vpack.c.b16 %v5639, %v5635
        %v7284 = vpack.c.b16 %v5640, %v5636
        %v7285 = vpack.c.b16 %v5645, %v5641
        %v7286 = vpack.c.b16 %v5646, %v5642
        %v7287 = vpack.c.b16 %v5647, %v5643
        %v7288 = vpack.c.b16 %v5648, %v5644
        %v7289 = vpack.c.b16 %v5653, %v5649
        %v7290 = vpack.c.b16 %v5654, %v5650
        %v7291 = vpack.c.b16 %v5655, %v5651
        %v7292 = vpack.c.b16 %v5656, %v5652
        %v7293 = vpack.c.b16 %v5661, %v5657
        %v7294 = vpack.c.b16 %v5662, %v5658
        %v7295 = vpack.c.b16 %v5663, %v5659
        %v7296 = vpack.c.b16 %v5664, %v5660
        %v7297 = vpack.c.b16 %v5669, %v5665
        %v7298 = vpack.c.b16 %v5670, %v5666
        %v7299 = vpack.c.b16 %v5671, %v5667
        %v7300 = vpack.c.b16 %v5672, %v5668
        %v7301 = vpack.c.b16 %v5677, %v5673
        %v7302 = vpack.c.b16 %v5678, %v5674
        %v7303 = vpack.c.b16 %v5679, %v5675
        %v7304 = vpack.c.b16 %v5680, %v5676
        %v7305 = vpack.c.b16 %v5685, %v5681
        %v7306 = vpack.c.b16 %v5686, %v5682
        %v7307 = vpack.c.b16 %v5687, %v5683
        %v7308 = vpack.c.b16 %v5688, %v5684
        %v7309 = vpack.c.b16 %v5693, %v5689
        %v7310 = vpack.c.b16 %v5694, %v5690
        %v7311 = vpack.c.b16 %v5695, %v5691
        %v7312 = vpack.c.b16 %v5696, %v5692
        %v7313 = vpack.c.b16 %v5701, %v5697
        %v7314 = vpack.c.b16 %v5702, %v5698
        %v7315 = vpack.c.b16 %v5703, %v5699
        %v7316 = vpack.c.b16 %v5704, %v5700
        %v7317 = vpack.c.b16 %v5709, %v5705
        %v7318 = vpack.c.b16 %v5710, %v5706
        %v7319 = vpack.c.b16 %v5711, %v5707
        %v7320 = vpack.c.b16 %v5712, %v5708
        %v7321 = vpack.c.b16 %v5717, %v5713
        %v7322 = vpack.c.b16 %v5718, %v5714
        %v7323 = vpack.c.b16 %v5719, %v5715
        %v7324 = vpack.c.b16 %v5720, %v5716
        %v7325 = vpack.c.b16 %v5725, %v5721
        %v7326 = vpack.c.b16 %v5726, %v5722
        %v7327 = vpack.c.b16 %v5727, %v5723
        %v7328 = vpack.c.b16 %v5728, %v5724
        %v7329 = vpack.c.b16 %v5733, %v5729
        %v7330 = vpack.c.b16 %v5734, %v5730
        %v7331 = vpack.c.b16 %v5735, %v5731
        %v7332 = vpack.c.b16 %v5736, %v5732
        %v7333 = vpack.c.b16 %v5741, %v5737
        %v7334 = vpack.c.b16 %v5742, %v5738
        %v7335 = vpack.c.b16 %v5743, %v5739
        %v7336 = vpack.c.b16 %v5744, %v5740
        %v7337 = vpack.c.b16 %v5749, %v5745
        %v7338 = vpack.c.b16 %v5750, %v5746
        %v7339 = vpack.c.b16 %v5751, %v5747
        %v7340 = vpack.c.b16 %v5752, %v5748
        %v7341 = vpack.c.b16 %v5757, %v5753
        %v7342 = vpack.c.b16 %v5758, %v5754
        %v7343 = vpack.c.b16 %v5759, %v5755
        %v7344 = vpack.c.b16 %v5760, %v5756
        %v7345 = vpack.c.b16 %v5765, %v5761
        %v7346 = vpack.c.b16 %v5766, %v5762
        %v7347 = vpack.c.b16 %v5767, %v5763
        %v7348 = vpack.c.b16 %v5768, %v5764
        %v7349 = vpack.c.b16 %v5773, %v5769
        %v7350 = vpack.c.b16 %v5774, %v5770
        %v7351 = vpack.c.b16 %v5775, %v5771
        %v7352 = vpack.c.b16 %v5776, %v5772
        %v7353 = vpack.c.b16 %v5781, %v5777
        %v7354 = vpack.c.b16 %v5782, %v5778
        %v7355 = vpack.c.b16 %v5783, %v5779
        %v7356 = vpack.c.b16 %v5784, %v5780
        %v7357 = vpack.c.b16 %v5789, %v5785
        %v7358 = vpack.c.b16 %v5790, %v5786
        %v7359 = vpack.c.b16 %v5791, %v5787
        %v7360 = vpack.c.b16 %v5792, %v5788
        %v7361 = vpack.c.b16 %v5797, %v5793
        %v7362 = vpack.c.b16 %v5798, %v5794
        %v7363 = vpack.c.b16 %v5799, %v5795
        %v7364 = vpack.c.b16 %v5800, %v5796
        %v7365 = vpack.c.b16 %v5805, %v5801
        %v7366 = vpack.c.b16 %v5806, %v5802
        %v7367 = vpack.c.b16 %v5807, %v5803
        %v7368 = vpack.c.b16 %v5808, %v5804
        %v7369 = vpack.c.b16 %v5813, %v5809
        %v7370 = vpack.c.b16 %v5814, %v5810
        %v7371 = vpack.c.b16 %v5815, %v5811
        %v7372 = vpack.c.b16 %v5816, %v5812
        %v7373 = vpack.c.b16 %v5821, %v5817
        %v7374 = vpack.c.b16 %v5822, %v5818
        %v7375 = vpack.c.b16 %v5823, %v5819
        %v7376 = vpack.c.b16 %v5824, %v5820
        %v7377 = vpack.c.b16 %v5829, %v5825
        %v7378 = vpack.c.b16 %v5830, %v5826
        %v7379 = vpack.c.b16 %v5831, %v5827
        %v7380 = vpack.c.b16 %v5832, %v5828
        %v7381 = vpack.c.b16 %v5837, %v5833
        %v7382 = vpack.c.b16 %v5838, %v5834
        %v7383 = vpack.c.b16 %v5839, %v5835
        %v7384 = vpack.c.b16 %v5840, %v5836
        %v7385 = vpack.c.b16 %v5845, %v5841
        %v7386 = vpack.c.b16 %v5846, %v5842
        %v7387 = vpack.c.b16 %v5847, %v5843
        %v7388 = vpack.c.b16 %v5848, %v5844
        %v7389 = vpack.c.b16 %v5853, %v5849
        %v7390 = vpack.c.b16 %v5854, %v5850
        %v7391 = vpack.c.b16 %v5855, %v5851
        %v7392 = vpack.c.b16 %v5856, %v5852
        %v7393 = vpack.c.b16 %v5861, %v5857
        %v7394 = vpack.c.b16 %v5862, %v5858
        %v7395 = vpack.c.b16 %v5863, %v5859
        %v7396 = vpack.c.b16 %v5864, %v5860
        %v7397 = vpack.c.b16 %v5869, %v5865
        %v7398 = vpack.c.b16 %v5870, %v5866
        %v7399 = vpack.c.b16 %v5871, %v5867
        %v7400 = vpack.c.b16 %v5872, %v5868
        %v7401 = vpack.c.b16 %v5877, %v5873
        %v7402 = vpack.c.b16 %v5878, %v5874
        %v7403 = vpack.c.b16 %v5879, %v5875
        %v7404 = vpack.c.b16 %v5880, %v5876
        %v7405 = vpack.c.b16 %v5885, %v5881
        %v7406 = vpack.c.b16 %v5886, %v5882
        %v7407 = vpack.c.b16 %v5887, %v5883
        %v7408 = vpack.c.b16 %v5888, %v5884
        %v7409 = vpack.c.b16 %v5893, %v5889
        %v7410 = vpack.c.b16 %v5894, %v5890
        %v7411 = vpack.c.b16 %v5895, %v5891
        %v7412 = vpack.c.b16 %v5896, %v5892
        %v7413 = vpack.c.b16 %v5901, %v5897
        %v7414 = vpack.c.b16 %v5902, %v5898
        %v7415 = vpack.c.b16 %v5903, %v5899
        %v7416 = vpack.c.b16 %v5904, %v5900
        %v7417 = vpack.c.b16 %v5909, %v5905
        %v7418 = vpack.c.b16 %v5910, %v5906
        %v7419 = vpack.c.b16 %v5911, %v5907
        %v7420 = vpack.c.b16 %v5912, %v5908
        %v7421 = vpack.c.b16 %v5917, %v5913
        %v7422 = vpack.c.b16 %v5918, %v5914
        %v7423 = vpack.c.b16 %v5919, %v5915
        %v7424 = vpack.c.b16 %v5920, %v5916
        %v7425 = vpack.c.b16 %v5925, %v5921
        %v7426 = vpack.c.b16 %v5926, %v5922
        %v7427 = vpack.c.b16 %v5927, %v5923
        %v7428 = vpack.c.b16 %v5928, %v5924
        %v7429 = vpack.c.b16 %v5933, %v5929
        %v7430 = vpack.c.b16 %v5934, %v5930
        %v7431 = vpack.c.b16 %v5935, %v5931
        %v7432 = vpack.c.b16 %v5936, %v5932
        %v7433 = vpack.c.b16 %v5941, %v5937
        %v7434 = vpack.c.b16 %v5942, %v5938
        %v7435 = vpack.c.b16 %v5943, %v5939
        %v7436 = vpack.c.b16 %v5944, %v5940
        %v7437 = vpack.c.b16 %v5949, %v5945
        %v7438 = vpack.c.b16 %v5950, %v5946
        %v7439 = vpack.c.b16 %v5951, %v5947
        %v7440 = vpack.c.b16 %v5952, %v5948
        %v7441 = vpack.c.b16 %v5957, %v5953
        %v7442 = vpack.c.b16 %v5958, %v5954
        %v7443 = vpack.c.b16 %v5959, %v5955
        %v7444 = vpack.c.b16 %v5960, %v5956
        %v7445 = vpack.c.b16 %v5965, %v5961
        %v7446 = vpack.c.b16 %v5966, %v5962
        %v7447 = vpack.c.b16 %v5967, %v5963
        %v7448 = vpack.c.b16 %v5968, %v5964
        %v7449 = vpack.c.b16 %v5973, %v5969
        %v7450 = vpack.c.b16 %v5974, %v5970
        %v7451 = vpack.c.b16 %v5975, %v5971
        %v7452 = vpack.c.b16 %v5976, %v5972
        %v7453 = vpack.c.b16 %v5981, %v5977
        %v7454 = vpack.c.b16 %v5982, %v5978
        %v7455 = vpack.c.b16 %v5983, %v5979
        %v7456 = vpack.c.b16 %v5984, %v5980
        %v7457 = vpack.c.b16 %v5989, %v5985
        %v7458 = vpack.c.b16 %v5990, %v5986
        %v7459 = vpack.c.b16 %v5991, %v5987
        %v7460 = vpack.c.b16 %v5992, %v5988
        %v7461 = vpack.c.b16 %v5997, %v5993
        %v7462 = vpack.c.b16 %v5998, %v5994
        %v7463 = vpack.c.b16 %v5999, %v5995
        %v7464 = vpack.c.b16 %v6000, %v5996
        %v7465 = vpack.c.b16 %v6005, %v6001
        %v7466 = vpack.c.b16 %v6006, %v6002
        %v7467 = vpack.c.b16 %v6007, %v6003
        %v7468 = vpack.c.b16 %v6008, %v6004
        %v7469 = vpack.c.b16 %v6013, %v6009
        %v7470 = vpack.c.b16 %v6014, %v6010
        %v7471 = vpack.c.b16 %v6015, %v6011
        %v7472 = vpack.c.b16 %v6016, %v6012
        %v7473 = vpack.c.b16 %v6021, %v6017
        %v7474 = vpack.c.b16 %v6022, %v6018
        %v7475 = vpack.c.b16 %v6023, %v6019
        %v7476 = vpack.c.b16 %v6024, %v6020
        %v7477 = vpack.c.b16 %v6029, %v6025
        %v7478 = vpack.c.b16 %v6030, %v6026
        %v7479 = vpack.c.b16 %v6031, %v6027
        %v7480 = vpack.c.b16 %v6032, %v6028
        %v7481 = vpack.c.b16 %v6037, %v6033
        %v7482 = vpack.c.b16 %v6038, %v6034
        %v7483 = vpack.c.b16 %v6039, %v6035
        %v7484 = vpack.c.b16 %v6040, %v6036
        %v7485 = vpack.c.b16 %v6045, %v6041
        %v7486 = vpack.c.b16 %v6046, %v6042
        %v7487 = vpack.c.b16 %v6047, %v6043
        %v7488 = vpack.c.b16 %v6048, %v6044
        %v7489 = vpack.c.b16 %v6053, %v6049
        %v7490 = vpack.c.b16 %v6054, %v6050
        %v7491 = vpack.c.b16 %v6055, %v6051
        %v7492 = vpack.c.b16 %v6056, %v6052
        %v7493 = vpack.c.b16 %v6061, %v6057
        %v7494 = vpack.c.b16 %v6062, %v6058
        %v7495 = vpack.c.b16 %v6063, %v6059
        %v7496 = vpack.c.b16 %v6064, %v6060
        %v7497 = vpack.c.b16 %v6069, %v6065
        %v7498 = vpack.c.b16 %v6070, %v6066
        %v7499 = vpack.c.b16 %v6071, %v6067
        %v7500 = vpack.c.b16 %v6072, %v6068
        %v7501 = vpack.c.b16 %v6077, %v6073
        %v7502 = vpack.c.b16 %v6078, %v6074
        %v7503 = vpack.c.b16 %v6079, %v6075
        %v7504 = vpack.c.b16 %v6080, %v6076
        %v7505 = vpack.c.b16 %v6085, %v6081
        %v7506 = vpack.c.b16 %v6086, %v6082
        %v7507 = vpack.c.b16 %v6087, %v6083
        %v7508 = vpack.c.b16 %v6088, %v6084
        %v7509 = vpack.c.b16 %v6093, %v6089
        %v7510 = vpack.c.b16 %v6094, %v6090
        %v7511 = vpack.c.b16 %v6095, %v6091
        %v7512 = vpack.c.b16 %v6096, %v6092
        %v7513 = vpack.c.b16 %v6101, %v6097
        %v7514 = vpack.c.b16 %v6102, %v6098
        %v7515 = vpack.c.b16 %v6103, %v6099
        %v7516 = vpack.c.b16 %v6104, %v6100
        %v7517 = vpack.c.b16 %v6109, %v6105
        %v7518 = vpack.c.b16 %v6110, %v6106
        %v7519 = vpack.c.b16 %v6111, %v6107
        %v7520 = vpack.c.b16 %v6112, %v6108
        %v7521 = vpack.c.b16 %v6117, %v6113
        %v7522 = vpack.c.b16 %v6118, %v6114
        %v7523 = vpack.c.b16 %v6119, %v6115
        %v7524 = vpack.c.b16 %v6120, %v6116
        %v7525 = vpack.c.b16 %v6125, %v6121
        %v7526 = vpack.c.b16 %v6126, %v6122
        %v7527 = vpack.c.b16 %v6127, %v6123
        %v7528 = vpack.c.b16 %v6128, %v6124
        %v7529 = vpack.c.b16 %v6133, %v6129
        %v7530 = vpack.c.b16 %v6134, %v6130
        %v7531 = vpack.c.b16 %v6135, %v6131
        %v7532 = vpack.c.b16 %v6136, %v6132
        %v7533 = vpack.c.b16 %v6141, %v6137
        %v7534 = vpack.c.b16 %v6142, %v6138
        %v7535 = vpack.c.b16 %v6143, %v6139
        %v7536 = vpack.c.b16 %v6144, %v6140
        %v7537 = vpack.c.b16 %v6149, %v6145
        %v7538 = vpack.c.b16 %v6150, %v6146
        %v7539 = vpack.c.b16 %v6151, %v6147
        %v7540 = vpack.c.b16 %v6152, %v6148
        %v7541 = vpack.c.b16 %v6157, %v6153
        %v7542 = vpack.c.b16 %v6158, %v6154
        %v7543 = vpack.c.b16 %v6159, %v6155
        %v7544 = vpack.c.b16 %v6160, %v6156
        %v7545 = vpack.c.b16 %v6165, %v6161
        %v7546 = vpack.c.b16 %v6166, %v6162
        %v7547 = vpack.c.b16 %v6167, %v6163
        %v7548 = vpack.c.b16 %v6168, %v6164
        %v7549 = vpack.c.b16 %v6173, %v6169
        %v7550 = vpack.c.b16 %v6174, %v6170
        %v7551 = vpack.c.b16 %v6175, %v6171
        %v7552 = vpack.c.b16 %v6176, %v6172
        %v7553 = vpack.c.b16 %v6181, %v6177
        %v7554 = vpack.c.b16 %v6182, %v6178
        %v7555 = vpack.c.b16 %v6183, %v6179
        %v7556 = vpack.c.b16 %v6184, %v6180
        %v7557 = vpack.c.b16 %v6189, %v6185
        %v7558 = vpack.c.b16 %v6190, %v6186
        %v7559 = vpack.c.b16 %v6191, %v6187
        %v7560 = vpack.c.b16 %v6192, %v6188
        %v7561 = vpack.c.b16 %v6197, %v6193
        %v7562 = vpack.c.b16 %v6198, %v6194
        %v7563 = vpack.c.b16 %v6199, %v6195
        %v7564 = vpack.c.b16 %v6200, %v6196
        %v7565 = vpack.c.b16 %v6205, %v6201
        %v7566 = vpack.c.b16 %v6206, %v6202
        %v7567 = vpack.c.b16 %v6207, %v6203
        %v7568 = vpack.c.b16 %v6208, %v6204
        %v7569 = vpack.c.b16 %v6213, %v6209
        %v7570 = vpack.c.b16 %v6214, %v6210
        %v7571 = vpack.c.b16 %v6215, %v6211
        %v7572 = vpack.c.b16 %v6216, %v6212
        %v7573 = vpack.c.b16 %v6221, %v6217
        %v7574 = vpack.c.b16 %v6222, %v6218
        %v7575 = vpack.c.b16 %v6223, %v6219
        %v7576 = vpack.c.b16 %v6224, %v6220
        %v7577 = vpack.c.b16 %v6229, %v6225
        %v7578 = vpack.c.b16 %v6230, %v6226
        %v7579 = vpack.c.b16 %v6231, %v6227
        %v7580 = vpack.c.b16 %v6232, %v6228
        %v7581 = vpack.c.b16 %v6237, %v6233
        %v7582 = vpack.c.b16 %v6238, %v6234
        %v7583 = vpack.c.b16 %v6239, %v6235
        %v7584 = vpack.c.b16 %v6240, %v6236
        %v7585 = vpack.c.b16 %v6245, %v6241
        %v7586 = vpack.c.b16 %v6246, %v6242
        %v7587 = vpack.c.b16 %v6247, %v6243
        %v7588 = vpack.c.b16 %v6248, %v6244
        %v7589 = vpack.c.b16 %v6253, %v6249
        %v7590 = vpack.c.b16 %v6254, %v6250
        %v7591 = vpack.c.b16 %v6255, %v6251
        %v7592 = vpack.c.b16 %v6256, %v6252
        %v7593 = vpack.c.b16 %v6261, %v6257
        %v7594 = vpack.c.b16 %v6262, %v6258
        %v7595 = vpack.c.b16 %v6263, %v6259
        %v7596 = vpack.c.b16 %v6264, %v6260
        %v7597 = vpack.c.b16 %v6269, %v6265
        %v7598 = vpack.c.b16 %v6270, %v6266
        %v7599 = vpack.c.b16 %v6271, %v6267
        %v7600 = vpack.c.b16 %v6272, %v6268
        %v7601 = vpack.c.b16 %v6277, %v6273
        %v7602 = vpack.c.b16 %v6278, %v6274
        %v7603 = vpack.c.b16 %v6279, %v6275
        %v7604 = vpack.c.b16 %v6280, %v6276
        %v7605 = vpack.c.b16 %v6285, %v6281
        %v7606 = vpack.c.b16 %v6286, %v6282
        %v7607 = vpack.c.b16 %v6287, %v6283
        %v7608 = vpack.c.b16 %v6288, %v6284
        %v7609 = vpack.c.b16 %v6293, %v6289
        %v7610 = vpack.c.b16 %v6294, %v6290
        %v7611 = vpack.c.b16 %v6295, %v6291
        %v7612 = vpack.c.b16 %v6296, %v6292
        %v7613 = vpack.c.b16 %v6301, %v6297
        %v7614 = vpack.c.b16 %v6302, %v6298
        %v7615 = vpack.c.b16 %v6303, %v6299
        %v7616 = vpack.c.b16 %v6304, %v6300
        %v7617 = vpack.c.b16 %v6309, %v6305
        %v7618 = vpack.c.b16 %v6310, %v6306
        %v7619 = vpack.c.b16 %v6311, %v6307
        %v7620 = vpack.c.b16 %v6312, %v6308
        %v7621 = vpack.c.b16 %v6317, %v6313
        %v7622 = vpack.c.b16 %v6318, %v6314
        %v7623 = vpack.c.b16 %v6319, %v6315
        %v7624 = vpack.c.b16 %v6320, %v6316
        %v7625 = vpack.c.b16 %v6325, %v6321
        %v7626 = vpack.c.b16 %v6326, %v6322
        %v7627 = vpack.c.b16 %v6327, %v6323
        %v7628 = vpack.c.b16 %v6328, %v6324
        %v7629 = vpack.c.b16 %v6333, %v6329
        %v7630 = vpack.c.b16 %v6334, %v6330
        %v7631 = vpack.c.b16 %v6335, %v6331
        %v7632 = vpack.c.b16 %v6336, %v6332
        %v7633 = vpack.c.b16 %v6341, %v6337
        %v7634 = vpack.c.b16 %v6342, %v6338
        %v7635 = vpack.c.b16 %v6343, %v6339
        %v7636 = vpack.c.b16 %v6344, %v6340
        %v7637 = vpack.c.b16 %v6349, %v6345
        %v7638 = vpack.c.b16 %v6350, %v6346
        %v7639 = vpack.c.b16 %v6351, %v6347
        %v7640 = vpack.c.b16 %v6352, %v6348
        %v7641 = vpack.c.b16 %v6357, %v6353
        %v7642 = vpack.c.b16 %v6358, %v6354
        %v7643 = vpack.c.b16 %v6359, %v6355
        %v7644 = vpack.c.b16 %v6360, %v6356
        %v7645 = vpack.c.b16 %v6365, %v6361
        %v7646 = vpack.c.b16 %v6366, %v6362
        %v7647 = vpack.c.b16 %v6367, %v6363
        %v7648 = vpack.c.b16 %v6368, %v6364
        %v7649 = vpack.c.b16 %v6373, %v6369
        %v7650 = vpack.c.b16 %v6374, %v6370
        %v7651 = vpack.c.b16 %v6375, %v6371
        %v7652 = vpack.c.b16 %v6376, %v6372
        %v7653 = vpack.c.b16 %v6381, %v6377
        %v7654 = vpack.c.b16 %v6382, %v6378
        %v7655 = vpack.c.b16 %v6383, %v6379
        %v7656 = vpack.c.b16 %v6384, %v6380
        %v7657 = vpack.c.b16 %v6389, %v6385
        %v7658 = vpack.c.b16 %v6390, %v6386
        %v7659 = vpack.c.b16 %v6391, %v6387
        %v7660 = vpack.c.b16 %v6392, %v6388
        %v7661 = vpack.c.b16 %v6397, %v6393
        %v7662 = vpack.c.b16 %v6398, %v6394
        %v7663 = vpack.c.b16 %v6399, %v6395
        %v7664 = vpack.c.b16 %v6400, %v6396
        %v7665 = vpack.c.b16 %v6405, %v6401
        %v7666 = vpack.c.b16 %v6406, %v6402
        %v7667 = vpack.c.b16 %v6407, %v6403
        %v7668 = vpack.c.b16 %v6408, %v6404
        %v7669 = vpack.c.b16 %v6413, %v6409
        %v7670 = vpack.c.b16 %v6414, %v6410
        %v7671 = vpack.c.b16 %v6415, %v6411
        %v7672 = vpack.c.b16 %v6416, %v6412
        %v7673 = vpack.c.b16 %v6421, %v6417
        %v7674 = vpack.c.b16 %v6422, %v6418
        %v7675 = vpack.c.b16 %v6423, %v6419
        %v7676 = vpack.c.b16 %v6424, %v6420
        %v7677 = vpack.c.b16 %v6429, %v6425
        %v7678 = vpack.c.b16 %v6430, %v6426
        %v7679 = vpack.c.b16 %v6431, %v6427
        %v7680 = vpack.c.b16 %v6432, %v6428
        %v7681 = vpack.c.b16 %v6437, %v6433
        %v7682 = vpack.c.b16 %v6438, %v6434
        %v7683 = vpack.c.b16 %v6439, %v6435
        %v7684 = vpack.c.b16 %v6440, %v6436
        %v7685 = vpack.c.b16 %v6445, %v6441
        %v7686 = vpack.c.b16 %v6446, %v6442
        %v7687 = vpack.c.b16 %v6447, %v6443
        %v7688 = vpack.c.b16 %v6448, %v6444
        %v7689 = vpack.c.b16 %v6453, %v6449
        %v7690 = vpack.c.b16 %v6454, %v6450
        %v7691 = vpack.c.b16 %v6455, %v6451
        %v7692 = vpack.c.b16 %v6456, %v6452
        %v7693 = vpack.c.b16 %v6461, %v6457
        %v7694 = vpack.c.b16 %v6462, %v6458
        %v7695 = vpack.c.b16 %v6463, %v6459
        %v7696 = vpack.c.b16 %v6464, %v6460
        %v7697 = vpack.c.b16 %v6469, %v6465
        %v7698 = vpack.c.b16 %v6470, %v6466
        %v7699 = vpack.c.b16 %v6471, %v6467
        %v7700 = vpack.c.b16 %v6472, %v6468
        %v7701 = vpack.c.b16 %v6477, %v6473
        %v7702 = vpack.c.b16 %v6478, %v6474
        %v7703 = vpack.c.b16 %v6479, %v6475
        %v7704 = vpack.c.b16 %v6480, %v6476
        %v7705 = vpack.c.b16 %v6485, %v6481
        %v7706 = vpack.c.b16 %v6486, %v6482
        %v7707 = vpack.c.b16 %v6487, %v6483
        %v7708 = vpack.c.b16 %v6488, %v6484
        %v7709 = vpack.c.b16 %v6493, %v6489
        %v7710 = vpack.c.b16 %v6494, %v6490
        %v7711 = vpack.c.b16 %v6495, %v6491
        %v7712 = vpack.c.b16 %v6496, %v6492
        %v7713 = vpack.c.b16 %v6501, %v6497
        %v7714 = vpack.c.b16 %v6502, %v6498
        %v7715 = vpack.c.b16 %v6503, %v6499
        %v7716 = vpack.c.b16 %v6504, %v6500
        %v7717 = vpack.c.b16 %v6509, %v6505
        %v7718 = vpack.c.b16 %v6510, %v6506
        %v7719 = vpack.c.b16 %v6511, %v6507
        %v7720 = vpack.c.b16 %v6512, %v6508
        %v7721 = vpack.c.b16 %v6517, %v6513
        %v7722 = vpack.c.b16 %v6518, %v6514
        %v7723 = vpack.c.b16 %v6519, %v6515
        %v7724 = vpack.c.b16 %v6520, %v6516
        %v7725 = vpack.c.b16 %v6525, %v6521
        %v7726 = vpack.c.b16 %v6526, %v6522
        %v7727 = vpack.c.b16 %v6527, %v6523
        %v7728 = vpack.c.b16 %v6528, %v6524
        %v7729 = vpack.c.b16 %v6533, %v6529
        %v7730 = vpack.c.b16 %v6534, %v6530
        %v7731 = vpack.c.b16 %v6535, %v6531
        %v7732 = vpack.c.b16 %v6536, %v6532
        %v7733 = vpack.c.b16 %v6541, %v6537
        %v7734 = vpack.c.b16 %v6542, %v6538
        %v7735 = vpack.c.b16 %v6543, %v6539
        %v7736 = vpack.c.b16 %v6544, %v6540
        %v7737 = vpack.c.b16 %v6549, %v6545
        %v7738 = vpack.c.b16 %v6550, %v6546
        %v7739 = vpack.c.b16 %v6551, %v6547
        %v7740 = vpack.c.b16 %v6552, %v6548
        %v7741 = vpack.c.b16 %v6557, %v6553
        %v7742 = vpack.c.b16 %v6558, %v6554
        %v7743 = vpack.c.b16 %v6559, %v6555
        %v7744 = vpack.c.b16 %v6560, %v6556
        %v7745 = vpack.c.b16 %v6565, %v6561
        %v7746 = vpack.c.b16 %v6566, %v6562
        %v7747 = vpack.c.b16 %v6567, %v6563
        %v7748 = vpack.c.b16 %v6568, %v6564
        %v7749 = vpack.c.b16 %v6573, %v6569
        %v7750 = vpack.c.b16 %v6574, %v6570
        %v7751 = vpack.c.b16 %v6575, %v6571
        %v7752 = vpack.c.b16 %v6576, %v6572
        %v7753 = vpack.c.b16 %v6581, %v6577
        %v7754 = vpack.c.b16 %v6582, %v6578
        %v7755 = vpack.c.b16 %v6583, %v6579
        %v7756 = vpack.c.b16 %v6584, %v6580
        %v7757 = vpack.c.b16 %v6589, %v6585
        %v7758 = vpack.c.b16 %v6590, %v6586
        %v7759 = vpack.c.b16 %v6591, %v6587
        %v7760 = vpack.c.b16 %v6592, %v6588
        %v7761 = vpack.c.b16 %v6597, %v6593
        %v7762 = vpack.c.b16 %v6598, %v6594
        %v7763 = vpack.c.b16 %v6599, %v6595
        %v7764 = vpack.c.b16 %v6600, %v6596
        %v7765 = vpack.c.b16 %v6605, %v6601
        %v7766 = vpack.c.b16 %v6606, %v6602
        %v7767 = vpack.c.b16 %v6607, %v6603
        %v7768 = vpack.c.b16 %v6608, %v6604
        %v7769 = vpack.c.b16 %v6613, %v6609
        %v7770 = vpack.c.b16 %v6614, %v6610
        %v7771 = vpack.c.b16 %v6615, %v6611
        %v7772 = vpack.c.b16 %v6616, %v6612
        %v7773 = vpack.c.b16 %v6621, %v6617
        %v7774 = vpack.c.b16 %v6622, %v6618
        %v7775 = vpack.c.b16 %v6623, %v6619
        %v7776 = vpack.c.b16 %v6624, %v6620
        %v7777 = vpack.c.b16 %v6629, %v6625
        %v7778 = vpack.c.b16 %v6630, %v6626
        %v7779 = vpack.c.b16 %v6631, %v6627
        %v7780 = vpack.c.b16 %v6632, %v6628
        %v7781 = vpack.c.b16 %v6637, %v6633
        %v7782 = vpack.c.b16 %v6638, %v6634
        %v7783 = vpack.c.b16 %v6639, %v6635
        %v7784 = vpack.c.b16 %v6640, %v6636
        %v7785 = vpack.c.b16 %v6645, %v6641
        %v7786 = vpack.c.b16 %v6646, %v6642
        %v7787 = vpack.c.b16 %v6647, %v6643
        %v7788 = vpack.c.b16 %v6648, %v6644
        %v7789 = vpack.c.b16 %v6653, %v6649
        %v7790 = vpack.c.b16 %v6654, %v6650
        %v7791 = vpack.c.b16 %v6655, %v6651
        %v7792 = vpack.c.b16 %v6656, %v6652
        %v7793 = vpack.c.b16 %v6661, %v6657
        %v7794 = vpack.c.b16 %v6662, %v6658
        %v7795 = vpack.c.b16 %v6663, %v6659
        %v7796 = vpack.c.b16 %v6664, %v6660
        %v7797 = vpack.c.b16 %v6669, %v6665
        %v7798 = vpack.c.b16 %v6670, %v6666
        %v7799 = vpack.c.b16 %v6671, %v6667
        %v7800 = vpack.c.b16 %v6672, %v6668
        %v7801 = vpack.c.b16 %v6677, %v6673
        %v7802 = vpack.c.b16 %v6678, %v6674
        %v7803 = vpack.c.b16 %v6679, %v6675
        %v7804 = vpack.c.b16 %v6680, %v6676
        %v7805 = vpack.c.b16 %v6685, %v6681
        %v7806 = vpack.c.b16 %v6686, %v6682
        %v7807 = vpack.c.b16 %v6687, %v6683
        %v7808 = vpack.c.b16 %v6688, %v6684
        %v7809 = vpack.c.b16 %v6693, %v6689
        %v7810 = vpack.c.b16 %v6694, %v6690
        %v7811 = vpack.c.b16 %v6695, %v6691
        %v7812 = vpack.c.b16 %v6696, %v6692
        %v7813 = vpack.c.b16 %v6701, %v6697
        %v7814 = vpack.c.b16 %v6702, %v6698
        %v7815 = vpack.c.b16 %v6703, %v6699
        %v7816 = vpack.c.b16 %v6704, %v6700
        %v7817 = vpack.c.b16 %v6709, %v6705
        %v7818 = vpack.c.b16 %v6710, %v6706
        %v7819 = vpack.c.b16 %v6711, %v6707
        %v7820 = vpack.c.b16 %v6712, %v6708
        %v7821 = vpack.c.b16 %v6717, %v6713
        %v7822 = vpack.c.b16 %v6718, %v6714
        %v7823 = vpack.c.b16 %v6719, %v6715
        %v7824 = vpack.c.b16 %v6720, %v6716
        %v7825 = vpack.c.b16 %v6725, %v6721
        %v7826 = vpack.c.b16 %v6726, %v6722
        %v7827 = vpack.c.b16 %v6727, %v6723
        %v7828 = vpack.c.b16 %v6728, %v6724
        %v7829 = vpack.c.b16 %v6733, %v6729
        %v7830 = vpack.c.b16 %v6734, %v6730
        %v7831 = vpack.c.b16 %v6735, %v6731
        %v7832 = vpack.c.b16 %v6736, %v6732
        %v7833 = vpack.c.b16 %v6741, %v6737
        %v7834 = vpack.c.b16 %v6742, %v6738
        %v7835 = vpack.c.b16 %v6743, %v6739
        %v7836 = vpack.c.b16 %v6744, %v6740
        %v7837 = vpack.c.b16 %v6749, %v6745
        %v7838 = vpack.c.b16 %v6750, %v6746
        %v7839 = vpack.c.b16 %v6751, %v6747
        %v7840 = vpack.c.b16 %v6752, %v6748
        %v7841 = vpack.c.b16 %v6757, %v6753
        %v7842 = vpack.c.b16 %v6758, %v6754
        %v7843 = vpack.c.b16 %v6759, %v6755
        %v7844 = vpack.c.b16 %v6760, %v6756
        %v7845 = vpack.c.b16 %v6765, %v6761
        %v7846 = vpack.c.b16 %v6766, %v6762
        %v7847 = vpack.c.b16 %v6767, %v6763
        %v7848 = vpack.c.b16 %v6768, %v6764
        %v7849 = vpack.c.b16 %v6773, %v6769
        %v7850 = vpack.c.b16 %v6774, %v6770
        %v7851 = vpack.c.b16 %v6775, %v6771
        %v7852 = vpack.c.b16 %v6776, %v6772
        %v7853 = vpack.c.b16 %v6781, %v6777
        %v7854 = vpack.c.b16 %v6782, %v6778
        %v7855 = vpack.c.b16 %v6783, %v6779
        %v7856 = vpack.c.b16 %v6784, %v6780
        %v7857 = vpack.c.b16 %v6789, %v6785
        %v7858 = vpack.c.b16 %v6790, %v6786
        %v7859 = vpack.c.b16 %v6791, %v6787
        %v7860 = vpack.c.b16 %v6792, %v6788
        %v7861 = vpack.c.b16 %v6797, %v6793
        %v7862 = vpack.c.b16 %v6798, %v6794
        %v7863 = vpack.c.b16 %v6799, %v6795
        %v7864 = vpack.c.b16 %v6800, %v6796
        %v7865 = vpack.c.b16 %v6805, %v6801
        %v7866 = vpack.c.b16 %v6806, %v6802
        %v7867 = vpack.c.b16 %v6807, %v6803
        %v7868 = vpack.c.b16 %v6808, %v6804
        %v7869 = vpack.c.b16 %v6813, %v6809
        %v7870 = vpack.c.b16 %v6814, %v6810
        %v7871 = vpack.c.b16 %v6815, %v6811
        %v7872 = vpack.c.b16 %v6816, %v6812
        %v7873 = vpack.c.b16 %v6821, %v6817
        %v7874 = vpack.c.b16 %v6822, %v6818
        %v7875 = vpack.c.b16 %v6823, %v6819
        %v7876 = vpack.c.b16 %v6824, %v6820
        %v7877 = vpack.c.b16 %v6829, %v6825
        %v7878 = vpack.c.b16 %v6830, %v6826
        %v7879 = vpack.c.b16 %v6831, %v6827
        %v7880 = vpack.c.b16 %v6832, %v6828
        %v7881 = vpack.c.b16 %v6837, %v6833
        %v7882 = vpack.c.b16 %v6838, %v6834
        %v7883 = vpack.c.b16 %v6839, %v6835
        %v7884 = vpack.c.b16 %v6840, %v6836
        %v7885 = vpack.c.b16 %v6845, %v6841
        %v7886 = vpack.c.b16 %v6846, %v6842
        %v7887 = vpack.c.b16 %v6847, %v6843
        %v7888 = vpack.c.b16 %v6848, %v6844
        %v7889 = vpack.c.b16 %v6853, %v6849
        %v7890 = vpack.c.b16 %v6854, %v6850
        %v7891 = vpack.c.b16 %v6855, %v6851
        %v7892 = vpack.c.b16 %v6856, %v6852
        %v7893 = vpack.c.b16 %v6861, %v6857
        %v7894 = vpack.c.b16 %v6862, %v6858
        %v7895 = vpack.c.b16 %v6863, %v6859
        %v7896 = vpack.c.b16 %v6864, %v6860
        %v7897 = vpack.c.b16 %v6869, %v6865
        %v7898 = vpack.c.b16 %v6870, %v6866
        %v7899 = vpack.c.b16 %v6871, %v6867
        %v7900 = vpack.c.b16 %v6872, %v6868
        %v7901 = vpack.c.b16 %v6877, %v6873
        %v7902 = vpack.c.b16 %v6878, %v6874
        %v7903 = vpack.c.b16 %v6879, %v6875
        %v7904 = vpack.c.b16 %v6880, %v6876
        %v8930 = vperm.slane %v3808, 0
        %v8931 = vperm.slane %v3808, 1
        %v8932 = vperm.slane %v3808, 2
        %v8933 = vperm.slane %v3808, 3
        %8938 = vmatpush.bf16.msra.mxu0 %v6909
        %8939 = vmatpush.bf16.msra.mxu0 %v6905
        %8940 = vmatpush.bf16.msra.mxu0 %v6901
        %8941 = vmatpush.bf16.msra.mxu0 %v6897
        %8942 = vmatpush.bf16.msra.mxu0 %v6893
        %8943 = vmatpush.bf16.msra.mxu0 %v6889
        %8944 = vmatpush.bf16.msra.mxu0 %v6885
        %8945 = vmatpush.bf16.msra.mxu0 %v6881
        %8946 = vmatmul.bf16.gmra.mxu0 %v2752
        %v8947 = vpop.f32.mrf.mxu0
        %v8948 = vadd.f32 %v8930, %v8947
        %v8949 = vpop.f32.mrf.mxu0
        %8950 = vdwg.mxu0
        %8951 = vmatpush.bf16.msra.mxu0 %v6941
        %8952 = vmatpush.bf16.msra.mxu0 %v6937
        %8953 = vmatpush.bf16.msra.mxu0 %v6933
        %8954 = vmatpush.bf16.msra.mxu0 %v6929
        %8955 = vmatpush.bf16.msra.mxu0 %v6925
        %8956 = vmatpush.bf16.msra.mxu0 %v6921
        %8957 = vmatpush.bf16.msra.mxu0 %v6917
        %8958 = vmatpush.bf16.msra.mxu0 %v6913
        %8959 = vmatmul.bf16.gmra.mxu0 %v2753
        %v8960 = vpop.f32.mrf.mxu0
        %v8961 = vadd.f32 %v8948, %v8960
        %v8962 = vpop.f32.mrf.mxu0
        %8963 = vdwg.mxu0
        %8964 = vmatpush.bf16.msra.mxu0 %v6973
        %8965 = vmatpush.bf16.msra.mxu0 %v6969
        %8966 = vmatpush.bf16.msra.mxu0 %v6965
        %8967 = vmatpush.bf16.msra.mxu0 %v6961
        %8968 = vmatpush.bf16.msra.mxu0 %v6957
        %8969 = vmatpush.bf16.msra.mxu0 %v6953
        %8970 = vmatpush.bf16.msra.mxu0 %v6949
        %8971 = vmatpush.bf16.msra.mxu0 %v6945
        %8972 = vmatmul.bf16.gmra.mxu0 %v2754
        %v8973 = vpop.f32.mrf.mxu0
        %v8974 = vadd.f32 %v8961, %v8973
        %v8975 = vpop.f32.mrf.mxu0
        %8976 = vdwg.mxu0
        %8977 = vmatpush.bf16.msra.mxu0 %v7005
        %8978 = vmatpush.bf16.msra.mxu0 %v7001
        %8979 = vmatpush.bf16.msra.mxu0 %v6997
        %8980 = vmatpush.bf16.msra.mxu0 %v6993
        %8981 = vmatpush.bf16.msra.mxu0 %v6989
        %8982 = vmatpush.bf16.msra.mxu0 %v6985
        %8983 = vmatpush.bf16.msra.mxu0 %v6981
        %8984 = vmatpush.bf16.msra.mxu0 %v6977
        %8985 = vmatmul.bf16.gmra.mxu0 %v2755
        %v8986 = vpop.f32.mrf.mxu0
        %v8987 = vadd.f32 %v8974, %v8986
        %v8988 = vpop.f32.mrf.mxu0
        %8989 = vdwg.mxu0
        %8990 = vmatpush.bf16.msra.mxu0 %v7037
        %8991 = vmatpush.bf16.msra.mxu0 %v7033
        %8992 = vmatpush.bf16.msra.mxu0 %v7029
        %8993 = vmatpush.bf16.msra.mxu0 %v7025
        %8994 = vmatpush.bf16.msra.mxu0 %v7021
        %8995 = vmatpush.bf16.msra.mxu0 %v7017
        %8996 = vmatpush.bf16.msra.mxu0 %v7013
        %8997 = vmatpush.bf16.msra.mxu0 %v7009
        %8998 = vmatmul.bf16.gmra.mxu0 %v2756
        %v8999 = vpop.f32.mrf.mxu0
        %v9000 = vadd.f32 %v8987, %v8999
        %v9001 = vpop.f32.mrf.mxu0
        %9002 = vdwg.mxu0
        %9003 = vmatpush.bf16.msra.mxu0 %v7069
        %9004 = vmatpush.bf16.msra.mxu0 %v7065
        %9005 = vmatpush.bf16.msra.mxu0 %v7061
        %9006 = vmatpush.bf16.msra.mxu0 %v7057
        %9007 = vmatpush.bf16.msra.mxu0 %v7053
        %9008 = vmatpush.bf16.msra.mxu0 %v7049
        %9009 = vmatpush.bf16.msra.mxu0 %v7045
        %9010 = vmatpush.bf16.msra.mxu0 %v7041
        %9011 = vmatmul.bf16.gmra.mxu0 %v2757
        %v9012 = vpop.f32.mrf.mxu0
        %v9013 = vadd.f32 %v9000, %v9012
        %v9014 = vpop.f32.mrf.mxu0
        %9015 = vdwg.mxu0
        %9016 = vmatpush.bf16.msra.mxu0 %v7101
        %9017 = vmatpush.bf16.msra.mxu0 %v7097
        %9018 = vmatpush.bf16.msra.mxu0 %v7093
        %9019 = vmatpush.bf16.msra.mxu0 %v7089
        %9020 = vmatpush.bf16.msra.mxu0 %v7085
        %9021 = vmatpush.bf16.msra.mxu0 %v7081
        %9022 = vmatpush.bf16.msra.mxu0 %v7077
        %9023 = vmatpush.bf16.msra.mxu0 %v7073
        %9024 = vmatmul.bf16.gmra.mxu0 %v2758
        %v9025 = vpop.f32.mrf.mxu0
        %v9026 = vadd.f32 %v9013, %v9025
        %v9027 = vpop.f32.mrf.mxu0
        %9028 = vdwg.mxu0
        %9029 = vmatpush.bf16.msra.mxu0 %v7133
        %9030 = vmatpush.bf16.msra.mxu0 %v7129
        %9031 = vmatpush.bf16.msra.mxu0 %v7125
        %9032 = vmatpush.bf16.msra.mxu0 %v7121
        %9033 = vmatpush.bf16.msra.mxu0 %v7117
        %9034 = vmatpush.bf16.msra.mxu0 %v7113
        %9035 = vmatpush.bf16.msra.mxu0 %v7109
        %9036 = vmatpush.bf16.msra.mxu0 %v7105
        %9037 = vmatmul.bf16.gmra.mxu0 %v2759
        %v9038 = vpop.f32.mrf.mxu0
        %v9039 = vadd.f32 %v9026, %v9038
        %v9040 = vpop.f32.mrf.mxu0
        %9041 = vdwg.mxu0
        %9042 = vmatpush.bf16.msra.mxu0 %v7165
        %9043 = vmatpush.bf16.msra.mxu0 %v7161
        %9044 = vmatpush.bf16.msra.mxu0 %v7157
        %9045 = vmatpush.bf16.msra.mxu0 %v7153
        %9046 = vmatpush.bf16.msra.mxu0 %v7149
        %9047 = vmatpush.bf16.msra.mxu0 %v7145
        %9048 = vmatpush.bf16.msra.mxu0 %v7141
        %9049 = vmatpush.bf16.msra.mxu0 %v7137
        %9050 = vmatmul.bf16.gmra.mxu0 %v2760
        %v9051 = vpop.f32.mrf.mxu0
        %v9052 = vadd.f32 %v9039, %v9051
        %v9053 = vpop.f32.mrf.mxu0
        %9054 = vdwg.mxu0
        %9055 = vmatpush.bf16.msra.mxu0 %v7197
        %9056 = vmatpush.bf16.msra.mxu0 %v7193
        %9057 = vmatpush.bf16.msra.mxu0 %v7189
        %9058 = vmatpush.bf16.msra.mxu0 %v7185
        %9059 = vmatpush.bf16.msra.mxu0 %v7181
        %9060 = vmatpush.bf16.msra.mxu0 %v7177
        %9061 = vmatpush.bf16.msra.mxu0 %v7173
        %9062 = vmatpush.bf16.msra.mxu0 %v7169
        %9063 = vmatmul.bf16.gmra.mxu0 %v2761
        %v9064 = vpop.f32.mrf.mxu0
        %v9065 = vadd.f32 %v9052, %v9064
        %v9066 = vpop.f32.mrf.mxu0
        %9067 = vdwg.mxu0
        %9068 = vmatpush.bf16.msra.mxu0 %v7229
        %9069 = vmatpush.bf16.msra.mxu0 %v7225
        %9070 = vmatpush.bf16.msra.mxu0 %v7221
        %9071 = vmatpush.bf16.msra.mxu0 %v7217
        %9072 = vmatpush.bf16.msra.mxu0 %v7213
        %9073 = vmatpush.bf16.msra.mxu0 %v7209
        %9074 = vmatpush.bf16.msra.mxu0 %v7205
        %9075 = vmatpush.bf16.msra.mxu0 %v7201
        %9076 = vmatmul.bf16.gmra.mxu0 %v2762
        %v9077 = vpop.f32.mrf.mxu0
        %v9078 = vadd.f32 %v9065, %v9077
        %v9079 = vpop.f32.mrf.mxu0
        %9080 = vdwg.mxu0
        %9081 = vmatpush.bf16.msra.mxu0 %v7261
        %9082 = vmatpush.bf16.msra.mxu0 %v7257
        %9083 = vmatpush.bf16.msra.mxu0 %v7253
        %9084 = vmatpush.bf16.msra.mxu0 %v7249
        %9085 = vmatpush.bf16.msra.mxu0 %v7245
        %9086 = vmatpush.bf16.msra.mxu0 %v7241
        %9087 = vmatpush.bf16.msra.mxu0 %v7237
        %9088 = vmatpush.bf16.msra.mxu0 %v7233
        %9089 = vmatmul.bf16.gmra.mxu0 %v2763
        %v9090 = vpop.f32.mrf.mxu0
        %v9091 = vadd.f32 %v9078, %v9090
        %v9092 = vpop.f32.mrf.mxu0
        %9093 = vdwg.mxu0
        %9094 = vmatpush.bf16.msra.mxu0 %v7293
        %9095 = vmatpush.bf16.msra.mxu0 %v7289
        %9096 = vmatpush.bf16.msra.mxu0 %v7285
        %9097 = vmatpush.bf16.msra.mxu0 %v7281
        %9098 = vmatpush.bf16.msra.mxu0 %v7277
        %9099 = vmatpush.bf16.msra.mxu0 %v7273
        %9100 = vmatpush.bf16.msra.mxu0 %v7269
        %9101 = vmatpush.bf16.msra.mxu0 %v7265
        %9102 = vmatmul.bf16.gmra.mxu0 %v2764
        %v9103 = vpop.f32.mrf.mxu0
        %v9104 = vadd.f32 %v9091, %v9103
        %v9105 = vpop.f32.mrf.mxu0
        %9106 = vdwg.mxu0
        %9107 = vmatpush.bf16.msra.mxu0 %v7325
        %9108 = vmatpush.bf16.msra.mxu0 %v7321
        %9109 = vmatpush.bf16.msra.mxu0 %v7317
        %9110 = vmatpush.bf16.msra.mxu0 %v7313
        %9111 = vmatpush.bf16.msra.mxu0 %v7309
        %9112 = vmatpush.bf16.msra.mxu0 %v7305
        %9113 = vmatpush.bf16.msra.mxu0 %v7301
        %9114 = vmatpush.bf16.msra.mxu0 %v7297
        %9115 = vmatmul.bf16.gmra.mxu0 %v2765
        %v9116 = vpop.f32.mrf.mxu0
        %v9117 = vadd.f32 %v9104, %v9116
        %v9118 = vpop.f32.mrf.mxu0
        %9119 = vdwg.mxu0
        %9120 = vmatpush.bf16.msra.mxu0 %v7357
        %9121 = vmatpush.bf16.msra.mxu0 %v7353
        %9122 = vmatpush.bf16.msra.mxu0 %v7349
        %9123 = vmatpush.bf16.msra.mxu0 %v7345
        %9124 = vmatpush.bf16.msra.mxu0 %v7341
        %9125 = vmatpush.bf16.msra.mxu0 %v7337
        %9126 = vmatpush.bf16.msra.mxu0 %v7333
        %9127 = vmatpush.bf16.msra.mxu0 %v7329
        %9128 = vmatmul.bf16.gmra.mxu0 %v2766
        %v9129 = vpop.f32.mrf.mxu0
        %v9130 = vadd.f32 %v9117, %v9129
        %v9131 = vpop.f32.mrf.mxu0
        %9132 = vdwg.mxu0
        %9133 = vmatpush.bf16.msra.mxu0 %v7389
        %9134 = vmatpush.bf16.msra.mxu0 %v7385
        %9135 = vmatpush.bf16.msra.mxu0 %v7381
        %9136 = vmatpush.bf16.msra.mxu0 %v7377
        %9137 = vmatpush.bf16.msra.mxu0 %v7373
        %9138 = vmatpush.bf16.msra.mxu0 %v7369
        %9139 = vmatpush.bf16.msra.mxu0 %v7365
        %9140 = vmatpush.bf16.msra.mxu0 %v7361
        %9141 = vmatmul.bf16.gmra.mxu0 %v2767
        %v9142 = vpop.f32.mrf.mxu0
        %v9143 = vadd.f32 %v9130, %v9142
        %v9144 = vpop.f32.mrf.mxu0
        %9145 = vdwg.mxu0
        %9146 = vmatpush.bf16.msra.mxu0 %v7421
        %9147 = vmatpush.bf16.msra.mxu0 %v7417
        %9148 = vmatpush.bf16.msra.mxu0 %v7413
        %9149 = vmatpush.bf16.msra.mxu0 %v7409
        %9150 = vmatpush.bf16.msra.mxu0 %v7405
        %9151 = vmatpush.bf16.msra.mxu0 %v7401
        %9152 = vmatpush.bf16.msra.mxu0 %v7397
        %9153 = vmatpush.bf16.msra.mxu0 %v7393
        %9154 = vmatmul.bf16.gmra.mxu0 %v2768
        %v9155 = vpop.f32.mrf.mxu0
        %v9156 = vadd.f32 %v9143, %v9155
        %v9157 = vpop.f32.mrf.mxu0
        %9158 = vdwg.mxu0
        %9159 = vmatpush.bf16.msra.mxu0 %v7453
        %9160 = vmatpush.bf16.msra.mxu0 %v7449
        %9161 = vmatpush.bf16.msra.mxu0 %v7445
        %9162 = vmatpush.bf16.msra.mxu0 %v7441
        %9163 = vmatpush.bf16.msra.mxu0 %v7437
        %9164 = vmatpush.bf16.msra.mxu0 %v7433
        %9165 = vmatpush.bf16.msra.mxu0 %v7429
        %9166 = vmatpush.bf16.msra.mxu0 %v7425
        %9167 = vmatmul.bf16.gmra.mxu0 %v2769
        %v9168 = vpop.f32.mrf.mxu0
        %v9169 = vadd.f32 %v9156, %v9168
        %v9170 = vpop.f32.mrf.mxu0
        %9171 = vdwg.mxu0
        %9172 = vmatpush.bf16.msra.mxu0 %v7485
        %9173 = vmatpush.bf16.msra.mxu0 %v7481
        %9174 = vmatpush.bf16.msra.mxu0 %v7477
        %9175 = vmatpush.bf16.msra.mxu0 %v7473
        %9176 = vmatpush.bf16.msra.mxu0 %v7469
        %9177 = vmatpush.bf16.msra.mxu0 %v7465
        %9178 = vmatpush.bf16.msra.mxu0 %v7461
        %9179 = vmatpush.bf16.msra.mxu0 %v7457
        %9180 = vmatmul.bf16.gmra.mxu0 %v2770
        %v9181 = vpop.f32.mrf.mxu0
        %v9182 = vadd.f32 %v9169, %v9181
        %v9183 = vpop.f32.mrf.mxu0
        %9184 = vdwg.mxu0
        %9185 = vmatpush.bf16.msra.mxu0 %v7517
        %9186 = vmatpush.bf16.msra.mxu0 %v7513
        %9187 = vmatpush.bf16.msra.mxu0 %v7509
        %9188 = vmatpush.bf16.msra.mxu0 %v7505
        %9189 = vmatpush.bf16.msra.mxu0 %v7501
        %9190 = vmatpush.bf16.msra.mxu0 %v7497
        %9191 = vmatpush.bf16.msra.mxu0 %v7493
        %9192 = vmatpush.bf16.msra.mxu0 %v7489
        %9193 = vmatmul.bf16.gmra.mxu0 %v2771
        %v9194 = vpop.f32.mrf.mxu0
        %v9195 = vadd.f32 %v9182, %v9194
        %v9196 = vpop.f32.mrf.mxu0
        %9197 = vdwg.mxu0
        %9198 = vmatpush.bf16.msra.mxu0 %v7549
        %9199 = vmatpush.bf16.msra.mxu0 %v7545
        %9200 = vmatpush.bf16.msra.mxu0 %v7541
        %9201 = vmatpush.bf16.msra.mxu0 %v7537
        %9202 = vmatpush.bf16.msra.mxu0 %v7533
        %9203 = vmatpush.bf16.msra.mxu0 %v7529
        %9204 = vmatpush.bf16.msra.mxu0 %v7525
        %9205 = vmatpush.bf16.msra.mxu0 %v7521
        %9206 = vmatmul.bf16.gmra.mxu0 %v2772
        %v9207 = vpop.f32.mrf.mxu0
        %v9208 = vadd.f32 %v9195, %v9207
        %v9209 = vpop.f32.mrf.mxu0
        %9210 = vdwg.mxu0
        %9211 = vmatpush.bf16.msra.mxu0 %v7581
        %9212 = vmatpush.bf16.msra.mxu0 %v7577
        %9213 = vmatpush.bf16.msra.mxu0 %v7573
        %9214 = vmatpush.bf16.msra.mxu0 %v7569
        %9215 = vmatpush.bf16.msra.mxu0 %v7565
        %9216 = vmatpush.bf16.msra.mxu0 %v7561
        %9217 = vmatpush.bf16.msra.mxu0 %v7557
        %9218 = vmatpush.bf16.msra.mxu0 %v7553
        %9219 = vmatmul.bf16.gmra.mxu0 %v2773
        %v9220 = vpop.f32.mrf.mxu0
        %v9221 = vadd.f32 %v9208, %v9220
        %v9222 = vpop.f32.mrf.mxu0
        %9223 = vdwg.mxu0
        %9224 = vmatpush.bf16.msra.mxu0 %v7613
        %9225 = vmatpush.bf16.msra.mxu0 %v7609
        %9226 = vmatpush.bf16.msra.mxu0 %v7605
        %9227 = vmatpush.bf16.msra.mxu0 %v7601
        %9228 = vmatpush.bf16.msra.mxu0 %v7597
        %9229 = vmatpush.bf16.msra.mxu0 %v7593
        %9230 = vmatpush.bf16.msra.mxu0 %v7589
        %9231 = vmatpush.bf16.msra.mxu0 %v7585
        %9232 = vmatmul.bf16.gmra.mxu0 %v2774
        %v9233 = vpop.f32.mrf.mxu0
        %v9234 = vadd.f32 %v9221, %v9233
        %v9235 = vpop.f32.mrf.mxu0
        %9236 = vdwg.mxu0
        %9237 = vmatpush.bf16.msra.mxu0 %v7645
        %9238 = vmatpush.bf16.msra.mxu0 %v7641
        %9239 = vmatpush.bf16.msra.mxu0 %v7637
        %9240 = vmatpush.bf16.msra.mxu0 %v7633
        %9241 = vmatpush.bf16.msra.mxu0 %v7629
        %9242 = vmatpush.bf16.msra.mxu0 %v7625
        %9243 = vmatpush.bf16.msra.mxu0 %v7621
        %9244 = vmatpush.bf16.msra.mxu0 %v7617
        %9245 = vmatmul.bf16.gmra.mxu0 %v2775
        %v9246 = vpop.f32.mrf.mxu0
        %v9247 = vadd.f32 %v9234, %v9246
        %v9248 = vpop.f32.mrf.mxu0
        %9249 = vdwg.mxu0
        %9250 = vmatpush.bf16.msra.mxu0 %v7677
        %9251 = vmatpush.bf16.msra.mxu0 %v7673
        %9252 = vmatpush.bf16.msra.mxu0 %v7669
        %9253 = vmatpush.bf16.msra.mxu0 %v7665
        %9254 = vmatpush.bf16.msra.mxu0 %v7661
        %9255 = vmatpush.bf16.msra.mxu0 %v7657
        %9256 = vmatpush.bf16.msra.mxu0 %v7653
        %9257 = vmatpush.bf16.msra.mxu0 %v7649
        %9258 = vmatmul.bf16.gmra.mxu0 %v2776
        %v9259 = vpop.f32.mrf.mxu0
        %v9260 = vadd.f32 %v9247, %v9259
        %v9261 = vpop.f32.mrf.mxu0
        %9262 = vdwg.mxu0
        %9263 = vmatpush.bf16.msra.mxu0 %v7709
        %9264 = vmatpush.bf16.msra.mxu0 %v7705
        %9265 = vmatpush.bf16.msra.mxu0 %v7701
        %9266 = vmatpush.bf16.msra.mxu0 %v7697
        %9267 = vmatpush.bf16.msra.mxu0 %v7693
        %9268 = vmatpush.bf16.msra.mxu0 %v7689
        %9269 = vmatpush.bf16.msra.mxu0 %v7685
        %9270 = vmatpush.bf16.msra.mxu0 %v7681
        %9271 = vmatmul.bf16.gmra.mxu0 %v2777
        %v9272 = vpop.f32.mrf.mxu0
        %v9273 = vadd.f32 %v9260, %v9272
        %v9274 = vpop.f32.mrf.mxu0
        %9275 = vdwg.mxu0
        %9276 = vmatpush.bf16.msra.mxu0 %v7741
        %9277 = vmatpush.bf16.msra.mxu0 %v7737
        %9278 = vmatpush.bf16.msra.mxu0 %v7733
        %9279 = vmatpush.bf16.msra.mxu0 %v7729
        %9280 = vmatpush.bf16.msra.mxu0 %v7725
        %9281 = vmatpush.bf16.msra.mxu0 %v7721
        %9282 = vmatpush.bf16.msra.mxu0 %v7717
        %9283 = vmatpush.bf16.msra.mxu0 %v7713
        %9284 = vmatmul.bf16.gmra.mxu0 %v2778
        %v9285 = vpop.f32.mrf.mxu0
        %v9286 = vadd.f32 %v9273, %v9285
        %v9287 = vpop.f32.mrf.mxu0
        %9288 = vdwg.mxu0
        %9289 = vmatpush.bf16.msra.mxu0 %v7773
        %9290 = vmatpush.bf16.msra.mxu0 %v7769
        %9291 = vmatpush.bf16.msra.mxu0 %v7765
        %9292 = vmatpush.bf16.msra.mxu0 %v7761
        %9293 = vmatpush.bf16.msra.mxu0 %v7757
        %9294 = vmatpush.bf16.msra.mxu0 %v7753
        %9295 = vmatpush.bf16.msra.mxu0 %v7749
        %9296 = vmatpush.bf16.msra.mxu0 %v7745
        %9297 = vmatmul.bf16.gmra.mxu0 %v2779
        %v9298 = vpop.f32.mrf.mxu0
        %v9299 = vadd.f32 %v9286, %v9298
        %v9300 = vpop.f32.mrf.mxu0
        %9301 = vdwg.mxu0
        %9302 = vmatpush.bf16.msra.mxu0 %v7805
        %9303 = vmatpush.bf16.msra.mxu0 %v7801
        %9304 = vmatpush.bf16.msra.mxu0 %v7797
        %9305 = vmatpush.bf16.msra.mxu0 %v7793
        %9306 = vmatpush.bf16.msra.mxu0 %v7789
        %9307 = vmatpush.bf16.msra.mxu0 %v7785
        %9308 = vmatpush.bf16.msra.mxu0 %v7781
        %9309 = vmatpush.bf16.msra.mxu0 %v7777
        %9310 = vmatmul.bf16.gmra.mxu0 %v2780
        %v9311 = vpop.f32.mrf.mxu0
        %v9312 = vadd.f32 %v9299, %v9311
        %v9313 = vpop.f32.mrf.mxu0
        %9314 = vdwg.mxu0
        %9315 = vmatpush.bf16.msra.mxu0 %v7837
        %9316 = vmatpush.bf16.msra.mxu0 %v7833
        %9317 = vmatpush.bf16.msra.mxu0 %v7829
        %9318 = vmatpush.bf16.msra.mxu0 %v7825
        %9319 = vmatpush.bf16.msra.mxu0 %v7821
        %9320 = vmatpush.bf16.msra.mxu0 %v7817
        %9321 = vmatpush.bf16.msra.mxu0 %v7813
        %9322 = vmatpush.bf16.msra.mxu0 %v7809
        %9323 = vmatmul.bf16.gmra.mxu0 %v2781
        %v9324 = vpop.f32.mrf.mxu0
        %v9325 = vadd.f32 %v9312, %v9324
        %v9326 = vpop.f32.mrf.mxu0
        %9327 = vdwg.mxu0
        %9328 = vmatpush.bf16.msra.mxu0 %v7869
        %9329 = vmatpush.bf16.msra.mxu0 %v7865
        %9330 = vmatpush.bf16.msra.mxu0 %v7861
        %9331 = vmatpush.bf16.msra.mxu0 %v7857
        %9332 = vmatpush.bf16.msra.mxu0 %v7853
        %9333 = vmatpush.bf16.msra.mxu0 %v7849
        %9334 = vmatpush.bf16.msra.mxu0 %v7845
        %9335 = vmatpush.bf16.msra.mxu0 %v7841
        %9336 = vmatmul.bf16.gmra.mxu0 %v2782
        %v9337 = vpop.f32.mrf.mxu0
        %v9338 = vadd.f32 %v9325, %v9337
        %v9339 = vpop.f32.mrf.mxu0
        %9340 = vdwg.mxu0
        %9341 = vmatpush.bf16.msra.mxu0 %v7901
        %9342 = vmatpush.bf16.msra.mxu0 %v7897
        %9343 = vmatpush.bf16.msra.mxu0 %v7893
        %9344 = vmatpush.bf16.msra.mxu0 %v7889
        %9345 = vmatpush.bf16.msra.mxu0 %v7885
        %9346 = vmatpush.bf16.msra.mxu0 %v7881
        %9347 = vmatpush.bf16.msra.mxu0 %v7877
        %9348 = vmatpush.bf16.msra.mxu0 %v7873
        %9349 = vmatmul.bf16.gmra.mxu0 %v2783
        %v9350 = vpop.f32.mrf.mxu0
        %v9351 = vadd.f32 %v9338, %v9350
        %v9352 = vpop.f32.mrf.mxu0
        %9353 = vdwg.mxu0
        %9354 = vmatpush.bf16.msra.mxu0 %v6910
        %9355 = vmatpush.bf16.msra.mxu0 %v6906
        %9356 = vmatpush.bf16.msra.mxu0 %v6902
        %9357 = vmatpush.bf16.msra.mxu0 %v6898
        %9358 = vmatpush.bf16.msra.mxu0 %v6894
        %9359 = vmatpush.bf16.msra.mxu0 %v6890
        %9360 = vmatpush.bf16.msra.mxu0 %v6886
        %9361 = vmatpush.bf16.msra.mxu0 %v6882
        %9362 = vmatmul.bf16.gmra.mxu0 %v2752
        %v9363 = vpop.f32.mrf.mxu0
        %v9364 = vadd.f32 %v8931, %v9363
        %v9365 = vpop.f32.mrf.mxu0
        %9366 = vdwg.mxu0
        %9367 = vmatpush.bf16.msra.mxu0 %v6942
        %9368 = vmatpush.bf16.msra.mxu0 %v6938
        %9369 = vmatpush.bf16.msra.mxu0 %v6934
        %9370 = vmatpush.bf16.msra.mxu0 %v6930
        %9371 = vmatpush.bf16.msra.mxu0 %v6926
        %9372 = vmatpush.bf16.msra.mxu0 %v6922
        %9373 = vmatpush.bf16.msra.mxu0 %v6918
        %9374 = vmatpush.bf16.msra.mxu0 %v6914
        %9375 = vmatmul.bf16.gmra.mxu0 %v2753
        %v9376 = vpop.f32.mrf.mxu0
        %v9377 = vadd.f32 %v9364, %v9376
        %v9378 = vpop.f32.mrf.mxu0
        %9379 = vdwg.mxu0
        %9380 = vmatpush.bf16.msra.mxu0 %v6974
        %9381 = vmatpush.bf16.msra.mxu0 %v6970
        %9382 = vmatpush.bf16.msra.mxu0 %v6966
        %9383 = vmatpush.bf16.msra.mxu0 %v6962
        %9384 = vmatpush.bf16.msra.mxu0 %v6958
        %9385 = vmatpush.bf16.msra.mxu0 %v6954
        %9386 = vmatpush.bf16.msra.mxu0 %v6950
        %9387 = vmatpush.bf16.msra.mxu0 %v6946
        %9388 = vmatmul.bf16.gmra.mxu0 %v2754
        %v9389 = vpop.f32.mrf.mxu0
        %v9390 = vadd.f32 %v9377, %v9389
        %v9391 = vpop.f32.mrf.mxu0
        %9392 = vdwg.mxu0
        %9393 = vmatpush.bf16.msra.mxu0 %v7006
        %9394 = vmatpush.bf16.msra.mxu0 %v7002
        %9395 = vmatpush.bf16.msra.mxu0 %v6998
        %9396 = vmatpush.bf16.msra.mxu0 %v6994
        %9397 = vmatpush.bf16.msra.mxu0 %v6990
        %9398 = vmatpush.bf16.msra.mxu0 %v6986
        %9399 = vmatpush.bf16.msra.mxu0 %v6982
        %9400 = vmatpush.bf16.msra.mxu0 %v6978
        %9401 = vmatmul.bf16.gmra.mxu0 %v2755
        %v9402 = vpop.f32.mrf.mxu0
        %v9403 = vadd.f32 %v9390, %v9402
        %v9404 = vpop.f32.mrf.mxu0
        %9405 = vdwg.mxu0
        %9406 = vmatpush.bf16.msra.mxu0 %v7038
        %9407 = vmatpush.bf16.msra.mxu0 %v7034
        %9408 = vmatpush.bf16.msra.mxu0 %v7030
        %9409 = vmatpush.bf16.msra.mxu0 %v7026
        %9410 = vmatpush.bf16.msra.mxu0 %v7022
        %9411 = vmatpush.bf16.msra.mxu0 %v7018
        %9412 = vmatpush.bf16.msra.mxu0 %v7014
        %9413 = vmatpush.bf16.msra.mxu0 %v7010
        %9414 = vmatmul.bf16.gmra.mxu0 %v2756
        %v9415 = vpop.f32.mrf.mxu0
        %v9416 = vadd.f32 %v9403, %v9415
        %v9417 = vpop.f32.mrf.mxu0
        %9418 = vdwg.mxu0
        %9419 = vmatpush.bf16.msra.mxu0 %v7070
        %9420 = vmatpush.bf16.msra.mxu0 %v7066
        %9421 = vmatpush.bf16.msra.mxu0 %v7062
        %9422 = vmatpush.bf16.msra.mxu0 %v7058
        %9423 = vmatpush.bf16.msra.mxu0 %v7054
        %9424 = vmatpush.bf16.msra.mxu0 %v7050
        %9425 = vmatpush.bf16.msra.mxu0 %v7046
        %9426 = vmatpush.bf16.msra.mxu0 %v7042
        %9427 = vmatmul.bf16.gmra.mxu0 %v2757
        %v9428 = vpop.f32.mrf.mxu0
        %v9429 = vadd.f32 %v9416, %v9428
        %v9430 = vpop.f32.mrf.mxu0
        %9431 = vdwg.mxu0
        %9432 = vmatpush.bf16.msra.mxu0 %v7102
        %9433 = vmatpush.bf16.msra.mxu0 %v7098
        %9434 = vmatpush.bf16.msra.mxu0 %v7094
        %9435 = vmatpush.bf16.msra.mxu0 %v7090
        %9436 = vmatpush.bf16.msra.mxu0 %v7086
        %9437 = vmatpush.bf16.msra.mxu0 %v7082
        %9438 = vmatpush.bf16.msra.mxu0 %v7078
        %9439 = vmatpush.bf16.msra.mxu0 %v7074
        %9440 = vmatmul.bf16.gmra.mxu0 %v2758
        %v9441 = vpop.f32.mrf.mxu0
        %v9442 = vadd.f32 %v9429, %v9441
        %v9443 = vpop.f32.mrf.mxu0
        %9444 = vdwg.mxu0
        %9445 = vmatpush.bf16.msra.mxu0 %v7134
        %9446 = vmatpush.bf16.msra.mxu0 %v7130
        %9447 = vmatpush.bf16.msra.mxu0 %v7126
        %9448 = vmatpush.bf16.msra.mxu0 %v7122
        %9449 = vmatpush.bf16.msra.mxu0 %v7118
        %9450 = vmatpush.bf16.msra.mxu0 %v7114
        %9451 = vmatpush.bf16.msra.mxu0 %v7110
        %9452 = vmatpush.bf16.msra.mxu0 %v7106
        %9453 = vmatmul.bf16.gmra.mxu0 %v2759
        %v9454 = vpop.f32.mrf.mxu0
        %v9455 = vadd.f32 %v9442, %v9454
        %v9456 = vpop.f32.mrf.mxu0
        %9457 = vdwg.mxu0
        %9458 = vmatpush.bf16.msra.mxu0 %v7166
        %9459 = vmatpush.bf16.msra.mxu0 %v7162
        %9460 = vmatpush.bf16.msra.mxu0 %v7158
        %9461 = vmatpush.bf16.msra.mxu0 %v7154
        %9462 = vmatpush.bf16.msra.mxu0 %v7150
        %9463 = vmatpush.bf16.msra.mxu0 %v7146
        %9464 = vmatpush.bf16.msra.mxu0 %v7142
        %9465 = vmatpush.bf16.msra.mxu0 %v7138
        %9466 = vmatmul.bf16.gmra.mxu0 %v2760
        %v9467 = vpop.f32.mrf.mxu0
        %v9468 = vadd.f32 %v9455, %v9467
        %v9469 = vpop.f32.mrf.mxu0
        %9470 = vdwg.mxu0
        %9471 = vmatpush.bf16.msra.mxu0 %v7198
        %9472 = vmatpush.bf16.msra.mxu0 %v7194
        %9473 = vmatpush.bf16.msra.mxu0 %v7190
        %9474 = vmatpush.bf16.msra.mxu0 %v7186
        %9475 = vmatpush.bf16.msra.mxu0 %v7182
        %9476 = vmatpush.bf16.msra.mxu0 %v7178
        %9477 = vmatpush.bf16.msra.mxu0 %v7174
        %9478 = vmatpush.bf16.msra.mxu0 %v7170
        %9479 = vmatmul.bf16.gmra.mxu0 %v2761
        %v9480 = vpop.f32.mrf.mxu0
        %v9481 = vadd.f32 %v9468, %v9480
        %v9482 = vpop.f32.mrf.mxu0
        %9483 = vdwg.mxu0
        %9484 = vmatpush.bf16.msra.mxu0 %v7230
        %9485 = vmatpush.bf16.msra.mxu0 %v7226
        %9486 = vmatpush.bf16.msra.mxu0 %v7222
        %9487 = vmatpush.bf16.msra.mxu0 %v7218
        %9488 = vmatpush.bf16.msra.mxu0 %v7214
        %9489 = vmatpush.bf16.msra.mxu0 %v7210
        %9490 = vmatpush.bf16.msra.mxu0 %v7206
        %9491 = vmatpush.bf16.msra.mxu0 %v7202
        %9492 = vmatmul.bf16.gmra.mxu0 %v2762
        %v9493 = vpop.f32.mrf.mxu0
        %v9494 = vadd.f32 %v9481, %v9493
        %v9495 = vpop.f32.mrf.mxu0
        %9496 = vdwg.mxu0
        %9497 = vmatpush.bf16.msra.mxu0 %v7262
        %9498 = vmatpush.bf16.msra.mxu0 %v7258
        %9499 = vmatpush.bf16.msra.mxu0 %v7254
        %9500 = vmatpush.bf16.msra.mxu0 %v7250
        %9501 = vmatpush.bf16.msra.mxu0 %v7246
        %9502 = vmatpush.bf16.msra.mxu0 %v7242
        %9503 = vmatpush.bf16.msra.mxu0 %v7238
        %9504 = vmatpush.bf16.msra.mxu0 %v7234
        %9505 = vmatmul.bf16.gmra.mxu0 %v2763
        %v9506 = vpop.f32.mrf.mxu0
        %v9507 = vadd.f32 %v9494, %v9506
        %v9508 = vpop.f32.mrf.mxu0
        %9509 = vdwg.mxu0
        %9510 = vmatpush.bf16.msra.mxu0 %v7294
        %9511 = vmatpush.bf16.msra.mxu0 %v7290
        %9512 = vmatpush.bf16.msra.mxu0 %v7286
        %9513 = vmatpush.bf16.msra.mxu0 %v7282
        %9514 = vmatpush.bf16.msra.mxu0 %v7278
        %9515 = vmatpush.bf16.msra.mxu0 %v7274
        %9516 = vmatpush.bf16.msra.mxu0 %v7270
        %9517 = vmatpush.bf16.msra.mxu0 %v7266
        %9518 = vmatmul.bf16.gmra.mxu0 %v2764
        %v9519 = vpop.f32.mrf.mxu0
        %v9520 = vadd.f32 %v9507, %v9519
        %v9521 = vpop.f32.mrf.mxu0
        %9522 = vdwg.mxu0
        %9523 = vmatpush.bf16.msra.mxu0 %v7326
        %9524 = vmatpush.bf16.msra.mxu0 %v7322
        %9525 = vmatpush.bf16.msra.mxu0 %v7318
        %9526 = vmatpush.bf16.msra.mxu0 %v7314
        %9527 = vmatpush.bf16.msra.mxu0 %v7310
        %9528 = vmatpush.bf16.msra.mxu0 %v7306
        %9529 = vmatpush.bf16.msra.mxu0 %v7302
        %9530 = vmatpush.bf16.msra.mxu0 %v7298
        %9531 = vmatmul.bf16.gmra.mxu0 %v2765
        %v9532 = vpop.f32.mrf.mxu0
        %v9533 = vadd.f32 %v9520, %v9532
        %v9534 = vpop.f32.mrf.mxu0
        %9535 = vdwg.mxu0
        %9536 = vmatpush.bf16.msra.mxu0 %v7358
        %9537 = vmatpush.bf16.msra.mxu0 %v7354
        %9538 = vmatpush.bf16.msra.mxu0 %v7350
        %9539 = vmatpush.bf16.msra.mxu0 %v7346
        %9540 = vmatpush.bf16.msra.mxu0 %v7342
        %9541 = vmatpush.bf16.msra.mxu0 %v7338
        %9542 = vmatpush.bf16.msra.mxu0 %v7334
        %9543 = vmatpush.bf16.msra.mxu0 %v7330
        %9544 = vmatmul.bf16.gmra.mxu0 %v2766
        %v9545 = vpop.f32.mrf.mxu0
        %v9546 = vadd.f32 %v9533, %v9545
        %v9547 = vpop.f32.mrf.mxu0
        %9548 = vdwg.mxu0
        %9549 = vmatpush.bf16.msra.mxu0 %v7390
        %9550 = vmatpush.bf16.msra.mxu0 %v7386
        %9551 = vmatpush.bf16.msra.mxu0 %v7382
        %9552 = vmatpush.bf16.msra.mxu0 %v7378
        %9553 = vmatpush.bf16.msra.mxu0 %v7374
        %9554 = vmatpush.bf16.msra.mxu0 %v7370
        %9555 = vmatpush.bf16.msra.mxu0 %v7366
        %9556 = vmatpush.bf16.msra.mxu0 %v7362
        %9557 = vmatmul.bf16.gmra.mxu0 %v2767
        %v9558 = vpop.f32.mrf.mxu0
        %v9559 = vadd.f32 %v9546, %v9558
        %v9560 = vpop.f32.mrf.mxu0
        %9561 = vdwg.mxu0
        %9562 = vmatpush.bf16.msra.mxu0 %v7422
        %9563 = vmatpush.bf16.msra.mxu0 %v7418
        %9564 = vmatpush.bf16.msra.mxu0 %v7414
        %9565 = vmatpush.bf16.msra.mxu0 %v7410
        %9566 = vmatpush.bf16.msra.mxu0 %v7406
        %9567 = vmatpush.bf16.msra.mxu0 %v7402
        %9568 = vmatpush.bf16.msra.mxu0 %v7398
        %9569 = vmatpush.bf16.msra.mxu0 %v7394
        %9570 = vmatmul.bf16.gmra.mxu0 %v2768
        %v9571 = vpop.f32.mrf.mxu0
        %v9572 = vadd.f32 %v9559, %v9571
        %v9573 = vpop.f32.mrf.mxu0
        %9574 = vdwg.mxu0
        %9575 = vmatpush.bf16.msra.mxu0 %v7454
        %9576 = vmatpush.bf16.msra.mxu0 %v7450
        %9577 = vmatpush.bf16.msra.mxu0 %v7446
        %9578 = vmatpush.bf16.msra.mxu0 %v7442
        %9579 = vmatpush.bf16.msra.mxu0 %v7438
        %9580 = vmatpush.bf16.msra.mxu0 %v7434
        %9581 = vmatpush.bf16.msra.mxu0 %v7430
        %9582 = vmatpush.bf16.msra.mxu0 %v7426
        %9583 = vmatmul.bf16.gmra.mxu0 %v2769
        %v9584 = vpop.f32.mrf.mxu0
        %v9585 = vadd.f32 %v9572, %v9584
        %v9586 = vpop.f32.mrf.mxu0
        %9587 = vdwg.mxu0
        %9588 = vmatpush.bf16.msra.mxu0 %v7486
        %9589 = vmatpush.bf16.msra.mxu0 %v7482
        %9590 = vmatpush.bf16.msra.mxu0 %v7478
        %9591 = vmatpush.bf16.msra.mxu0 %v7474
        %9592 = vmatpush.bf16.msra.mxu0 %v7470
        %9593 = vmatpush.bf16.msra.mxu0 %v7466
        %9594 = vmatpush.bf16.msra.mxu0 %v7462
        %9595 = vmatpush.bf16.msra.mxu0 %v7458
        %9596 = vmatmul.bf16.gmra.mxu0 %v2770
        %v9597 = vpop.f32.mrf.mxu0
        %v9598 = vadd.f32 %v9585, %v9597
        %v9599 = vpop.f32.mrf.mxu0
        %9600 = vdwg.mxu0
        %9601 = vmatpush.bf16.msra.mxu0 %v7518
        %9602 = vmatpush.bf16.msra.mxu0 %v7514
        %9603 = vmatpush.bf16.msra.mxu0 %v7510
        %9604 = vmatpush.bf16.msra.mxu0 %v7506
        %9605 = vmatpush.bf16.msra.mxu0 %v7502
        %9606 = vmatpush.bf16.msra.mxu0 %v7498
        %9607 = vmatpush.bf16.msra.mxu0 %v7494
        %9608 = vmatpush.bf16.msra.mxu0 %v7490
        %9609 = vmatmul.bf16.gmra.mxu0 %v2771
        %v9610 = vpop.f32.mrf.mxu0
        %v9611 = vadd.f32 %v9598, %v9610
        %v9612 = vpop.f32.mrf.mxu0
        %9613 = vdwg.mxu0
        %9614 = vmatpush.bf16.msra.mxu0 %v7550
        %9615 = vmatpush.bf16.msra.mxu0 %v7546
        %9616 = vmatpush.bf16.msra.mxu0 %v7542
        %9617 = vmatpush.bf16.msra.mxu0 %v7538
        %9618 = vmatpush.bf16.msra.mxu0 %v7534
        %9619 = vmatpush.bf16.msra.mxu0 %v7530
        %9620 = vmatpush.bf16.msra.mxu0 %v7526
        %9621 = vmatpush.bf16.msra.mxu0 %v7522
        %9622 = vmatmul.bf16.gmra.mxu0 %v2772
        %v9623 = vpop.f32.mrf.mxu0
        %v9624 = vadd.f32 %v9611, %v9623
        %v9625 = vpop.f32.mrf.mxu0
        %9626 = vdwg.mxu0
        %9627 = vmatpush.bf16.msra.mxu0 %v7582
        %9628 = vmatpush.bf16.msra.mxu0 %v7578
        %9629 = vmatpush.bf16.msra.mxu0 %v7574
        %9630 = vmatpush.bf16.msra.mxu0 %v7570
        %9631 = vmatpush.bf16.msra.mxu0 %v7566
        %9632 = vmatpush.bf16.msra.mxu0 %v7562
        %9633 = vmatpush.bf16.msra.mxu0 %v7558
        %9634 = vmatpush.bf16.msra.mxu0 %v7554
        %9635 = vmatmul.bf16.gmra.mxu0 %v2773
        %v9636 = vpop.f32.mrf.mxu0
        %v9637 = vadd.f32 %v9624, %v9636
        %v9638 = vpop.f32.mrf.mxu0
        %9639 = vdwg.mxu0
        %9640 = vmatpush.bf16.msra.mxu0 %v7614
        %9641 = vmatpush.bf16.msra.mxu0 %v7610
        %9642 = vmatpush.bf16.msra.mxu0 %v7606
        %9643 = vmatpush.bf16.msra.mxu0 %v7602
        %9644 = vmatpush.bf16.msra.mxu0 %v7598
        %9645 = vmatpush.bf16.msra.mxu0 %v7594
        %9646 = vmatpush.bf16.msra.mxu0 %v7590
        %9647 = vmatpush.bf16.msra.mxu0 %v7586
        %9648 = vmatmul.bf16.gmra.mxu0 %v2774
        %v9649 = vpop.f32.mrf.mxu0
        %v9650 = vadd.f32 %v9637, %v9649
        %v9651 = vpop.f32.mrf.mxu0
        %9652 = vdwg.mxu0
        %9653 = vmatpush.bf16.msra.mxu0 %v7646
        %9654 = vmatpush.bf16.msra.mxu0 %v7642
        %9655 = vmatpush.bf16.msra.mxu0 %v7638
        %9656 = vmatpush.bf16.msra.mxu0 %v7634
        %9657 = vmatpush.bf16.msra.mxu0 %v7630
        %9658 = vmatpush.bf16.msra.mxu0 %v7626
        %9659 = vmatpush.bf16.msra.mxu0 %v7622
        %9660 = vmatpush.bf16.msra.mxu0 %v7618
        %9661 = vmatmul.bf16.gmra.mxu0 %v2775
        %v9662 = vpop.f32.mrf.mxu0
        %v9663 = vadd.f32 %v9650, %v9662
        %v9664 = vpop.f32.mrf.mxu0
        %9665 = vdwg.mxu0
        %9666 = vmatpush.bf16.msra.mxu0 %v7678
        %9667 = vmatpush.bf16.msra.mxu0 %v7674
        %9668 = vmatpush.bf16.msra.mxu0 %v7670
        %9669 = vmatpush.bf16.msra.mxu0 %v7666
        %9670 = vmatpush.bf16.msra.mxu0 %v7662
        %9671 = vmatpush.bf16.msra.mxu0 %v7658
        %9672 = vmatpush.bf16.msra.mxu0 %v7654
        %9673 = vmatpush.bf16.msra.mxu0 %v7650
        %9674 = vmatmul.bf16.gmra.mxu0 %v2776
        %v9675 = vpop.f32.mrf.mxu0
        %v9676 = vadd.f32 %v9663, %v9675
        %v9677 = vpop.f32.mrf.mxu0
        %9678 = vdwg.mxu0
        %9679 = vmatpush.bf16.msra.mxu0 %v7710
        %9680 = vmatpush.bf16.msra.mxu0 %v7706
        %9681 = vmatpush.bf16.msra.mxu0 %v7702
        %9682 = vmatpush.bf16.msra.mxu0 %v7698
        %9683 = vmatpush.bf16.msra.mxu0 %v7694
        %9684 = vmatpush.bf16.msra.mxu0 %v7690
        %9685 = vmatpush.bf16.msra.mxu0 %v7686
        %9686 = vmatpush.bf16.msra.mxu0 %v7682
        %9687 = vmatmul.bf16.gmra.mxu0 %v2777
        %v9688 = vpop.f32.mrf.mxu0
        %v9689 = vadd.f32 %v9676, %v9688
        %v9690 = vpop.f32.mrf.mxu0
        %9691 = vdwg.mxu0
        %9692 = vmatpush.bf16.msra.mxu0 %v7742
        %9693 = vmatpush.bf16.msra.mxu0 %v7738
        %9694 = vmatpush.bf16.msra.mxu0 %v7734
        %9695 = vmatpush.bf16.msra.mxu0 %v7730
        %9696 = vmatpush.bf16.msra.mxu0 %v7726
        %9697 = vmatpush.bf16.msra.mxu0 %v7722
        %9698 = vmatpush.bf16.msra.mxu0 %v7718
        %9699 = vmatpush.bf16.msra.mxu0 %v7714
        %9700 = vmatmul.bf16.gmra.mxu0 %v2778
        %v9701 = vpop.f32.mrf.mxu0
        %v9702 = vadd.f32 %v9689, %v9701
        %v9703 = vpop.f32.mrf.mxu0
        %9704 = vdwg.mxu0
        %9705 = vmatpush.bf16.msra.mxu0 %v7774
        %9706 = vmatpush.bf16.msra.mxu0 %v7770
        %9707 = vmatpush.bf16.msra.mxu0 %v7766
        %9708 = vmatpush.bf16.msra.mxu0 %v7762
        %9709 = vmatpush.bf16.msra.mxu0 %v7758
        %9710 = vmatpush.bf16.msra.mxu0 %v7754
        %9711 = vmatpush.bf16.msra.mxu0 %v7750
        %9712 = vmatpush.bf16.msra.mxu0 %v7746
        %9713 = vmatmul.bf16.gmra.mxu0 %v2779
        %v9714 = vpop.f32.mrf.mxu0
        %v9715 = vadd.f32 %v9702, %v9714
        %v9716 = vpop.f32.mrf.mxu0
        %9717 = vdwg.mxu0
        %9718 = vmatpush.bf16.msra.mxu0 %v7806
        %9719 = vmatpush.bf16.msra.mxu0 %v7802
        %9720 = vmatpush.bf16.msra.mxu0 %v7798
        %9721 = vmatpush.bf16.msra.mxu0 %v7794
        %9722 = vmatpush.bf16.msra.mxu0 %v7790
        %9723 = vmatpush.bf16.msra.mxu0 %v7786
        %9724 = vmatpush.bf16.msra.mxu0 %v7782
        %9725 = vmatpush.bf16.msra.mxu0 %v7778
        %9726 = vmatmul.bf16.gmra.mxu0 %v2780
        %v9727 = vpop.f32.mrf.mxu0
        %v9728 = vadd.f32 %v9715, %v9727
        %v9729 = vpop.f32.mrf.mxu0
        %9730 = vdwg.mxu0
        %9731 = vmatpush.bf16.msra.mxu0 %v7838
        %9732 = vmatpush.bf16.msra.mxu0 %v7834
        %9733 = vmatpush.bf16.msra.mxu0 %v7830
        %9734 = vmatpush.bf16.msra.mxu0 %v7826
        %9735 = vmatpush.bf16.msra.mxu0 %v7822
        %9736 = vmatpush.bf16.msra.mxu0 %v7818
        %9737 = vmatpush.bf16.msra.mxu0 %v7814
        %9738 = vmatpush.bf16.msra.mxu0 %v7810
        %9739 = vmatmul.bf16.gmra.mxu0 %v2781
        %v9740 = vpop.f32.mrf.mxu0
        %v9741 = vadd.f32 %v9728, %v9740
        %v9742 = vpop.f32.mrf.mxu0
        %9743 = vdwg.mxu0
        %9744 = vmatpush.bf16.msra.mxu0 %v7870
        %9745 = vmatpush.bf16.msra.mxu0 %v7866
        %9746 = vmatpush.bf16.msra.mxu0 %v7862
        %9747 = vmatpush.bf16.msra.mxu0 %v7858
        %9748 = vmatpush.bf16.msra.mxu0 %v7854
        %9749 = vmatpush.bf16.msra.mxu0 %v7850
        %9750 = vmatpush.bf16.msra.mxu0 %v7846
        %9751 = vmatpush.bf16.msra.mxu0 %v7842
        %9752 = vmatmul.bf16.gmra.mxu0 %v2782
        %v9753 = vpop.f32.mrf.mxu0
        %v9754 = vadd.f32 %v9741, %v9753
        %v9755 = vpop.f32.mrf.mxu0
        %9756 = vdwg.mxu0
        %9757 = vmatpush.bf16.msra.mxu0 %v7902
        %9758 = vmatpush.bf16.msra.mxu0 %v7898
        %9759 = vmatpush.bf16.msra.mxu0 %v7894
        %9760 = vmatpush.bf16.msra.mxu0 %v7890
        %9761 = vmatpush.bf16.msra.mxu0 %v7886
        %9762 = vmatpush.bf16.msra.mxu0 %v7882
        %9763 = vmatpush.bf16.msra.mxu0 %v7878
        %9764 = vmatpush.bf16.msra.mxu0 %v7874
        %9765 = vmatmul.bf16.gmra.mxu0 %v2783
        %v9766 = vpop.f32.mrf.mxu0
        %v9767 = vadd.f32 %v9754, %v9766
        %v9768 = vpop.f32.mrf.mxu0
        %9769 = vdwg.mxu0
        %9770 = vmatpush.bf16.msra.mxu0 %v6911
        %9771 = vmatpush.bf16.msra.mxu0 %v6907
        %9772 = vmatpush.bf16.msra.mxu0 %v6903
        %9773 = vmatpush.bf16.msra.mxu0 %v6899
        %9774 = vmatpush.bf16.msra.mxu0 %v6895
        %9775 = vmatpush.bf16.msra.mxu0 %v6891
        %9776 = vmatpush.bf16.msra.mxu0 %v6887
        %9777 = vmatpush.bf16.msra.mxu0 %v6883
        %9778 = vmatmul.bf16.gmra.mxu0 %v2752
        %v9779 = vpop.f32.mrf.mxu0
        %v9780 = vadd.f32 %v8932, %v9779
        %v9781 = vpop.f32.mrf.mxu0
        %9782 = vdwg.mxu0
        %9783 = vmatpush.bf16.msra.mxu0 %v6943
        %9784 = vmatpush.bf16.msra.mxu0 %v6939
        %9785 = vmatpush.bf16.msra.mxu0 %v6935
        %9786 = vmatpush.bf16.msra.mxu0 %v6931
        %9787 = vmatpush.bf16.msra.mxu0 %v6927
        %9788 = vmatpush.bf16.msra.mxu0 %v6923
        %9789 = vmatpush.bf16.msra.mxu0 %v6919
        %9790 = vmatpush.bf16.msra.mxu0 %v6915
        %9791 = vmatmul.bf16.gmra.mxu0 %v2753
        %v9792 = vpop.f32.mrf.mxu0
        %v9793 = vadd.f32 %v9780, %v9792
        %v9794 = vpop.f32.mrf.mxu0
        %9795 = vdwg.mxu0
        %9796 = vmatpush.bf16.msra.mxu0 %v6975
        %9797 = vmatpush.bf16.msra.mxu0 %v6971
        %9798 = vmatpush.bf16.msra.mxu0 %v6967
        %9799 = vmatpush.bf16.msra.mxu0 %v6963
        %9800 = vmatpush.bf16.msra.mxu0 %v6959
        %9801 = vmatpush.bf16.msra.mxu0 %v6955
        %9802 = vmatpush.bf16.msra.mxu0 %v6951
        %9803 = vmatpush.bf16.msra.mxu0 %v6947
        %9804 = vmatmul.bf16.gmra.mxu0 %v2754
        %v9805 = vpop.f32.mrf.mxu0
        %v9806 = vadd.f32 %v9793, %v9805
        %v9807 = vpop.f32.mrf.mxu0
        %9808 = vdwg.mxu0
        %9809 = vmatpush.bf16.msra.mxu0 %v7007
        %9810 = vmatpush.bf16.msra.mxu0 %v7003
        %9811 = vmatpush.bf16.msra.mxu0 %v6999
        %9812 = vmatpush.bf16.msra.mxu0 %v6995
        %9813 = vmatpush.bf16.msra.mxu0 %v6991
        %9814 = vmatpush.bf16.msra.mxu0 %v6987
        %9815 = vmatpush.bf16.msra.mxu0 %v6983
        %9816 = vmatpush.bf16.msra.mxu0 %v6979
        %9817 = vmatmul.bf16.gmra.mxu0 %v2755
        %v9818 = vpop.f32.mrf.mxu0
        %v9819 = vadd.f32 %v9806, %v9818
        %v9820 = vpop.f32.mrf.mxu0
        %9821 = vdwg.mxu0
        %9822 = vmatpush.bf16.msra.mxu0 %v7039
        %9823 = vmatpush.bf16.msra.mxu0 %v7035
        %9824 = vmatpush.bf16.msra.mxu0 %v7031
        %9825 = vmatpush.bf16.msra.mxu0 %v7027
        %9826 = vmatpush.bf16.msra.mxu0 %v7023
        %9827 = vmatpush.bf16.msra.mxu0 %v7019
        %9828 = vmatpush.bf16.msra.mxu0 %v7015
        %9829 = vmatpush.bf16.msra.mxu0 %v7011
        %9830 = vmatmul.bf16.gmra.mxu0 %v2756
        %v9831 = vpop.f32.mrf.mxu0
        %v9832 = vadd.f32 %v9819, %v9831
        %v9833 = vpop.f32.mrf.mxu0
        %9834 = vdwg.mxu0
        %9835 = vmatpush.bf16.msra.mxu0 %v7071
        %9836 = vmatpush.bf16.msra.mxu0 %v7067
        %9837 = vmatpush.bf16.msra.mxu0 %v7063
        %9838 = vmatpush.bf16.msra.mxu0 %v7059
        %9839 = vmatpush.bf16.msra.mxu0 %v7055
        %9840 = vmatpush.bf16.msra.mxu0 %v7051
        %9841 = vmatpush.bf16.msra.mxu0 %v7047
        %9842 = vmatpush.bf16.msra.mxu0 %v7043
        %9843 = vmatmul.bf16.gmra.mxu0 %v2757
        %v9844 = vpop.f32.mrf.mxu0
        %v9845 = vadd.f32 %v9832, %v9844
        %v9846 = vpop.f32.mrf.mxu0
        %9847 = vdwg.mxu0
        %9848 = vmatpush.bf16.msra.mxu0 %v7103
        %9849 = vmatpush.bf16.msra.mxu0 %v7099
        %9850 = vmatpush.bf16.msra.mxu0 %v7095
        %9851 = vmatpush.bf16.msra.mxu0 %v7091
        %9852 = vmatpush.bf16.msra.mxu0 %v7087
        %9853 = vmatpush.bf16.msra.mxu0 %v7083
        %9854 = vmatpush.bf16.msra.mxu0 %v7079
        %9855 = vmatpush.bf16.msra.mxu0 %v7075
        %9856 = vmatmul.bf16.gmra.mxu0 %v2758
        %v9857 = vpop.f32.mrf.mxu0
        %v9858 = vadd.f32 %v9845, %v9857
        %v9859 = vpop.f32.mrf.mxu0
        %9860 = vdwg.mxu0
        %9861 = vmatpush.bf16.msra.mxu0 %v7135
        %9862 = vmatpush.bf16.msra.mxu0 %v7131
        %9863 = vmatpush.bf16.msra.mxu0 %v7127
        %9864 = vmatpush.bf16.msra.mxu0 %v7123
        %9865 = vmatpush.bf16.msra.mxu0 %v7119
        %9866 = vmatpush.bf16.msra.mxu0 %v7115
        %9867 = vmatpush.bf16.msra.mxu0 %v7111
        %9868 = vmatpush.bf16.msra.mxu0 %v7107
        %9869 = vmatmul.bf16.gmra.mxu0 %v2759
        %v9870 = vpop.f32.mrf.mxu0
        %v9871 = vadd.f32 %v9858, %v9870
        %v9872 = vpop.f32.mrf.mxu0
        %9873 = vdwg.mxu0
        %9874 = vmatpush.bf16.msra.mxu0 %v7167
        %9875 = vmatpush.bf16.msra.mxu0 %v7163
        %9876 = vmatpush.bf16.msra.mxu0 %v7159
        %9877 = vmatpush.bf16.msra.mxu0 %v7155
        %9878 = vmatpush.bf16.msra.mxu0 %v7151
        %9879 = vmatpush.bf16.msra.mxu0 %v7147
        %9880 = vmatpush.bf16.msra.mxu0 %v7143
        %9881 = vmatpush.bf16.msra.mxu0 %v7139
        %9882 = vmatmul.bf16.gmra.mxu0 %v2760
        %v9883 = vpop.f32.mrf.mxu0
        %v9884 = vadd.f32 %v9871, %v9883
        %v9885 = vpop.f32.mrf.mxu0
        %9886 = vdwg.mxu0
        %9887 = vmatpush.bf16.msra.mxu0 %v7199
        %9888 = vmatpush.bf16.msra.mxu0 %v7195
        %9889 = vmatpush.bf16.msra.mxu0 %v7191
        %9890 = vmatpush.bf16.msra.mxu0 %v7187
        %9891 = vmatpush.bf16.msra.mxu0 %v7183
        %9892 = vmatpush.bf16.msra.mxu0 %v7179
        %9893 = vmatpush.bf16.msra.mxu0 %v7175
        %9894 = vmatpush.bf16.msra.mxu0 %v7171
        %9895 = vmatmul.bf16.gmra.mxu0 %v2761
        %v9896 = vpop.f32.mrf.mxu0
        %v9897 = vadd.f32 %v9884, %v9896
        %v9898 = vpop.f32.mrf.mxu0
        %9899 = vdwg.mxu0
        %9900 = vmatpush.bf16.msra.mxu0 %v7231
        %9901 = vmatpush.bf16.msra.mxu0 %v7227
        %9902 = vmatpush.bf16.msra.mxu0 %v7223
        %9903 = vmatpush.bf16.msra.mxu0 %v7219
        %9904 = vmatpush.bf16.msra.mxu0 %v7215
        %9905 = vmatpush.bf16.msra.mxu0 %v7211
        %9906 = vmatpush.bf16.msra.mxu0 %v7207
        %9907 = vmatpush.bf16.msra.mxu0 %v7203
        %9908 = vmatmul.bf16.gmra.mxu0 %v2762
        %v9909 = vpop.f32.mrf.mxu0
        %v9910 = vadd.f32 %v9897, %v9909
        %v9911 = vpop.f32.mrf.mxu0
        %9912 = vdwg.mxu0
        %9913 = vmatpush.bf16.msra.mxu0 %v7263
        %9914 = vmatpush.bf16.msra.mxu0 %v7259
        %9915 = vmatpush.bf16.msra.mxu0 %v7255
        %9916 = vmatpush.bf16.msra.mxu0 %v7251
        %9917 = vmatpush.bf16.msra.mxu0 %v7247
        %9918 = vmatpush.bf16.msra.mxu0 %v7243
        %9919 = vmatpush.bf16.msra.mxu0 %v7239
        %9920 = vmatpush.bf16.msra.mxu0 %v7235
        %9921 = vmatmul.bf16.gmra.mxu0 %v2763
        %v9922 = vpop.f32.mrf.mxu0
        %v9923 = vadd.f32 %v9910, %v9922
        %v9924 = vpop.f32.mrf.mxu0
        %9925 = vdwg.mxu0
        %9926 = vmatpush.bf16.msra.mxu0 %v7295
        %9927 = vmatpush.bf16.msra.mxu0 %v7291
        %9928 = vmatpush.bf16.msra.mxu0 %v7287
        %9929 = vmatpush.bf16.msra.mxu0 %v7283
        %9930 = vmatpush.bf16.msra.mxu0 %v7279
        %9931 = vmatpush.bf16.msra.mxu0 %v7275
        %9932 = vmatpush.bf16.msra.mxu0 %v7271
        %9933 = vmatpush.bf16.msra.mxu0 %v7267
        %9934 = vmatmul.bf16.gmra.mxu0 %v2764
        %v9935 = vpop.f32.mrf.mxu0
        %v9936 = vadd.f32 %v9923, %v9935
        %v9937 = vpop.f32.mrf.mxu0
        %9938 = vdwg.mxu0
        %9939 = vmatpush.bf16.msra.mxu0 %v7327
        %9940 = vmatpush.bf16.msra.mxu0 %v7323
        %9941 = vmatpush.bf16.msra.mxu0 %v7319
        %9942 = vmatpush.bf16.msra.mxu0 %v7315
        %9943 = vmatpush.bf16.msra.mxu0 %v7311
        %9944 = vmatpush.bf16.msra.mxu0 %v7307
        %9945 = vmatpush.bf16.msra.mxu0 %v7303
        %9946 = vmatpush.bf16.msra.mxu0 %v7299
        %9947 = vmatmul.bf16.gmra.mxu0 %v2765
        %v9948 = vpop.f32.mrf.mxu0
        %v9949 = vadd.f32 %v9936, %v9948
        %v9950 = vpop.f32.mrf.mxu0
        %9951 = vdwg.mxu0
        %9952 = vmatpush.bf16.msra.mxu0 %v7359
        %9953 = vmatpush.bf16.msra.mxu0 %v7355
        %9954 = vmatpush.bf16.msra.mxu0 %v7351
        %9955 = vmatpush.bf16.msra.mxu0 %v7347
        %9956 = vmatpush.bf16.msra.mxu0 %v7343
        %9957 = vmatpush.bf16.msra.mxu0 %v7339
        %9958 = vmatpush.bf16.msra.mxu0 %v7335
        %9959 = vmatpush.bf16.msra.mxu0 %v7331
        %9960 = vmatmul.bf16.gmra.mxu0 %v2766
        %v9961 = vpop.f32.mrf.mxu0
        %v9962 = vadd.f32 %v9949, %v9961
        %v9963 = vpop.f32.mrf.mxu0
        %9964 = vdwg.mxu0
        %9965 = vmatpush.bf16.msra.mxu0 %v7391
        %9966 = vmatpush.bf16.msra.mxu0 %v7387
        %9967 = vmatpush.bf16.msra.mxu0 %v7383
        %9968 = vmatpush.bf16.msra.mxu0 %v7379
        %9969 = vmatpush.bf16.msra.mxu0 %v7375
        %9970 = vmatpush.bf16.msra.mxu0 %v7371
        %9971 = vmatpush.bf16.msra.mxu0 %v7367
        %9972 = vmatpush.bf16.msra.mxu0 %v7363
        %9973 = vmatmul.bf16.gmra.mxu0 %v2767
        %v9974 = vpop.f32.mrf.mxu0
        %v9975 = vadd.f32 %v9962, %v9974
        %v9976 = vpop.f32.mrf.mxu0
        %9977 = vdwg.mxu0
        %9978 = vmatpush.bf16.msra.mxu0 %v7423
        %9979 = vmatpush.bf16.msra.mxu0 %v7419
        %9980 = vmatpush.bf16.msra.mxu0 %v7415
        %9981 = vmatpush.bf16.msra.mxu0 %v7411
        %9982 = vmatpush.bf16.msra.mxu0 %v7407
        %9983 = vmatpush.bf16.msra.mxu0 %v7403
        %9984 = vmatpush.bf16.msra.mxu0 %v7399
        %9985 = vmatpush.bf16.msra.mxu0 %v7395
        %9986 = vmatmul.bf16.gmra.mxu0 %v2768
        %v9987 = vpop.f32.mrf.mxu0
        %v9988 = vadd.f32 %v9975, %v9987
        %v9989 = vpop.f32.mrf.mxu0
        %9990 = vdwg.mxu0
        %9991 = vmatpush.bf16.msra.mxu0 %v7455
        %9992 = vmatpush.bf16.msra.mxu0 %v7451
        %9993 = vmatpush.bf16.msra.mxu0 %v7447
        %9994 = vmatpush.bf16.msra.mxu0 %v7443
        %9995 = vmatpush.bf16.msra.mxu0 %v7439
        %9996 = vmatpush.bf16.msra.mxu0 %v7435
        %9997 = vmatpush.bf16.msra.mxu0 %v7431
        %9998 = vmatpush.bf16.msra.mxu0 %v7427
        %9999 = vmatmul.bf16.gmra.mxu0 %v2769
        %v10000 = vpop.f32.mrf.mxu0
        %v10001 = vadd.f32 %v9988, %v10000
        %v10002 = vpop.f32.mrf.mxu0
        %10003 = vdwg.mxu0
        %10004 = vmatpush.bf16.msra.mxu0 %v7487
        %10005 = vmatpush.bf16.msra.mxu0 %v7483
        %10006 = vmatpush.bf16.msra.mxu0 %v7479
        %10007 = vmatpush.bf16.msra.mxu0 %v7475
        %10008 = vmatpush.bf16.msra.mxu0 %v7471
        %10009 = vmatpush.bf16.msra.mxu0 %v7467
        %10010 = vmatpush.bf16.msra.mxu0 %v7463
        %10011 = vmatpush.bf16.msra.mxu0 %v7459
        %10012 = vmatmul.bf16.gmra.mxu0 %v2770
        %v10013 = vpop.f32.mrf.mxu0
        %v10014 = vadd.f32 %v10001, %v10013
        %v10015 = vpop.f32.mrf.mxu0
        %10016 = vdwg.mxu0
        %10017 = vmatpush.bf16.msra.mxu0 %v7519
        %10018 = vmatpush.bf16.msra.mxu0 %v7515
        %10019 = vmatpush.bf16.msra.mxu0 %v7511
        %10020 = vmatpush.bf16.msra.mxu0 %v7507
        %10021 = vmatpush.bf16.msra.mxu0 %v7503
        %10022 = vmatpush.bf16.msra.mxu0 %v7499
        %10023 = vmatpush.bf16.msra.mxu0 %v7495
        %10024 = vmatpush.bf16.msra.mxu0 %v7491
        %10025 = vmatmul.bf16.gmra.mxu0 %v2771
        %v10026 = vpop.f32.mrf.mxu0
        %v10027 = vadd.f32 %v10014, %v10026
        %v10028 = vpop.f32.mrf.mxu0
        %10029 = vdwg.mxu0
        %10030 = vmatpush.bf16.msra.mxu0 %v7551
        %10031 = vmatpush.bf16.msra.mxu0 %v7547
        %10032 = vmatpush.bf16.msra.mxu0 %v7543
        %10033 = vmatpush.bf16.msra.mxu0 %v7539
        %10034 = vmatpush.bf16.msra.mxu0 %v7535
        %10035 = vmatpush.bf16.msra.mxu0 %v7531
        %10036 = vmatpush.bf16.msra.mxu0 %v7527
        %10037 = vmatpush.bf16.msra.mxu0 %v7523
        %10038 = vmatmul.bf16.gmra.mxu0 %v2772
        %v10039 = vpop.f32.mrf.mxu0
        %v10040 = vadd.f32 %v10027, %v10039
        %v10041 = vpop.f32.mrf.mxu0
        %10042 = vdwg.mxu0
        %10043 = vmatpush.bf16.msra.mxu0 %v7583
        %10044 = vmatpush.bf16.msra.mxu0 %v7579
        %10045 = vmatpush.bf16.msra.mxu0 %v7575
        %10046 = vmatpush.bf16.msra.mxu0 %v7571
        %10047 = vmatpush.bf16.msra.mxu0 %v7567
        %10048 = vmatpush.bf16.msra.mxu0 %v7563
        %10049 = vmatpush.bf16.msra.mxu0 %v7559
        %10050 = vmatpush.bf16.msra.mxu0 %v7555
        %10051 = vmatmul.bf16.gmra.mxu0 %v2773
        %v10052 = vpop.f32.mrf.mxu0
        %v10053 = vadd.f32 %v10040, %v10052
        %v10054 = vpop.f32.mrf.mxu0
        %10055 = vdwg.mxu0
        %10056 = vmatpush.bf16.msra.mxu0 %v7615
        %10057 = vmatpush.bf16.msra.mxu0 %v7611
        %10058 = vmatpush.bf16.msra.mxu0 %v7607
        %10059 = vmatpush.bf16.msra.mxu0 %v7603
        %10060 = vmatpush.bf16.msra.mxu0 %v7599
        %10061 = vmatpush.bf16.msra.mxu0 %v7595
        %10062 = vmatpush.bf16.msra.mxu0 %v7591
        %10063 = vmatpush.bf16.msra.mxu0 %v7587
        %10064 = vmatmul.bf16.gmra.mxu0 %v2774
        %v10065 = vpop.f32.mrf.mxu0
        %v10066 = vadd.f32 %v10053, %v10065
        %v10067 = vpop.f32.mrf.mxu0
        %10068 = vdwg.mxu0
        %10069 = vmatpush.bf16.msra.mxu0 %v7647
        %10070 = vmatpush.bf16.msra.mxu0 %v7643
        %10071 = vmatpush.bf16.msra.mxu0 %v7639
        %10072 = vmatpush.bf16.msra.mxu0 %v7635
        %10073 = vmatpush.bf16.msra.mxu0 %v7631
        %10074 = vmatpush.bf16.msra.mxu0 %v7627
        %10075 = vmatpush.bf16.msra.mxu0 %v7623
        %10076 = vmatpush.bf16.msra.mxu0 %v7619
        %10077 = vmatmul.bf16.gmra.mxu0 %v2775
        %v10078 = vpop.f32.mrf.mxu0
        %v10079 = vadd.f32 %v10066, %v10078
        %v10080 = vpop.f32.mrf.mxu0
        %10081 = vdwg.mxu0
        %10082 = vmatpush.bf16.msra.mxu0 %v7679
        %10083 = vmatpush.bf16.msra.mxu0 %v7675
        %10084 = vmatpush.bf16.msra.mxu0 %v7671
        %10085 = vmatpush.bf16.msra.mxu0 %v7667
        %10086 = vmatpush.bf16.msra.mxu0 %v7663
        %10087 = vmatpush.bf16.msra.mxu0 %v7659
        %10088 = vmatpush.bf16.msra.mxu0 %v7655
        %10089 = vmatpush.bf16.msra.mxu0 %v7651
        %10090 = vmatmul.bf16.gmra.mxu0 %v2776
        %v10091 = vpop.f32.mrf.mxu0
        %v10092 = vadd.f32 %v10079, %v10091
        %v10093 = vpop.f32.mrf.mxu0
        %10094 = vdwg.mxu0
        %10095 = vmatpush.bf16.msra.mxu0 %v7711
        %10096 = vmatpush.bf16.msra.mxu0 %v7707
        %10097 = vmatpush.bf16.msra.mxu0 %v7703
        %10098 = vmatpush.bf16.msra.mxu0 %v7699
        %10099 = vmatpush.bf16.msra.mxu0 %v7695
        %10100 = vmatpush.bf16.msra.mxu0 %v7691
        %10101 = vmatpush.bf16.msra.mxu0 %v7687
        %10102 = vmatpush.bf16.msra.mxu0 %v7683
        %10103 = vmatmul.bf16.gmra.mxu0 %v2777
        %v10104 = vpop.f32.mrf.mxu0
        %v10105 = vadd.f32 %v10092, %v10104
        %v10106 = vpop.f32.mrf.mxu0
        %10107 = vdwg.mxu0
        %10108 = vmatpush.bf16.msra.mxu0 %v7743
        %10109 = vmatpush.bf16.msra.mxu0 %v7739
        %10110 = vmatpush.bf16.msra.mxu0 %v7735
        %10111 = vmatpush.bf16.msra.mxu0 %v7731
        %10112 = vmatpush.bf16.msra.mxu0 %v7727
        %10113 = vmatpush.bf16.msra.mxu0 %v7723
        %10114 = vmatpush.bf16.msra.mxu0 %v7719
        %10115 = vmatpush.bf16.msra.mxu0 %v7715
        %10116 = vmatmul.bf16.gmra.mxu0 %v2778
        %v10117 = vpop.f32.mrf.mxu0
        %v10118 = vadd.f32 %v10105, %v10117
        %v10119 = vpop.f32.mrf.mxu0
        %10120 = vdwg.mxu0
        %10121 = vmatpush.bf16.msra.mxu0 %v7775
        %10122 = vmatpush.bf16.msra.mxu0 %v7771
        %10123 = vmatpush.bf16.msra.mxu0 %v7767
        %10124 = vmatpush.bf16.msra.mxu0 %v7763
        %10125 = vmatpush.bf16.msra.mxu0 %v7759
        %10126 = vmatpush.bf16.msra.mxu0 %v7755
        %10127 = vmatpush.bf16.msra.mxu0 %v7751
        %10128 = vmatpush.bf16.msra.mxu0 %v7747
        %10129 = vmatmul.bf16.gmra.mxu0 %v2779
        %v10130 = vpop.f32.mrf.mxu0
        %v10131 = vadd.f32 %v10118, %v10130
        %v10132 = vpop.f32.mrf.mxu0
        %10133 = vdwg.mxu0
        %10134 = vmatpush.bf16.msra.mxu0 %v7807
        %10135 = vmatpush.bf16.msra.mxu0 %v7803
        %10136 = vmatpush.bf16.msra.mxu0 %v7799
        %10137 = vmatpush.bf16.msra.mxu0 %v7795
        %10138 = vmatpush.bf16.msra.mxu0 %v7791
        %10139 = vmatpush.bf16.msra.mxu0 %v7787
        %10140 = vmatpush.bf16.msra.mxu0 %v7783
        %10141 = vmatpush.bf16.msra.mxu0 %v7779
        %10142 = vmatmul.bf16.gmra.mxu0 %v2780
        %v10143 = vpop.f32.mrf.mxu0
        %v10144 = vadd.f32 %v10131, %v10143
        %v10145 = vpop.f32.mrf.mxu0
        %10146 = vdwg.mxu0
        %10147 = vmatpush.bf16.msra.mxu0 %v7839
        %10148 = vmatpush.bf16.msra.mxu0 %v7835
        %10149 = vmatpush.bf16.msra.mxu0 %v7831
        %10150 = vmatpush.bf16.msra.mxu0 %v7827
        %10151 = vmatpush.bf16.msra.mxu0 %v7823
        %10152 = vmatpush.bf16.msra.mxu0 %v7819
        %10153 = vmatpush.bf16.msra.mxu0 %v7815
        %10154 = vmatpush.bf16.msra.mxu0 %v7811
        %10155 = vmatmul.bf16.gmra.mxu0 %v2781
        %v10156 = vpop.f32.mrf.mxu0
        %v10157 = vadd.f32 %v10144, %v10156
        %v10158 = vpop.f32.mrf.mxu0
        %10159 = vdwg.mxu0
        %10160 = vmatpush.bf16.msra.mxu0 %v7871
        %10161 = vmatpush.bf16.msra.mxu0 %v7867
        %10162 = vmatpush.bf16.msra.mxu0 %v7863
        %10163 = vmatpush.bf16.msra.mxu0 %v7859
        %10164 = vmatpush.bf16.msra.mxu0 %v7855
        %10165 = vmatpush.bf16.msra.mxu0 %v7851
        %10166 = vmatpush.bf16.msra.mxu0 %v7847
        %10167 = vmatpush.bf16.msra.mxu0 %v7843
        %10168 = vmatmul.bf16.gmra.mxu0 %v2782
        %v10169 = vpop.f32.mrf.mxu0
        %v10170 = vadd.f32 %v10157, %v10169
        %v10171 = vpop.f32.mrf.mxu0
        %10172 = vdwg.mxu0
        %10173 = vmatpush.bf16.msra.mxu0 %v7903
        %10174 = vmatpush.bf16.msra.mxu0 %v7899
        %10175 = vmatpush.bf16.msra.mxu0 %v7895
        %10176 = vmatpush.bf16.msra.mxu0 %v7891
        %10177 = vmatpush.bf16.msra.mxu0 %v7887
        %10178 = vmatpush.bf16.msra.mxu0 %v7883
        %10179 = vmatpush.bf16.msra.mxu0 %v7879
        %10180 = vmatpush.bf16.msra.mxu0 %v7875
        %10181 = vmatmul.bf16.gmra.mxu0 %v2783
        %v10182 = vpop.f32.mrf.mxu0
        %v10183 = vadd.f32 %v10170, %v10182
        %v10184 = vpop.f32.mrf.mxu0
        %10185 = vdwg.mxu0
        %10186 = vmatpush.bf16.msra.mxu0 %v6912
        %10187 = vmatpush.bf16.msra.mxu0 %v6908
        %10188 = vmatpush.bf16.msra.mxu0 %v6904
        %10189 = vmatpush.bf16.msra.mxu0 %v6900
        %10190 = vmatpush.bf16.msra.mxu0 %v6896
        %10191 = vmatpush.bf16.msra.mxu0 %v6892
        %10192 = vmatpush.bf16.msra.mxu0 %v6888
        %10193 = vmatpush.bf16.msra.mxu0 %v6884
        %10194 = vmatmul.bf16.gmra.mxu0 %v2752
        %v10195 = vpop.f32.mrf.mxu0
        %v10196 = vadd.f32 %v8933, %v10195
        %v10197 = vpop.f32.mrf.mxu0
        %10198 = vdwg.mxu0
        %10199 = vmatpush.bf16.msra.mxu0 %v6944
        %10200 = vmatpush.bf16.msra.mxu0 %v6940
        %10201 = vmatpush.bf16.msra.mxu0 %v6936
        %10202 = vmatpush.bf16.msra.mxu0 %v6932
        %10203 = vmatpush.bf16.msra.mxu0 %v6928
        %10204 = vmatpush.bf16.msra.mxu0 %v6924
        %10205 = vmatpush.bf16.msra.mxu0 %v6920
        %10206 = vmatpush.bf16.msra.mxu0 %v6916
        %10207 = vmatmul.bf16.gmra.mxu0 %v2753
        %v10208 = vpop.f32.mrf.mxu0
        %v10209 = vadd.f32 %v10196, %v10208
        %v10210 = vpop.f32.mrf.mxu0
        %10211 = vdwg.mxu0
        %10212 = vmatpush.bf16.msra.mxu0 %v6976
        %10213 = vmatpush.bf16.msra.mxu0 %v6972
        %10214 = vmatpush.bf16.msra.mxu0 %v6968
        %10215 = vmatpush.bf16.msra.mxu0 %v6964
        %10216 = vmatpush.bf16.msra.mxu0 %v6960
        %10217 = vmatpush.bf16.msra.mxu0 %v6956
        %10218 = vmatpush.bf16.msra.mxu0 %v6952
        %10219 = vmatpush.bf16.msra.mxu0 %v6948
        %10220 = vmatmul.bf16.gmra.mxu0 %v2754
        %v10221 = vpop.f32.mrf.mxu0
        %v10222 = vadd.f32 %v10209, %v10221
        %v10223 = vpop.f32.mrf.mxu0
        %10224 = vdwg.mxu0
        %10225 = vmatpush.bf16.msra.mxu0 %v7008
        %10226 = vmatpush.bf16.msra.mxu0 %v7004
        %10227 = vmatpush.bf16.msra.mxu0 %v7000
        %10228 = vmatpush.bf16.msra.mxu0 %v6996
        %10229 = vmatpush.bf16.msra.mxu0 %v6992
        %10230 = vmatpush.bf16.msra.mxu0 %v6988
        %10231 = vmatpush.bf16.msra.mxu0 %v6984
        %10232 = vmatpush.bf16.msra.mxu0 %v6980
        %10233 = vmatmul.bf16.gmra.mxu0 %v2755
        %v10234 = vpop.f32.mrf.mxu0
        %v10235 = vadd.f32 %v10222, %v10234
        %v10236 = vpop.f32.mrf.mxu0
        %10237 = vdwg.mxu0
        %10238 = vmatpush.bf16.msra.mxu0 %v7040
        %10239 = vmatpush.bf16.msra.mxu0 %v7036
        %10240 = vmatpush.bf16.msra.mxu0 %v7032
        %10241 = vmatpush.bf16.msra.mxu0 %v7028
        %10242 = vmatpush.bf16.msra.mxu0 %v7024
        %10243 = vmatpush.bf16.msra.mxu0 %v7020
        %10244 = vmatpush.bf16.msra.mxu0 %v7016
        %10245 = vmatpush.bf16.msra.mxu0 %v7012
        %10246 = vmatmul.bf16.gmra.mxu0 %v2756
        %v10247 = vpop.f32.mrf.mxu0
        %v10248 = vadd.f32 %v10235, %v10247
        %v10249 = vpop.f32.mrf.mxu0
        %10250 = vdwg.mxu0
        %10251 = vmatpush.bf16.msra.mxu0 %v7072
        %10252 = vmatpush.bf16.msra.mxu0 %v7068
        %10253 = vmatpush.bf16.msra.mxu0 %v7064
        %10254 = vmatpush.bf16.msra.mxu0 %v7060
        %10255 = vmatpush.bf16.msra.mxu0 %v7056
        %10256 = vmatpush.bf16.msra.mxu0 %v7052
        %10257 = vmatpush.bf16.msra.mxu0 %v7048
        %10258 = vmatpush.bf16.msra.mxu0 %v7044
        %10259 = vmatmul.bf16.gmra.mxu0 %v2757
        %v10260 = vpop.f32.mrf.mxu0
        %v10261 = vadd.f32 %v10248, %v10260
        %v10262 = vpop.f32.mrf.mxu0
        %10263 = vdwg.mxu0
        %10264 = vmatpush.bf16.msra.mxu0 %v7104
        %10265 = vmatpush.bf16.msra.mxu0 %v7100
        %10266 = vmatpush.bf16.msra.mxu0 %v7096
        %10267 = vmatpush.bf16.msra.mxu0 %v7092
        %10268 = vmatpush.bf16.msra.mxu0 %v7088
        %10269 = vmatpush.bf16.msra.mxu0 %v7084
        %10270 = vmatpush.bf16.msra.mxu0 %v7080
        %10271 = vmatpush.bf16.msra.mxu0 %v7076
        %10272 = vmatmul.bf16.gmra.mxu0 %v2758
        %v10273 = vpop.f32.mrf.mxu0
        %v10274 = vadd.f32 %v10261, %v10273
        %v10275 = vpop.f32.mrf.mxu0
        %10276 = vdwg.mxu0
        %10277 = vmatpush.bf16.msra.mxu0 %v7136
        %10278 = vmatpush.bf16.msra.mxu0 %v7132
        %10279 = vmatpush.bf16.msra.mxu0 %v7128
        %10280 = vmatpush.bf16.msra.mxu0 %v7124
        %10281 = vmatpush.bf16.msra.mxu0 %v7120
        %10282 = vmatpush.bf16.msra.mxu0 %v7116
        %10283 = vmatpush.bf16.msra.mxu0 %v7112
        %10284 = vmatpush.bf16.msra.mxu0 %v7108
        %10285 = vmatmul.bf16.gmra.mxu0 %v2759
        %v10286 = vpop.f32.mrf.mxu0
        %v10287 = vadd.f32 %v10274, %v10286
        %v10288 = vpop.f32.mrf.mxu0
        %10289 = vdwg.mxu0
        %10290 = vmatpush.bf16.msra.mxu0 %v7168
        %10291 = vmatpush.bf16.msra.mxu0 %v7164
        %10292 = vmatpush.bf16.msra.mxu0 %v7160
        %10293 = vmatpush.bf16.msra.mxu0 %v7156
        %10294 = vmatpush.bf16.msra.mxu0 %v7152
        %10295 = vmatpush.bf16.msra.mxu0 %v7148
        %10296 = vmatpush.bf16.msra.mxu0 %v7144
        %10297 = vmatpush.bf16.msra.mxu0 %v7140
        %10298 = vmatmul.bf16.gmra.mxu0 %v2760
        %v10299 = vpop.f32.mrf.mxu0
        %v10300 = vadd.f32 %v10287, %v10299
        %v10301 = vpop.f32.mrf.mxu0
        %10302 = vdwg.mxu0
        %10303 = vmatpush.bf16.msra.mxu0 %v7200
        %10304 = vmatpush.bf16.msra.mxu0 %v7196
        %10305 = vmatpush.bf16.msra.mxu0 %v7192
        %10306 = vmatpush.bf16.msra.mxu0 %v7188
        %10307 = vmatpush.bf16.msra.mxu0 %v7184
        %10308 = vmatpush.bf16.msra.mxu0 %v7180
        %10309 = vmatpush.bf16.msra.mxu0 %v7176
        %10310 = vmatpush.bf16.msra.mxu0 %v7172
        %10311 = vmatmul.bf16.gmra.mxu0 %v2761
        %v10312 = vpop.f32.mrf.mxu0
        %v10313 = vadd.f32 %v10300, %v10312
        %v10314 = vpop.f32.mrf.mxu0
        %10315 = vdwg.mxu0
        %10316 = vmatpush.bf16.msra.mxu0 %v7232
        %10317 = vmatpush.bf16.msra.mxu0 %v7228
        %10318 = vmatpush.bf16.msra.mxu0 %v7224
        %10319 = vmatpush.bf16.msra.mxu0 %v7220
        %10320 = vmatpush.bf16.msra.mxu0 %v7216
        %10321 = vmatpush.bf16.msra.mxu0 %v7212
        %10322 = vmatpush.bf16.msra.mxu0 %v7208
        %10323 = vmatpush.bf16.msra.mxu0 %v7204
        %10324 = vmatmul.bf16.gmra.mxu0 %v2762
        %v10325 = vpop.f32.mrf.mxu0
        %v10326 = vadd.f32 %v10313, %v10325
        %v10327 = vpop.f32.mrf.mxu0
        %10328 = vdwg.mxu0
        %10329 = vmatpush.bf16.msra.mxu0 %v7264
        %10330 = vmatpush.bf16.msra.mxu0 %v7260
        %10331 = vmatpush.bf16.msra.mxu0 %v7256
        %10332 = vmatpush.bf16.msra.mxu0 %v7252
        %10333 = vmatpush.bf16.msra.mxu0 %v7248
        %10334 = vmatpush.bf16.msra.mxu0 %v7244
        %10335 = vmatpush.bf16.msra.mxu0 %v7240
        %10336 = vmatpush.bf16.msra.mxu0 %v7236
        %10337 = vmatmul.bf16.gmra.mxu0 %v2763
        %v10338 = vpop.f32.mrf.mxu0
        %v10339 = vadd.f32 %v10326, %v10338
        %v10340 = vpop.f32.mrf.mxu0
        %10341 = vdwg.mxu0
        %10342 = vmatpush.bf16.msra.mxu0 %v7296
        %10343 = vmatpush.bf16.msra.mxu0 %v7292
        %10344 = vmatpush.bf16.msra.mxu0 %v7288
        %10345 = vmatpush.bf16.msra.mxu0 %v7284
        %10346 = vmatpush.bf16.msra.mxu0 %v7280
        %10347 = vmatpush.bf16.msra.mxu0 %v7276
        %10348 = vmatpush.bf16.msra.mxu0 %v7272
        %10349 = vmatpush.bf16.msra.mxu0 %v7268
        %10350 = vmatmul.bf16.gmra.mxu0 %v2764
        %v10351 = vpop.f32.mrf.mxu0
        %v10352 = vadd.f32 %v10339, %v10351
        %v10353 = vpop.f32.mrf.mxu0
        %10354 = vdwg.mxu0
        %10355 = vmatpush.bf16.msra.mxu0 %v7328
        %10356 = vmatpush.bf16.msra.mxu0 %v7324
        %10357 = vmatpush.bf16.msra.mxu0 %v7320
        %10358 = vmatpush.bf16.msra.mxu0 %v7316
        %10359 = vmatpush.bf16.msra.mxu0 %v7312
        %10360 = vmatpush.bf16.msra.mxu0 %v7308
        %10361 = vmatpush.bf16.msra.mxu0 %v7304
        %10362 = vmatpush.bf16.msra.mxu0 %v7300
        %10363 = vmatmul.bf16.gmra.mxu0 %v2765
        %v10364 = vpop.f32.mrf.mxu0
        %v10365 = vadd.f32 %v10352, %v10364
        %v10366 = vpop.f32.mrf.mxu0
        %10367 = vdwg.mxu0
        %10368 = vmatpush.bf16.msra.mxu0 %v7360
        %10369 = vmatpush.bf16.msra.mxu0 %v7356
        %10370 = vmatpush.bf16.msra.mxu0 %v7352
        %10371 = vmatpush.bf16.msra.mxu0 %v7348
        %10372 = vmatpush.bf16.msra.mxu0 %v7344
        %10373 = vmatpush.bf16.msra.mxu0 %v7340
        %10374 = vmatpush.bf16.msra.mxu0 %v7336
        %10375 = vmatpush.bf16.msra.mxu0 %v7332
        %10376 = vmatmul.bf16.gmra.mxu0 %v2766
        %v10377 = vpop.f32.mrf.mxu0
        %v10378 = vadd.f32 %v10365, %v10377
        %v10379 = vpop.f32.mrf.mxu0
        %10380 = vdwg.mxu0
        %10381 = vmatpush.bf16.msra.mxu0 %v7392
        %10382 = vmatpush.bf16.msra.mxu0 %v7388
        %10383 = vmatpush.bf16.msra.mxu0 %v7384
        %10384 = vmatpush.bf16.msra.mxu0 %v7380
        %10385 = vmatpush.bf16.msra.mxu0 %v7376
        %10386 = vmatpush.bf16.msra.mxu0 %v7372
        %10387 = vmatpush.bf16.msra.mxu0 %v7368
        %10388 = vmatpush.bf16.msra.mxu0 %v7364
        %10389 = vmatmul.bf16.gmra.mxu0 %v2767
        %v10390 = vpop.f32.mrf.mxu0
        %v10391 = vadd.f32 %v10378, %v10390
        %v10392 = vpop.f32.mrf.mxu0
        %10393 = vdwg.mxu0
        %10394 = vmatpush.bf16.msra.mxu0 %v7424
        %10395 = vmatpush.bf16.msra.mxu0 %v7420
        %10396 = vmatpush.bf16.msra.mxu0 %v7416
        %10397 = vmatpush.bf16.msra.mxu0 %v7412
        %10398 = vmatpush.bf16.msra.mxu0 %v7408
        %10399 = vmatpush.bf16.msra.mxu0 %v7404
        %10400 = vmatpush.bf16.msra.mxu0 %v7400
        %10401 = vmatpush.bf16.msra.mxu0 %v7396
        %10402 = vmatmul.bf16.gmra.mxu0 %v2768
        %v10403 = vpop.f32.mrf.mxu0
        %v10404 = vadd.f32 %v10391, %v10403
        %v10405 = vpop.f32.mrf.mxu0
        %10406 = vdwg.mxu0
        %10407 = vmatpush.bf16.msra.mxu0 %v7456
        %10408 = vmatpush.bf16.msra.mxu0 %v7452
        %10409 = vmatpush.bf16.msra.mxu0 %v7448
        %10410 = vmatpush.bf16.msra.mxu0 %v7444
        %10411 = vmatpush.bf16.msra.mxu0 %v7440
        %10412 = vmatpush.bf16.msra.mxu0 %v7436
        %10413 = vmatpush.bf16.msra.mxu0 %v7432
        %10414 = vmatpush.bf16.msra.mxu0 %v7428
        %10415 = vmatmul.bf16.gmra.mxu0 %v2769
        %v10416 = vpop.f32.mrf.mxu0
        %v10417 = vadd.f32 %v10404, %v10416
        %v10418 = vpop.f32.mrf.mxu0
        %10419 = vdwg.mxu0
        %10420 = vmatpush.bf16.msra.mxu0 %v7488
        %10421 = vmatpush.bf16.msra.mxu0 %v7484
        %10422 = vmatpush.bf16.msra.mxu0 %v7480
        %10423 = vmatpush.bf16.msra.mxu0 %v7476
        %10424 = vmatpush.bf16.msra.mxu0 %v7472
        %10425 = vmatpush.bf16.msra.mxu0 %v7468
        %10426 = vmatpush.bf16.msra.mxu0 %v7464
        %10427 = vmatpush.bf16.msra.mxu0 %v7460
        %10428 = vmatmul.bf16.gmra.mxu0 %v2770
        %v10429 = vpop.f32.mrf.mxu0
        %v10430 = vadd.f32 %v10417, %v10429
        %v10431 = vpop.f32.mrf.mxu0
        %10432 = vdwg.mxu0
        %10433 = vmatpush.bf16.msra.mxu0 %v7520
        %10434 = vmatpush.bf16.msra.mxu0 %v7516
        %10435 = vmatpush.bf16.msra.mxu0 %v7512
        %10436 = vmatpush.bf16.msra.mxu0 %v7508
        %10437 = vmatpush.bf16.msra.mxu0 %v7504
        %10438 = vmatpush.bf16.msra.mxu0 %v7500
        %10439 = vmatpush.bf16.msra.mxu0 %v7496
        %10440 = vmatpush.bf16.msra.mxu0 %v7492
        %10441 = vmatmul.bf16.gmra.mxu0 %v2771
        %v10442 = vpop.f32.mrf.mxu0
        %v10443 = vadd.f32 %v10430, %v10442
        %v10444 = vpop.f32.mrf.mxu0
        %10445 = vdwg.mxu0
        %10446 = vmatpush.bf16.msra.mxu0 %v7552
        %10447 = vmatpush.bf16.msra.mxu0 %v7548
        %10448 = vmatpush.bf16.msra.mxu0 %v7544
        %10449 = vmatpush.bf16.msra.mxu0 %v7540
        %10450 = vmatpush.bf16.msra.mxu0 %v7536
        %10451 = vmatpush.bf16.msra.mxu0 %v7532
        %10452 = vmatpush.bf16.msra.mxu0 %v7528
        %10453 = vmatpush.bf16.msra.mxu0 %v7524
        %10454 = vmatmul.bf16.gmra.mxu0 %v2772
        %v10455 = vpop.f32.mrf.mxu0
        %v10456 = vadd.f32 %v10443, %v10455
        %v10457 = vpop.f32.mrf.mxu0
        %10458 = vdwg.mxu0
        %10459 = vmatpush.bf16.msra.mxu0 %v7584
        %10460 = vmatpush.bf16.msra.mxu0 %v7580
        %10461 = vmatpush.bf16.msra.mxu0 %v7576
        %10462 = vmatpush.bf16.msra.mxu0 %v7572
        %10463 = vmatpush.bf16.msra.mxu0 %v7568
        %10464 = vmatpush.bf16.msra.mxu0 %v7564
        %10465 = vmatpush.bf16.msra.mxu0 %v7560
        %10466 = vmatpush.bf16.msra.mxu0 %v7556
        %10467 = vmatmul.bf16.gmra.mxu0 %v2773
        %v10468 = vpop.f32.mrf.mxu0
        %v10469 = vadd.f32 %v10456, %v10468
        %v10470 = vpop.f32.mrf.mxu0
        %10471 = vdwg.mxu0
        %10472 = vmatpush.bf16.msra.mxu0 %v7616
        %10473 = vmatpush.bf16.msra.mxu0 %v7612
        %10474 = vmatpush.bf16.msra.mxu0 %v7608
        %10475 = vmatpush.bf16.msra.mxu0 %v7604
        %10476 = vmatpush.bf16.msra.mxu0 %v7600
        %10477 = vmatpush.bf16.msra.mxu0 %v7596
        %10478 = vmatpush.bf16.msra.mxu0 %v7592
        %10479 = vmatpush.bf16.msra.mxu0 %v7588
        %10480 = vmatmul.bf16.gmra.mxu0 %v2774
        %v10481 = vpop.f32.mrf.mxu0
        %v10482 = vadd.f32 %v10469, %v10481
        %v10483 = vpop.f32.mrf.mxu0
        %10484 = vdwg.mxu0
        %10485 = vmatpush.bf16.msra.mxu0 %v7648
        %10486 = vmatpush.bf16.msra.mxu0 %v7644
        %10487 = vmatpush.bf16.msra.mxu0 %v7640
        %10488 = vmatpush.bf16.msra.mxu0 %v7636
        %10489 = vmatpush.bf16.msra.mxu0 %v7632
        %10490 = vmatpush.bf16.msra.mxu0 %v7628
        %10491 = vmatpush.bf16.msra.mxu0 %v7624
        %10492 = vmatpush.bf16.msra.mxu0 %v7620
        %10493 = vmatmul.bf16.gmra.mxu0 %v2775
        %v10494 = vpop.f32.mrf.mxu0
        %v10495 = vadd.f32 %v10482, %v10494
        %v10496 = vpop.f32.mrf.mxu0
        %10497 = vdwg.mxu0
        %10498 = vmatpush.bf16.msra.mxu0 %v7680
        %10499 = vmatpush.bf16.msra.mxu0 %v7676
        %10500 = vmatpush.bf16.msra.mxu0 %v7672
        %10501 = vmatpush.bf16.msra.mxu0 %v7668
        %10502 = vmatpush.bf16.msra.mxu0 %v7664
        %10503 = vmatpush.bf16.msra.mxu0 %v7660
        %10504 = vmatpush.bf16.msra.mxu0 %v7656
        %10505 = vmatpush.bf16.msra.mxu0 %v7652
        %10506 = vmatmul.bf16.gmra.mxu0 %v2776
        %v10507 = vpop.f32.mrf.mxu0
        %v10508 = vadd.f32 %v10495, %v10507
        %v10509 = vpop.f32.mrf.mxu0
        %10510 = vdwg.mxu0
        %10511 = vmatpush.bf16.msra.mxu0 %v7712
        %10512 = vmatpush.bf16.msra.mxu0 %v7708
        %10513 = vmatpush.bf16.msra.mxu0 %v7704
        %10514 = vmatpush.bf16.msra.mxu0 %v7700
        %10515 = vmatpush.bf16.msra.mxu0 %v7696
        %10516 = vmatpush.bf16.msra.mxu0 %v7692
        %10517 = vmatpush.bf16.msra.mxu0 %v7688
        %10518 = vmatpush.bf16.msra.mxu0 %v7684
        %10519 = vmatmul.bf16.gmra.mxu0 %v2777
        %v10520 = vpop.f32.mrf.mxu0
        %v10521 = vadd.f32 %v10508, %v10520
        %v10522 = vpop.f32.mrf.mxu0
        %10523 = vdwg.mxu0
        %10524 = vmatpush.bf16.msra.mxu0 %v7744
        %10525 = vmatpush.bf16.msra.mxu0 %v7740
        %10526 = vmatpush.bf16.msra.mxu0 %v7736
        %10527 = vmatpush.bf16.msra.mxu0 %v7732
        %10528 = vmatpush.bf16.msra.mxu0 %v7728
        %10529 = vmatpush.bf16.msra.mxu0 %v7724
        %10530 = vmatpush.bf16.msra.mxu0 %v7720
        %10531 = vmatpush.bf16.msra.mxu0 %v7716
        %10532 = vmatmul.bf16.gmra.mxu0 %v2778
        %v10533 = vpop.f32.mrf.mxu0
        %v10534 = vadd.f32 %v10521, %v10533
        %v10535 = vpop.f32.mrf.mxu0
        %10536 = vdwg.mxu0
        %10537 = vmatpush.bf16.msra.mxu0 %v7776
        %10538 = vmatpush.bf16.msra.mxu0 %v7772
        %10539 = vmatpush.bf16.msra.mxu0 %v7768
        %10540 = vmatpush.bf16.msra.mxu0 %v7764
        %10541 = vmatpush.bf16.msra.mxu0 %v7760
        %10542 = vmatpush.bf16.msra.mxu0 %v7756
        %10543 = vmatpush.bf16.msra.mxu0 %v7752
        %10544 = vmatpush.bf16.msra.mxu0 %v7748
        %10545 = vmatmul.bf16.gmra.mxu0 %v2779
        %v10546 = vpop.f32.mrf.mxu0
        %v10547 = vadd.f32 %v10534, %v10546
        %v10548 = vpop.f32.mrf.mxu0
        %10549 = vdwg.mxu0
        %10550 = vmatpush.bf16.msra.mxu0 %v7808
        %10551 = vmatpush.bf16.msra.mxu0 %v7804
        %10552 = vmatpush.bf16.msra.mxu0 %v7800
        %10553 = vmatpush.bf16.msra.mxu0 %v7796
        %10554 = vmatpush.bf16.msra.mxu0 %v7792
        %10555 = vmatpush.bf16.msra.mxu0 %v7788
        %10556 = vmatpush.bf16.msra.mxu0 %v7784
        %10557 = vmatpush.bf16.msra.mxu0 %v7780
        %10558 = vmatmul.bf16.gmra.mxu0 %v2780
        %v10559 = vpop.f32.mrf.mxu0
        %v10560 = vadd.f32 %v10547, %v10559
        %v10561 = vpop.f32.mrf.mxu0
        %10562 = vdwg.mxu0
        %10563 = vmatpush.bf16.msra.mxu0 %v7840
        %10564 = vmatpush.bf16.msra.mxu0 %v7836
        %10565 = vmatpush.bf16.msra.mxu0 %v7832
        %10566 = vmatpush.bf16.msra.mxu0 %v7828
        %10567 = vmatpush.bf16.msra.mxu0 %v7824
        %10568 = vmatpush.bf16.msra.mxu0 %v7820
        %10569 = vmatpush.bf16.msra.mxu0 %v7816
        %10570 = vmatpush.bf16.msra.mxu0 %v7812
        %10571 = vmatmul.bf16.gmra.mxu0 %v2781
        %v10572 = vpop.f32.mrf.mxu0
        %v10573 = vadd.f32 %v10560, %v10572
        %v10574 = vpop.f32.mrf.mxu0
        %10575 = vdwg.mxu0
        %10576 = vmatpush.bf16.msra.mxu0 %v7872
        %10577 = vmatpush.bf16.msra.mxu0 %v7868
        %10578 = vmatpush.bf16.msra.mxu0 %v7864
        %10579 = vmatpush.bf16.msra.mxu0 %v7860
        %10580 = vmatpush.bf16.msra.mxu0 %v7856
        %10581 = vmatpush.bf16.msra.mxu0 %v7852
        %10582 = vmatpush.bf16.msra.mxu0 %v7848
        %10583 = vmatpush.bf16.msra.mxu0 %v7844
        %10584 = vmatmul.bf16.gmra.mxu0 %v2782
        %v10585 = vpop.f32.mrf.mxu0
        %v10586 = vadd.f32 %v10573, %v10585
        %v10587 = vpop.f32.mrf.mxu0
        %10588 = vdwg.mxu0
        %10589 = vmatpush.bf16.msra.mxu0 %v7904
        %10590 = vmatpush.bf16.msra.mxu0 %v7900
        %10591 = vmatpush.bf16.msra.mxu0 %v7896
        %10592 = vmatpush.bf16.msra.mxu0 %v7892
        %10593 = vmatpush.bf16.msra.mxu0 %v7888
        %10594 = vmatpush.bf16.msra.mxu0 %v7884
        %10595 = vmatpush.bf16.msra.mxu0 %v7880
        %10596 = vmatpush.bf16.msra.mxu0 %v7876
        %10597 = vmatmul.bf16.gmra.mxu0 %v2783
        %v10598 = vpop.f32.mrf.mxu0
        %v10599 = vadd.f32 %v10586, %v10598
        %v10600 = vpop.f32.mrf.mxu0
        %10601 = vdwg.mxu0
        %v10602 = vmax.f32 %v9351, 0.0
        %v10603 = vmax.f32 %v9767, 0.0
        %v10604 = vmax.f32 %v10183, 0.0
        %v10605 = vmax.f32 %v10599, 0.0
        %v10606 = vld [vmem:[%s7] sm:$0xff]
        %v10607 = vld [vmem:[%s7 + $0x8] sm:$0xff]
        %v10608 = vld [vmem:[%s7 + $0x10] sm:$0xff]
        %v10609 = vld [vmem:[%s7 + $0x18] sm:$0xff]
        %v10610 = vld [vmem:[%s7 + $0x20] sm:$0xff]
        %v10611 = vld [vmem:[%s7 + $0x28] sm:$0xff]
        %v10612 = vld [vmem:[%s7 + $0x30] sm:$0xff]
        %v10613 = vld [vmem:[%s7 + $0x38] sm:$0xff]
        %v10614 = vld [vmem:[%s7 + $0x40] sm:$0xff]
        %v10615 = vld [vmem:[%s7 + $0x48] sm:$0xff]
        %v10616 = vld [vmem:[%s7 + $0x50] sm:$0xff]
        %v10617 = vld [vmem:[%s7 + $0x58] sm:$0xff]
        %v10618 = vld [vmem:[%s7 + $0x60] sm:$0xff]
        %v10619 = vld [vmem:[%s7 + $0x68] sm:$0xff]
        %v10620 = vld [vmem:[%s7 + $0x70] sm:$0xff]
        %v10621 = vld [vmem:[%s7 + $0x78] sm:$0xff]
        %v10622 = vld [vmem:[%s7 + $0x80] sm:$0xff]
        %v10623 = vld [vmem:[%s7 + $0x88] sm:$0xff]
        %v10624 = vld [vmem:[%s7 + $0x90] sm:$0xff]
        %v10625 = vld [vmem:[%s7 + $0x98] sm:$0xff]
        %v10626 = vld [vmem:[%s7 + $0xa0] sm:$0xff]
        %v10627 = vld [vmem:[%s7 + $0xa8] sm:$0xff]
        %v10628 = vld [vmem:[%s7 + $0xb0] sm:$0xff]
        %v10629 = vld [vmem:[%s7 + $0xb8] sm:$0xff]
        %v10630 = vld [vmem:[%s7 + $0xc0] sm:$0xff]
        %v10631 = vld [vmem:[%s7 + $0xc8] sm:$0xff]
        %v10632 = vld [vmem:[%s7 + $0xd0] sm:$0xff]
        %v10633 = vld [vmem:[%s7 + $0xd8] sm:$0xff]
        %v10634 = vld [vmem:[%s7 + $0xe0] sm:$0xff]
        %v10635 = vld [vmem:[%s7 + $0xe8] sm:$0xff]
        %v10636 = vld [vmem:[%s7 + $0xf0] sm:$0xff]
        %v10637 = vld [vmem:[%s7 + $0xf8] sm:$0xff]
        %v10638 = vld [vmem:[%s7 + $0x100] sm:$0xff]
        %v10639 = vld [vmem:[%s7 + $0x108] sm:$0xff]
        %v10640 = vld [vmem:[%s7 + $0x110] sm:$0xff]
        %v10641 = vld [vmem:[%s7 + $0x118] sm:$0xff]
        %v10642 = vld [vmem:[%s7 + $0x120] sm:$0xff]
        %v10643 = vld [vmem:[%s7 + $0x128] sm:$0xff]
        %v10644 = vld [vmem:[%s7 + $0x130] sm:$0xff]
        %v10645 = vld [vmem:[%s7 + $0x138] sm:$0xff]
        %v10646 = vld [vmem:[%s7 + $0x140] sm:$0xff]
        %v10647 = vld [vmem:[%s7 + $0x148] sm:$0xff]
        %v10648 = vld [vmem:[%s7 + $0x150] sm:$0xff]
        %v10649 = vld [vmem:[%s7 + $0x158] sm:$0xff]
        %v10650 = vld [vmem:[%s7 + $0x160] sm:$0xff]
        %v10651 = vld [vmem:[%s7 + $0x168] sm:$0xff]
        %v10652 = vld [vmem:[%s7 + $0x170] sm:$0xff]
        %v10653 = vld [vmem:[%s7 + $0x178] sm:$0xff]
        %v10654 = vld [vmem:[%s7 + $0x180] sm:$0xff]
        %v10655 = vld [vmem:[%s7 + $0x188] sm:$0xff]
        %v10656 = vld [vmem:[%s7 + $0x190] sm:$0xff]
        %v10657 = vld [vmem:[%s7 + $0x198] sm:$0xff]
        %v10658 = vld [vmem:[%s7 + $0x1a0] sm:$0xff]
        %v10659 = vld [vmem:[%s7 + $0x1a8] sm:$0xff]
        %v10660 = vld [vmem:[%s7 + $0x1b0] sm:$0xff]
        %v10661 = vld [vmem:[%s7 + $0x1b8] sm:$0xff]
        %v10662 = vld [vmem:[%s7 + $0x1c0] sm:$0xff]
        %v10663 = vld [vmem:[%s7 + $0x1c8] sm:$0xff]
        %v10664 = vld [vmem:[%s7 + $0x1d0] sm:$0xff]
        %v10665 = vld [vmem:[%s7 + $0x1d8] sm:$0xff]
        %v10666 = vld [vmem:[%s7 + $0x1e0] sm:$0xff]
        %v10667 = vld [vmem:[%s7 + $0x1e8] sm:$0xff]
        %v10668 = vld [vmem:[%s7 + $0x1f0] sm:$0xff]
        %v10669 = vld [vmem:[%s7 + $0x1f8] sm:$0xff]
        %v10670 = vld [vmem:[%s8] sm:$0x1]
        %10671 = vmatpush.msra.mxu0 %v10621
        %10672 = vmatpush.msra.mxu0 %v10620
        %10673 = vmatpush.msra.mxu0 %v10619
        %10674 = vmatpush.msra.mxu0 %v10618
        %10675 = vmatpush.msra.mxu0 %v10617
        %10676 = vmatpush.msra.mxu0 %v10616
        %10677 = vmatpush.msra.mxu0 %v10615
        %10678 = vmatpush.msra.mxu0 %v10614
        %10679 = vmatpush.msra.mxu0 %v10613
        %10680 = vmatpush.msra.mxu0 %v10612
        %10681 = vmatpush.msra.mxu0 %v10611
        %10682 = vmatpush.msra.mxu0 %v10610
        %10683 = vmatpush.msra.mxu0 %v10609
        %10684 = vmatpush.msra.mxu0 %v10608
        %10685 = vmatpush.msra.mxu0 %v10607
        %10686 = vmatpush.msra.mxu0 %v10606
        %10687 = vmatmul.f32.gmra.mxu0 %v10602
        %v10688 = vpop.f32.mrf.mxu0
        %v10689 = vadd.f32 %v10670, %v10688
        %10690 = vdwg.mxu0
        %10691 = vmatpush.msra.mxu0 %v10637
        %10692 = vmatpush.msra.mxu0 %v10636
        %10693 = vmatpush.msra.mxu0 %v10635
        %10694 = vmatpush.msra.mxu0 %v10634
        %10695 = vmatpush.msra.mxu0 %v10633
        %10696 = vmatpush.msra.mxu0 %v10632
        %10697 = vmatpush.msra.mxu0 %v10631
        %10698 = vmatpush.msra.mxu0 %v10630
        %10699 = vmatpush.msra.mxu0 %v10629
        %10700 = vmatpush.msra.mxu0 %v10628
        %10701 = vmatpush.msra.mxu0 %v10627
        %10702 = vmatpush.msra.mxu0 %v10626
        %10703 = vmatpush.msra.mxu0 %v10625
        %10704 = vmatpush.msra.mxu0 %v10624
        %10705 = vmatpush.msra.mxu0 %v10623
        %10706 = vmatpush.msra.mxu0 %v10622
        %10707 = vmatmul.f32.gmra.mxu0 %v10603
        %v10708 = vpop.f32.mrf.mxu0
        %v10709 = vadd.f32 %v10689, %v10708
        %10710 = vdwg.mxu0
        %10711 = vmatpush.msra.mxu0 %v10653
        %10712 = vmatpush.msra.mxu0 %v10652
        %10713 = vmatpush.msra.mxu0 %v10651
        %10714 = vmatpush.msra.mxu0 %v10650
        %10715 = vmatpush.msra.mxu0 %v10649
        %10716 = vmatpush.msra.mxu0 %v10648
        %10717 = vmatpush.msra.mxu0 %v10647
        %10718 = vmatpush.msra.mxu0 %v10646
        %10719 = vmatpush.msra.mxu0 %v10645
        %10720 = vmatpush.msra.mxu0 %v10644
        %10721 = vmatpush.msra.mxu0 %v10643
        %10722 = vmatpush.msra.mxu0 %v10642
        %10723 = vmatpush.msra.mxu0 %v10641
        %10724 = vmatpush.msra.mxu0 %v10640
        %10725 = vmatpush.msra.mxu0 %v10639
        %10726 = vmatpush.msra.mxu0 %v10638
        %10727 = vmatmul.f32.gmra.mxu0 %v10604
        %v10728 = vpop.f32.mrf.mxu0
        %v10729 = vadd.f32 %v10709, %v10728
        %10730 = vdwg.mxu0
        %10731 = vmatpush.msra.mxu0 %v10669
        %10732 = vmatpush.msra.mxu0 %v10668
        %10733 = vmatpush.msra.mxu0 %v10667
        %10734 = vmatpush.msra.mxu0 %v10666
        %10735 = vmatpush.msra.mxu0 %v10665
        %10736 = vmatpush.msra.mxu0 %v10664
        %10737 = vmatpush.msra.mxu0 %v10663
        %10738 = vmatpush.msra.mxu0 %v10662
        %10739 = vmatpush.msra.mxu0 %v10661
        %10740 = vmatpush.msra.mxu0 %v10660
        %10741 = vmatpush.msra.mxu0 %v10659
        %10742 = vmatpush.msra.mxu0 %v10658
        %10743 = vmatpush.msra.mxu0 %v10657
        %10744 = vmatpush.msra.mxu0 %v10656
        %10745 = vmatpush.msra.mxu0 %v10655
        %10746 = vmatpush.msra.mxu0 %v10654
        %10747 = vmatmul.f32.gmra.mxu0 %v10605
        %v10748 = vpop.f32.mrf.mxu0
        %v10749 = vadd.f32 %v10729, %v10748
        %10750 = vdwg.mxu0
        %vm10751 = vcmask 40960
        %v10752 = vsel %vm10751, %v10749, 0.0
        %10753 = vadd.xlane.f32.xlu0 %v10752
        %v10754 = vpop.xlane.xlu0 %10753
        %v10755 = vrcp.pop 6.0
        %v10756 = vmul.f32 6.0, %v10755
        %v10757 = vsub.f32 1.0, %v10756
        %v10758 = vmul.f32 %v10755, %v10757
        %v10759 = vadd.f32 %v10755, %v10758
        %vm10760 = vweird.f32 %v10755
        %v10761 = vsel %vm10760, %v10755, %v10759
        %v10762 = vmul.f32 %v10754, %v10761
        %v10763 = vsub.f32 %v10749, %v10762
        %10765 = vset.pattern.permute.xlu0 6
        %10766 = vperm.xlu0 %10765, %v10749
        %v10767 = vpop.permute.xlu0 %10766
        %v10769 = vadd.f32 %v10767, %v10763
        %10770 = vst.msk [vmem:[%s324] sm:$0x1] %vm10751, %v10769
        %s10771 = sand.u32 %s225, 1
        %s10772 = scalar_lea.sflag [#allocation5], %s10771
        %s10773 = sand.u32 %s225, 1
        %s10774 = scalar_lea.vmem [#allocation4], %s10773
        // Predicated region
        $region57: #{net_forward.1} parent=55 // pred_check
          %p10775 = pneg %p235
        $region58: #{net_forward.1} parent=55 // pred_check_branch
          %10777 = sbr.rel (%p10775) target = $region60
        $region59: #{net_forward.1} parent=55 // pred_region
          %10779 = vsyncadd %s10772, 0
          %s10780 = scalar_lea.hbm %s9, %s23
          %s10782 = sshll.u32 %s10774, 4
          %s10783 = int_to_ptr.vmem [resolvable:$true] %s10782
          %s10784 = sshll.u32 %s10780, 4
          %s10785 = int_to_ptr.hbm [resolvable:$true] %s10784
          %10787 = dma.vmem_to_hbm [thread:$0]  %s10783, 16, %s10785, %s10772
        $region60: #{net_forward.1} parent=55 // pred_fallthru
          _
      $region56: #{net_forward.1} parent=5 // pred_fallthru
        _
      %p10788 = scmp.le.s32.totalorder 2, %s18
      // Predicated region
      $region61: #{net_forward.1} parent=5 // pred_check
        %p10789 = pneg %p10788
      $region62: #{net_forward.1} parent=5 // pred_check_branch
        %10791 = sbr.rel (%p10789) target = $region64
      $region63: #{net_forward.1} parent=5 // pred_region
        %s10792 = ssub.s32 %s18, 2
        // Predicated region
        $region65: #{net_forward.1} parent=63 // pred_check
          %p10793 = pneg %p241
        $region66: #{net_forward.1} parent=63 // pred_check_branch
          %10795 = sbr.rel (%p10793) target = $region68
        $region67: #{net_forward.1} parent=63 // pred_region
          %s10796 = sand.u32 %s226, 1
          %s10797 = scalar_lea.sflag [#allocation5], %s10796
          %s10798 = sand.u32 %s226, 1
          %s10799 = scalar_lea.vmem [#allocation4], %s10798
          %10801 = dma.done %s10797, 16
        $region68: #{net_forward.1} parent=63 // pred_fallthru
          _
      $region64: #{net_forward.1} parent=5 // pred_fallthru
        _
    $region6: #{net_forward.1} parent=1 // loop_footer
      %s22 = sadd.s32 1, %s18
    $region7: #{net_forward.1} parent=1 // loop_footer_branch
      %17 = sbr.rel target = $region3
    $region8: #{net_forward.1} parent=1 // loop_exit
      _
    %10802 = vsyncpa [#allocation5], 1
    %s10803 = scalar_lea.sflag [#allocation5], 1
    %10804 = vsyncpa %s10803, 1

</llo_original>
